<compile_context>
chip_gen: v6e
topology: v6e:2x2x1
jax: 0.10.0
libtpu: 0.0.40
codegen_flags: <defaults>
</compile_context>

<pallas_src>
import numpy as np

import jax
import jax.numpy as jnp
from jax import lax
from jax.experimental import pallas as pl
from jax.experimental.pallas import tpu as pltpu


C1P = 32                 # conv1 out channels 20 -> 32 (lane sub-block)
C2P = 64                 # conv2 out channels 50 -> 64
N1 = 2 * 6 * C1P         # 384 = conv1 output lanes per pool-column offset (rw, w2, c)
N2 = 4 * C2P             # 256 = conv2 output lanes per pool-column offset (ow, co)
F1P = 512                # fc1 out features 500 -> 512
NOUTP = 128              # logits padded to a lane-dense store
H2P = 8                  # conv1 pooled-output H phase extent, padded 6 -> 8

_VMEM_LIMIT = 48 * 1024 * 1024


def _round_up(x, m):
    return (x + m - 1) // m * m


# ------------------------------ Pallas kernel -------------------------------


def _lenet_kernel(x_ref, w1_ref, b1_ref, w2_ref, b2_ref,
                  wf1_ref, bf1_ref, wf2_ref, bf2_ref, out_ref):
    f32 = jnp.float32
    bf16 = jnp.bfloat16
    bt = x_ref.shape[0]

    # ---------------- conv1(5x5) + bias + ReLU + 2x2 max-pool ----------------
    # 5 W-banded matmuls (one per kernel row ki): the 5-wide column window and
    # the pool column offset pj live inside the host-packed weight w1_ref.
    # LHS rows = (pi, rh, n, h2): pool row offset pi (max-reduced below),
    # output H phase rh, batch n, phase position h2 (6 real rows padded to 8).
    acc1 = None
    for ki in range(5):
        blocks = []
        for pi in range(2):
            for rh in range(2):
                e = 2 * rh + pi + ki                       # x row = 4*h2 + e
                blocks.append(x_ref[:, e % 4, e // 4:e // 4 + H2P, :])  # (bt,8,28)
        lhs = jnp.stack(blocks, axis=0).reshape(4 * bt * H2P, 28)
        part = jnp.dot(lhs, w1_ref[ki], preferred_element_type=f32)
        acc1 = part if acc1 is None else acc1 + part       # (4*bt*8, 768)
    half = 2 * bt * H2P
    z1 = jnp.maximum(acc1[:half], acc1[half:])             # pool over row offset pi
    z1 = jnp.maximum(z1[:, :N1], z1[:, N1:])               # pool over col offset pj
    y1 = jnp.maximum(z1 + b1_ref[...], 0.0)                # bias + ReLU (pooled)
    y1 = y1.reshape(2, bt, H2P, N1).astype(bf16)           # (rh, n, h2, (rw,w2,c))

    # ---------------- conv2(5x5) + bias + ReLU + 2x2 max-pool ----------------
    # Same banded trick one level up; y1 stays VMEM-resident (no HBM im2col).
    # Pool row offset qi is resolved by slicing the matmul output rows.
    acc_q = [None, None]
    for ki in range(5):
        lhs = jnp.stack([y1[ki % 2], y1[(ki + 1) % 2]], axis=0)   # (2, bt, 8, 384)
        lhs = lhs.reshape(2 * bt * H2P, N1)
        z = jnp.dot(lhs, w2_ref[ki], preferred_element_type=f32)  # (2*bt*8, 512)
        z = z.reshape(2, bt, H2P, 2 * N2)                         # (qi, n, h2, (qj,ow,co))
        for qi in range(2):
            s = (qi + ki) // 2
            part = z[qi, :, s:s + 4, :]                           # rows oh = h2 - s
            acc_q[qi] = part if acc_q[qi] is None else acc_q[qi] + part
    z2 = jnp.maximum(acc_q[0], acc_q[1])                          # pool over qi
    z2 = jnp.maximum(z2[..., :N2], z2[..., N2:])                  # pool over qj
    y2 = jnp.maximum(z2 + b2_ref[...], 0.0).astype(bf16)          # (bt, 4, (ow, co))

    # ------------------------- fc1 + ReLU + fc2 ------------------------------
    xfc = jnp.concatenate([y2[:, i, :] for i in range(4)], axis=-1)  # (bt, 1024)
    h = jnp.dot(xfc, wf1_ref[...], preferred_element_type=f32) + bf1_ref[...]
    h = jnp.maximum(h, 0.0).astype(bf16)                             # (bt, 512)
    logits = jnp.dot(h, wf2_ref[...], preferred_element_type=f32) + bf2_ref[...]
    out_ref[...] = logits.astype(out_ref.dtype)                      # (bt, 128)


# ------------------------------ JAX-side glue --------------------------------


def lenet_forward_fn(x_nchw, kp, n_outputs):
    b = x_nchw.shape[0]
    assert x_nchw.shape[1:] == (1, 28, 28), x_nchw.shape
    bt = min(32, _round_up(b, 8))      # batch tile; >=2 grid steps for b >= 2*bt
    bp = _round_up(b, bt)
    grid = bp // bt

    # Phase-4 split of the input rows (h = 4*t + a); H padded 28 -> 36 so every
    # in-kernel slice stays sublane aligned.  Same byte count as the raw image.
    x = x_nchw[:, 0, :, :].astype(jnp.bfloat16)
    x = jnp.pad(x, ((0, bp - b), (0, 36 - 28), (0, 0)))
    x4 = x.reshape(bp, 9, 4, 28).transpose(0, 2, 1, 3)        # (bp, 4, 9, 28)

    flops_step = 2 * (5 * (4 * bt * H2P) * 28 * (2 * N1)
                      + 5 * (2 * bt * H2P) * N1 * (2 * N2)
                      + bt * (4 * N2) * F1P
                      + bt * F1P * NOUTP)
    bytes_accessed = (x4.size * 2
                      + kp["w1b"].size * 2 + kp["w2b"].size * 2
                      + kp["wf1"].size * 2 + kp["wf2"].size * 2
                      + (N1 + N2 + F1P + NOUTP) * 4
                      + bp * NOUTP * 4)

    out = pl.pallas_call(
        _lenet_kernel,
        out_shape=jax.ShapeDtypeStruct((bp, NOUTP), jnp.float32),
        grid=(grid,),
        in_specs=[
            pl.BlockSpec((bt, 4, 9, 28), lambda i: (i, 0, 0, 0)),   # input (streamed)
            pl.BlockSpec((5, 28, 2 * N1), lambda i: (0, 0, 0)),     # conv1 banded w
            pl.BlockSpec((1, N1), lambda i: (0, 0)),                # conv1 bias (tiled)
            pl.BlockSpec((5, N1, 2 * N2), lambda i: (0, 0, 0)),     # conv2 banded w
            pl.BlockSpec((1, N2), lambda i: (0, 0)),                # conv2 bias (tiled)
            pl.BlockSpec((4 * N2, F1P), lambda i: (0, 0)),          # fc1 w
            pl.BlockSpec((1, F1P), lambda i: (0, 0)),               # fc1 b
            pl.BlockSpec((F1P, NOUTP), lambda i: (0, 0)),           # fc2 w
            pl.BlockSpec((1, NOUTP), lambda i: (0, 0)),             # fc2 b
        ],
        out_specs=pl.BlockSpec((bt, NOUTP), lambda i: (i, 0)),
        compiler_params=pltpu.CompilerParams(
            dimension_semantics=("parallel",),
            vmem_limit_bytes=_VMEM_LIMIT,
        ),
        cost_estimate=pl.CostEstimate(
            flops=flops_step * grid, transcendentals=0,
            bytes_accessed=bytes_accessed),
    )(x4, kp["w1b"], kp["b1t"], kp["w2b"], kp["b2t"],
      kp["wf1"], kp["bf1"], kp["wf2"], kp["bf2"])
    return out[:b, :n_outputs]


net_forward = jax.jit(lenet_forward_fn, static_argnames=("n_outputs",))


# ------------------------------ Parameters -----------------------------------


def init_torch_params(key, n_outputs=10):
    """Deterministic synthetic parameters with exactly the PyTorch Net layouts."""
    ks = jax.random.split(key, 8)
    s = 0.05
    return {
        "conv1_w": s * jax.random.normal(ks[0], (20, 1, 5, 5), jnp.float32),
        "conv1_b": s * jax.random.normal(ks[1], (20,), jnp.float32),
        "conv2_w": s * jax.random.normal(ks[2], (50, 20, 5, 5), jnp.float32),
        "conv2_b": s * jax.random.normal(ks[3], (50,), jnp.float32),
        "fc1_w":   s * jax.random.normal(ks[4], (500, 4 * 4 * 50), jnp.float32),
        "fc1_b":   s * jax.random.normal(ks[5], (500,), jnp.float32),
        "fc2_w":   s * jax.random.normal(ks[6], (n_outputs, 500), jnp.float32),
        "fc2_b":   s * jax.random.normal(ks[7], (n_outputs,), jnp.float32),
    }


def pack_params(p, n_outputs):
    """Pack PyTorch-layout params into the banded kernel layout (once, at init)."""
    assert n_outputs <= NOUTP
    w1 = np.asarray(p["conv1_w"], np.float32)      # (20, 1, 5, 5)
    b1 = np.asarray(p["conv1_b"], np.float32)
    w2 = np.asarray(p["conv2_w"], np.float32)      # (50, 20, 5, 5)
    b2 = np.asarray(p["conv2_b"], np.float32)
    f1w = np.asarray(p["fc1_w"], np.float32)       # (500, 800)
    f1b = np.asarray(p["fc1_b"], np.float32)
    f2w = np.asarray(p["fc2_w"], np.float32)       # (n_outputs, 500)
    f2b = np.asarray(p["fc2_b"], np.float32)

    # conv1 banded weights: K = x row fragment w_in in [0,28);
    # output lanes = (pj, rw, w2, c) with c padded 20->32  ->  2*2*6*32 = 768.
    w1b = np.zeros((5, 28, 2 * N1), np.float32)
    for ki in range(5):
        for kj in range(5):
            for pj in range(2):
                for rw in range(2):
                    for w2i in range(6):
                        w_in = 4 * w2i + 2 * rw + pj + kj
                        col = pj * N1 + (rw * 6 + w2i) * C1P
                        w1b[ki, w_in, col:col + 20] = w1[:, 0, ki, kj]
    b1t = np.tile(np.pad(b1, (0, C1P - 20)), 12).reshape(1, N1)

    # conv2 banded weights: K = y1 lanes (rw, w2, ci) = 384;
    # output lanes = (qj, ow, co) with co padded 50->64  ->  2*4*64 = 512.
    w2b = np.zeros((5, N1, 2 * N2), np.float32)
    for ki in range(5):
        for qj in range(2):
            for ow in range(4):
                for rw in range(2):
                    for w2i in range(6):
                        kj = 2 * w2i + rw - 2 * ow - qj
                        if 0 <= kj < 5:
                            r0 = (rw * 6 + w2i) * C1P
                            c0 = qj * N2 + ow * C2P
                            w2b[ki, r0:r0 + 20, c0:c0 + 50] = w2[:, :, ki, kj].T
    b2t = np.tile(np.pad(b2, (0, C2P - 50)), 4).reshape(1, N2)

    # fc1: rows ordered (oh, ow, co) to match the in-kernel flatten of the
    # pooled conv2 output; this folds PyTorch's NCHW .view(-1, 4*4*50) into
    # the weight layout so the forward pass needs no transpose.
    wf1 = np.zeros((4 * N2, F1P), np.float32)
    f1w_r = f1w.reshape(500, 50, 4, 4)             # (f, co, oh, ow)
    for oh in range(4):
        for ow in range(4):
            r0 = oh * N2 + ow * C2P
            wf1[r0:r0 + 50, :500] = f1w_r[:, :, oh, ow].T
    bf1 = np.zeros((1, F1P), np.float32)
    bf1[0, :500] = f1b

    wf2 = np.zeros((F1P, NOUTP), np.float32)
    wf2[:500, :n_outputs] = f2w.T
    bf2 = np.zeros((1, NOUTP), np.float32)
    bf2[0, :n_outputs] = f2b

    bf16 = jnp.bfloat16
    return {
        "w1b": jnp.asarray(w1b, bf16), "b1t": jnp.asarray(b1t),
        "w2b": jnp.asarray(w2b, bf16), "b2t": jnp.asarray(b2t),
        "wf1": jnp.asarray(wf1, bf16), "bf1": jnp.asarray(bf1),
        "wf2": jnp.asarray(wf2, bf16), "bf2": jnp.asarray(bf2),
    }


# ------------------------- Pure-JAX f32 reference ----------------------------


def reference_forward(x, p):
    dn = ("NCHW", "OIHW", "NCHW")
    z = lax.conv_general_dilated(x, p["conv1_w"], (1, 1), "VALID",
                                 dimension_numbers=dn)
    z = jax.nn.relu(z + p["conv1_b"][None, :, None, None])
    z = lax.reduce_window(z, -jnp.inf, lax.max, (1, 1, 2, 2), (1, 1, 2, 2), "VALID")
    z = lax.conv_general_dilated(z, p["conv2_w"], (1, 1), "VALID",
                                 dimension_numbers=dn)
    z = jax.nn.relu(z + p["conv2_b"][None, :, None, None])
    z = lax.reduce_window(z, -jnp.inf, lax.max, (1, 1, 2, 2), (1, 1, 2, 2), "VALID")
    z = z.reshape(z.shape[0], -1)                        # NCHW flatten == .view
    z = jax.nn.relu(z @ p["fc1_w"].T + p["fc1_b"])
    return z @ p["fc2_w"].T + p["fc2_b"]


if __name__ == "__main__":
    key = jax.random.PRNGKey(0)
    k_x, k_p = jax.random.split(key)
    n_outputs = 10
    # MNIST-style input: batch=2, 1 channel, 28x28 (required by the 4*4*50 view).
    x = jax.random.normal(k_x, (2, 1, 28, 28), jnp.float32)
    torch_params = init_torch_params(k_p, n_outputs)
    kparams = pack_params(torch_params, n_outputs)

    out = net_forward(x, kparams, n_outputs=n_outputs)
    out = jax.block_until_ready(out)
    assert out.shape == (2, n_outputs), out.shape
    assert bool(jnp.all(jnp.isfinite(out)))

    ref = reference_forward(x, torch_params)
    max_err = float(jnp.max(jnp.abs(out - ref)))
    assert max_err < 5e-2, f"kernel/reference mismatch: max abs err = {max_err}"
    print("KERNEL_OK")
</pallas_src>

<mosaic_0001>
module attributes {stable_mosaic.version = 11 : i64} {
  func.func @_lenet_kernel(%arg0: i32, %arg1: memref<8x4x9x28xbf16, #tpu.memory_space<vmem>>, %arg2: memref<5x28x768xbf16, #tpu.memory_space<vmem>>, %arg3: memref<1x384xf32, #tpu.memory_space<vmem>>, %arg4: memref<5x384x512xbf16, #tpu.memory_space<vmem>>, %arg5: memref<1x256xf32, #tpu.memory_space<vmem>>, %arg6: memref<1024x512xbf16, #tpu.memory_space<vmem>>, %arg7: memref<1x512xf32, #tpu.memory_space<vmem>>, %arg8: memref<512x128xbf16, #tpu.memory_space<vmem>>, %arg9: memref<1x128xf32, #tpu.memory_space<vmem>>, %arg10: memref<8x128xf32, #tpu.memory_space<vmem>>) attributes {dimension_semantics = [#tpu.dimension_semantics<parallel>], iteration_bounds = array<i64: 1>, scalar_prefetch = 0 : i64, scratch_operands = 0 : i64, tpu.core_type = #tpu.core_type<tc>, window_params = [{transform_indices = @transform_0, window_bounds = array<i64: 8, 4, 9, 28>}, {pipeline_mode = #tpu.pipeline_mode<synchronous>, transform_indices = @transform_1, window_bounds = array<i64: 5, 28, 768>}, {pipeline_mode = #tpu.pipeline_mode<synchronous>, transform_indices = @transform_2, window_bounds = array<i64: 1, 384>}, {pipeline_mode = #tpu.pipeline_mode<synchronous>, transform_indices = @transform_3, window_bounds = array<i64: 5, 384, 512>}, {pipeline_mode = #tpu.pipeline_mode<synchronous>, transform_indices = @transform_4, window_bounds = array<i64: 1, 256>}, {pipeline_mode = #tpu.pipeline_mode<synchronous>, transform_indices = @transform_5, window_bounds = array<i64: 1024, 512>}, {pipeline_mode = #tpu.pipeline_mode<synchronous>, transform_indices = @transform_6, window_bounds = array<i64: 1, 512>}, {pipeline_mode = #tpu.pipeline_mode<synchronous>, transform_indices = @transform_7, window_bounds = array<i64: 512, 128>}, {pipeline_mode = #tpu.pipeline_mode<synchronous>, transform_indices = @transform_8, window_bounds = array<i64: 1, 128>}, {transform_indices = @transform_9, window_bounds = array<i64: 8, 128>}]} {
    %c0 = arith.constant 0 : index
    %c0_0 = arith.constant 0 : index
    %c0_1 = arith.constant 0 : index
    %c0_2 = arith.constant 0 : index
    %0 = vector.load %arg1[%c0, %c0_0, %c0_1, %c0_2] : memref<8x4x9x28xbf16, #tpu.memory_space<vmem>>, vector<8x1x8x28xbf16>
    %1 = vector.shape_cast %0 : vector<8x1x8x28xbf16> to vector<8x8x28xbf16>
    %c0_3 = arith.constant 0 : index
    %c2 = arith.constant 2 : index
    %c0_4 = arith.constant 0 : index
    %c0_5 = arith.constant 0 : index
    %2 = vector.load %arg1[%c0_3, %c2, %c0_4, %c0_5] : memref<8x4x9x28xbf16, #tpu.memory_space<vmem>>, vector<8x1x8x28xbf16>
    %3 = vector.shape_cast %2 : vector<8x1x8x28xbf16> to vector<8x8x28xbf16>
    %c0_6 = arith.constant 0 : index
    %c1 = arith.constant 1 : index
    %c0_7 = arith.constant 0 : index
    %c0_8 = arith.constant 0 : index
    %4 = vector.load %arg1[%c0_6, %c1, %c0_7, %c0_8] : memref<8x4x9x28xbf16, #tpu.memory_space<vmem>>, vector<8x1x8x28xbf16>
    %5 = vector.shape_cast %4 : vector<8x1x8x28xbf16> to vector<8x8x28xbf16>
    %c0_9 = arith.constant 0 : index
    %c3 = arith.constant 3 : index
    %c0_10 = arith.constant 0 : index
    %c0_11 = arith.constant 0 : index
    %6 = vector.load %arg1[%c0_9, %c3, %c0_10, %c0_11] : memref<8x4x9x28xbf16, #tpu.memory_space<vmem>>, vector<8x1x8x28xbf16>
    %7 = vector.shape_cast %6 : vector<8x1x8x28xbf16> to vector<8x8x28xbf16>
    %8 = vector.shape_cast %1 : vector<8x8x28xbf16> to vector<1x8x8x28xbf16>
    %9 = vector.shape_cast %3 : vector<8x8x28xbf16> to vector<1x8x8x28xbf16>
    %10 = vector.shape_cast %5 : vector<8x8x28xbf16> to vector<1x8x8x28xbf16>
    %11 = vector.shape_cast %7 : vector<8x8x28xbf16> to vector<1x8x8x28xbf16>
    %12 = tpu.concatenate %8, %9, %10, %11 in 0 : vector<1x8x8x28xbf16>, vector<1x8x8x28xbf16>, vector<1x8x8x28xbf16>, vector<1x8x8x28xbf16> -> vector<4x8x8x28xbf16>
    %13 = vector.shape_cast %12 : vector<4x8x8x28xbf16> to vector<256x28xbf16>
    %c0_12 = arith.constant 0 : index
    %c0_13 = arith.constant 0 : index
    %c0_14 = arith.constant 0 : index
    %14 = vector.load %arg2[%c0_12, %c0_13, %c0_14] : memref<5x28x768xbf16, #tpu.memory_space<vmem>>, vector<1x28x768xbf16>
    %15 = vector.shape_cast %14 : vector<1x28x768xbf16> to vector<28x768xbf16>
    %cst = arith.constant dense<0.000000e+00> : vector<256x768xf32>
    %16 = tpu.matmul %13, %15, %cst {dimension_numbers = #tpu.dot_dimension_numbers<[1], [0], [0], [1], [0, 0, 1, 1], [], []>} : vector<256x28xbf16>, vector<28x768xbf16>, vector<256x768xf32> -> vector<256x768xf32>
    %c0_15 = arith.constant 0 : index
    %c1_16 = arith.constant 1 : index
    %c0_17 = arith.constant 0 : index
    %c0_18 = arith.constant 0 : index
    %17 = vector.load %arg1[%c0_15, %c1_16, %c0_17, %c0_18] : memref<8x4x9x28xbf16, #tpu.memory_space<vmem>>, vector<8x1x8x28xbf16>
    %18 = vector.shape_cast %17 : vector<8x1x8x28xbf16> to vector<8x8x28xbf16>
    %c0_19 = arith.constant 0 : index
    %c3_20 = arith.constant 3 : index
    %c0_21 = arith.constant 0 : index
    %c0_22 = arith.constant 0 : index
    %19 = vector.load %arg1[%c0_19, %c3_20, %c0_21, %c0_22] : memref<8x4x9x28xbf16, #tpu.memory_space<vmem>>, vector<8x1x8x28xbf16>
    %20 = vector.shape_cast %19 : vector<8x1x8x28xbf16> to vector<8x8x28xbf16>
    %c0_23 = arith.constant 0 : index
    %c2_24 = arith.constant 2 : index
    %c0_25 = arith.constant 0 : index
    %c0_26 = arith.constant 0 : index
    %21 = vector.load %arg1[%c0_23, %c2_24, %c0_25, %c0_26] : memref<8x4x9x28xbf16, #tpu.memory_space<vmem>>, vector<8x1x8x28xbf16>
    %22 = vector.shape_cast %21 : vector<8x1x8x28xbf16> to vector<8x8x28xbf16>
    %c0_27 = arith.constant 0 : index
    %c0_28 = arith.constant 0 : index
    %c1_29 = arith.constant 1 : index
    %c0_30 = arith.constant 0 : index
    %23 = vector.load %arg1[%c0_27, %c0_28, %c1_29, %c0_30] : memref<8x4x9x28xbf16, #tpu.memory_space<vmem>>, vector<8x1x8x28xbf16>
    %24 = vector.shape_cast %23 : vector<8x1x8x28xbf16> to vector<8x8x28xbf16>
    %25 = vector.shape_cast %18 : vector<8x8x28xbf16> to vector<1x8x8x28xbf16>
    %26 = vector.shape_cast %20 : vector<8x8x28xbf16> to vector<1x8x8x28xbf16>
    %27 = vector.shape_cast %22 : vector<8x8x28xbf16> to vector<1x8x8x28xbf16>
    %28 = vector.shape_cast %24 : vector<8x8x28xbf16> to vector<1x8x8x28xbf16>
    %29 = tpu.concatenate %25, %26, %27, %28 in 0 : vector<1x8x8x28xbf16>, vector<1x8x8x28xbf16>, vector<1x8x8x28xbf16>, vector<1x8x8x28xbf16> -> vector<4x8x8x28xbf16>
    %30 = vector.shape_cast %29 : vector<4x8x8x28xbf16> to vector<256x28xbf16>
    %c1_31 = arith.constant 1 : index
    %c0_32 = arith.constant 0 : index
    %c0_33 = arith.constant 0 : index
    %31 = vector.load %arg2[%c1_31, %c0_32, %c0_33] : memref<5x28x768xbf16, #tpu.memory_space<vmem>>, vector<1x28x768xbf16>
    %32 = vector.shape_cast %31 : vector<1x28x768xbf16> to vector<28x768xbf16>
    %cst_34 = arith.constant dense<0.000000e+00> : vector<256x768xf32>
    %33 = tpu.matmul %30, %32, %cst_34 {dimension_numbers = #tpu.dot_dimension_numbers<[1], [0], [0], [1], [0, 0, 1, 1], [], []>} : vector<256x28xbf16>, vector<28x768xbf16>, vector<256x768xf32> -> vector<256x768xf32>
    %34 = arith.addf %16, %33 : vector<256x768xf32>
    %c0_35 = arith.constant 0 : index
    %c2_36 = arith.constant 2 : index
    %c0_37 = arith.constant 0 : index
    %c0_38 = arith.constant 0 : index
    %35 = vector.load %arg1[%c0_35, %c2_36, %c0_37, %c0_38] : memref<8x4x9x28xbf16, #tpu.memory_space<vmem>>, vector<8x1x8x28xbf16>
    %36 = vector.shape_cast %35 : vector<8x1x8x28xbf16> to vector<8x8x28xbf16>
    %c0_39 = arith.constant 0 : index
    %c0_40 = arith.constant 0 : index
    %c1_41 = arith.constant 1 : index
    %c0_42 = arith.constant 0 : index
    %37 = vector.load %arg1[%c0_39, %c0_40, %c1_41, %c0_42] : memref<8x4x9x28xbf16, #tpu.memory_space<vmem>>, vector<8x1x8x28xbf16>
    %38 = vector.shape_cast %37 : vector<8x1x8x28xbf16> to vector<8x8x28xbf16>
    %c0_43 = arith.constant 0 : index
    %c3_44 = arith.constant 3 : index
    %c0_45 = arith.constant 0 : index
    %c0_46 = arith.constant 0 : index
    %39 = vector.load %arg1[%c0_43, %c3_44, %c0_45, %c0_46] : memref<8x4x9x28xbf16, #tpu.memory_space<vmem>>, vector<8x1x8x28xbf16>
    %40 = vector.shape_cast %39 : vector<8x1x8x28xbf16> to vector<8x8x28xbf16>
    %c0_47 = arith.constant 0 : index
    %c1_48 = arith.constant 1 : index
    %c1_49 = arith.constant 1 : index
    %c0_50 = arith.constant 0 : index
    %41 = vector.load %arg1[%c0_47, %c1_48, %c1_49, %c0_50] : memref<8x4x9x28xbf16, #tpu.memory_space<vmem>>, vector<8x1x8x28xbf16>
    %42 = vector.shape_cast %41 : vector<8x1x8x28xbf16> to vector<8x8x28xbf16>
    %43 = vector.shape_cast %36 : vector<8x8x28xbf16> to vector<1x8x8x28xbf16>
    %44 = vector.shape_cast %38 : vector<8x8x28xbf16> to vector<1x8x8x28xbf16>
    %45 = vector.shape_cast %40 : vector<8x8x28xbf16> to vector<1x8x8x28xbf16>
    %46 = vector.shape_cast %42 : vector<8x8x28xbf16> to vector<1x8x8x28xbf16>
    %47 = tpu.concatenate %43, %44, %45, %46 in 0 : vector<1x8x8x28xbf16>, vector<1x8x8x28xbf16>, vector<1x8x8x28xbf16>, vector<1x8x8x28xbf16> -> vector<4x8x8x28xbf16>
    %48 = vector.shape_cast %47 : vector<4x8x8x28xbf16> to vector<256x28xbf16>
    %c2_51 = arith.constant 2 : index
    %c0_52 = arith.constant 0 : index
    %c0_53 = arith.constant 0 : index
    %49 = vector.load %arg2[%c2_51, %c0_52, %c0_53] : memref<5x28x768xbf16, #tpu.memory_space<vmem>>, vector<1x28x768xbf16>
    %50 = vector.shape_cast %49 : vector<1x28x768xbf16> to vector<28x768xbf16>
    %cst_54 = arith.constant dense<0.000000e+00> : vector<256x768xf32>
    %51 = tpu.matmul %48, %50, %cst_54 {dimension_numbers = #tpu.dot_dimension_numbers<[1], [0], [0], [1], [0, 0, 1, 1], [], []>} : vector<256x28xbf16>, vector<28x768xbf16>, vector<256x768xf32> -> vector<256x768xf32>
    %52 = arith.addf %34, %51 : vector<256x768xf32>
    %c0_55 = arith.constant 0 : index
    %c3_56 = arith.constant 3 : index
    %c0_57 = arith.constant 0 : index
    %c0_58 = arith.constant 0 : index
    %53 = vector.load %arg1[%c0_55, %c3_56, %c0_57, %c0_58] : memref<8x4x9x28xbf16, #tpu.memory_space<vmem>>, vector<8x1x8x28xbf16>
    %54 = vector.shape_cast %53 : vector<8x1x8x28xbf16> to vector<8x8x28xbf16>
    %c0_59 = arith.constant 0 : index
    %c1_60 = arith.constant 1 : index
    %c1_61 = arith.constant 1 : index
    %c0_62 = arith.constant 0 : index
    %55 = vector.load %arg1[%c0_59, %c1_60, %c1_61, %c0_62] : memref<8x4x9x28xbf16, #tpu.memory_space<vmem>>, vector<8x1x8x28xbf16>
    %56 = vector.shape_cast %55 : vector<8x1x8x28xbf16> to vector<8x8x28xbf16>
    %c0_63 = arith.constant 0 : index
    %c0_64 = arith.constant 0 : index
    %c1_65 = arith.constant 1 : index
    %c0_66 = arith.constant 0 : index
    %57 = vector.load %arg1[%c0_63, %c0_64, %c1_65, %c0_66] : memref<8x4x9x28xbf16, #tpu.memory_space<vmem>>, vector<8x1x8x28xbf16>
    %58 = vector.shape_cast %57 : vector<8x1x8x28xbf16> to vector<8x8x28xbf16>
    %c0_67 = arith.constant 0 : index
    %c2_68 = arith.constant 2 : index
    %c1_69 = arith.constant 1 : index
    %c0_70 = arith.constant 0 : index
    %59 = vector.load %arg1[%c0_67, %c2_68, %c1_69, %c0_70] : memref<8x4x9x28xbf16, #tpu.memory_space<vmem>>, vector<8x1x8x28xbf16>
    %60 = vector.shape_cast %59 : vector<8x1x8x28xbf16> to vector<8x8x28xbf16>
    %61 = vector.shape_cast %54 : vector<8x8x28xbf16> to vector<1x8x8x28xbf16>
    %62 = vector.shape_cast %56 : vector<8x8x28xbf16> to vector<1x8x8x28xbf16>
    %63 = vector.shape_cast %58 : vector<8x8x28xbf16> to vector<1x8x8x28xbf16>
    %64 = vector.shape_cast %60 : vector<8x8x28xbf16> to vector<1x8x8x28xbf16>
    %65 = tpu.concatenate %61, %62, %63, %64 in 0 : vector<1x8x8x28xbf16>, vector<1x8x8x28xbf16>, vector<1x8x8x28xbf16>, vector<1x8x8x28xbf16> -> vector<4x8x8x28xbf16>
    %66 = vector.shape_cast %65 : vector<4x8x8x28xbf16> to vector<256x28xbf16>
    %c3_71 = arith.constant 3 : index
    %c0_72 = arith.constant 0 : index
    %c0_73 = arith.constant 0 : index
    %67 = vector.load %arg2[%c3_71, %c0_72, %c0_73] : memref<5x28x768xbf16, #tpu.memory_space<vmem>>, vector<1x28x768xbf16>
    %68 = vector.shape_cast %67 : vector<1x28x768xbf16> to vector<28x768xbf16>
    %cst_74 = arith.constant dense<0.000000e+00> : vector<256x768xf32>
    %69 = tpu.matmul %66, %68, %cst_74 {dimension_numbers = #tpu.dot_dimension_numbers<[1], [0], [0], [1], [0, 0, 1, 1], [], []>} : vector<256x28xbf16>, vector<28x768xbf16>, vector<256x768xf32> -> vector<256x768xf32>
    %70 = arith.addf %52, %69 : vector<256x768xf32>
    %c0_75 = arith.constant 0 : index
    %c0_76 = arith.constant 0 : index
    %c1_77 = arith.constant 1 : index
    %c0_78 = arith.constant 0 : index
    %71 = vector.load %arg1[%c0_75, %c0_76, %c1_77, %c0_78] : memref<8x4x9x28xbf16, #tpu.memory_space<vmem>>, vector<8x1x8x28xbf16>
    %72 = vector.shape_cast %71 : vector<8x1x8x28xbf16> to vector<8x8x28xbf16>
    %c0_79 = arith.constant 0 : index
    %c2_80 = arith.constant 2 : index
    %c1_81 = arith.constant 1 : index
    %c0_82 = arith.constant 0 : index
    %73 = vector.load %arg1[%c0_79, %c2_80, %c1_81, %c0_82] : memref<8x4x9x28xbf16, #tpu.memory_space<vmem>>, vector<8x1x8x28xbf16>
    %74 = vector.shape_cast %73 : vector<8x1x8x28xbf16> to vector<8x8x28xbf16>
    %c0_83 = arith.constant 0 : index
    %c1_84 = arith.constant 1 : index
    %c1_85 = arith.constant 1 : index
    %c0_86 = arith.constant 0 : index
    %75 = vector.load %arg1[%c0_83, %c1_84, %c1_85, %c0_86] : memref<8x4x9x28xbf16, #tpu.memory_space<vmem>>, vector<8x1x8x28xbf16>
    %76 = vector.shape_cast %75 : vector<8x1x8x28xbf16> to vector<8x8x28xbf16>
    %c0_87 = arith.constant 0 : index
    %c3_88 = arith.constant 3 : index
    %c1_89 = arith.constant 1 : index
    %c0_90 = arith.constant 0 : index
    %77 = vector.load %arg1[%c0_87, %c3_88, %c1_89, %c0_90] : memref<8x4x9x28xbf16, #tpu.memory_space<vmem>>, vector<8x1x8x28xbf16>
    %78 = vector.shape_cast %77 : vector<8x1x8x28xbf16> to vector<8x8x28xbf16>
    %79 = vector.shape_cast %72 : vector<8x8x28xbf16> to vector<1x8x8x28xbf16>
    %80 = vector.shape_cast %74 : vector<8x8x28xbf16> to vector<1x8x8x28xbf16>
    %81 = vector.shape_cast %76 : vector<8x8x28xbf16> to vector<1x8x8x28xbf16>
    %82 = vector.shape_cast %78 : vector<8x8x28xbf16> to vector<1x8x8x28xbf16>
    %83 = tpu.concatenate %79, %80, %81, %82 in 0 : vector<1x8x8x28xbf16>, vector<1x8x8x28xbf16>, vector<1x8x8x28xbf16>, vector<1x8x8x28xbf16> -> vector<4x8x8x28xbf16>
    %84 = vector.shape_cast %83 : vector<4x8x8x28xbf16> to vector<256x28xbf16>
    %c4 = arith.constant 4 : index
    %c0_91 = arith.constant 0 : index
    %c0_92 = arith.constant 0 : index
    %85 = vector.load %arg2[%c4, %c0_91, %c0_92] : memref<5x28x768xbf16, #tpu.memory_space<vmem>>, vector<1x28x768xbf16>
    %86 = vector.shape_cast %85 : vector<1x28x768xbf16> to vector<28x768xbf16>
    %cst_93 = arith.constant dense<0.000000e+00> : vector<256x768xf32>
    %87 = tpu.matmul %84, %86, %cst_93 {dimension_numbers = #tpu.dot_dimension_numbers<[1], [0], [0], [1], [0, 0, 1, 1], [], []>} : vector<256x28xbf16>, vector<28x768xbf16>, vector<256x768xf32> -> vector<256x768xf32>
    %88 = arith.addf %70, %87 : vector<256x768xf32>
    %89 = vector.extract_strided_slice %88 {offsets = [0, 0], sizes = [128, 768], strides = [1, 1]} : vector<256x768xf32> to vector<128x768xf32>
    %90 = vector.extract_strided_slice %88 {offsets = [128, 0], sizes = [128, 768], strides = [1, 1]} : vector<256x768xf32> to vector<128x768xf32>
    %91 = arith.maximumf %89, %90 : vector<128x768xf32>
    %92 = vector.extract_strided_slice %91 {offsets = [0, 0], sizes = [128, 384], strides = [1, 1]} : vector<128x768xf32> to vector<128x384xf32>
    %93 = vector.extract_strided_slice %91 {offsets = [0, 384], sizes = [128, 384], strides = [1, 1]} : vector<128x768xf32> to vector<128x384xf32>
    %94 = arith.maximumf %92, %93 : vector<128x384xf32>
    %c0_94 = arith.constant 0 : index
    %c0_95 = arith.constant 0 : index
    %95 = vector.load %arg3[%c0_94, %c0_95] : memref<1x384xf32, #tpu.memory_space<vmem>>, vector<1x384xf32>
    %96 = vector.broadcast %95 : vector<1x384xf32> to vector<128x384xf32>
    %97 = arith.addf %94, %96 : vector<128x384xf32>
    %cst_96 = arith.constant 0.000000e+00 : f32
    %98 = vector.broadcast %cst_96 : f32 to vector<128x384xf32>
    %99 = arith.maximumf %97, %98 : vector<128x384xf32>
    %100 = vector.shape_cast %99 : vector<128x384xf32> to vector<2x8x8x384xf32>
    %101 = arith.truncf %100 : vector<2x8x8x384xf32> to vector<2x8x8x384xbf16>
    %102 = vector.extract_strided_slice %101 {offsets = [0, 0, 0, 0], sizes = [1, 8, 8, 384], strides = [1, 1, 1, 1]} : vector<2x8x8x384xbf16> to vector<1x8x8x384xbf16>
    %103 = vector.shape_cast %102 : vector<1x8x8x384xbf16> to vector<8x8x384xbf16>
    %104 = vector.extract_strided_slice %101 {offsets = [1, 0, 0, 0], sizes = [1, 8, 8, 384], strides = [1, 1, 1, 1]} : vector<2x8x8x384xbf16> to vector<1x8x8x384xbf16>
    %105 = vector.shape_cast %104 : vector<1x8x8x384xbf16> to vector<8x8x384xbf16>
    %106 = vector.shape_cast %103 : vector<8x8x384xbf16> to vector<1x8x8x384xbf16>
    %107 = vector.shape_cast %105 : vector<8x8x384xbf16> to vector<1x8x8x384xbf16>
    %108 = tpu.concatenate %106, %107 in 0 : vector<1x8x8x384xbf16>, vector<1x8x8x384xbf16> -> vector<2x8x8x384xbf16>
    %109 = vector.shape_cast %108 : vector<2x8x8x384xbf16> to vector<128x384xbf16>
    %c0_97 = arith.constant 0 : index
    %c0_98 = arith.constant 0 : index
    %c0_99 = arith.constant 0 : index
    %110 = vector.load %arg4[%c0_97, %c0_98, %c0_99] : memref<5x384x512xbf16, #tpu.memory_space<vmem>>, vector<1x384x512xbf16>
    %111 = vector.shape_cast %110 : vector<1x384x512xbf16> to vector<384x512xbf16>
    %cst_100 = arith.constant dense<0.000000e+00> : vector<128x512xf32>
    %112 = tpu.matmul %109, %111, %cst_100 {dimension_numbers = #tpu.dot_dimension_numbers<[1], [0], [0], [1], [0, 0, 1, 1], [], []>} : vector<128x384xbf16>, vector<384x512xbf16>, vector<128x512xf32> -> vector<128x512xf32>
    %113 = vector.shape_cast %112 : vector<128x512xf32> to vector<2x8x8x512xf32>
    %114 = vector.extract_strided_slice %113 {offsets = [0, 0, 0, 0], sizes = [1, 8, 4, 512], strides = [1, 1, 1, 1]} : vector<2x8x8x512xf32> to vector<1x8x4x512xf32>
    %115 = vector.shape_cast %114 : vector<1x8x4x512xf32> to vector<8x4x512xf32>
    %116 = vector.extract_strided_slice %113 {offsets = [1, 0, 0, 0], sizes = [1, 8, 4, 512], strides = [1, 1, 1, 1]} : vector<2x8x8x512xf32> to vector<1x8x4x512xf32>
    %117 = vector.shape_cast %116 : vector<1x8x4x512xf32> to vector<8x4x512xf32>
    %118 = vector.extract_strided_slice %101 {offsets = [1, 0, 0, 0], sizes = [1, 8, 8, 384], strides = [1, 1, 1, 1]} : vector<2x8x8x384xbf16> to vector<1x8x8x384xbf16>
    %119 = vector.shape_cast %118 : vector<1x8x8x384xbf16> to vector<8x8x384xbf16>
    %120 = vector.extract_strided_slice %101 {offsets = [0, 0, 0, 0], sizes = [1, 8, 8, 384], strides = [1, 1, 1, 1]} : vector<2x8x8x384xbf16> to vector<1x8x8x384xbf16>
    %121 = vector.shape_cast %120 : vector<1x8x8x384xbf16> to vector<8x8x384xbf16>
    %122 = vector.shape_cast %119 : vector<8x8x384xbf16> to vector<1x8x8x384xbf16>
    %123 = vector.shape_cast %121 : vector<8x8x384xbf16> to vector<1x8x8x384xbf16>
    %124 = tpu.concatenate %122, %123 in 0 : vector<1x8x8x384xbf16>, vector<1x8x8x384xbf16> -> vector<2x8x8x384xbf16>
    %125 = vector.shape_cast %124 : vector<2x8x8x384xbf16> to vector<128x384xbf16>
    %c1_101 = arith.constant 1 : index
    %c0_102 = arith.constant 0 : index
    %c0_103 = arith.constant 0 : index
    %126 = vector.load %arg4[%c1_101, %c0_102, %c0_103] : memref<5x384x512xbf16, #tpu.memory_space<vmem>>, vector<1x384x512xbf16>
    %127 = vector.shape_cast %126 : vector<1x384x512xbf16> to vector<384x512xbf16>
    %cst_104 = arith.constant dense<0.000000e+00> : vector<128x512xf32>
    %128 = tpu.matmul %125, %127, %cst_104 {dimension_numbers = #tpu.dot_dimension_numbers<[1], [0], [0], [1], [0, 0, 1, 1], [], []>} : vector<128x384xbf16>, vector<384x512xbf16>, vector<128x512xf32> -> vector<128x512xf32>
    %129 = vector.shape_cast %128 : vector<128x512xf32> to vector<2x8x8x512xf32>
    %130 = vector.extract_strided_slice %129 {offsets = [0, 0, 0, 0], sizes = [1, 8, 4, 512], strides = [1, 1, 1, 1]} : vector<2x8x8x512xf32> to vector<1x8x4x512xf32>
    %131 = vector.shape_cast %130 : vector<1x8x4x512xf32> to vector<8x4x512xf32>
    %132 = arith.addf %115, %131 : vector<8x4x512xf32>
    %133 = vector.extract_strided_slice %129 {offsets = [1, 0, 1, 0], sizes = [1, 8, 4, 512], strides = [1, 1, 1, 1]} : vector<2x8x8x512xf32> to vector<1x8x4x512xf32>
    %134 = vector.shape_cast %133 : vector<1x8x4x512xf32> to vector<8x4x512xf32>
    %135 = arith.addf %117, %134 : vector<8x4x512xf32>
    %136 = vector.extract_strided_slice %101 {offsets = [0, 0, 0, 0], sizes = [1, 8, 8, 384], strides = [1, 1, 1, 1]} : vector<2x8x8x384xbf16> to vector<1x8x8x384xbf16>
    %137 = vector.shape_cast %136 : vector<1x8x8x384xbf16> to vector<8x8x384xbf16>
    %138 = vector.extract_strided_slice %101 {offsets = [1, 0, 0, 0], sizes = [1, 8, 8, 384], strides = [1, 1, 1, 1]} : vector<2x8x8x384xbf16> to vector<1x8x8x384xbf16>
    %139 = vector.shape_cast %138 : vector<1x8x8x384xbf16> to vector<8x8x384xbf16>
    %140 = vector.shape_cast %137 : vector<8x8x384xbf16> to vector<1x8x8x384xbf16>
    %141 = vector.shape_cast %139 : vector<8x8x384xbf16> to vector<1x8x8x384xbf16>
    %142 = tpu.concatenate %140, %141 in 0 : vector<1x8x8x384xbf16>, vector<1x8x8x384xbf16> -> vector<2x8x8x384xbf16>
    %143 = vector.shape_cast %142 : vector<2x8x8x384xbf16> to vector<128x384xbf16>
    %c2_105 = arith.constant 2 : index
    %c0_106 = arith.constant 0 : index
    %c0_107 = arith.constant 0 : index
    %144 = vector.load %arg4[%c2_105, %c0_106, %c0_107] : memref<5x384x512xbf16, #tpu.memory_space<vmem>>, vector<1x384x512xbf16>
    %145 = vector.shape_cast %144 : vector<1x384x512xbf16> to vector<384x512xbf16>
    %cst_108 = arith.constant dense<0.000000e+00> : vector<128x512xf32>
    %146 = tpu.matmul %143, %145, %cst_108 {dimension_numbers = #tpu.dot_dimension_numbers<[1], [0], [0], [1], [0, 0, 1, 1], [], []>} : vector<128x384xbf16>, vector<384x512xbf16>, vector<128x512xf32> -> vector<128x512xf32>
    %147 = vector.shape_cast %146 : vector<128x512xf32> to vector<2x8x8x512xf32>
    %148 = vector.extract_strided_slice %147 {offsets = [0, 0, 1, 0], sizes = [1, 8, 4, 512], strides = [1, 1, 1, 1]} : vector<2x8x8x512xf32> to vector<1x8x4x512xf32>
    %149 = vector.shape_cast %148 : vector<1x8x4x512xf32> to vector<8x4x512xf32>
    %150 = arith.addf %132, %149 : vector<8x4x512xf32>
    %151 = vector.extract_strided_slice %147 {offsets = [1, 0, 1, 0], sizes = [1, 8, 4, 512], strides = [1, 1, 1, 1]} : vector<2x8x8x512xf32> to vector<1x8x4x512xf32>
    %152 = vector.shape_cast %151 : vector<1x8x4x512xf32> to vector<8x4x512xf32>
    %153 = arith.addf %135, %152 : vector<8x4x512xf32>
    %154 = vector.extract_strided_slice %101 {offsets = [1, 0, 0, 0], sizes = [1, 8, 8, 384], strides = [1, 1, 1, 1]} : vector<2x8x8x384xbf16> to vector<1x8x8x384xbf16>
    %155 = vector.shape_cast %154 : vector<1x8x8x384xbf16> to vector<8x8x384xbf16>
    %156 = vector.extract_strided_slice %101 {offsets = [0, 0, 0, 0], sizes = [1, 8, 8, 384], strides = [1, 1, 1, 1]} : vector<2x8x8x384xbf16> to vector<1x8x8x384xbf16>
    %157 = vector.shape_cast %156 : vector<1x8x8x384xbf16> to vector<8x8x384xbf16>
    %158 = vector.shape_cast %155 : vector<8x8x384xbf16> to vector<1x8x8x384xbf16>
    %159 = vector.shape_cast %157 : vector<8x8x384xbf16> to vector<1x8x8x384xbf16>
    %160 = tpu.concatenate %158, %159 in 0 : vector<1x8x8x384xbf16>, vector<1x8x8x384xbf16> -> vector<2x8x8x384xbf16>
    %161 = vector.shape_cast %160 : vector<2x8x8x384xbf16> to vector<128x384xbf16>
    %c3_109 = arith.constant 3 : index
    %c0_110 = arith.constant 0 : index
    %c0_111 = arith.constant 0 : index
    %162 = vector.load %arg4[%c3_109, %c0_110, %c0_111] : memref<5x384x512xbf16, #tpu.memory_space<vmem>>, vector<1x384x512xbf16>
    %163 = vector.shape_cast %162 : vector<1x384x512xbf16> to vector<384x512xbf16>
    %cst_112 = arith.constant dense<0.000000e+00> : vector<128x512xf32>
    %164 = tpu.matmul %161, %163, %cst_112 {dimension_numbers = #tpu.dot_dimension_numbers<[1], [0], [0], [1], [0, 0, 1, 1], [], []>} : vector<128x384xbf16>, vector<384x512xbf16>, vector<128x512xf32> -> vector<128x512xf32>
    %165 = vector.shape_cast %164 : vector<128x512xf32> to vector<2x8x8x512xf32>
    %166 = vector.extract_strided_slice %165 {offsets = [0, 0, 1, 0], sizes = [1, 8, 4, 512], strides = [1, 1, 1, 1]} : vector<2x8x8x512xf32> to vector<1x8x4x512xf32>
    %167 = vector.shape_cast %166 : vector<1x8x4x512xf32> to vector<8x4x512xf32>
    %168 = arith.addf %150, %167 : vector<8x4x512xf32>
    %169 = vector.extract_strided_slice %165 {offsets = [1, 0, 2, 0], sizes = [1, 8, 4, 512], strides = [1, 1, 1, 1]} : vector<2x8x8x512xf32> to vector<1x8x4x512xf32>
    %170 = vector.shape_cast %169 : vector<1x8x4x512xf32> to vector<8x4x512xf32>
    %171 = arith.addf %153, %170 : vector<8x4x512xf32>
    %172 = vector.extract_strided_slice %101 {offsets = [0, 0, 0, 0], sizes = [1, 8, 8, 384], strides = [1, 1, 1, 1]} : vector<2x8x8x384xbf16> to vector<1x8x8x384xbf16>
    %173 = vector.shape_cast %172 : vector<1x8x8x384xbf16> to vector<8x8x384xbf16>
    %174 = vector.extract_strided_slice %101 {offsets = [1, 0, 0, 0], sizes = [1, 8, 8, 384], strides = [1, 1, 1, 1]} : vector<2x8x8x384xbf16> to vector<1x8x8x384xbf16>
    %175 = vector.shape_cast %174 : vector<1x8x8x384xbf16> to vector<8x8x384xbf16>
    %176 = vector.shape_cast %173 : vector<8x8x384xbf16> to vector<1x8x8x384xbf16>
    %177 = vector.shape_cast %175 : vector<8x8x384xbf16> to vector<1x8x8x384xbf16>
    %178 = tpu.concatenate %176, %177 in 0 : vector<1x8x8x384xbf16>, vector<1x8x8x384xbf16> -> vector<2x8x8x384xbf16>
    %179 = vector.shape_cast %178 : vector<2x8x8x384xbf16> to vector<128x384xbf16>
    %c4_113 = arith.constant 4 : index
    %c0_114 = arith.constant 0 : index
    %c0_115 = arith.constant 0 : index
    %180 = vector.load %arg4[%c4_113, %c0_114, %c0_115] : memref<5x384x512xbf16, #tpu.memory_space<vmem>>, vector<1x384x512xbf16>
    %181 = vector.shape_cast %180 : vector<1x384x512xbf16> to vector<384x512xbf16>
    %cst_116 = arith.constant dense<0.000000e+00> : vector<128x512xf32>
    %182 = tpu.matmul %179, %181, %cst_116 {dimension_numbers = #tpu.dot_dimension_numbers<[1], [0], [0], [1], [0, 0, 1, 1], [], []>} : vector<128x384xbf16>, vector<384x512xbf16>, vector<128x512xf32> -> vector<128x512xf32>
    %183 = vector.shape_cast %182 : vector<128x512xf32> to vector<2x8x8x512xf32>
    %184 = vector.extract_strided_slice %183 {offsets = [0, 0, 2, 0], sizes = [1, 8, 4, 512], strides = [1, 1, 1, 1]} : vector<2x8x8x512xf32> to vector<1x8x4x512xf32>
    %185 = vector.shape_cast %184 : vector<1x8x4x512xf32> to vector<8x4x512xf32>
    %186 = arith.addf %168, %185 : vector<8x4x512xf32>
    %187 = vector.extract_strided_slice %183 {offsets = [1, 0, 2, 0], sizes = [1, 8, 4, 512], strides = [1, 1, 1, 1]} : vector<2x8x8x512xf32> to vector<1x8x4x512xf32>
    %188 = vector.shape_cast %187 : vector<1x8x4x512xf32> to vector<8x4x512xf32>
    %189 = arith.addf %171, %188 : vector<8x4x512xf32>
    %190 = arith.maximumf %186, %189 : vector<8x4x512xf32>
    %191 = vector.extract_strided_slice %190 {offsets = [0, 0, 0], sizes = [8, 4, 256], strides = [1, 1, 1]} : vector<8x4x512xf32> to vector<8x4x256xf32>
    %192 = vector.extract_strided_slice %190 {offsets = [0, 0, 256], sizes = [8, 4, 256], strides = [1, 1, 1]} : vector<8x4x512xf32> to vector<8x4x256xf32>
    %193 = arith.maximumf %191, %192 : vector<8x4x256xf32>
    %c0_117 = arith.constant 0 : index
    %c0_118 = arith.constant 0 : index
    %194 = vector.load %arg5[%c0_117, %c0_118] : memref<1x256xf32, #tpu.memory_space<vmem>>, vector<1x256xf32>
    %195 = vector.shape_cast %194 : vector<1x256xf32> to vector<1x1x256xf32>
    %196 = vector.broadcast %195 : vector<1x1x256xf32> to vector<8x4x256xf32>
    %197 = arith.addf %193, %196 : vector<8x4x256xf32>
    %cst_119 = arith.constant 0.000000e+00 : f32
    %198 = vector.broadcast %cst_119 : f32 to vector<8x4x256xf32>
    %199 = arith.maximumf %197, %198 : vector<8x4x256xf32>
    %200 = arith.truncf %199 : vector<8x4x256xf32> to vector<8x4x256xbf16>
    %201 = vector.extract_strided_slice %200 {offsets = [0, 0, 0], sizes = [8, 1, 256], strides = [1, 1, 1]} : vector<8x4x256xbf16> to vector<8x1x256xbf16>
    %202 = vector.shape_cast %201 : vector<8x1x256xbf16> to vector<8x256xbf16>
    %203 = vector.extract_strided_slice %200 {offsets = [0, 1, 0], sizes = [8, 1, 256], strides = [1, 1, 1]} : vector<8x4x256xbf16> to vector<8x1x256xbf16>
    %204 = vector.shape_cast %203 : vector<8x1x256xbf16> to vector<8x256xbf16>
    %205 = vector.extract_strided_slice %200 {offsets = [0, 2, 0], sizes = [8, 1, 256], strides = [1, 1, 1]} : vector<8x4x256xbf16> to vector<8x1x256xbf16>
    %206 = vector.shape_cast %205 : vector<8x1x256xbf16> to vector<8x256xbf16>
    %207 = vector.extract_strided_slice %200 {offsets = [0, 3, 0], sizes = [8, 1, 256], strides = [1, 1, 1]} : vector<8x4x256xbf16> to vector<8x1x256xbf16>
    %208 = vector.shape_cast %207 : vector<8x1x256xbf16> to vector<8x256xbf16>
    %209 = tpu.concatenate %202, %204, %206, %208 in 1 : vector<8x256xbf16>, vector<8x256xbf16>, vector<8x256xbf16>, vector<8x256xbf16> -> vector<8x1024xbf16>
    %c0_120 = arith.constant 0 : index
    %c0_121 = arith.constant 0 : index
    %210 = vector.load %arg6[%c0_120, %c0_121] : memref<1024x512xbf16, #tpu.memory_space<vmem>>, vector<1024x512xbf16>
    %cst_122 = arith.constant dense<0.000000e+00> : vector<8x512xf32>
    %211 = tpu.matmul %209, %210, %cst_122 {dimension_numbers = #tpu.dot_dimension_numbers<[1], [0], [0], [1], [0, 0, 1, 1], [], []>} : vector<8x1024xbf16>, vector<1024x512xbf16>, vector<8x512xf32> -> vector<8x512xf32>
    %c0_123 = arith.constant 0 : index
    %c0_124 = arith.constant 0 : index
    %212 = vector.load %arg7[%c0_123, %c0_124] : memref<1x512xf32, #tpu.memory_space<vmem>>, vector<1x512xf32>
    %213 = vector.broadcast %212 : vector<1x512xf32> to vector<8x512xf32>
    %214 = arith.addf %211, %213 : vector<8x512xf32>
    %cst_125 = arith.constant 0.000000e+00 : f32
    %215 = vector.broadcast %cst_125 : f32 to vector<8x512xf32>
    %216 = arith.maximumf %214, %215 : vector<8x512xf32>
    %217 = arith.truncf %216 : vector<8x512xf32> to vector<8x512xbf16>
    %c0_126 = arith.constant 0 : index
    %c0_127 = arith.constant 0 : index
    %218 = vector.load %arg8[%c0_126, %c0_127] : memref<512x128xbf16, #tpu.memory_space<vmem>>, vector<512x128xbf16>
    %cst_128 = arith.constant dense<0.000000e+00> : vector<8x128xf32>
    %219 = tpu.matmul %217, %218, %cst_128 {dimension_numbers = #tpu.dot_dimension_numbers<[1], [0], [0], [1], [0, 0, 1, 1], [], []>} : vector<8x512xbf16>, vector<512x128xbf16>, vector<8x128xf32> -> vector<8x128xf32>
    %c0_129 = arith.constant 0 : index
    %c0_130 = arith.constant 0 : index
    %220 = vector.load %arg9[%c0_129, %c0_130] : memref<1x128xf32, #tpu.memory_space<vmem>>, vector<1x128xf32>
    %221 = vector.broadcast %220 : vector<1x128xf32> to vector<8x128xf32>
    %222 = arith.addf %219, %221 : vector<8x128xf32>
    %c0_131 = arith.constant 0 : index
    %c0_132 = arith.constant 0 : index
    %223 = vector.load %arg10[%c0_131, %c0_132] : memref<8x128xf32, #tpu.memory_space<vmem>>, vector<8x128xf32>
    tpu.vector_store %arg10[%c0_131, %c0_132], %222 {strides = array<i32>} : memref<8x128xf32, #tpu.memory_space<vmem>>, vector<8x128xf32>,
    return
  }
  func.func @transform_0(%arg0: i32) -> (i32, i32, i32, i32) {
    %c0_i32 = arith.constant 0 : i32
    %c0_i32_0 = arith.constant 0 : i32
    %c0_i32_1 = arith.constant 0 : i32
    %c0_i32_2 = arith.constant 0 : i32
    return %arg0, %c0_i32, %c0_i32_0, %c0_i32_1 : i32, i32, i32, i32
  }
  func.func @transform_1(%arg0: i32) -> (i32, i32, i32) {
    %c0_i32 = arith.constant 0 : i32
    %c0_i32_0 = arith.constant 0 : i32
    %c0_i32_1 = arith.constant 0 : i32
    %c0_i32_2 = arith.constant 0 : i32
    return %c0_i32, %c0_i32_0, %c0_i32_1 : i32, i32, i32
  }
  func.func @transform_2(%arg0: i32) -> (i32, i32) {
    %c0_i32 = arith.constant 0 : i32
    %c0_i32_0 = arith.constant 0 : i32
    %c0_i32_1 = arith.constant 0 : i32
    return %c0_i32, %c0_i32_0 : i32, i32
  }
  func.func @transform_3(%arg0: i32) -> (i32, i32, i32) {
    %c0_i32 = arith.constant 0 : i32
    %c0_i32_0 = arith.constant 0 : i32
    %c0_i32_1 = arith.constant 0 : i32
    %c0_i32_2 = arith.constant 0 : i32
    return %c0_i32, %c0_i32_0, %c0_i32_1 : i32, i32, i32
  }
  func.func @transform_4(%arg0: i32) -> (i32, i32) {
    %c0_i32 = arith.constant 0 : i32
    %c0_i32_0 = arith.constant 0 : i32
    %c0_i32_1 = arith.constant 0 : i32
    return %c0_i32, %c0_i32_0 : i32, i32
  }
  func.func @transform_5(%arg0: i32) -> (i32, i32) {
    %c0_i32 = arith.constant 0 : i32
    %c0_i32_0 = arith.constant 0 : i32
    %c0_i32_1 = arith.constant 0 : i32
    return %c0_i32, %c0_i32_0 : i32, i32
  }
  func.func @transform_6(%arg0: i32) -> (i32, i32) {
    %c0_i32 = arith.constant 0 : i32
    %c0_i32_0 = arith.constant 0 : i32
    %c0_i32_1 = arith.constant 0 : i32
    return %c0_i32, %c0_i32_0 : i32, i32
  }
  func.func @transform_7(%arg0: i32) -> (i32, i32) {
    %c0_i32 = arith.constant 0 : i32
    %c0_i32_0 = arith.constant 0 : i32
    %c0_i32_1 = arith.constant 0 : i32
    return %c0_i32, %c0_i32_0 : i32, i32
  }
  func.func @transform_8(%arg0: i32) -> (i32, i32) {
    %c0_i32 = arith.constant 0 : i32
    %c0_i32_0 = arith.constant 0 : i32
    %c0_i32_1 = arith.constant 0 : i32
    return %c0_i32, %c0_i32_0 : i32, i32
  }
  func.func @transform_9(%arg0: i32) -> (i32, i32) {
    %c0_i32 = arith.constant 0 : i32
    %c0_i32_0 = arith.constant 0 : i32
    return %arg0, %c0_i32 : i32, i32
  }
}

</mosaic_0001>

<llo_original>
// kernel: lenet_forward_fn.1
$region0: #{lenet_forward_fn.1}
  #allocation0 [shape = 'u32[]', space=smem, size = 0x4, offset = 0x4, fixed_abs, tag = 'smem constant byte address 0x4 - core index']
  #allocation1 [shape = 'u32[144,128]{1,0:T(1,128)}', space=vmem, size = 0x12000, scoped, tag = 'internal scratch']
  %s0 = inlined_call_operand.vmem [shape: bf16[8,4,9,28], index: 0, kind: input, shape index: {}]
  %s1 = inlined_call_operand.hbm [shape: bf16[5,28,768], index: 1, kind: input, shape index: {}]
  %s2 = inlined_call_operand.hbm [shape: f32[1,384], index: 2, kind: input, shape index: {}]
  %s3 = inlined_call_operand.hbm [shape: bf16[5,384,512], index: 3, kind: input, shape index: {}]
  %s4 = inlined_call_operand.hbm [shape: f32[1,256], index: 4, kind: input, shape index: {}]
  %s5 = inlined_call_operand.hbm [shape: bf16[1024,512], index: 5, kind: input, shape index: {}]
  %s6 = inlined_call_operand.hbm [shape: f32[1,512], index: 6, kind: input, shape index: {}]
  %s7 = inlined_call_operand.hbm [shape: bf16[512,128], index: 7, kind: input, shape index: {}]
  %s8 = inlined_call_operand.hbm [shape: f32[1,128], index: 8, kind: input, shape index: {}]
  %s9 = inlined_call_operand.vmem [shape: f32[8,128], index: 9, kind: output, shape index: {}]
  %s10 = sld [smem:[#allocation0]]
  $region78: #{lenet_forward_fn.1} parent=0
    _
  %s12 = ssub.s32 1, %s10
  %s13 = scalar_select 0, %s12, %s10
  $region1: #{lenet_forward_fn.1} parent=0
    #allocation2 [shape = 'u8[245760]{0}', space=vmem, size = 0x3c000, scoped, tag = 'input window, operand 1, single buffered']
    #allocation3 [shape = 's32[1]{0}', space=sflag, size = 0x4, scoped, tag = 'scoped memory for lenet_forward_fn.1']
    #allocation4 [shape = 'u8[1536]{0}', space=vmem, size = 0x800, scoped, tag = 'input window, operand 2, single buffered']
    #allocation5 [shape = 's32[1]{0}', space=sflag, size = 0x4, scoped, tag = 'scoped memory for lenet_forward_fn.1']
    #allocation6 [shape = 'u8[1966080]{0}', space=vmem, size = 0x1e0000, scoped, tag = 'input window, operand 3, single buffered']
    #allocation7 [shape = 'u8[1024]{0}', space=vmem, size = 0x400, scoped, tag = 'input window, operand 4, single buffered']
    #allocation8 [shape = 's32[1]{0}', space=sflag, size = 0x4, scoped, tag = 'scoped memory for lenet_forward_fn.1']
    #allocation9 [shape = 'u8[1048576]{0}', space=vmem, size = 0x100000, scoped, tag = 'input window, operand 5, single buffered']
    #allocation10 [shape = 'u8[2048]{0}', space=vmem, size = 0x800, scoped, tag = 'input window, operand 6, single buffered']
    #allocation11 [shape = 's32[1]{0}', space=sflag, size = 0x4, scoped, tag = 'scoped memory for lenet_forward_fn.1']
    #allocation12 [shape = 'u8[131072]{0}', space=vmem, size = 0x20000, scoped, tag = 'input window, operand 7, single buffered']
    #allocation13 [shape = 'u8[512]{0}', space=vmem, size = 0x400, scoped, tag = 'input window, operand 8, single buffered']
    #allocation14 [shape = 's32[1]{0}', space=sflag, size = 0x4, scoped, tag = 'scoped memory for lenet_forward_fn.1']
    %14 = vsyncpa [#allocation3], 0
    %15 = vsyncpa [#allocation5], 0
    %16 = vsyncpa [#allocation8], 0
    %17 = vsyncpa [#allocation11], 0
    %18 = vsyncpa [#allocation14], 0
    // Predicated region
    $region2: #{lenet_forward_fn.1} parent=1 // pred_check
      _
    $region3: #{lenet_forward_fn.1} parent=1 // pred_check_branch
      %20 = sbr.rel (0) target = $region5
    $region4: #{lenet_forward_fn.1} parent=1 // pred_region
      _
    $region5: #{lenet_forward_fn.1} parent=1 // pred_fallthru
      _
    // Predicated region
    $region6: #{lenet_forward_fn.1} parent=1 // pred_check
      _
    $region7: #{lenet_forward_fn.1} parent=1 // pred_check_branch
      %22 = sbr.rel (0) target = $region9
    $region8: #{lenet_forward_fn.1} parent=1 // pred_region
      %s24 = ssub.s32 7680, 7680
      %25 = vsyncadd [#allocation3], %s24
      %s26 = sshll.u32 [#allocation2], 4
      %s27 = int_to_ptr.vmem [resolvable:$true] %s26
      %32 = dma.hbm_to_vmem [thread:$0]  %s1, 7680, %s27, [#allocation3], 384, 384, 24
    $region9: #{lenet_forward_fn.1} parent=1 // pred_fallthru
      _
    // Predicated region
    $region10: #{lenet_forward_fn.1} parent=1 // pred_check
      _
    $region11: #{lenet_forward_fn.1} parent=1 // pred_check_branch
      %34 = sbr.rel (0) target = $region13
    $region12: #{lenet_forward_fn.1} parent=1 // pred_region
      %s36 = ssub.s32 48, 48
      %37 = vsyncadd [#allocation5], %s36
      %s39 = sshll.u32 [#allocation4], 4
      %s40 = int_to_ptr.vmem [resolvable:$true] %s39
      %42 = dma.hbm_to_vmem [thread:$0]  %s2, 48, %s40, [#allocation5]
    $region13: #{lenet_forward_fn.1} parent=1 // pred_fallthru
      _
    // Predicated region
    $region14: #{lenet_forward_fn.1} parent=1 // pred_check
      _
    $region15: #{lenet_forward_fn.1} parent=1 // pred_check_branch
      %44 = sbr.rel (0) target = $region17
    $region16: #{lenet_forward_fn.1} parent=1 // pred_region
      %s46 = ssub.s32 61440, 61440
      %47 = vsyncadd [#allocation5], %s46
      %s48 = sshll.u32 [#allocation6], 4
      %s49 = int_to_ptr.vmem [resolvable:$true] %s48
      %54 = dma.hbm_to_vmem [thread:$0]  %s3, 61440, %s49, [#allocation5], 256, 256, 16
    $region17: #{lenet_forward_fn.1} parent=1 // pred_fallthru
      _
    // Predicated region
    $region18: #{lenet_forward_fn.1} parent=1 // pred_check
      _
    $region19: #{lenet_forward_fn.1} parent=1 // pred_check_branch
      %56 = sbr.rel (0) target = $region21
    $region20: #{lenet_forward_fn.1} parent=1 // pred_region
      %s58 = ssub.s32 32, 32
      %59 = vsyncadd [#allocation8], %s58
      %s61 = sshll.u32 [#allocation7], 4
      %s62 = int_to_ptr.vmem [resolvable:$true] %s61
      %64 = dma.hbm_to_vmem [thread:$0]  %s4, 32, %s62, [#allocation8]
    $region21: #{lenet_forward_fn.1} parent=1 // pred_fallthru
      _
    // Predicated region
    $region22: #{lenet_forward_fn.1} parent=1 // pred_check
      _
    $region23: #{lenet_forward_fn.1} parent=1 // pred_check_branch
      %66 = sbr.rel (0) target = $region25
    $region24: #{lenet_forward_fn.1} parent=1 // pred_region
      %s68 = ssub.s32 32768, 32768
      %69 = vsyncadd [#allocation8], %s68
      %s70 = sshll.u32 [#allocation9], 4
      %s71 = int_to_ptr.vmem [resolvable:$true] %s70
      %76 = dma.hbm_to_vmem [thread:$0]  %s5, 32768, %s71, [#allocation8], 256, 256, 16
    $region25: #{lenet_forward_fn.1} parent=1 // pred_fallthru
      _
    // Predicated region
    $region26: #{lenet_forward_fn.1} parent=1 // pred_check
      _
    $region27: #{lenet_forward_fn.1} parent=1 // pred_check_branch
      %78 = sbr.rel (0) target = $region29
    $region28: #{lenet_forward_fn.1} parent=1 // pred_region
      %s80 = ssub.s32 64, 64
      %81 = vsyncadd [#allocation11], %s80
      %s83 = sshll.u32 [#allocation10], 4
      %s84 = int_to_ptr.vmem [resolvable:$true] %s83
      %86 = dma.hbm_to_vmem [thread:$0]  %s6, 64, %s84, [#allocation11]
    $region29: #{lenet_forward_fn.1} parent=1 // pred_fallthru
      _
    // Predicated region
    $region30: #{lenet_forward_fn.1} parent=1 // pred_check
      _
    $region31: #{lenet_forward_fn.1} parent=1 // pred_check_branch
      %88 = sbr.rel (0) target = $region33
    $region32: #{lenet_forward_fn.1} parent=1 // pred_region
      %s90 = ssub.s32 4096, 4096
      %91 = vsyncadd [#allocation11], %s90
      %s92 = sshll.u32 [#allocation12], 4
      %s93 = int_to_ptr.vmem [resolvable:$true] %s92
      %98 = dma.hbm_to_vmem [thread:$0]  %s7, 4096, %s93, [#allocation11], 64, 64, 4
    $region33: #{lenet_forward_fn.1} parent=1 // pred_fallthru
      _
    // Predicated region
    $region34: #{lenet_forward_fn.1} parent=1 // pred_check
      _
    $region35: #{lenet_forward_fn.1} parent=1 // pred_check_branch
      %100 = sbr.rel (0) target = $region37
    $region36: #{lenet_forward_fn.1} parent=1 // pred_region
      %s102 = ssub.s32 16, 16
      %103 = vsyncadd [#allocation14], %s102
      %s105 = sshll.u32 [#allocation13], 4
      %s106 = int_to_ptr.vmem [resolvable:$true] %s105
      %108 = dma.hbm_to_vmem [thread:$0]  %s8, 16, %s106, [#allocation14]
    $region37: #{lenet_forward_fn.1} parent=1 // pred_fallthru
      _
    // Predicated region
    $region38: #{lenet_forward_fn.1} parent=1 // pred_check
      _
    $region39: #{lenet_forward_fn.1} parent=1 // pred_check_branch
      %110 = sbr.rel (0) target = $region41
    $region40: #{lenet_forward_fn.1} parent=1 // pred_region
      %111 = dma.done [#allocation3], 7680
    $region41: #{lenet_forward_fn.1} parent=1 // pred_fallthru
      _
    // Predicated region
    $region42: #{lenet_forward_fn.1} parent=1 // pred_check
      _
    $region43: #{lenet_forward_fn.1} parent=1 // pred_check_branch
      %113 = sbr.rel (0) target = $region45
    $region44: #{lenet_forward_fn.1} parent=1 // pred_region
      %114 = dma.done [#allocation5], 48
    $region45: #{lenet_forward_fn.1} parent=1 // pred_fallthru
      _
    // Predicated region
    $region46: #{lenet_forward_fn.1} parent=1 // pred_check
      _
    $region47: #{lenet_forward_fn.1} parent=1 // pred_check_branch
      %116 = sbr.rel (0) target = $region49
    $region48: #{lenet_forward_fn.1} parent=1 // pred_region
      %117 = dma.done [#allocation5], 61440
    $region49: #{lenet_forward_fn.1} parent=1 // pred_fallthru
      _
    // Predicated region
    $region50: #{lenet_forward_fn.1} parent=1 // pred_check
      _
    $region51: #{lenet_forward_fn.1} parent=1 // pred_check_branch
      %119 = sbr.rel (0) target = $region53
    $region52: #{lenet_forward_fn.1} parent=1 // pred_region
      %120 = dma.done [#allocation8], 32
    $region53: #{lenet_forward_fn.1} parent=1 // pred_fallthru
      _
    // Predicated region
    $region54: #{lenet_forward_fn.1} parent=1 // pred_check
      _
    $region55: #{lenet_forward_fn.1} parent=1 // pred_check_branch
      %122 = sbr.rel (0) target = $region57
    $region56: #{lenet_forward_fn.1} parent=1 // pred_region
      %123 = dma.done [#allocation8], 32768
    $region57: #{lenet_forward_fn.1} parent=1 // pred_fallthru
      _
    // Predicated region
    $region58: #{lenet_forward_fn.1} parent=1 // pred_check
      _
    $region59: #{lenet_forward_fn.1} parent=1 // pred_check_branch
      %125 = sbr.rel (0) target = $region61
    $region60: #{lenet_forward_fn.1} parent=1 // pred_region
      %126 = dma.done [#allocation11], 64
    $region61: #{lenet_forward_fn.1} parent=1 // pred_fallthru
      _
    // Predicated region
    $region62: #{lenet_forward_fn.1} parent=1 // pred_check
      _
    $region63: #{lenet_forward_fn.1} parent=1 // pred_check_branch
      %128 = sbr.rel (0) target = $region65
    $region64: #{lenet_forward_fn.1} parent=1 // pred_region
      %129 = dma.done [#allocation11], 4096
    $region65: #{lenet_forward_fn.1} parent=1 // pred_fallthru
      _
    // Predicated region
    $region66: #{lenet_forward_fn.1} parent=1 // pred_check
      _
    $region67: #{lenet_forward_fn.1} parent=1 // pred_check_branch
      %131 = sbr.rel (0) target = $region69
    $region68: #{lenet_forward_fn.1} parent=1 // pred_region
      %132 = dma.done [#allocation14], 16
    $region69: #{lenet_forward_fn.1} parent=1 // pred_fallthru
      _
    %v134 = vld [vmem:[%s0] sm:$0xf]
    %v135 = vld [vmem:[%s0 + $0x20] sm:$0xf]
    %v136 = vld [vmem:[%s0 + $0x40] sm:$0xf]
    %v137 = vld [vmem:[%s0 + $0x60] sm:$0xf]
    %v138 = vld [vmem:[%s0 + $0x80] sm:$0xf]
    %v139 = vld [vmem:[%s0 + $0xa0] sm:$0xf]
    %v140 = vld [vmem:[%s0 + $0xc0] sm:$0xf]
    %v141 = vld [vmem:[%s0 + $0xe0] sm:$0xf]
    %s142 = scalar_lea.vmem %s0, 16
    %v143 = vld [vmem:[%s142] sm:$0xf]
    %v144 = vld [vmem:[%s142 + $0x20] sm:$0xf]
    %v145 = vld [vmem:[%s142 + $0x40] sm:$0xf]
    %v146 = vld [vmem:[%s142 + $0x60] sm:$0xf]
    %v147 = vld [vmem:[%s142 + $0x80] sm:$0xf]
    %v148 = vld [vmem:[%s142 + $0xa0] sm:$0xf]
    %v149 = vld [vmem:[%s142 + $0xc0] sm:$0xf]
    %v150 = vld [vmem:[%s142 + $0xe0] sm:$0xf]
    %s151 = scalar_lea.vmem %s0, 8
    %v152 = vld [vmem:[%s151] sm:$0xf]
    %v153 = vld [vmem:[%s151 + $0x20] sm:$0xf]
    %v154 = vld [vmem:[%s151 + $0x40] sm:$0xf]
    %v155 = vld [vmem:[%s151 + $0x60] sm:$0xf]
    %v156 = vld [vmem:[%s151 + $0x80] sm:$0xf]
    %v157 = vld [vmem:[%s151 + $0xa0] sm:$0xf]
    %v158 = vld [vmem:[%s151 + $0xc0] sm:$0xf]
    %v159 = vld [vmem:[%s151 + $0xe0] sm:$0xf]
    %s160 = scalar_lea.vmem %s0, 24
    %v161 = vld [vmem:[%s160] sm:$0xf]
    %v162 = vld [vmem:[%s160 + $0x20] sm:$0xf]
    %v163 = vld [vmem:[%s160 + $0x40] sm:$0xf]
    %v164 = vld [vmem:[%s160 + $0x60] sm:$0xf]
    %v165 = vld [vmem:[%s160 + $0x80] sm:$0xf]
    %v166 = vld [vmem:[%s160 + $0xa0] sm:$0xf]
    %v167 = vld [vmem:[%s160 + $0xc0] sm:$0xf]
    %v168 = vld [vmem:[%s160 + $0xe0] sm:$0xf]
    %v169 = vld [vmem:[#allocation2] sm:$0xff]
    %v170 = vld [vmem:[#allocation2 + $0x8] sm:$0xff]
    %v171 = vld [vmem:[#allocation2 + $0x10] sm:$0xff]
    %v172 = vld [vmem:[#allocation2 + $0x18] sm:$0xff]
    %v173 = vld [vmem:[#allocation2 + $0x20] sm:$0xff]
    %v174 = vld [vmem:[#allocation2 + $0x28] sm:$0xff]
    %v175 = vld [vmem:[#allocation2 + $0x30] sm:$0xff]
    %v176 = vld [vmem:[#allocation2 + $0x38] sm:$0xff]
    %v177 = vld [vmem:[#allocation2 + $0x40] sm:$0xff]
    %v178 = vld [vmem:[#allocation2 + $0x48] sm:$0x33]
    %v179 = vld [vmem:[#allocation2 + $0x50] sm:$0x33]
    %v180 = vld [vmem:[#allocation2 + $0x58] sm:$0x33]
    %v181 = vld [vmem:[%s0 + $0x4] sm:$0x1]
    %v182 = vld [vmem:[%s0 + $0x24] sm:$0x1]
    %v183 = vld [vmem:[%s0 + $0x44] sm:$0x1]
    %v184 = vld [vmem:[%s0 + $0x64] sm:$0x1]
    %v185 = vld [vmem:[%s0 + $0x84] sm:$0x1]
    %v186 = vld [vmem:[%s0 + $0xa4] sm:$0x1]
    %v187 = vld [vmem:[%s0 + $0xc4] sm:$0x1]
    %v188 = vld [vmem:[%s0 + $0xe4] sm:$0x1]
    %vm189 = vsmask.f32 3328
    %vm190 = vsmask.f32 7440
    %vm191 = vmor %vm189, %vm190
    %v193 = vshrl.u32 %v134, 16
    %v195 = vrot.slane %v193, 4
    %v196 = vshll.u32 %v134, 16
    %v198 = vrot.slane %v196, 5
    %v199 = vor.u32 %v195, %v198
    %v200 = vrot.slane %v199, 4
    %v202 = vshll.u32 %v181, 16
    %v204 = vrot.slane %v202, 5
    %v205 = vsel %vm191, %v200, %v204
    %v207 = vshrl.u32 %v135, 16
    %v209 = vrot.slane %v207, 4
    %v210 = vshll.u32 %v135, 16
    %v212 = vrot.slane %v210, 5
    %v213 = vor.u32 %v209, %v212
    %v214 = vrot.slane %v213, 4
    %v216 = vshll.u32 %v182, 16
    %v218 = vrot.slane %v216, 5
    %v219 = vsel %vm191, %v214, %v218
    %v221 = vshrl.u32 %v136, 16
    %v223 = vrot.slane %v221, 4
    %v224 = vshll.u32 %v136, 16
    %v226 = vrot.slane %v224, 5
    %v227 = vor.u32 %v223, %v226
    %v228 = vrot.slane %v227, 4
    %v230 = vshll.u32 %v183, 16
    %v232 = vrot.slane %v230, 5
    %v233 = vsel %vm191, %v228, %v232
    %v235 = vshrl.u32 %v137, 16
    %v237 = vrot.slane %v235, 4
    %v238 = vshll.u32 %v137, 16
    %v240 = vrot.slane %v238, 5
    %v241 = vor.u32 %v237, %v240
    %v242 = vrot.slane %v241, 4
    %v244 = vshll.u32 %v184, 16
    %v246 = vrot.slane %v244, 5
    %v247 = vsel %vm191, %v242, %v246
    %v249 = vshrl.u32 %v138, 16
    %v251 = vrot.slane %v249, 4
    %v252 = vshll.u32 %v138, 16
    %v254 = vrot.slane %v252, 5
    %v255 = vor.u32 %v251, %v254
    %v256 = vrot.slane %v255, 4
    %v258 = vshll.u32 %v185, 16
    %v260 = vrot.slane %v258, 5
    %v261 = vsel %vm191, %v256, %v260
    %v263 = vshrl.u32 %v139, 16
    %v265 = vrot.slane %v263, 4
    %v266 = vshll.u32 %v139, 16
    %v268 = vrot.slane %v266, 5
    %v269 = vor.u32 %v265, %v268
    %v270 = vrot.slane %v269, 4
    %v272 = vshll.u32 %v186, 16
    %v274 = vrot.slane %v272, 5
    %v275 = vsel %vm191, %v270, %v274
    %v277 = vshrl.u32 %v140, 16
    %v279 = vrot.slane %v277, 4
    %v280 = vshll.u32 %v140, 16
    %v282 = vrot.slane %v280, 5
    %v283 = vor.u32 %v279, %v282
    %v284 = vrot.slane %v283, 4
    %v286 = vshll.u32 %v187, 16
    %v288 = vrot.slane %v286, 5
    %v289 = vsel %vm191, %v284, %v288
    %v291 = vshrl.u32 %v141, 16
    %v293 = vrot.slane %v291, 4
    %v294 = vshll.u32 %v141, 16
    %v296 = vrot.slane %v294, 5
    %v297 = vor.u32 %v293, %v296
    %v298 = vrot.slane %v297, 4
    %v300 = vshll.u32 %v188, 16
    %v302 = vrot.slane %v300, 5
    %v303 = vsel %vm191, %v298, %v302
    %s304 = scalar_lea.vmem [#allocation2], 96
    %v305 = vld [vmem:[%s304] sm:$0xff]
    %v306 = vld [vmem:[%s304 + $0x8] sm:$0xff]
    %v307 = vld [vmem:[%s304 + $0x10] sm:$0xff]
    %v308 = vld [vmem:[%s304 + $0x18] sm:$0xff]
    %v309 = vld [vmem:[%s304 + $0x20] sm:$0xff]
    %v310 = vld [vmem:[%s304 + $0x28] sm:$0xff]
    %v311 = vld [vmem:[%s304 + $0x30] sm:$0xff]
    %v312 = vld [vmem:[%s304 + $0x38] sm:$0xff]
    %v313 = vld [vmem:[%s304 + $0x40] sm:$0xff]
    %v314 = vld [vmem:[%s304 + $0x48] sm:$0x33]
    %v315 = vld [vmem:[%s304 + $0x50] sm:$0x33]
    %v316 = vld [vmem:[%s304 + $0x58] sm:$0x33]
    %v341 = vunpack.c.l.b16 %v152
    %v342 = vunpack.c.l.b16 %v153
    %v343 = vunpack.c.l.b16 %v154
    %v344 = vunpack.c.l.b16 %v155
    %v345 = vunpack.c.l.b16 %v156
    %v346 = vunpack.c.l.b16 %v157
    %v347 = vunpack.c.l.b16 %v158
    %v348 = vunpack.c.l.b16 %v159
    %v349 = vunpack.c.l.b16 %v161
    %v350 = vunpack.c.l.b16 %v162
    %v351 = vunpack.c.l.b16 %v163
    %v352 = vunpack.c.l.b16 %v164
    %v353 = vunpack.c.l.b16 %v165
    %v354 = vunpack.c.l.b16 %v166
    %v355 = vunpack.c.l.b16 %v167
    %v356 = vunpack.c.l.b16 %v168
    %v357 = vunpack.c.l.b16 %v143
    %v358 = vunpack.c.l.b16 %v144
    %v359 = vunpack.c.l.b16 %v145
    %v360 = vunpack.c.l.b16 %v146
    %v361 = vunpack.c.l.b16 %v147
    %v362 = vunpack.c.l.b16 %v148
    %v363 = vunpack.c.l.b16 %v149
    %v364 = vunpack.c.l.b16 %v150
    %v365 = vunpack.c.l.b16 %v205
    %v366 = vunpack.c.l.b16 %v219
    %v367 = vunpack.c.l.b16 %v233
    %v368 = vunpack.c.l.b16 %v247
    %v369 = vunpack.c.l.b16 %v261
    %v370 = vunpack.c.l.b16 %v275
    %v371 = vunpack.c.l.b16 %v289
    %v372 = vunpack.c.l.b16 %v303
    %v373 = vpack.c.b16 %v342, %v341
    %v374 = vpack.c.b16 %v344, %v343
    %v375 = vpack.c.b16 %v346, %v345
    %v376 = vpack.c.b16 %v348, %v347
    %v377 = vpack.c.b16 %v350, %v349
    %v378 = vpack.c.b16 %v352, %v351
    %v379 = vpack.c.b16 %v354, %v353
    %v380 = vpack.c.b16 %v356, %v355
    %v381 = vpack.c.b16 %v358, %v357
    %v382 = vpack.c.b16 %v360, %v359
    %v383 = vpack.c.b16 %v362, %v361
    %v384 = vpack.c.b16 %v364, %v363
    %v385 = vpack.c.b16 %v366, %v365
    %v386 = vpack.c.b16 %v368, %v367
    %v387 = vpack.c.b16 %v370, %v369
    %v388 = vpack.c.b16 %v372, %v371
    %v401 = vunpack.c.l.b16 %v305
    %v402 = vunpack.c.h.b16 %v305
    %v403 = vunpack.c.l.b16 %v306
    %v404 = vunpack.c.h.b16 %v306
    %v405 = vunpack.c.l.b16 %v307
    %v406 = vunpack.c.h.b16 %v307
    %v407 = vunpack.c.l.b16 %v308
    %v408 = vunpack.c.h.b16 %v308
    %v409 = vunpack.c.l.b16 %v309
    %v410 = vunpack.c.h.b16 %v309
    %v411 = vunpack.c.l.b16 %v310
    %v412 = vunpack.c.h.b16 %v310
    %v413 = vunpack.c.l.b16 %v311
    %v414 = vunpack.c.h.b16 %v311
    %v415 = vunpack.c.l.b16 %v312
    %v416 = vunpack.c.h.b16 %v312
    %v417 = vunpack.c.l.b16 %v313
    %v418 = vunpack.c.h.b16 %v313
    %v419 = vunpack.c.l.b16 %v314
    %v420 = vunpack.c.h.b16 %v314
    %v421 = vunpack.c.l.b16 %v315
    %v422 = vunpack.c.h.b16 %v315
    %v423 = vunpack.c.l.b16 %v316
    %v424 = vunpack.c.h.b16 %v316
    %v425 = vpack.c.b16 %v407, %v401
    %v426 = vpack.c.b16 %v408, %v402
    %v427 = vpack.c.b16 %v409, %v403
    %v428 = vpack.c.b16 %v410, %v404
    %v429 = vpack.c.b16 %v411, %v405
    %v430 = vpack.c.b16 %v412, %v406
    %v431 = vpack.c.b16 %v419, %v413
    %v432 = vpack.c.b16 %v420, %v414
    %v433 = vpack.c.b16 %v421, %v415
    %v434 = vpack.c.b16 %v422, %v416
    %v435 = vpack.c.b16 %v423, %v417
    %v436 = vpack.c.b16 %v424, %v418
    %vm443 = vcmask 228352
    %v445 = vsel %vm443, %v373, 0
    %v448 = vsel %vm443, %v374, 0
    %v451 = vsel %vm443, %v375, 0
    %v454 = vsel %vm443, %v376, 0
    %v457 = vsel %vm443, %v377, 0
    %v460 = vsel %vm443, %v378, 0
    %v463 = vsel %vm443, %v379, 0
    %v466 = vsel %vm443, %v380, 0
    %v469 = vsel %vm443, %v381, 0
    %v472 = vsel %vm443, %v382, 0
    %v475 = vsel %vm443, %v383, 0
    %v478 = vsel %vm443, %v384, 0
    %v481 = vsel %vm443, %v385, 0
    %v484 = vsel %vm443, %v386, 0
    %v487 = vsel %vm443, %v387, 0
    %v490 = vsel %vm443, %v388, 0
    %vm492 = vcmask 1045504
    %v494 = vsel %vm492, %v431, 0
    %v497 = vsel %vm492, %v432, 0
    %v500 = vsel %vm492, %v433, 0
    %v503 = vsel %vm492, %v434, 0
    %v506 = vsel %vm492, %v435, 0
    %v509 = vsel %vm492, %v436, 0
    %511 = vmatprep.subr.bf16.mxu0 0
    %512 = vmatpush1.bf16.msra.mxu0 0
    %513 = vmatprep.subr.bf16.mxu0 0
    %514 = vmatpush1.bf16.msra.mxu0 0
    %515 = vmatprep.subr.bf16.mxu0 0
    %516 = vmatpush1.bf16.msra.mxu0 0
    %517 = vmatprep.subr.bf16.mxu0 0
    %518 = vmatpush1.bf16.msra.mxu0 0
    %519 = vmatprep.subr.bf16.mxu0 0
    %520 = vmatpush1.bf16.msra.mxu0 0
    %521 = vmatprep.subr.bf16.mxu0 0
    %522 = vmatpush1.bf16.msra.mxu0 0
    %523 = vmatprep.subr.bf16.mxu0 %v497
    %524 = vmatpush1.bf16.msra.mxu0 %v494
    %525 = vmatprep.subr.bf16.mxu0 %v426
    %526 = vmatpush1.bf16.msra.mxu0 %v425
    %527 = vmatprep.subr.bf16.mxu0 0
    %528 = vmatpush2.bf16.msra.mxu0 0
    %529 = vmatprep.subr.bf16.mxu0 0
    %530 = vmatpush2.bf16.msra.mxu0 0
    %531 = vmatprep.subr.bf16.mxu0 0
    %532 = vmatpush2.bf16.msra.mxu0 0
    %533 = vmatprep.subr.bf16.mxu0 0
    %534 = vmatpush2.bf16.msra.mxu0 0
    %535 = vmatprep.subr.bf16.mxu0 0
    %536 = vmatpush2.bf16.msra.mxu0 0
    %537 = vmatprep.subr.bf16.mxu0 0
    %538 = vmatpush2.bf16.msra.mxu0 0
    %539 = vmatprep.subr.bf16.mxu0 0
    %540 = vmatpush2.bf16.msra.mxu0 0
    %541 = vmatprep.subr.bf16.mxu0 0
    %542 = vmatpush2.bf16.msra.mxu0 0
    %543 = vmatprep.mubr.bf16.mxu0 0
    %544 = vmatmul.mubr.bf16.gmra.mxu0 %v445
    %v545 = vpop.f32.mrf.mxu0
    %v546 = vadd.f32 0.0, %v545
    %v547 = vpop.f32.mrf.mxu0
    %v548 = vadd.f32 0.0, %v547
    %v549 = vpop.f32.mrf.mxu0
    %v550 = vadd.f32 0.0, %v549
    %v551 = vpop.f32.mrf.mxu0
    %v552 = vadd.f32 0.0, %v551
    %553 = vmatprep.mubr.bf16.mxu0 0
    %554 = vmatmul.mubr.bf16.gmra.mxu0 %v448
    %v555 = vpop.f32.mrf.mxu0
    %v556 = vadd.f32 0.0, %v555
    %v557 = vpop.f32.mrf.mxu0
    %v558 = vadd.f32 0.0, %v557
    %v559 = vpop.f32.mrf.mxu0
    %v560 = vadd.f32 0.0, %v559
    %v561 = vpop.f32.mrf.mxu0
    %v562 = vadd.f32 0.0, %v561
    %563 = vmatprep.mubr.bf16.mxu0 0
    %564 = vmatmul.mubr.bf16.gmra.mxu0 %v451
    %v565 = vpop.f32.mrf.mxu0
    %v566 = vadd.f32 0.0, %v565
    %v567 = vpop.f32.mrf.mxu0
    %v568 = vadd.f32 0.0, %v567
    %v569 = vpop.f32.mrf.mxu0
    %v570 = vadd.f32 0.0, %v569
    %v571 = vpop.f32.mrf.mxu0
    %v572 = vadd.f32 0.0, %v571
    %573 = vmatprep.mubr.bf16.mxu0 0
    %574 = vmatmul.mubr.bf16.gmra.mxu0 %v454
    %v575 = vpop.f32.mrf.mxu0
    %v576 = vadd.f32 0.0, %v575
    %v577 = vpop.f32.mrf.mxu0
    %v578 = vadd.f32 0.0, %v577
    %v579 = vpop.f32.mrf.mxu0
    %v580 = vadd.f32 0.0, %v579
    %v581 = vpop.f32.mrf.mxu0
    %v582 = vadd.f32 0.0, %v581
    %583 = vmatprep.mubr.bf16.mxu0 0
    %584 = vmatmul.mubr.bf16.gmra.mxu0 %v457
    %v585 = vpop.f32.mrf.mxu0
    %v586 = vadd.f32 0.0, %v585
    %v587 = vpop.f32.mrf.mxu0
    %v588 = vadd.f32 0.0, %v587
    %v589 = vpop.f32.mrf.mxu0
    %v590 = vadd.f32 0.0, %v589
    %v591 = vpop.f32.mrf.mxu0
    %v592 = vadd.f32 0.0, %v591
    %593 = vmatprep.mubr.bf16.mxu0 0
    %594 = vmatmul.mubr.bf16.gmra.mxu0 %v460
    %v595 = vpop.f32.mrf.mxu0
    %v596 = vadd.f32 0.0, %v595
    %v597 = vpop.f32.mrf.mxu0
    %v598 = vadd.f32 0.0, %v597
    %v599 = vpop.f32.mrf.mxu0
    %v600 = vadd.f32 0.0, %v599
    %v601 = vpop.f32.mrf.mxu0
    %v602 = vadd.f32 0.0, %v601
    %603 = vmatprep.mubr.bf16.mxu0 0
    %604 = vmatmul.mubr.bf16.gmra.mxu0 %v463
    %v605 = vpop.f32.mrf.mxu0
    %v606 = vadd.f32 0.0, %v605
    %v607 = vpop.f32.mrf.mxu0
    %v608 = vadd.f32 0.0, %v607
    %v609 = vpop.f32.mrf.mxu0
    %v610 = vadd.f32 0.0, %v609
    %v611 = vpop.f32.mrf.mxu0
    %v612 = vadd.f32 0.0, %v611
    %613 = vmatprep.mubr.bf16.mxu0 0
    %614 = vmatmul.mubr.bf16.gmra.mxu0 %v466
    %v615 = vpop.f32.mrf.mxu0
    %v616 = vadd.f32 0.0, %v615
    %v617 = vpop.f32.mrf.mxu0
    %v618 = vadd.f32 0.0, %v617
    %v619 = vpop.f32.mrf.mxu0
    %v620 = vadd.f32 0.0, %v619
    %v621 = vpop.f32.mrf.mxu0
    %v622 = vadd.f32 0.0, %v621
    %623 = vmatprep.mubr.bf16.mxu0 0
    %624 = vmatmul.mubr.bf16.gmra.mxu0 %v469
    %v625 = vpop.f32.mrf.mxu0
    %v626 = vadd.f32 0.0, %v625
    %v627 = vpop.f32.mrf.mxu0
    %v628 = vadd.f32 0.0, %v627
    %v629 = vpop.f32.mrf.mxu0
    %v630 = vadd.f32 0.0, %v629
    %v631 = vpop.f32.mrf.mxu0
    %v632 = vadd.f32 0.0, %v631
    %633 = vmatprep.mubr.bf16.mxu0 0
    %634 = vmatmul.mubr.bf16.gmra.mxu0 %v472
    %v635 = vpop.f32.mrf.mxu0
    %v636 = vadd.f32 0.0, %v635
    %v637 = vpop.f32.mrf.mxu0
    %v638 = vadd.f32 0.0, %v637
    %v639 = vpop.f32.mrf.mxu0
    %v640 = vadd.f32 0.0, %v639
    %v641 = vpop.f32.mrf.mxu0
    %v642 = vadd.f32 0.0, %v641
    %643 = vmatprep.mubr.bf16.mxu0 0
    %644 = vmatmul.mubr.bf16.gmra.mxu0 %v475
    %v645 = vpop.f32.mrf.mxu0
    %v646 = vadd.f32 0.0, %v645
    %v647 = vpop.f32.mrf.mxu0
    %v648 = vadd.f32 0.0, %v647
    %v649 = vpop.f32.mrf.mxu0
    %v650 = vadd.f32 0.0, %v649
    %v651 = vpop.f32.mrf.mxu0
    %v652 = vadd.f32 0.0, %v651
    %653 = vmatprep.mubr.bf16.mxu0 0
    %654 = vmatmul.mubr.bf16.gmra.mxu0 %v478
    %v655 = vpop.f32.mrf.mxu0
    %v656 = vadd.f32 0.0, %v655
    %v657 = vpop.f32.mrf.mxu0
    %v658 = vadd.f32 0.0, %v657
    %v659 = vpop.f32.mrf.mxu0
    %v660 = vadd.f32 0.0, %v659
    %v661 = vpop.f32.mrf.mxu0
    %v662 = vadd.f32 0.0, %v661
    %663 = vmatprep.mubr.bf16.mxu0 0
    %664 = vmatmul.mubr.bf16.gmra.mxu0 %v481
    %v665 = vpop.f32.mrf.mxu0
    %v666 = vadd.f32 0.0, %v665
    %v667 = vpop.f32.mrf.mxu0
    %v668 = vadd.f32 0.0, %v667
    %v669 = vpop.f32.mrf.mxu0
    %v670 = vadd.f32 0.0, %v669
    %v671 = vpop.f32.mrf.mxu0
    %v672 = vadd.f32 0.0, %v671
    %673 = vmatprep.mubr.bf16.mxu0 0
    %674 = vmatmul.mubr.bf16.gmra.mxu0 %v484
    %v675 = vpop.f32.mrf.mxu0
    %v676 = vadd.f32 0.0, %v675
    %v677 = vpop.f32.mrf.mxu0
    %v678 = vadd.f32 0.0, %v677
    %v679 = vpop.f32.mrf.mxu0
    %v680 = vadd.f32 0.0, %v679
    %v681 = vpop.f32.mrf.mxu0
    %v682 = vadd.f32 0.0, %v681
    %683 = vmatprep.mubr.bf16.mxu0 0
    %684 = vmatmul.mubr.bf16.gmra.mxu0 %v487
    %v685 = vpop.f32.mrf.mxu0
    %v686 = vadd.f32 0.0, %v685
    %v687 = vpop.f32.mrf.mxu0
    %v688 = vadd.f32 0.0, %v687
    %v689 = vpop.f32.mrf.mxu0
    %v690 = vadd.f32 0.0, %v689
    %v691 = vpop.f32.mrf.mxu0
    %v692 = vadd.f32 0.0, %v691
    %693 = vmatprep.mubr.bf16.mxu0 0
    %694 = vmatmul.mubr.bf16.gmra.mxu0 %v490
    %v695 = vpop.f32.mrf.mxu0
    %v696 = vadd.f32 0.0, %v695
    %v697 = vpop.f32.mrf.mxu0
    %v698 = vadd.f32 0.0, %v697
    %v699 = vpop.f32.mrf.mxu0
    %v700 = vadd.f32 0.0, %v699
    %v701 = vpop.f32.mrf.mxu0
    %v702 = vadd.f32 0.0, %v701
    %703 = vdwg.mxu0
    %704 = vmatprep.subr.bf16.mxu0 0
    %705 = vmatpush1.bf16.msra.mxu0 0
    %706 = vmatprep.subr.bf16.mxu0 0
    %707 = vmatpush1.bf16.msra.mxu0 0
    %708 = vmatprep.subr.bf16.mxu0 0
    %709 = vmatpush1.bf16.msra.mxu0 0
    %710 = vmatprep.subr.bf16.mxu0 0
    %711 = vmatpush1.bf16.msra.mxu0 0
    %712 = vmatprep.subr.bf16.mxu0 0
    %713 = vmatpush1.bf16.msra.mxu0 0
    %714 = vmatprep.subr.bf16.mxu0 0
    %715 = vmatpush1.bf16.msra.mxu0 0
    %716 = vmatprep.subr.bf16.mxu0 %v503
    %717 = vmatpush1.bf16.msra.mxu0 %v500
    %718 = vmatprep.subr.bf16.mxu0 %v428
    %719 = vmatpush1.bf16.msra.mxu0 %v427
    %720 = vmatprep.subr.bf16.mxu0 0
    %721 = vmatpush2.bf16.msra.mxu0 0
    %722 = vmatprep.subr.bf16.mxu0 0
    %723 = vmatpush2.bf16.msra.mxu0 0
    %724 = vmatprep.subr.bf16.mxu0 0
    %725 = vmatpush2.bf16.msra.mxu0 0
    %726 = vmatprep.subr.bf16.mxu0 0
    %727 = vmatpush2.bf16.msra.mxu0 0
    %728 = vmatprep.subr.bf16.mxu0 0
    %729 = vmatpush2.bf16.msra.mxu0 0
    %730 = vmatprep.subr.bf16.mxu0 0
    %731 = vmatpush2.bf16.msra.mxu0 0
    %732 = vmatprep.subr.bf16.mxu0 0
    %733 = vmatpush2.bf16.msra.mxu0 0
    %734 = vmatprep.subr.bf16.mxu0 0
    %735 = vmatpush2.bf16.msra.mxu0 0
    %736 = vmatprep.mubr.bf16.mxu0 0
    %737 = vmatmul.mubr.bf16.gmra.mxu0 %v445
    %v738 = vpop.f32.mrf.mxu0
    %v739 = vadd.f32 0.0, %v738
    %v740 = vpop.f32.mrf.mxu0
    %v741 = vadd.f32 0.0, %v740
    %v742 = vpop.f32.mrf.mxu0
    %v743 = vadd.f32 0.0, %v742
    %v744 = vpop.f32.mrf.mxu0
    %v745 = vadd.f32 0.0, %v744
    %746 = vmatprep.mubr.bf16.mxu0 0
    %747 = vmatmul.mubr.bf16.gmra.mxu0 %v448
    %v748 = vpop.f32.mrf.mxu0
    %v749 = vadd.f32 0.0, %v748
    %v750 = vpop.f32.mrf.mxu0
    %v751 = vadd.f32 0.0, %v750
    %v752 = vpop.f32.mrf.mxu0
    %v753 = vadd.f32 0.0, %v752
    %v754 = vpop.f32.mrf.mxu0
    %v755 = vadd.f32 0.0, %v754
    %756 = vmatprep.mubr.bf16.mxu0 0
    %757 = vmatmul.mubr.bf16.gmra.mxu0 %v451
    %v758 = vpop.f32.mrf.mxu0
    %v759 = vadd.f32 0.0, %v758
    %v760 = vpop.f32.mrf.mxu0
    %v761 = vadd.f32 0.0, %v760
    %v762 = vpop.f32.mrf.mxu0
    %v763 = vadd.f32 0.0, %v762
    %v764 = vpop.f32.mrf.mxu0
    %v765 = vadd.f32 0.0, %v764
    %766 = vmatprep.mubr.bf16.mxu0 0
    %767 = vmatmul.mubr.bf16.gmra.mxu0 %v454
    %v768 = vpop.f32.mrf.mxu0
    %v769 = vadd.f32 0.0, %v768
    %v770 = vpop.f32.mrf.mxu0
    %v771 = vadd.f32 0.0, %v770
    %v772 = vpop.f32.mrf.mxu0
    %v773 = vadd.f32 0.0, %v772
    %v774 = vpop.f32.mrf.mxu0
    %v775 = vadd.f32 0.0, %v774
    %776 = vmatprep.mubr.bf16.mxu0 0
    %777 = vmatmul.mubr.bf16.gmra.mxu0 %v457
    %v778 = vpop.f32.mrf.mxu0
    %v779 = vadd.f32 0.0, %v778
    %v780 = vpop.f32.mrf.mxu0
    %v781 = vadd.f32 0.0, %v780
    %v782 = vpop.f32.mrf.mxu0
    %v783 = vadd.f32 0.0, %v782
    %v784 = vpop.f32.mrf.mxu0
    %v785 = vadd.f32 0.0, %v784
    %786 = vmatprep.mubr.bf16.mxu0 0
    %787 = vmatmul.mubr.bf16.gmra.mxu0 %v460
    %v788 = vpop.f32.mrf.mxu0
    %v789 = vadd.f32 0.0, %v788
    %v790 = vpop.f32.mrf.mxu0
    %v791 = vadd.f32 0.0, %v790
    %v792 = vpop.f32.mrf.mxu0
    %v793 = vadd.f32 0.0, %v792
    %v794 = vpop.f32.mrf.mxu0
    %v795 = vadd.f32 0.0, %v794
    %796 = vmatprep.mubr.bf16.mxu0 0
    %797 = vmatmul.mubr.bf16.gmra.mxu0 %v463
    %v798 = vpop.f32.mrf.mxu0
    %v799 = vadd.f32 0.0, %v798
    %v800 = vpop.f32.mrf.mxu0
    %v801 = vadd.f32 0.0, %v800
    %v802 = vpop.f32.mrf.mxu0
    %v803 = vadd.f32 0.0, %v802
    %v804 = vpop.f32.mrf.mxu0
    %v805 = vadd.f32 0.0, %v804
    %806 = vmatprep.mubr.bf16.mxu0 0
    %807 = vmatmul.mubr.bf16.gmra.mxu0 %v466
    %v808 = vpop.f32.mrf.mxu0
    %v809 = vadd.f32 0.0, %v808
    %v810 = vpop.f32.mrf.mxu0
    %v811 = vadd.f32 0.0, %v810
    %v812 = vpop.f32.mrf.mxu0
    %v813 = vadd.f32 0.0, %v812
    %v814 = vpop.f32.mrf.mxu0
    %v815 = vadd.f32 0.0, %v814
    %816 = vmatprep.mubr.bf16.mxu0 0
    %817 = vmatmul.mubr.bf16.gmra.mxu0 %v469
    %v818 = vpop.f32.mrf.mxu0
    %v819 = vadd.f32 0.0, %v818
    %v820 = vpop.f32.mrf.mxu0
    %v821 = vadd.f32 0.0, %v820
    %v822 = vpop.f32.mrf.mxu0
    %v823 = vadd.f32 0.0, %v822
    %v824 = vpop.f32.mrf.mxu0
    %v825 = vadd.f32 0.0, %v824
    %826 = vmatprep.mubr.bf16.mxu0 0
    %827 = vmatmul.mubr.bf16.gmra.mxu0 %v472
    %v828 = vpop.f32.mrf.mxu0
    %v829 = vadd.f32 0.0, %v828
    %v830 = vpop.f32.mrf.mxu0
    %v831 = vadd.f32 0.0, %v830
    %v832 = vpop.f32.mrf.mxu0
    %v833 = vadd.f32 0.0, %v832
    %v834 = vpop.f32.mrf.mxu0
    %v835 = vadd.f32 0.0, %v834
    %836 = vmatprep.mubr.bf16.mxu0 0
    %837 = vmatmul.mubr.bf16.gmra.mxu0 %v475
    %v838 = vpop.f32.mrf.mxu0
    %v839 = vadd.f32 0.0, %v838
    %v840 = vpop.f32.mrf.mxu0
    %v841 = vadd.f32 0.0, %v840
    %v842 = vpop.f32.mrf.mxu0
    %v843 = vadd.f32 0.0, %v842
    %v844 = vpop.f32.mrf.mxu0
    %v845 = vadd.f32 0.0, %v844
    %846 = vmatprep.mubr.bf16.mxu0 0
    %847 = vmatmul.mubr.bf16.gmra.mxu0 %v478
    %v848 = vpop.f32.mrf.mxu0
    %v849 = vadd.f32 0.0, %v848
    %v850 = vpop.f32.mrf.mxu0
    %v851 = vadd.f32 0.0, %v850
    %v852 = vpop.f32.mrf.mxu0
    %v853 = vadd.f32 0.0, %v852
    %v854 = vpop.f32.mrf.mxu0
    %v855 = vadd.f32 0.0, %v854
    %856 = vmatprep.mubr.bf16.mxu0 0
    %857 = vmatmul.mubr.bf16.gmra.mxu0 %v481
    %v858 = vpop.f32.mrf.mxu0
    %v859 = vadd.f32 0.0, %v858
    %v860 = vpop.f32.mrf.mxu0
    %v861 = vadd.f32 0.0, %v860
    %v862 = vpop.f32.mrf.mxu0
    %v863 = vadd.f32 0.0, %v862
    %v864 = vpop.f32.mrf.mxu0
    %v865 = vadd.f32 0.0, %v864
    %866 = vmatprep.mubr.bf16.mxu0 0
    %867 = vmatmul.mubr.bf16.gmra.mxu0 %v484
    %v868 = vpop.f32.mrf.mxu0
    %v869 = vadd.f32 0.0, %v868
    %v870 = vpop.f32.mrf.mxu0
    %v871 = vadd.f32 0.0, %v870
    %v872 = vpop.f32.mrf.mxu0
    %v873 = vadd.f32 0.0, %v872
    %v874 = vpop.f32.mrf.mxu0
    %v875 = vadd.f32 0.0, %v874
    %876 = vmatprep.mubr.bf16.mxu0 0
    %877 = vmatmul.mubr.bf16.gmra.mxu0 %v487
    %v878 = vpop.f32.mrf.mxu0
    %v879 = vadd.f32 0.0, %v878
    %v880 = vpop.f32.mrf.mxu0
    %v881 = vadd.f32 0.0, %v880
    %v882 = vpop.f32.mrf.mxu0
    %v883 = vadd.f32 0.0, %v882
    %v884 = vpop.f32.mrf.mxu0
    %v885 = vadd.f32 0.0, %v884
    %886 = vmatprep.mubr.bf16.mxu0 0
    %887 = vmatmul.mubr.bf16.gmra.mxu0 %v490
    %v888 = vpop.f32.mrf.mxu0
    %v889 = vadd.f32 0.0, %v888
    %v890 = vpop.f32.mrf.mxu0
    %v891 = vadd.f32 0.0, %v890
    %v892 = vpop.f32.mrf.mxu0
    %v893 = vadd.f32 0.0, %v892
    %v894 = vpop.f32.mrf.mxu0
    %v895 = vadd.f32 0.0, %v894
    %896 = vdwg.mxu0
    %897 = vmatprep.subr.bf16.mxu0 0
    %898 = vmatpush1.bf16.msra.mxu0 0
    %899 = vmatprep.subr.bf16.mxu0 0
    %900 = vmatpush1.bf16.msra.mxu0 0
    %901 = vmatprep.subr.bf16.mxu0 0
    %902 = vmatpush1.bf16.msra.mxu0 0
    %903 = vmatprep.subr.bf16.mxu0 0
    %904 = vmatpush1.bf16.msra.mxu0 0
    %905 = vmatprep.subr.bf16.mxu0 0
    %906 = vmatpush1.bf16.msra.mxu0 0
    %907 = vmatprep.subr.bf16.mxu0 0
    %908 = vmatpush1.bf16.msra.mxu0 0
    %909 = vmatprep.subr.bf16.mxu0 %v509
    %910 = vmatpush1.bf16.msra.mxu0 %v506
    %911 = vmatprep.subr.bf16.mxu0 %v430
    %912 = vmatpush1.bf16.msra.mxu0 %v429
    %913 = vmatprep.subr.bf16.mxu0 0
    %914 = vmatpush2.bf16.msra.mxu0 0
    %915 = vmatprep.subr.bf16.mxu0 0
    %916 = vmatpush2.bf16.msra.mxu0 0
    %917 = vmatprep.subr.bf16.mxu0 0
    %918 = vmatpush2.bf16.msra.mxu0 0
    %919 = vmatprep.subr.bf16.mxu0 0
    %920 = vmatpush2.bf16.msra.mxu0 0
    %921 = vmatprep.subr.bf16.mxu0 0
    %922 = vmatpush2.bf16.msra.mxu0 0
    %923 = vmatprep.subr.bf16.mxu0 0
    %924 = vmatpush2.bf16.msra.mxu0 0
    %925 = vmatprep.subr.bf16.mxu0 0
    %926 = vmatpush2.bf16.msra.mxu0 0
    %927 = vmatprep.subr.bf16.mxu0 0
    %928 = vmatpush2.bf16.msra.mxu0 0
    %929 = vmatprep.mubr.bf16.mxu0 0
    %930 = vmatmul.mubr.bf16.gmra.mxu0 %v445
    %v931 = vpop.f32.mrf.mxu0
    %v932 = vadd.f32 0.0, %v931
    %v933 = vpop.f32.mrf.mxu0
    %v934 = vadd.f32 0.0, %v933
    %v935 = vpop.f32.mrf.mxu0
    %v936 = vadd.f32 0.0, %v935
    %v937 = vpop.f32.mrf.mxu0
    %v938 = vadd.f32 0.0, %v937
    %939 = vmatprep.mubr.bf16.mxu0 0
    %940 = vmatmul.mubr.bf16.gmra.mxu0 %v448
    %v941 = vpop.f32.mrf.mxu0
    %v942 = vadd.f32 0.0, %v941
    %v943 = vpop.f32.mrf.mxu0
    %v944 = vadd.f32 0.0, %v943
    %v945 = vpop.f32.mrf.mxu0
    %v946 = vadd.f32 0.0, %v945
    %v947 = vpop.f32.mrf.mxu0
    %v948 = vadd.f32 0.0, %v947
    %949 = vmatprep.mubr.bf16.mxu0 0
    %950 = vmatmul.mubr.bf16.gmra.mxu0 %v451
    %v951 = vpop.f32.mrf.mxu0
    %v952 = vadd.f32 0.0, %v951
    %v953 = vpop.f32.mrf.mxu0
    %v954 = vadd.f32 0.0, %v953
    %v955 = vpop.f32.mrf.mxu0
    %v956 = vadd.f32 0.0, %v955
    %v957 = vpop.f32.mrf.mxu0
    %v958 = vadd.f32 0.0, %v957
    %959 = vmatprep.mubr.bf16.mxu0 0
    %960 = vmatmul.mubr.bf16.gmra.mxu0 %v454
    %v961 = vpop.f32.mrf.mxu0
    %v962 = vadd.f32 0.0, %v961
    %v963 = vpop.f32.mrf.mxu0
    %v964 = vadd.f32 0.0, %v963
    %v965 = vpop.f32.mrf.mxu0
    %v966 = vadd.f32 0.0, %v965
    %v967 = vpop.f32.mrf.mxu0
    %v968 = vadd.f32 0.0, %v967
    %969 = vmatprep.mubr.bf16.mxu0 0
    %970 = vmatmul.mubr.bf16.gmra.mxu0 %v457
    %v971 = vpop.f32.mrf.mxu0
    %v972 = vadd.f32 0.0, %v971
    %v973 = vpop.f32.mrf.mxu0
    %v974 = vadd.f32 0.0, %v973
    %v975 = vpop.f32.mrf.mxu0
    %v976 = vadd.f32 0.0, %v975
    %v977 = vpop.f32.mrf.mxu0
    %v978 = vadd.f32 0.0, %v977
    %979 = vmatprep.mubr.bf16.mxu0 0
    %980 = vmatmul.mubr.bf16.gmra.mxu0 %v460
    %v981 = vpop.f32.mrf.mxu0
    %v982 = vadd.f32 0.0, %v981
    %v983 = vpop.f32.mrf.mxu0
    %v984 = vadd.f32 0.0, %v983
    %v985 = vpop.f32.mrf.mxu0
    %v986 = vadd.f32 0.0, %v985
    %v987 = vpop.f32.mrf.mxu0
    %v988 = vadd.f32 0.0, %v987
    %989 = vmatprep.mubr.bf16.mxu0 0
    %990 = vmatmul.mubr.bf16.gmra.mxu0 %v463
    %v991 = vpop.f32.mrf.mxu0
    %v992 = vadd.f32 0.0, %v991
    %v993 = vpop.f32.mrf.mxu0
    %v994 = vadd.f32 0.0, %v993
    %v995 = vpop.f32.mrf.mxu0
    %v996 = vadd.f32 0.0, %v995
    %v997 = vpop.f32.mrf.mxu0
    %v998 = vadd.f32 0.0, %v997
    %999 = vmatprep.mubr.bf16.mxu0 0
    %1000 = vmatmul.mubr.bf16.gmra.mxu0 %v466
    %v1001 = vpop.f32.mrf.mxu0
    %v1002 = vadd.f32 0.0, %v1001
    %v1003 = vpop.f32.mrf.mxu0
    %v1004 = vadd.f32 0.0, %v1003
    %v1005 = vpop.f32.mrf.mxu0
    %v1006 = vadd.f32 0.0, %v1005
    %v1007 = vpop.f32.mrf.mxu0
    %v1008 = vadd.f32 0.0, %v1007
    %1009 = vmatprep.mubr.bf16.mxu0 0
    %1010 = vmatmul.mubr.bf16.gmra.mxu0 %v469
    %v1011 = vpop.f32.mrf.mxu0
    %v1012 = vadd.f32 0.0, %v1011
    %v1013 = vpop.f32.mrf.mxu0
    %v1014 = vadd.f32 0.0, %v1013
    %v1015 = vpop.f32.mrf.mxu0
    %v1016 = vadd.f32 0.0, %v1015
    %v1017 = vpop.f32.mrf.mxu0
    %v1018 = vadd.f32 0.0, %v1017
    %1019 = vmatprep.mubr.bf16.mxu0 0
    %1020 = vmatmul.mubr.bf16.gmra.mxu0 %v472
    %v1021 = vpop.f32.mrf.mxu0
    %v1022 = vadd.f32 0.0, %v1021
    %v1023 = vpop.f32.mrf.mxu0
    %v1024 = vadd.f32 0.0, %v1023
    %v1025 = vpop.f32.mrf.mxu0
    %v1026 = vadd.f32 0.0, %v1025
    %v1027 = vpop.f32.mrf.mxu0
    %v1028 = vadd.f32 0.0, %v1027
    %1029 = vmatprep.mubr.bf16.mxu0 0
    %1030 = vmatmul.mubr.bf16.gmra.mxu0 %v475
    %v1031 = vpop.f32.mrf.mxu0
    %v1032 = vadd.f32 0.0, %v1031
    %v1033 = vpop.f32.mrf.mxu0
    %v1034 = vadd.f32 0.0, %v1033
    %v1035 = vpop.f32.mrf.mxu0
    %v1036 = vadd.f32 0.0, %v1035
    %v1037 = vpop.f32.mrf.mxu0
    %v1038 = vadd.f32 0.0, %v1037
    %1039 = vmatprep.mubr.bf16.mxu0 0
    %1040 = vmatmul.mubr.bf16.gmra.mxu0 %v478
    %v1041 = vpop.f32.mrf.mxu0
    %v1042 = vadd.f32 0.0, %v1041
    %v1043 = vpop.f32.mrf.mxu0
    %v1044 = vadd.f32 0.0, %v1043
    %v1045 = vpop.f32.mrf.mxu0
    %v1046 = vadd.f32 0.0, %v1045
    %v1047 = vpop.f32.mrf.mxu0
    %v1048 = vadd.f32 0.0, %v1047
    %1049 = vmatprep.mubr.bf16.mxu0 0
    %1050 = vmatmul.mubr.bf16.gmra.mxu0 %v481
    %v1051 = vpop.f32.mrf.mxu0
    %v1052 = vadd.f32 0.0, %v1051
    %v1053 = vpop.f32.mrf.mxu0
    %v1054 = vadd.f32 0.0, %v1053
    %v1055 = vpop.f32.mrf.mxu0
    %v1056 = vadd.f32 0.0, %v1055
    %v1057 = vpop.f32.mrf.mxu0
    %v1058 = vadd.f32 0.0, %v1057
    %1059 = vmatprep.mubr.bf16.mxu0 0
    %1060 = vmatmul.mubr.bf16.gmra.mxu0 %v484
    %v1061 = vpop.f32.mrf.mxu0
    %v1062 = vadd.f32 0.0, %v1061
    %v1063 = vpop.f32.mrf.mxu0
    %v1064 = vadd.f32 0.0, %v1063
    %v1065 = vpop.f32.mrf.mxu0
    %v1066 = vadd.f32 0.0, %v1065
    %v1067 = vpop.f32.mrf.mxu0
    %v1068 = vadd.f32 0.0, %v1067
    %1069 = vmatprep.mubr.bf16.mxu0 0
    %1070 = vmatmul.mubr.bf16.gmra.mxu0 %v487
    %v1071 = vpop.f32.mrf.mxu0
    %v1072 = vadd.f32 0.0, %v1071
    %v1073 = vpop.f32.mrf.mxu0
    %v1074 = vadd.f32 0.0, %v1073
    %v1075 = vpop.f32.mrf.mxu0
    %v1076 = vadd.f32 0.0, %v1075
    %v1077 = vpop.f32.mrf.mxu0
    %v1078 = vadd.f32 0.0, %v1077
    %1079 = vmatprep.mubr.bf16.mxu0 0
    %1080 = vmatmul.mubr.bf16.gmra.mxu0 %v490
    %v1081 = vpop.f32.mrf.mxu0
    %v1082 = vadd.f32 0.0, %v1081
    %v1083 = vpop.f32.mrf.mxu0
    %v1084 = vadd.f32 0.0, %v1083
    %v1085 = vpop.f32.mrf.mxu0
    %v1086 = vadd.f32 0.0, %v1085
    %v1087 = vpop.f32.mrf.mxu0
    %v1088 = vadd.f32 0.0, %v1087
    %1089 = vdwg.mxu0
    %v1098 = vunpack.c.l.b16 %v134
    %v1099 = vunpack.c.l.b16 %v135
    %v1100 = vunpack.c.l.b16 %v136
    %v1101 = vunpack.c.l.b16 %v137
    %v1102 = vunpack.c.l.b16 %v138
    %v1103 = vunpack.c.l.b16 %v139
    %v1104 = vunpack.c.l.b16 %v140
    %v1105 = vunpack.c.l.b16 %v141
    %v1106 = vpack.c.b16 %v1099, %v1098
    %v1107 = vpack.c.b16 %v1101, %v1100
    %v1108 = vpack.c.b16 %v1103, %v1102
    %v1109 = vpack.c.b16 %v1105, %v1104
    %v1122 = vunpack.c.l.b16 %v169
    %v1123 = vunpack.c.h.b16 %v169
    %v1124 = vunpack.c.l.b16 %v170
    %v1125 = vunpack.c.h.b16 %v170
    %v1126 = vunpack.c.l.b16 %v171
    %v1127 = vunpack.c.h.b16 %v171
    %v1128 = vunpack.c.l.b16 %v172
    %v1129 = vunpack.c.h.b16 %v172
    %v1130 = vunpack.c.l.b16 %v173
    %v1131 = vunpack.c.h.b16 %v173
    %v1132 = vunpack.c.l.b16 %v174
    %v1133 = vunpack.c.h.b16 %v174
    %v1134 = vunpack.c.l.b16 %v175
    %v1135 = vunpack.c.h.b16 %v175
    %v1136 = vunpack.c.l.b16 %v176
    %v1137 = vunpack.c.h.b16 %v176
    %v1138 = vunpack.c.l.b16 %v177
    %v1139 = vunpack.c.h.b16 %v177
    %v1140 = vunpack.c.l.b16 %v178
    %v1141 = vunpack.c.h.b16 %v178
    %v1142 = vunpack.c.l.b16 %v179
    %v1143 = vunpack.c.h.b16 %v179
    %v1144 = vunpack.c.l.b16 %v180
    %v1145 = vunpack.c.h.b16 %v180
    %v1146 = vpack.c.b16 %v1128, %v1122
    %v1147 = vpack.c.b16 %v1129, %v1123
    %v1148 = vpack.c.b16 %v1130, %v1124
    %v1149 = vpack.c.b16 %v1131, %v1125
    %v1150 = vpack.c.b16 %v1132, %v1126
    %v1151 = vpack.c.b16 %v1133, %v1127
    %v1152 = vpack.c.b16 %v1140, %v1134
    %v1153 = vpack.c.b16 %v1141, %v1135
    %v1154 = vpack.c.b16 %v1142, %v1136
    %v1155 = vpack.c.b16 %v1143, %v1137
    %v1156 = vpack.c.b16 %v1144, %v1138
    %v1157 = vpack.c.b16 %v1145, %v1139
    %v1165 = vsel %vm443, %v1106, 0
    %v1168 = vsel %vm443, %v1107, 0
    %v1171 = vsel %vm443, %v1108, 0
    %v1174 = vsel %vm443, %v1109, 0
    %v1177 = vsel %vm492, %v1152, 0
    %v1180 = vsel %vm492, %v1153, 0
    %v1183 = vsel %vm492, %v1154, 0
    %v1186 = vsel %vm492, %v1155, 0
    %v1189 = vsel %vm492, %v1156, 0
    %v1192 = vsel %vm492, %v1157, 0
    %1194 = vmatprep.subr.bf16.mxu0 0
    %1195 = vmatpush1.bf16.msra.mxu0 0
    %1196 = vmatprep.subr.bf16.mxu0 0
    %1197 = vmatpush1.bf16.msra.mxu0 0
    %1198 = vmatprep.subr.bf16.mxu0 0
    %1199 = vmatpush1.bf16.msra.mxu0 0
    %1200 = vmatprep.subr.bf16.mxu0 0
    %1201 = vmatpush1.bf16.msra.mxu0 0
    %1202 = vmatprep.subr.bf16.mxu0 0
    %1203 = vmatpush1.bf16.msra.mxu0 0
    %1204 = vmatprep.subr.bf16.mxu0 0
    %1205 = vmatpush1.bf16.msra.mxu0 0
    %1206 = vmatprep.subr.bf16.mxu0 %v1180
    %1207 = vmatpush1.bf16.msra.mxu0 %v1177
    %1208 = vmatprep.subr.bf16.mxu0 %v1147
    %1209 = vmatpush1.bf16.msra.mxu0 %v1146
    %1210 = vmatprep.subr.bf16.mxu0 0
    %1211 = vmatpush2.bf16.msra.mxu0 0
    %1212 = vmatprep.subr.bf16.mxu0 0
    %1213 = vmatpush2.bf16.msra.mxu0 0
    %1214 = vmatprep.subr.bf16.mxu0 0
    %1215 = vmatpush2.bf16.msra.mxu0 0
    %1216 = vmatprep.subr.bf16.mxu0 0
    %1217 = vmatpush2.bf16.msra.mxu0 0
    %1218 = vmatprep.subr.bf16.mxu0 0
    %1219 = vmatpush2.bf16.msra.mxu0 0
    %1220 = vmatprep.subr.bf16.mxu0 0
    %1221 = vmatpush2.bf16.msra.mxu0 0
    %1222 = vmatprep.subr.bf16.mxu0 0
    %1223 = vmatpush2.bf16.msra.mxu0 0
    %1224 = vmatprep.subr.bf16.mxu0 0
    %1225 = vmatpush2.bf16.msra.mxu0 0
    %1226 = vmatprep.mubr.bf16.mxu0 0
    %1227 = vmatmul.mubr.bf16.gmra.mxu0 %v1165
    %v1228 = vpop.f32.mrf.mxu0
    %v1229 = vadd.f32 %v546, %v1228
    %v1230 = vpop.f32.mrf.mxu0
    %v1231 = vadd.f32 %v548, %v1230
    %v1232 = vpop.f32.mrf.mxu0
    %v1233 = vadd.f32 %v550, %v1232
    %v1234 = vpop.f32.mrf.mxu0
    %v1235 = vadd.f32 %v552, %v1234
    %1236 = vmatprep.mubr.bf16.mxu0 0
    %1237 = vmatmul.mubr.bf16.gmra.mxu0 %v1168
    %v1238 = vpop.f32.mrf.mxu0
    %v1239 = vadd.f32 %v556, %v1238
    %v1240 = vpop.f32.mrf.mxu0
    %v1241 = vadd.f32 %v558, %v1240
    %v1242 = vpop.f32.mrf.mxu0
    %v1243 = vadd.f32 %v560, %v1242
    %v1244 = vpop.f32.mrf.mxu0
    %v1245 = vadd.f32 %v562, %v1244
    %1246 = vmatprep.mubr.bf16.mxu0 0
    %1247 = vmatmul.mubr.bf16.gmra.mxu0 %v1171
    %v1248 = vpop.f32.mrf.mxu0
    %v1249 = vadd.f32 %v566, %v1248
    %v1250 = vpop.f32.mrf.mxu0
    %v1251 = vadd.f32 %v568, %v1250
    %v1252 = vpop.f32.mrf.mxu0
    %v1253 = vadd.f32 %v570, %v1252
    %v1254 = vpop.f32.mrf.mxu0
    %v1255 = vadd.f32 %v572, %v1254
    %1256 = vmatprep.mubr.bf16.mxu0 0
    %1257 = vmatmul.mubr.bf16.gmra.mxu0 %v1174
    %v1258 = vpop.f32.mrf.mxu0
    %v1259 = vadd.f32 %v576, %v1258
    %v1260 = vpop.f32.mrf.mxu0
    %v1261 = vadd.f32 %v578, %v1260
    %v1262 = vpop.f32.mrf.mxu0
    %v1263 = vadd.f32 %v580, %v1262
    %v1264 = vpop.f32.mrf.mxu0
    %v1265 = vadd.f32 %v582, %v1264
    %1266 = vmatprep.mubr.bf16.mxu0 0
    %1267 = vmatmul.mubr.bf16.gmra.mxu0 %v469
    %v1268 = vpop.f32.mrf.mxu0
    %v1269 = vadd.f32 %v586, %v1268
    %v1270 = vpop.f32.mrf.mxu0
    %v1271 = vadd.f32 %v588, %v1270
    %v1272 = vpop.f32.mrf.mxu0
    %v1273 = vadd.f32 %v590, %v1272
    %v1274 = vpop.f32.mrf.mxu0
    %v1275 = vadd.f32 %v592, %v1274
    %1276 = vmatprep.mubr.bf16.mxu0 0
    %1277 = vmatmul.mubr.bf16.gmra.mxu0 %v472
    %v1278 = vpop.f32.mrf.mxu0
    %v1279 = vadd.f32 %v596, %v1278
    %v1280 = vpop.f32.mrf.mxu0
    %v1281 = vadd.f32 %v598, %v1280
    %v1282 = vpop.f32.mrf.mxu0
    %v1283 = vadd.f32 %v600, %v1282
    %v1284 = vpop.f32.mrf.mxu0
    %v1285 = vadd.f32 %v602, %v1284
    %1286 = vmatprep.mubr.bf16.mxu0 0
    %1287 = vmatmul.mubr.bf16.gmra.mxu0 %v475
    %v1288 = vpop.f32.mrf.mxu0
    %v1289 = vadd.f32 %v606, %v1288
    %v1290 = vpop.f32.mrf.mxu0
    %v1291 = vadd.f32 %v608, %v1290
    %v1292 = vpop.f32.mrf.mxu0
    %v1293 = vadd.f32 %v610, %v1292
    %v1294 = vpop.f32.mrf.mxu0
    %v1295 = vadd.f32 %v612, %v1294
    %1296 = vmatprep.mubr.bf16.mxu0 0
    %1297 = vmatmul.mubr.bf16.gmra.mxu0 %v478
    %v1298 = vpop.f32.mrf.mxu0
    %v1299 = vadd.f32 %v616, %v1298
    %v1300 = vpop.f32.mrf.mxu0
    %v1301 = vadd.f32 %v618, %v1300
    %v1302 = vpop.f32.mrf.mxu0
    %v1303 = vadd.f32 %v620, %v1302
    %v1304 = vpop.f32.mrf.mxu0
    %v1305 = vadd.f32 %v622, %v1304
    %1306 = vmatprep.mubr.bf16.mxu0 0
    %1307 = vmatmul.mubr.bf16.gmra.mxu0 %v445
    %v1308 = vpop.f32.mrf.mxu0
    %v1309 = vadd.f32 %v626, %v1308
    %v1310 = vpop.f32.mrf.mxu0
    %v1311 = vadd.f32 %v628, %v1310
    %v1312 = vpop.f32.mrf.mxu0
    %v1313 = vadd.f32 %v630, %v1312
    %v1314 = vpop.f32.mrf.mxu0
    %v1315 = vadd.f32 %v632, %v1314
    %1316 = vmatprep.mubr.bf16.mxu0 0
    %1317 = vmatmul.mubr.bf16.gmra.mxu0 %v448
    %v1318 = vpop.f32.mrf.mxu0
    %v1319 = vadd.f32 %v636, %v1318
    %v1320 = vpop.f32.mrf.mxu0
    %v1321 = vadd.f32 %v638, %v1320
    %v1322 = vpop.f32.mrf.mxu0
    %v1323 = vadd.f32 %v640, %v1322
    %v1324 = vpop.f32.mrf.mxu0
    %v1325 = vadd.f32 %v642, %v1324
    %1326 = vmatprep.mubr.bf16.mxu0 0
    %1327 = vmatmul.mubr.bf16.gmra.mxu0 %v451
    %v1328 = vpop.f32.mrf.mxu0
    %v1329 = vadd.f32 %v646, %v1328
    %v1330 = vpop.f32.mrf.mxu0
    %v1331 = vadd.f32 %v648, %v1330
    %v1332 = vpop.f32.mrf.mxu0
    %v1333 = vadd.f32 %v650, %v1332
    %v1334 = vpop.f32.mrf.mxu0
    %v1335 = vadd.f32 %v652, %v1334
    %1336 = vmatprep.mubr.bf16.mxu0 0
    %1337 = vmatmul.mubr.bf16.gmra.mxu0 %v454
    %v1338 = vpop.f32.mrf.mxu0
    %v1339 = vadd.f32 %v656, %v1338
    %v1340 = vpop.f32.mrf.mxu0
    %v1341 = vadd.f32 %v658, %v1340
    %v1342 = vpop.f32.mrf.mxu0
    %v1343 = vadd.f32 %v660, %v1342
    %v1344 = vpop.f32.mrf.mxu0
    %v1345 = vadd.f32 %v662, %v1344
    %1346 = vmatprep.mubr.bf16.mxu0 0
    %1347 = vmatmul.mubr.bf16.gmra.mxu0 %v457
    %v1348 = vpop.f32.mrf.mxu0
    %v1349 = vadd.f32 %v666, %v1348
    %v1350 = vpop.f32.mrf.mxu0
    %v1351 = vadd.f32 %v668, %v1350
    %v1352 = vpop.f32.mrf.mxu0
    %v1353 = vadd.f32 %v670, %v1352
    %v1354 = vpop.f32.mrf.mxu0
    %v1355 = vadd.f32 %v672, %v1354
    %1356 = vmatprep.mubr.bf16.mxu0 0
    %1357 = vmatmul.mubr.bf16.gmra.mxu0 %v460
    %v1358 = vpop.f32.mrf.mxu0
    %v1359 = vadd.f32 %v676, %v1358
    %v1360 = vpop.f32.mrf.mxu0
    %v1361 = vadd.f32 %v678, %v1360
    %v1362 = vpop.f32.mrf.mxu0
    %v1363 = vadd.f32 %v680, %v1362
    %v1364 = vpop.f32.mrf.mxu0
    %v1365 = vadd.f32 %v682, %v1364
    %1366 = vmatprep.mubr.bf16.mxu0 0
    %1367 = vmatmul.mubr.bf16.gmra.mxu0 %v463
    %v1368 = vpop.f32.mrf.mxu0
    %v1369 = vadd.f32 %v686, %v1368
    %v1370 = vpop.f32.mrf.mxu0
    %v1371 = vadd.f32 %v688, %v1370
    %v1372 = vpop.f32.mrf.mxu0
    %v1373 = vadd.f32 %v690, %v1372
    %v1374 = vpop.f32.mrf.mxu0
    %v1375 = vadd.f32 %v692, %v1374
    %1376 = vmatprep.mubr.bf16.mxu0 0
    %1377 = vmatmul.mubr.bf16.gmra.mxu0 %v466
    %v1378 = vpop.f32.mrf.mxu0
    %v1379 = vadd.f32 %v696, %v1378
    %v1380 = vpop.f32.mrf.mxu0
    %v1381 = vadd.f32 %v698, %v1380
    %v1382 = vpop.f32.mrf.mxu0
    %v1383 = vadd.f32 %v700, %v1382
    %v1384 = vpop.f32.mrf.mxu0
    %v1385 = vadd.f32 %v702, %v1384
    %1386 = vdwg.mxu0
    %1387 = vmatprep.subr.bf16.mxu0 0
    %1388 = vmatpush1.bf16.msra.mxu0 0
    %1389 = vmatprep.subr.bf16.mxu0 0
    %1390 = vmatpush1.bf16.msra.mxu0 0
    %1391 = vmatprep.subr.bf16.mxu0 0
    %1392 = vmatpush1.bf16.msra.mxu0 0
    %1393 = vmatprep.subr.bf16.mxu0 0
    %1394 = vmatpush1.bf16.msra.mxu0 0
    %1395 = vmatprep.subr.bf16.mxu0 0
    %1396 = vmatpush1.bf16.msra.mxu0 0
    %1397 = vmatprep.subr.bf16.mxu0 0
    %1398 = vmatpush1.bf16.msra.mxu0 0
    %1399 = vmatprep.subr.bf16.mxu0 %v1186
    %1400 = vmatpush1.bf16.msra.mxu0 %v1183
    %1401 = vmatprep.subr.bf16.mxu0 %v1149
    %1402 = vmatpush1.bf16.msra.mxu0 %v1148
    %1403 = vmatprep.subr.bf16.mxu0 0
    %1404 = vmatpush2.bf16.msra.mxu0 0
    %1405 = vmatprep.subr.bf16.mxu0 0
    %1406 = vmatpush2.bf16.msra.mxu0 0
    %1407 = vmatprep.subr.bf16.mxu0 0
    %1408 = vmatpush2.bf16.msra.mxu0 0
    %1409 = vmatprep.subr.bf16.mxu0 0
    %1410 = vmatpush2.bf16.msra.mxu0 0
    %1411 = vmatprep.subr.bf16.mxu0 0
    %1412 = vmatpush2.bf16.msra.mxu0 0
    %1413 = vmatprep.subr.bf16.mxu0 0
    %1414 = vmatpush2.bf16.msra.mxu0 0
    %1415 = vmatprep.subr.bf16.mxu0 0
    %1416 = vmatpush2.bf16.msra.mxu0 0
    %1417 = vmatprep.subr.bf16.mxu0 0
    %1418 = vmatpush2.bf16.msra.mxu0 0
    %1419 = vmatprep.mubr.bf16.mxu0 0
    %1420 = vmatmul.mubr.bf16.gmra.mxu0 %v1165
    %v1421 = vpop.f32.mrf.mxu0
    %v1422 = vadd.f32 %v739, %v1421
    %v1423 = vpop.f32.mrf.mxu0
    %v1424 = vadd.f32 %v741, %v1423
    %v1425 = vpop.f32.mrf.mxu0
    %v1426 = vadd.f32 %v743, %v1425
    %v1427 = vpop.f32.mrf.mxu0
    %v1428 = vadd.f32 %v745, %v1427
    %1429 = vmatprep.mubr.bf16.mxu0 0
    %1430 = vmatmul.mubr.bf16.gmra.mxu0 %v1168
    %v1431 = vpop.f32.mrf.mxu0
    %v1432 = vadd.f32 %v749, %v1431
    %v1433 = vpop.f32.mrf.mxu0
    %v1434 = vadd.f32 %v751, %v1433
    %v1435 = vpop.f32.mrf.mxu0
    %v1436 = vadd.f32 %v753, %v1435
    %v1437 = vpop.f32.mrf.mxu0
    %v1438 = vadd.f32 %v755, %v1437
    %1439 = vmatprep.mubr.bf16.mxu0 0
    %1440 = vmatmul.mubr.bf16.gmra.mxu0 %v1171
    %v1441 = vpop.f32.mrf.mxu0
    %v1442 = vadd.f32 %v759, %v1441
    %v1443 = vpop.f32.mrf.mxu0
    %v1444 = vadd.f32 %v761, %v1443
    %v1445 = vpop.f32.mrf.mxu0
    %v1446 = vadd.f32 %v763, %v1445
    %v1447 = vpop.f32.mrf.mxu0
    %v1448 = vadd.f32 %v765, %v1447
    %1449 = vmatprep.mubr.bf16.mxu0 0
    %1450 = vmatmul.mubr.bf16.gmra.mxu0 %v1174
    %v1451 = vpop.f32.mrf.mxu0
    %v1452 = vadd.f32 %v769, %v1451
    %v1453 = vpop.f32.mrf.mxu0
    %v1454 = vadd.f32 %v771, %v1453
    %v1455 = vpop.f32.mrf.mxu0
    %v1456 = vadd.f32 %v773, %v1455
    %v1457 = vpop.f32.mrf.mxu0
    %v1458 = vadd.f32 %v775, %v1457
    %1459 = vmatprep.mubr.bf16.mxu0 0
    %1460 = vmatmul.mubr.bf16.gmra.mxu0 %v469
    %v1461 = vpop.f32.mrf.mxu0
    %v1462 = vadd.f32 %v779, %v1461
    %v1463 = vpop.f32.mrf.mxu0
    %v1464 = vadd.f32 %v781, %v1463
    %v1465 = vpop.f32.mrf.mxu0
    %v1466 = vadd.f32 %v783, %v1465
    %v1467 = vpop.f32.mrf.mxu0
    %v1468 = vadd.f32 %v785, %v1467
    %1469 = vmatprep.mubr.bf16.mxu0 0
    %1470 = vmatmul.mubr.bf16.gmra.mxu0 %v472
    %v1471 = vpop.f32.mrf.mxu0
    %v1472 = vadd.f32 %v789, %v1471
    %v1473 = vpop.f32.mrf.mxu0
    %v1474 = vadd.f32 %v791, %v1473
    %v1475 = vpop.f32.mrf.mxu0
    %v1476 = vadd.f32 %v793, %v1475
    %v1477 = vpop.f32.mrf.mxu0
    %v1478 = vadd.f32 %v795, %v1477
    %1479 = vmatprep.mubr.bf16.mxu0 0
    %1480 = vmatmul.mubr.bf16.gmra.mxu0 %v475
    %v1481 = vpop.f32.mrf.mxu0
    %v1482 = vadd.f32 %v799, %v1481
    %v1483 = vpop.f32.mrf.mxu0
    %v1484 = vadd.f32 %v801, %v1483
    %v1485 = vpop.f32.mrf.mxu0
    %v1486 = vadd.f32 %v803, %v1485
    %v1487 = vpop.f32.mrf.mxu0
    %v1488 = vadd.f32 %v805, %v1487
    %1489 = vmatprep.mubr.bf16.mxu0 0
    %1490 = vmatmul.mubr.bf16.gmra.mxu0 %v478
    %v1491 = vpop.f32.mrf.mxu0
    %v1492 = vadd.f32 %v809, %v1491
    %v1493 = vpop.f32.mrf.mxu0
    %v1494 = vadd.f32 %v811, %v1493
    %v1495 = vpop.f32.mrf.mxu0
    %v1496 = vadd.f32 %v813, %v1495
    %v1497 = vpop.f32.mrf.mxu0
    %v1498 = vadd.f32 %v815, %v1497
    %1499 = vmatprep.mubr.bf16.mxu0 0
    %1500 = vmatmul.mubr.bf16.gmra.mxu0 %v445
    %v1501 = vpop.f32.mrf.mxu0
    %v1502 = vadd.f32 %v819, %v1501
    %v1503 = vpop.f32.mrf.mxu0
    %v1504 = vadd.f32 %v821, %v1503
    %v1505 = vpop.f32.mrf.mxu0
    %v1506 = vadd.f32 %v823, %v1505
    %v1507 = vpop.f32.mrf.mxu0
    %v1508 = vadd.f32 %v825, %v1507
    %1509 = vmatprep.mubr.bf16.mxu0 0
    %1510 = vmatmul.mubr.bf16.gmra.mxu0 %v448
    %v1511 = vpop.f32.mrf.mxu0
    %v1512 = vadd.f32 %v829, %v1511
    %v1513 = vpop.f32.mrf.mxu0
    %v1514 = vadd.f32 %v831, %v1513
    %v1515 = vpop.f32.mrf.mxu0
    %v1516 = vadd.f32 %v833, %v1515
    %v1517 = vpop.f32.mrf.mxu0
    %v1518 = vadd.f32 %v835, %v1517
    %1519 = vmatprep.mubr.bf16.mxu0 0
    %1520 = vmatmul.mubr.bf16.gmra.mxu0 %v451
    %v1521 = vpop.f32.mrf.mxu0
    %v1522 = vadd.f32 %v839, %v1521
    %v1523 = vpop.f32.mrf.mxu0
    %v1524 = vadd.f32 %v841, %v1523
    %v1525 = vpop.f32.mrf.mxu0
    %v1526 = vadd.f32 %v843, %v1525
    %v1527 = vpop.f32.mrf.mxu0
    %v1528 = vadd.f32 %v845, %v1527
    %1529 = vmatprep.mubr.bf16.mxu0 0
    %1530 = vmatmul.mubr.bf16.gmra.mxu0 %v454
    %v1531 = vpop.f32.mrf.mxu0
    %v1532 = vadd.f32 %v849, %v1531
    %v1533 = vpop.f32.mrf.mxu0
    %v1534 = vadd.f32 %v851, %v1533
    %v1535 = vpop.f32.mrf.mxu0
    %v1536 = vadd.f32 %v853, %v1535
    %v1537 = vpop.f32.mrf.mxu0
    %v1538 = vadd.f32 %v855, %v1537
    %1539 = vmatprep.mubr.bf16.mxu0 0
    %1540 = vmatmul.mubr.bf16.gmra.mxu0 %v457
    %v1541 = vpop.f32.mrf.mxu0
    %v1542 = vadd.f32 %v859, %v1541
    %v1543 = vpop.f32.mrf.mxu0
    %v1544 = vadd.f32 %v861, %v1543
    %v1545 = vpop.f32.mrf.mxu0
    %v1546 = vadd.f32 %v863, %v1545
    %v1547 = vpop.f32.mrf.mxu0
    %v1548 = vadd.f32 %v865, %v1547
    %1549 = vmatprep.mubr.bf16.mxu0 0
    %1550 = vmatmul.mubr.bf16.gmra.mxu0 %v460
    %v1551 = vpop.f32.mrf.mxu0
    %v1552 = vadd.f32 %v869, %v1551
    %v1553 = vpop.f32.mrf.mxu0
    %v1554 = vadd.f32 %v871, %v1553
    %v1555 = vpop.f32.mrf.mxu0
    %v1556 = vadd.f32 %v873, %v1555
    %v1557 = vpop.f32.mrf.mxu0
    %v1558 = vadd.f32 %v875, %v1557
    %1559 = vmatprep.mubr.bf16.mxu0 0
    %1560 = vmatmul.mubr.bf16.gmra.mxu0 %v463
    %v1561 = vpop.f32.mrf.mxu0
    %v1562 = vadd.f32 %v879, %v1561
    %v1563 = vpop.f32.mrf.mxu0
    %v1564 = vadd.f32 %v881, %v1563
    %v1565 = vpop.f32.mrf.mxu0
    %v1566 = vadd.f32 %v883, %v1565
    %v1567 = vpop.f32.mrf.mxu0
    %v1568 = vadd.f32 %v885, %v1567
    %1569 = vmatprep.mubr.bf16.mxu0 0
    %1570 = vmatmul.mubr.bf16.gmra.mxu0 %v466
    %v1571 = vpop.f32.mrf.mxu0
    %v1572 = vadd.f32 %v889, %v1571
    %v1573 = vpop.f32.mrf.mxu0
    %v1574 = vadd.f32 %v891, %v1573
    %v1575 = vpop.f32.mrf.mxu0
    %v1576 = vadd.f32 %v893, %v1575
    %v1577 = vpop.f32.mrf.mxu0
    %v1578 = vadd.f32 %v895, %v1577
    %1579 = vdwg.mxu0
    %1580 = vmatprep.subr.bf16.mxu0 0
    %1581 = vmatpush1.bf16.msra.mxu0 0
    %1582 = vmatprep.subr.bf16.mxu0 0
    %1583 = vmatpush1.bf16.msra.mxu0 0
    %1584 = vmatprep.subr.bf16.mxu0 0
    %1585 = vmatpush1.bf16.msra.mxu0 0
    %1586 = vmatprep.subr.bf16.mxu0 0
    %1587 = vmatpush1.bf16.msra.mxu0 0
    %1588 = vmatprep.subr.bf16.mxu0 0
    %1589 = vmatpush1.bf16.msra.mxu0 0
    %1590 = vmatprep.subr.bf16.mxu0 0
    %1591 = vmatpush1.bf16.msra.mxu0 0
    %1592 = vmatprep.subr.bf16.mxu0 %v1192
    %1593 = vmatpush1.bf16.msra.mxu0 %v1189
    %1594 = vmatprep.subr.bf16.mxu0 %v1151
    %1595 = vmatpush1.bf16.msra.mxu0 %v1150
    %1596 = vmatprep.subr.bf16.mxu0 0
    %1597 = vmatpush2.bf16.msra.mxu0 0
    %1598 = vmatprep.subr.bf16.mxu0 0
    %1599 = vmatpush2.bf16.msra.mxu0 0
    %1600 = vmatprep.subr.bf16.mxu0 0
    %1601 = vmatpush2.bf16.msra.mxu0 0
    %1602 = vmatprep.subr.bf16.mxu0 0
    %1603 = vmatpush2.bf16.msra.mxu0 0
    %1604 = vmatprep.subr.bf16.mxu0 0
    %1605 = vmatpush2.bf16.msra.mxu0 0
    %1606 = vmatprep.subr.bf16.mxu0 0
    %1607 = vmatpush2.bf16.msra.mxu0 0
    %1608 = vmatprep.subr.bf16.mxu0 0
    %1609 = vmatpush2.bf16.msra.mxu0 0
    %1610 = vmatprep.subr.bf16.mxu0 0
    %1611 = vmatpush2.bf16.msra.mxu0 0
    %1612 = vmatprep.mubr.bf16.mxu0 0
    %1613 = vmatmul.mubr.bf16.gmra.mxu0 %v1165
    %v1614 = vpop.f32.mrf.mxu0
    %v1615 = vadd.f32 %v932, %v1614
    %v1616 = vpop.f32.mrf.mxu0
    %v1617 = vadd.f32 %v934, %v1616
    %v1618 = vpop.f32.mrf.mxu0
    %v1619 = vadd.f32 %v936, %v1618
    %v1620 = vpop.f32.mrf.mxu0
    %v1621 = vadd.f32 %v938, %v1620
    %1622 = vmatprep.mubr.bf16.mxu0 0
    %1623 = vmatmul.mubr.bf16.gmra.mxu0 %v1168
    %v1624 = vpop.f32.mrf.mxu0
    %v1625 = vadd.f32 %v942, %v1624
    %v1626 = vpop.f32.mrf.mxu0
    %v1627 = vadd.f32 %v944, %v1626
    %v1628 = vpop.f32.mrf.mxu0
    %v1629 = vadd.f32 %v946, %v1628
    %v1630 = vpop.f32.mrf.mxu0
    %v1631 = vadd.f32 %v948, %v1630
    %1632 = vmatprep.mubr.bf16.mxu0 0
    %1633 = vmatmul.mubr.bf16.gmra.mxu0 %v1171
    %v1634 = vpop.f32.mrf.mxu0
    %v1635 = vadd.f32 %v952, %v1634
    %v1636 = vpop.f32.mrf.mxu0
    %v1637 = vadd.f32 %v954, %v1636
    %v1638 = vpop.f32.mrf.mxu0
    %v1639 = vadd.f32 %v956, %v1638
    %v1640 = vpop.f32.mrf.mxu0
    %v1641 = vadd.f32 %v958, %v1640
    %1642 = vmatprep.mubr.bf16.mxu0 0
    %1643 = vmatmul.mubr.bf16.gmra.mxu0 %v1174
    %v1644 = vpop.f32.mrf.mxu0
    %v1645 = vadd.f32 %v962, %v1644
    %v1646 = vpop.f32.mrf.mxu0
    %v1647 = vadd.f32 %v964, %v1646
    %v1648 = vpop.f32.mrf.mxu0
    %v1649 = vadd.f32 %v966, %v1648
    %v1650 = vpop.f32.mrf.mxu0
    %v1651 = vadd.f32 %v968, %v1650
    %1652 = vmatprep.mubr.bf16.mxu0 0
    %1653 = vmatmul.mubr.bf16.gmra.mxu0 %v469
    %v1654 = vpop.f32.mrf.mxu0
    %v1655 = vadd.f32 %v972, %v1654
    %v1656 = vpop.f32.mrf.mxu0
    %v1657 = vadd.f32 %v974, %v1656
    %v1658 = vpop.f32.mrf.mxu0
    %v1659 = vadd.f32 %v976, %v1658
    %v1660 = vpop.f32.mrf.mxu0
    %v1661 = vadd.f32 %v978, %v1660
    %1662 = vmatprep.mubr.bf16.mxu0 0
    %1663 = vmatmul.mubr.bf16.gmra.mxu0 %v472
    %v1664 = vpop.f32.mrf.mxu0
    %v1665 = vadd.f32 %v982, %v1664
    %v1666 = vpop.f32.mrf.mxu0
    %v1667 = vadd.f32 %v984, %v1666
    %v1668 = vpop.f32.mrf.mxu0
    %v1669 = vadd.f32 %v986, %v1668
    %v1670 = vpop.f32.mrf.mxu0
    %v1671 = vadd.f32 %v988, %v1670
    %1672 = vmatprep.mubr.bf16.mxu0 0
    %1673 = vmatmul.mubr.bf16.gmra.mxu0 %v475
    %v1674 = vpop.f32.mrf.mxu0
    %v1675 = vadd.f32 %v992, %v1674
    %v1676 = vpop.f32.mrf.mxu0
    %v1677 = vadd.f32 %v994, %v1676
    %v1678 = vpop.f32.mrf.mxu0
    %v1679 = vadd.f32 %v996, %v1678
    %v1680 = vpop.f32.mrf.mxu0
    %v1681 = vadd.f32 %v998, %v1680
    %1682 = vmatprep.mubr.bf16.mxu0 0
    %1683 = vmatmul.mubr.bf16.gmra.mxu0 %v478
    %v1684 = vpop.f32.mrf.mxu0
    %v1685 = vadd.f32 %v1002, %v1684
    %v1686 = vpop.f32.mrf.mxu0
    %v1687 = vadd.f32 %v1004, %v1686
    %v1688 = vpop.f32.mrf.mxu0
    %v1689 = vadd.f32 %v1006, %v1688
    %v1690 = vpop.f32.mrf.mxu0
    %v1691 = vadd.f32 %v1008, %v1690
    %1692 = vmatprep.mubr.bf16.mxu0 0
    %1693 = vmatmul.mubr.bf16.gmra.mxu0 %v445
    %v1694 = vpop.f32.mrf.mxu0
    %v1695 = vadd.f32 %v1012, %v1694
    %v1696 = vpop.f32.mrf.mxu0
    %v1697 = vadd.f32 %v1014, %v1696
    %v1698 = vpop.f32.mrf.mxu0
    %v1699 = vadd.f32 %v1016, %v1698
    %v1700 = vpop.f32.mrf.mxu0
    %v1701 = vadd.f32 %v1018, %v1700
    %1702 = vmatprep.mubr.bf16.mxu0 0
    %1703 = vmatmul.mubr.bf16.gmra.mxu0 %v448
    %v1704 = vpop.f32.mrf.mxu0
    %v1705 = vadd.f32 %v1022, %v1704
    %v1706 = vpop.f32.mrf.mxu0
    %v1707 = vadd.f32 %v1024, %v1706
    %v1708 = vpop.f32.mrf.mxu0
    %v1709 = vadd.f32 %v1026, %v1708
    %v1710 = vpop.f32.mrf.mxu0
    %v1711 = vadd.f32 %v1028, %v1710
    %1712 = vmatprep.mubr.bf16.mxu0 0
    %1713 = vmatmul.mubr.bf16.gmra.mxu0 %v451
    %v1714 = vpop.f32.mrf.mxu0
    %v1715 = vadd.f32 %v1032, %v1714
    %v1716 = vpop.f32.mrf.mxu0
    %v1717 = vadd.f32 %v1034, %v1716
    %v1718 = vpop.f32.mrf.mxu0
    %v1719 = vadd.f32 %v1036, %v1718
    %v1720 = vpop.f32.mrf.mxu0
    %v1721 = vadd.f32 %v1038, %v1720
    %1722 = vmatprep.mubr.bf16.mxu0 0
    %1723 = vmatmul.mubr.bf16.gmra.mxu0 %v454
    %v1724 = vpop.f32.mrf.mxu0
    %v1725 = vadd.f32 %v1042, %v1724
    %v1726 = vpop.f32.mrf.mxu0
    %v1727 = vadd.f32 %v1044, %v1726
    %v1728 = vpop.f32.mrf.mxu0
    %v1729 = vadd.f32 %v1046, %v1728
    %v1730 = vpop.f32.mrf.mxu0
    %v1731 = vadd.f32 %v1048, %v1730
    %1732 = vmatprep.mubr.bf16.mxu0 0
    %1733 = vmatmul.mubr.bf16.gmra.mxu0 %v457
    %v1734 = vpop.f32.mrf.mxu0
    %v1735 = vadd.f32 %v1052, %v1734
    %v1736 = vpop.f32.mrf.mxu0
    %v1737 = vadd.f32 %v1054, %v1736
    %v1738 = vpop.f32.mrf.mxu0
    %v1739 = vadd.f32 %v1056, %v1738
    %v1740 = vpop.f32.mrf.mxu0
    %v1741 = vadd.f32 %v1058, %v1740
    %1742 = vmatprep.mubr.bf16.mxu0 0
    %1743 = vmatmul.mubr.bf16.gmra.mxu0 %v460
    %v1744 = vpop.f32.mrf.mxu0
    %v1745 = vadd.f32 %v1062, %v1744
    %v1746 = vpop.f32.mrf.mxu0
    %v1747 = vadd.f32 %v1064, %v1746
    %v1748 = vpop.f32.mrf.mxu0
    %v1749 = vadd.f32 %v1066, %v1748
    %v1750 = vpop.f32.mrf.mxu0
    %v1751 = vadd.f32 %v1068, %v1750
    %1752 = vmatprep.mubr.bf16.mxu0 0
    %1753 = vmatmul.mubr.bf16.gmra.mxu0 %v463
    %v1754 = vpop.f32.mrf.mxu0
    %v1755 = vadd.f32 %v1072, %v1754
    %v1756 = vpop.f32.mrf.mxu0
    %v1757 = vadd.f32 %v1074, %v1756
    %v1758 = vpop.f32.mrf.mxu0
    %v1759 = vadd.f32 %v1076, %v1758
    %v1760 = vpop.f32.mrf.mxu0
    %v1761 = vadd.f32 %v1078, %v1760
    %1762 = vmatprep.mubr.bf16.mxu0 0
    %1763 = vmatmul.mubr.bf16.gmra.mxu0 %v466
    %v1764 = vpop.f32.mrf.mxu0
    %v1765 = vadd.f32 %v1082, %v1764
    %v1766 = vpop.f32.mrf.mxu0
    %v1767 = vadd.f32 %v1084, %v1766
    %v1768 = vpop.f32.mrf.mxu0
    %v1769 = vadd.f32 %v1086, %v1768
    %v1770 = vpop.f32.mrf.mxu0
    %v1771 = vadd.f32 %v1088, %v1770
    %1772 = vdwg.mxu0
    %v1773 = vld [vmem:[%s151] sm:$0xf]
    %v1774 = vld [vmem:[%s151 + $0x4] sm:$0x1]
    %v1775 = vld [vmem:[%s151 + $0x20] sm:$0xf]
    %v1776 = vld [vmem:[%s151 + $0x24] sm:$0x1]
    %v1777 = vld [vmem:[%s151 + $0x40] sm:$0xf]
    %v1778 = vld [vmem:[%s151 + $0x44] sm:$0x1]
    %v1779 = vld [vmem:[%s151 + $0x60] sm:$0xf]
    %v1780 = vld [vmem:[%s151 + $0x64] sm:$0x1]
    %v1781 = vld [vmem:[%s151 + $0x80] sm:$0xf]
    %v1782 = vld [vmem:[%s151 + $0x84] sm:$0x1]
    %v1783 = vld [vmem:[%s151 + $0xa0] sm:$0xf]
    %v1784 = vld [vmem:[%s151 + $0xa4] sm:$0x1]
    %v1785 = vld [vmem:[%s151 + $0xc0] sm:$0xf]
    %v1786 = vld [vmem:[%s151 + $0xc4] sm:$0x1]
    %v1787 = vld [vmem:[%s151 + $0xe0] sm:$0xf]
    %v1788 = vld [vmem:[%s151 + $0xe4] sm:$0x1]
    %v1790 = vshrl.u32 %v1773, 16
    %v1792 = vrot.slane %v1790, 4
    %v1793 = vshll.u32 %v1773, 16
    %v1795 = vrot.slane %v1793, 5
    %v1796 = vor.u32 %v1792, %v1795
    %v1797 = vrot.slane %v1796, 4
    %v1799 = vshll.u32 %v1774, 16
    %v1801 = vrot.slane %v1799, 5
    %v1802 = vsel %vm191, %v1797, %v1801
    %v1804 = vshrl.u32 %v1775, 16
    %v1806 = vrot.slane %v1804, 4
    %v1807 = vshll.u32 %v1775, 16
    %v1809 = vrot.slane %v1807, 5
    %v1810 = vor.u32 %v1806, %v1809
    %v1811 = vrot.slane %v1810, 4
    %v1813 = vshll.u32 %v1776, 16
    %v1815 = vrot.slane %v1813, 5
    %v1816 = vsel %vm191, %v1811, %v1815
    %v1818 = vshrl.u32 %v1777, 16
    %v1820 = vrot.slane %v1818, 4
    %v1821 = vshll.u32 %v1777, 16
    %v1823 = vrot.slane %v1821, 5
    %v1824 = vor.u32 %v1820, %v1823
    %v1825 = vrot.slane %v1824, 4
    %v1827 = vshll.u32 %v1778, 16
    %v1829 = vrot.slane %v1827, 5
    %v1830 = vsel %vm191, %v1825, %v1829
    %v1832 = vshrl.u32 %v1779, 16
    %v1834 = vrot.slane %v1832, 4
    %v1835 = vshll.u32 %v1779, 16
    %v1837 = vrot.slane %v1835, 5
    %v1838 = vor.u32 %v1834, %v1837
    %v1839 = vrot.slane %v1838, 4
    %v1841 = vshll.u32 %v1780, 16
    %v1843 = vrot.slane %v1841, 5
    %v1844 = vsel %vm191, %v1839, %v1843
    %v1846 = vshrl.u32 %v1781, 16
    %v1848 = vrot.slane %v1846, 4
    %v1849 = vshll.u32 %v1781, 16
    %v1851 = vrot.slane %v1849, 5
    %v1852 = vor.u32 %v1848, %v1851
    %v1853 = vrot.slane %v1852, 4
    %v1855 = vshll.u32 %v1782, 16
    %v1857 = vrot.slane %v1855, 5
    %v1858 = vsel %vm191, %v1853, %v1857
    %v1860 = vshrl.u32 %v1783, 16
    %v1862 = vrot.slane %v1860, 4
    %v1863 = vshll.u32 %v1783, 16
    %v1865 = vrot.slane %v1863, 5
    %v1866 = vor.u32 %v1862, %v1865
    %v1867 = vrot.slane %v1866, 4
    %v1869 = vshll.u32 %v1784, 16
    %v1871 = vrot.slane %v1869, 5
    %v1872 = vsel %vm191, %v1867, %v1871
    %v1874 = vshrl.u32 %v1785, 16
    %v1876 = vrot.slane %v1874, 4
    %v1877 = vshll.u32 %v1785, 16
    %v1879 = vrot.slane %v1877, 5
    %v1880 = vor.u32 %v1876, %v1879
    %v1881 = vrot.slane %v1880, 4
    %v1883 = vshll.u32 %v1786, 16
    %v1885 = vrot.slane %v1883, 5
    %v1886 = vsel %vm191, %v1881, %v1885
    %v1888 = vshrl.u32 %v1787, 16
    %v1890 = vrot.slane %v1888, 4
    %v1891 = vshll.u32 %v1787, 16
    %v1893 = vrot.slane %v1891, 5
    %v1894 = vor.u32 %v1890, %v1893
    %v1895 = vrot.slane %v1894, 4
    %v1897 = vshll.u32 %v1788, 16
    %v1899 = vrot.slane %v1897, 5
    %v1900 = vsel %vm191, %v1895, %v1899
    %s1901 = scalar_lea.vmem [#allocation2], 192
    %v1902 = vld [vmem:[%s1901] sm:$0xff]
    %v1903 = vld [vmem:[%s1901 + $0x8] sm:$0xff]
    %v1904 = vld [vmem:[%s1901 + $0x10] sm:$0xff]
    %v1905 = vld [vmem:[%s1901 + $0x18] sm:$0xff]
    %v1906 = vld [vmem:[%s1901 + $0x20] sm:$0xff]
    %v1907 = vld [vmem:[%s1901 + $0x28] sm:$0xff]
    %v1908 = vld [vmem:[%s1901 + $0x30] sm:$0xff]
    %v1909 = vld [vmem:[%s1901 + $0x38] sm:$0xff]
    %v1910 = vld [vmem:[%s1901 + $0x40] sm:$0xff]
    %v1911 = vld [vmem:[%s1901 + $0x48] sm:$0x33]
    %v1912 = vld [vmem:[%s1901 + $0x50] sm:$0x33]
    %v1913 = vld [vmem:[%s1901 + $0x58] sm:$0x33]
    %v1914 = vunpack.c.l.b16 %v1802
    %v1915 = vunpack.c.l.b16 %v1816
    %v1916 = vunpack.c.l.b16 %v1830
    %v1917 = vunpack.c.l.b16 %v1844
    %v1918 = vunpack.c.l.b16 %v1858
    %v1919 = vunpack.c.l.b16 %v1872
    %v1920 = vunpack.c.l.b16 %v1886
    %v1921 = vunpack.c.l.b16 %v1900
    %v1922 = vpack.c.b16 %v1915, %v1914
    %v1923 = vpack.c.b16 %v1917, %v1916
    %v1924 = vpack.c.b16 %v1919, %v1918
    %v1925 = vpack.c.b16 %v1921, %v1920
    %v1938 = vunpack.c.l.b16 %v1902
    %v1939 = vunpack.c.h.b16 %v1902
    %v1940 = vunpack.c.l.b16 %v1903
    %v1941 = vunpack.c.h.b16 %v1903
    %v1942 = vunpack.c.l.b16 %v1904
    %v1943 = vunpack.c.h.b16 %v1904
    %v1944 = vunpack.c.l.b16 %v1905
    %v1945 = vunpack.c.h.b16 %v1905
    %v1946 = vunpack.c.l.b16 %v1906
    %v1947 = vunpack.c.h.b16 %v1906
    %v1948 = vunpack.c.l.b16 %v1907
    %v1949 = vunpack.c.h.b16 %v1907
    %v1950 = vunpack.c.l.b16 %v1908
    %v1951 = vunpack.c.h.b16 %v1908
    %v1952 = vunpack.c.l.b16 %v1909
    %v1953 = vunpack.c.h.b16 %v1909
    %v1954 = vunpack.c.l.b16 %v1910
    %v1955 = vunpack.c.h.b16 %v1910
    %v1956 = vunpack.c.l.b16 %v1911
    %v1957 = vunpack.c.h.b16 %v1911
    %v1958 = vunpack.c.l.b16 %v1912
    %v1959 = vunpack.c.h.b16 %v1912
    %v1960 = vunpack.c.l.b16 %v1913
    %v1961 = vunpack.c.h.b16 %v1913
    %v1962 = vpack.c.b16 %v1944, %v1938
    %v1963 = vpack.c.b16 %v1945, %v1939
    %v1964 = vpack.c.b16 %v1946, %v1940
    %v1965 = vpack.c.b16 %v1947, %v1941
    %v1966 = vpack.c.b16 %v1948, %v1942
    %v1967 = vpack.c.b16 %v1949, %v1943
    %v1968 = vpack.c.b16 %v1956, %v1950
    %v1969 = vpack.c.b16 %v1957, %v1951
    %v1970 = vpack.c.b16 %v1958, %v1952
    %v1971 = vpack.c.b16 %v1959, %v1953
    %v1972 = vpack.c.b16 %v1960, %v1954
    %v1973 = vpack.c.b16 %v1961, %v1955
    %v1981 = vsel %vm443, %v1922, 0
    %v1984 = vsel %vm443, %v1923, 0
    %v1987 = vsel %vm443, %v1924, 0
    %v1990 = vsel %vm443, %v1925, 0
    %v1993 = vsel %vm492, %v1968, 0
    %v1996 = vsel %vm492, %v1969, 0
    %v1999 = vsel %vm492, %v1970, 0
    %v2002 = vsel %vm492, %v1971, 0
    %v2005 = vsel %vm492, %v1972, 0
    %v2008 = vsel %vm492, %v1973, 0
    %2010 = vmatprep.subr.bf16.mxu0 0
    %2011 = vmatpush1.bf16.msra.mxu0 0
    %2012 = vmatprep.subr.bf16.mxu0 0
    %2013 = vmatpush1.bf16.msra.mxu0 0
    %2014 = vmatprep.subr.bf16.mxu0 0
    %2015 = vmatpush1.bf16.msra.mxu0 0
    %2016 = vmatprep.subr.bf16.mxu0 0
    %2017 = vmatpush1.bf16.msra.mxu0 0
    %2018 = vmatprep.subr.bf16.mxu0 0
    %2019 = vmatpush1.bf16.msra.mxu0 0
    %2020 = vmatprep.subr.bf16.mxu0 0
    %2021 = vmatpush1.bf16.msra.mxu0 0
    %2022 = vmatprep.subr.bf16.mxu0 %v1996
    %2023 = vmatpush1.bf16.msra.mxu0 %v1993
    %2024 = vmatprep.subr.bf16.mxu0 %v1963
    %2025 = vmatpush1.bf16.msra.mxu0 %v1962
    %2026 = vmatprep.subr.bf16.mxu0 0
    %2027 = vmatpush2.bf16.msra.mxu0 0
    %2028 = vmatprep.subr.bf16.mxu0 0
    %2029 = vmatpush2.bf16.msra.mxu0 0
    %2030 = vmatprep.subr.bf16.mxu0 0
    %2031 = vmatpush2.bf16.msra.mxu0 0
    %2032 = vmatprep.subr.bf16.mxu0 0
    %2033 = vmatpush2.bf16.msra.mxu0 0
    %2034 = vmatprep.subr.bf16.mxu0 0
    %2035 = vmatpush2.bf16.msra.mxu0 0
    %2036 = vmatprep.subr.bf16.mxu0 0
    %2037 = vmatpush2.bf16.msra.mxu0 0
    %2038 = vmatprep.subr.bf16.mxu0 0
    %2039 = vmatpush2.bf16.msra.mxu0 0
    %2040 = vmatprep.subr.bf16.mxu0 0
    %2041 = vmatpush2.bf16.msra.mxu0 0
    %2042 = vmatprep.mubr.bf16.mxu0 0
    %2043 = vmatmul.mubr.bf16.gmra.mxu0 %v469
    %v2044 = vpop.f32.mrf.mxu0
    %v2045 = vadd.f32 0.0, %v2044
    %v2046 = vpop.f32.mrf.mxu0
    %v2047 = vadd.f32 0.0, %v2046
    %v2048 = vpop.f32.mrf.mxu0
    %v2049 = vadd.f32 0.0, %v2048
    %v2050 = vpop.f32.mrf.mxu0
    %v2051 = vadd.f32 0.0, %v2050
    %2052 = vmatprep.mubr.bf16.mxu0 0
    %2053 = vmatmul.mubr.bf16.gmra.mxu0 %v472
    %v2054 = vpop.f32.mrf.mxu0
    %v2055 = vadd.f32 0.0, %v2054
    %v2056 = vpop.f32.mrf.mxu0
    %v2057 = vadd.f32 0.0, %v2056
    %v2058 = vpop.f32.mrf.mxu0
    %v2059 = vadd.f32 0.0, %v2058
    %v2060 = vpop.f32.mrf.mxu0
    %v2061 = vadd.f32 0.0, %v2060
    %2062 = vmatprep.mubr.bf16.mxu0 0
    %2063 = vmatmul.mubr.bf16.gmra.mxu0 %v475
    %v2064 = vpop.f32.mrf.mxu0
    %v2065 = vadd.f32 0.0, %v2064
    %v2066 = vpop.f32.mrf.mxu0
    %v2067 = vadd.f32 0.0, %v2066
    %v2068 = vpop.f32.mrf.mxu0
    %v2069 = vadd.f32 0.0, %v2068
    %v2070 = vpop.f32.mrf.mxu0
    %v2071 = vadd.f32 0.0, %v2070
    %2072 = vmatprep.mubr.bf16.mxu0 0
    %2073 = vmatmul.mubr.bf16.gmra.mxu0 %v478
    %v2074 = vpop.f32.mrf.mxu0
    %v2075 = vadd.f32 0.0, %v2074
    %v2076 = vpop.f32.mrf.mxu0
    %v2077 = vadd.f32 0.0, %v2076
    %v2078 = vpop.f32.mrf.mxu0
    %v2079 = vadd.f32 0.0, %v2078
    %v2080 = vpop.f32.mrf.mxu0
    %v2081 = vadd.f32 0.0, %v2080
    %2082 = vmatprep.mubr.bf16.mxu0 0
    %2083 = vmatmul.mubr.bf16.gmra.mxu0 %v481
    %v2084 = vpop.f32.mrf.mxu0
    %v2085 = vadd.f32 0.0, %v2084
    %v2086 = vpop.f32.mrf.mxu0
    %v2087 = vadd.f32 0.0, %v2086
    %v2088 = vpop.f32.mrf.mxu0
    %v2089 = vadd.f32 0.0, %v2088
    %v2090 = vpop.f32.mrf.mxu0
    %v2091 = vadd.f32 0.0, %v2090
    %2092 = vmatprep.mubr.bf16.mxu0 0
    %2093 = vmatmul.mubr.bf16.gmra.mxu0 %v484
    %v2094 = vpop.f32.mrf.mxu0
    %v2095 = vadd.f32 0.0, %v2094
    %v2096 = vpop.f32.mrf.mxu0
    %v2097 = vadd.f32 0.0, %v2096
    %v2098 = vpop.f32.mrf.mxu0
    %v2099 = vadd.f32 0.0, %v2098
    %v2100 = vpop.f32.mrf.mxu0
    %v2101 = vadd.f32 0.0, %v2100
    %2102 = vmatprep.mubr.bf16.mxu0 0
    %2103 = vmatmul.mubr.bf16.gmra.mxu0 %v487
    %v2104 = vpop.f32.mrf.mxu0
    %v2105 = vadd.f32 0.0, %v2104
    %v2106 = vpop.f32.mrf.mxu0
    %v2107 = vadd.f32 0.0, %v2106
    %v2108 = vpop.f32.mrf.mxu0
    %v2109 = vadd.f32 0.0, %v2108
    %v2110 = vpop.f32.mrf.mxu0
    %v2111 = vadd.f32 0.0, %v2110
    %2112 = vmatprep.mubr.bf16.mxu0 0
    %2113 = vmatmul.mubr.bf16.gmra.mxu0 %v490
    %v2114 = vpop.f32.mrf.mxu0
    %v2115 = vadd.f32 0.0, %v2114
    %v2116 = vpop.f32.mrf.mxu0
    %v2117 = vadd.f32 0.0, %v2116
    %v2118 = vpop.f32.mrf.mxu0
    %v2119 = vadd.f32 0.0, %v2118
    %v2120 = vpop.f32.mrf.mxu0
    %v2121 = vadd.f32 0.0, %v2120
    %2122 = vmatprep.mubr.bf16.mxu0 0
    %2123 = vmatmul.mubr.bf16.gmra.mxu0 %v457
    %v2124 = vpop.f32.mrf.mxu0
    %v2125 = vadd.f32 0.0, %v2124
    %v2126 = vpop.f32.mrf.mxu0
    %v2127 = vadd.f32 0.0, %v2126
    %v2128 = vpop.f32.mrf.mxu0
    %v2129 = vadd.f32 0.0, %v2128
    %v2130 = vpop.f32.mrf.mxu0
    %v2131 = vadd.f32 0.0, %v2130
    %2132 = vmatprep.mubr.bf16.mxu0 0
    %2133 = vmatmul.mubr.bf16.gmra.mxu0 %v460
    %v2134 = vpop.f32.mrf.mxu0
    %v2135 = vadd.f32 0.0, %v2134
    %v2136 = vpop.f32.mrf.mxu0
    %v2137 = vadd.f32 0.0, %v2136
    %v2138 = vpop.f32.mrf.mxu0
    %v2139 = vadd.f32 0.0, %v2138
    %v2140 = vpop.f32.mrf.mxu0
    %v2141 = vadd.f32 0.0, %v2140
    %2142 = vmatprep.mubr.bf16.mxu0 0
    %2143 = vmatmul.mubr.bf16.gmra.mxu0 %v463
    %v2144 = vpop.f32.mrf.mxu0
    %v2145 = vadd.f32 0.0, %v2144
    %v2146 = vpop.f32.mrf.mxu0
    %v2147 = vadd.f32 0.0, %v2146
    %v2148 = vpop.f32.mrf.mxu0
    %v2149 = vadd.f32 0.0, %v2148
    %v2150 = vpop.f32.mrf.mxu0
    %v2151 = vadd.f32 0.0, %v2150
    %2152 = vmatprep.mubr.bf16.mxu0 0
    %2153 = vmatmul.mubr.bf16.gmra.mxu0 %v466
    %v2154 = vpop.f32.mrf.mxu0
    %v2155 = vadd.f32 0.0, %v2154
    %v2156 = vpop.f32.mrf.mxu0
    %v2157 = vadd.f32 0.0, %v2156
    %v2158 = vpop.f32.mrf.mxu0
    %v2159 = vadd.f32 0.0, %v2158
    %v2160 = vpop.f32.mrf.mxu0
    %v2161 = vadd.f32 0.0, %v2160
    %2162 = vmatprep.mubr.bf16.mxu0 0
    %2163 = vmatmul.mubr.bf16.gmra.mxu0 %v1981
    %v2164 = vpop.f32.mrf.mxu0
    %v2165 = vadd.f32 0.0, %v2164
    %v2166 = vpop.f32.mrf.mxu0
    %v2167 = vadd.f32 0.0, %v2166
    %v2168 = vpop.f32.mrf.mxu0
    %v2169 = vadd.f32 0.0, %v2168
    %v2170 = vpop.f32.mrf.mxu0
    %v2171 = vadd.f32 0.0, %v2170
    %2172 = vmatprep.mubr.bf16.mxu0 0
    %2173 = vmatmul.mubr.bf16.gmra.mxu0 %v1984
    %v2174 = vpop.f32.mrf.mxu0
    %v2175 = vadd.f32 0.0, %v2174
    %v2176 = vpop.f32.mrf.mxu0
    %v2177 = vadd.f32 0.0, %v2176
    %v2178 = vpop.f32.mrf.mxu0
    %v2179 = vadd.f32 0.0, %v2178
    %v2180 = vpop.f32.mrf.mxu0
    %v2181 = vadd.f32 0.0, %v2180
    %2182 = vmatprep.mubr.bf16.mxu0 0
    %2183 = vmatmul.mubr.bf16.gmra.mxu0 %v1987
    %v2184 = vpop.f32.mrf.mxu0
    %v2185 = vadd.f32 0.0, %v2184
    %v2186 = vpop.f32.mrf.mxu0
    %v2187 = vadd.f32 0.0, %v2186
    %v2188 = vpop.f32.mrf.mxu0
    %v2189 = vadd.f32 0.0, %v2188
    %v2190 = vpop.f32.mrf.mxu0
    %v2191 = vadd.f32 0.0, %v2190
    %2192 = vmatprep.mubr.bf16.mxu0 0
    %2193 = vmatmul.mubr.bf16.gmra.mxu0 %v1990
    %v2194 = vpop.f32.mrf.mxu0
    %v2195 = vadd.f32 0.0, %v2194
    %v2196 = vpop.f32.mrf.mxu0
    %v2197 = vadd.f32 0.0, %v2196
    %v2198 = vpop.f32.mrf.mxu0
    %v2199 = vadd.f32 0.0, %v2198
    %v2200 = vpop.f32.mrf.mxu0
    %v2201 = vadd.f32 0.0, %v2200
    %2202 = vdwg.mxu0
    %2203 = vmatprep.subr.bf16.mxu0 0
    %2204 = vmatpush1.bf16.msra.mxu0 0
    %2205 = vmatprep.subr.bf16.mxu0 0
    %2206 = vmatpush1.bf16.msra.mxu0 0
    %2207 = vmatprep.subr.bf16.mxu0 0
    %2208 = vmatpush1.bf16.msra.mxu0 0
    %2209 = vmatprep.subr.bf16.mxu0 0
    %2210 = vmatpush1.bf16.msra.mxu0 0
    %2211 = vmatprep.subr.bf16.mxu0 0
    %2212 = vmatpush1.bf16.msra.mxu0 0
    %2213 = vmatprep.subr.bf16.mxu0 0
    %2214 = vmatpush1.bf16.msra.mxu0 0
    %2215 = vmatprep.subr.bf16.mxu0 %v2002
    %2216 = vmatpush1.bf16.msra.mxu0 %v1999
    %2217 = vmatprep.subr.bf16.mxu0 %v1965
    %2218 = vmatpush1.bf16.msra.mxu0 %v1964
    %2219 = vmatprep.subr.bf16.mxu0 0
    %2220 = vmatpush2.bf16.msra.mxu0 0
    %2221 = vmatprep.subr.bf16.mxu0 0
    %2222 = vmatpush2.bf16.msra.mxu0 0
    %2223 = vmatprep.subr.bf16.mxu0 0
    %2224 = vmatpush2.bf16.msra.mxu0 0
    %2225 = vmatprep.subr.bf16.mxu0 0
    %2226 = vmatpush2.bf16.msra.mxu0 0
    %2227 = vmatprep.subr.bf16.mxu0 0
    %2228 = vmatpush2.bf16.msra.mxu0 0
    %2229 = vmatprep.subr.bf16.mxu0 0
    %2230 = vmatpush2.bf16.msra.mxu0 0
    %2231 = vmatprep.subr.bf16.mxu0 0
    %2232 = vmatpush2.bf16.msra.mxu0 0
    %2233 = vmatprep.subr.bf16.mxu0 0
    %2234 = vmatpush2.bf16.msra.mxu0 0
    %2235 = vmatprep.mubr.bf16.mxu0 0
    %2236 = vmatmul.mubr.bf16.gmra.mxu0 %v469
    %v2237 = vpop.f32.mrf.mxu0
    %v2238 = vadd.f32 0.0, %v2237
    %v2239 = vpop.f32.mrf.mxu0
    %v2240 = vadd.f32 0.0, %v2239
    %v2241 = vpop.f32.mrf.mxu0
    %v2242 = vadd.f32 0.0, %v2241
    %v2243 = vpop.f32.mrf.mxu0
    %v2244 = vadd.f32 0.0, %v2243
    %2245 = vmatprep.mubr.bf16.mxu0 0
    %2246 = vmatmul.mubr.bf16.gmra.mxu0 %v472
    %v2247 = vpop.f32.mrf.mxu0
    %v2248 = vadd.f32 0.0, %v2247
    %v2249 = vpop.f32.mrf.mxu0
    %v2250 = vadd.f32 0.0, %v2249
    %v2251 = vpop.f32.mrf.mxu0
    %v2252 = vadd.f32 0.0, %v2251
    %v2253 = vpop.f32.mrf.mxu0
    %v2254 = vadd.f32 0.0, %v2253
    %2255 = vmatprep.mubr.bf16.mxu0 0
    %2256 = vmatmul.mubr.bf16.gmra.mxu0 %v475
    %v2257 = vpop.f32.mrf.mxu0
    %v2258 = vadd.f32 0.0, %v2257
    %v2259 = vpop.f32.mrf.mxu0
    %v2260 = vadd.f32 0.0, %v2259
    %v2261 = vpop.f32.mrf.mxu0
    %v2262 = vadd.f32 0.0, %v2261
    %v2263 = vpop.f32.mrf.mxu0
    %v2264 = vadd.f32 0.0, %v2263
    %2265 = vmatprep.mubr.bf16.mxu0 0
    %2266 = vmatmul.mubr.bf16.gmra.mxu0 %v478
    %v2267 = vpop.f32.mrf.mxu0
    %v2268 = vadd.f32 0.0, %v2267
    %v2269 = vpop.f32.mrf.mxu0
    %v2270 = vadd.f32 0.0, %v2269
    %v2271 = vpop.f32.mrf.mxu0
    %v2272 = vadd.f32 0.0, %v2271
    %v2273 = vpop.f32.mrf.mxu0
    %v2274 = vadd.f32 0.0, %v2273
    %2275 = vmatprep.mubr.bf16.mxu0 0
    %2276 = vmatmul.mubr.bf16.gmra.mxu0 %v481
    %v2277 = vpop.f32.mrf.mxu0
    %v2278 = vadd.f32 0.0, %v2277
    %v2279 = vpop.f32.mrf.mxu0
    %v2280 = vadd.f32 0.0, %v2279
    %v2281 = vpop.f32.mrf.mxu0
    %v2282 = vadd.f32 0.0, %v2281
    %v2283 = vpop.f32.mrf.mxu0
    %v2284 = vadd.f32 0.0, %v2283
    %2285 = vmatprep.mubr.bf16.mxu0 0
    %2286 = vmatmul.mubr.bf16.gmra.mxu0 %v484
    %v2287 = vpop.f32.mrf.mxu0
    %v2288 = vadd.f32 0.0, %v2287
    %v2289 = vpop.f32.mrf.mxu0
    %v2290 = vadd.f32 0.0, %v2289
    %v2291 = vpop.f32.mrf.mxu0
    %v2292 = vadd.f32 0.0, %v2291
    %v2293 = vpop.f32.mrf.mxu0
    %v2294 = vadd.f32 0.0, %v2293
    %2295 = vmatprep.mubr.bf16.mxu0 0
    %2296 = vmatmul.mubr.bf16.gmra.mxu0 %v487
    %v2297 = vpop.f32.mrf.mxu0
    %v2298 = vadd.f32 0.0, %v2297
    %v2299 = vpop.f32.mrf.mxu0
    %v2300 = vadd.f32 0.0, %v2299
    %v2301 = vpop.f32.mrf.mxu0
    %v2302 = vadd.f32 0.0, %v2301
    %v2303 = vpop.f32.mrf.mxu0
    %v2304 = vadd.f32 0.0, %v2303
    %2305 = vmatprep.mubr.bf16.mxu0 0
    %2306 = vmatmul.mubr.bf16.gmra.mxu0 %v490
    %v2307 = vpop.f32.mrf.mxu0
    %v2308 = vadd.f32 0.0, %v2307
    %v2309 = vpop.f32.mrf.mxu0
    %v2310 = vadd.f32 0.0, %v2309
    %v2311 = vpop.f32.mrf.mxu0
    %v2312 = vadd.f32 0.0, %v2311
    %v2313 = vpop.f32.mrf.mxu0
    %v2314 = vadd.f32 0.0, %v2313
    %2315 = vmatprep.mubr.bf16.mxu0 0
    %2316 = vmatmul.mubr.bf16.gmra.mxu0 %v457
    %v2317 = vpop.f32.mrf.mxu0
    %v2318 = vadd.f32 0.0, %v2317
    %v2319 = vpop.f32.mrf.mxu0
    %v2320 = vadd.f32 0.0, %v2319
    %v2321 = vpop.f32.mrf.mxu0
    %v2322 = vadd.f32 0.0, %v2321
    %v2323 = vpop.f32.mrf.mxu0
    %v2324 = vadd.f32 0.0, %v2323
    %2325 = vmatprep.mubr.bf16.mxu0 0
    %2326 = vmatmul.mubr.bf16.gmra.mxu0 %v460
    %v2327 = vpop.f32.mrf.mxu0
    %v2328 = vadd.f32 0.0, %v2327
    %v2329 = vpop.f32.mrf.mxu0
    %v2330 = vadd.f32 0.0, %v2329
    %v2331 = vpop.f32.mrf.mxu0
    %v2332 = vadd.f32 0.0, %v2331
    %v2333 = vpop.f32.mrf.mxu0
    %v2334 = vadd.f32 0.0, %v2333
    %2335 = vmatprep.mubr.bf16.mxu0 0
    %2336 = vmatmul.mubr.bf16.gmra.mxu0 %v463
    %v2337 = vpop.f32.mrf.mxu0
    %v2338 = vadd.f32 0.0, %v2337
    %v2339 = vpop.f32.mrf.mxu0
    %v2340 = vadd.f32 0.0, %v2339
    %v2341 = vpop.f32.mrf.mxu0
    %v2342 = vadd.f32 0.0, %v2341
    %v2343 = vpop.f32.mrf.mxu0
    %v2344 = vadd.f32 0.0, %v2343
    %2345 = vmatprep.mubr.bf16.mxu0 0
    %2346 = vmatmul.mubr.bf16.gmra.mxu0 %v466
    %v2347 = vpop.f32.mrf.mxu0
    %v2348 = vadd.f32 0.0, %v2347
    %v2349 = vpop.f32.mrf.mxu0
    %v2350 = vadd.f32 0.0, %v2349
    %v2351 = vpop.f32.mrf.mxu0
    %v2352 = vadd.f32 0.0, %v2351
    %v2353 = vpop.f32.mrf.mxu0
    %v2354 = vadd.f32 0.0, %v2353
    %2355 = vmatprep.mubr.bf16.mxu0 0
    %2356 = vmatmul.mubr.bf16.gmra.mxu0 %v1981
    %v2357 = vpop.f32.mrf.mxu0
    %v2358 = vadd.f32 0.0, %v2357
    %v2359 = vpop.f32.mrf.mxu0
    %v2360 = vadd.f32 0.0, %v2359
    %v2361 = vpop.f32.mrf.mxu0
    %v2362 = vadd.f32 0.0, %v2361
    %v2363 = vpop.f32.mrf.mxu0
    %v2364 = vadd.f32 0.0, %v2363
    %2365 = vmatprep.mubr.bf16.mxu0 0
    %2366 = vmatmul.mubr.bf16.gmra.mxu0 %v1984
    %v2367 = vpop.f32.mrf.mxu0
    %v2368 = vadd.f32 0.0, %v2367
    %v2369 = vpop.f32.mrf.mxu0
    %v2370 = vadd.f32 0.0, %v2369
    %v2371 = vpop.f32.mrf.mxu0
    %v2372 = vadd.f32 0.0, %v2371
    %v2373 = vpop.f32.mrf.mxu0
    %v2374 = vadd.f32 0.0, %v2373
    %2375 = vmatprep.mubr.bf16.mxu0 0
    %2376 = vmatmul.mubr.bf16.gmra.mxu0 %v1987
    %v2377 = vpop.f32.mrf.mxu0
    %v2378 = vadd.f32 0.0, %v2377
    %v2379 = vpop.f32.mrf.mxu0
    %v2380 = vadd.f32 0.0, %v2379
    %v2381 = vpop.f32.mrf.mxu0
    %v2382 = vadd.f32 0.0, %v2381
    %v2383 = vpop.f32.mrf.mxu0
    %v2384 = vadd.f32 0.0, %v2383
    %2385 = vmatprep.mubr.bf16.mxu0 0
    %2386 = vmatmul.mubr.bf16.gmra.mxu0 %v1990
    %v2387 = vpop.f32.mrf.mxu0
    %v2388 = vadd.f32 0.0, %v2387
    %v2389 = vpop.f32.mrf.mxu0
    %v2390 = vadd.f32 0.0, %v2389
    %v2391 = vpop.f32.mrf.mxu0
    %v2392 = vadd.f32 0.0, %v2391
    %v2393 = vpop.f32.mrf.mxu0
    %v2394 = vadd.f32 0.0, %v2393
    %2395 = vdwg.mxu0
    %2396 = vmatprep.subr.bf16.mxu0 0
    %2397 = vmatpush1.bf16.msra.mxu0 0
    %2398 = vmatprep.subr.bf16.mxu0 0
    %2399 = vmatpush1.bf16.msra.mxu0 0
    %2400 = vmatprep.subr.bf16.mxu0 0
    %2401 = vmatpush1.bf16.msra.mxu0 0
    %2402 = vmatprep.subr.bf16.mxu0 0
    %2403 = vmatpush1.bf16.msra.mxu0 0
    %2404 = vmatprep.subr.bf16.mxu0 0
    %2405 = vmatpush1.bf16.msra.mxu0 0
    %2406 = vmatprep.subr.bf16.mxu0 0
    %2407 = vmatpush1.bf16.msra.mxu0 0
    %2408 = vmatprep.subr.bf16.mxu0 %v2008
    %2409 = vmatpush1.bf16.msra.mxu0 %v2005
    %2410 = vmatprep.subr.bf16.mxu0 %v1967
    %2411 = vmatpush1.bf16.msra.mxu0 %v1966
    %2412 = vmatprep.subr.bf16.mxu0 0
    %2413 = vmatpush2.bf16.msra.mxu0 0
    %2414 = vmatprep.subr.bf16.mxu0 0
    %2415 = vmatpush2.bf16.msra.mxu0 0
    %2416 = vmatprep.subr.bf16.mxu0 0
    %2417 = vmatpush2.bf16.msra.mxu0 0
    %2418 = vmatprep.subr.bf16.mxu0 0
    %2419 = vmatpush2.bf16.msra.mxu0 0
    %2420 = vmatprep.subr.bf16.mxu0 0
    %2421 = vmatpush2.bf16.msra.mxu0 0
    %2422 = vmatprep.subr.bf16.mxu0 0
    %2423 = vmatpush2.bf16.msra.mxu0 0
    %2424 = vmatprep.subr.bf16.mxu0 0
    %2425 = vmatpush2.bf16.msra.mxu0 0
    %2426 = vmatprep.subr.bf16.mxu0 0
    %2427 = vmatpush2.bf16.msra.mxu0 0
    %2428 = vmatprep.mubr.bf16.mxu0 0
    %2429 = vmatmul.mubr.bf16.gmra.mxu0 %v469
    %v2430 = vpop.f32.mrf.mxu0
    %v2431 = vadd.f32 0.0, %v2430
    %v2432 = vpop.f32.mrf.mxu0
    %v2433 = vadd.f32 0.0, %v2432
    %v2434 = vpop.f32.mrf.mxu0
    %v2435 = vadd.f32 0.0, %v2434
    %v2436 = vpop.f32.mrf.mxu0
    %v2437 = vadd.f32 0.0, %v2436
    %2438 = vmatprep.mubr.bf16.mxu0 0
    %2439 = vmatmul.mubr.bf16.gmra.mxu0 %v472
    %v2440 = vpop.f32.mrf.mxu0
    %v2441 = vadd.f32 0.0, %v2440
    %v2442 = vpop.f32.mrf.mxu0
    %v2443 = vadd.f32 0.0, %v2442
    %v2444 = vpop.f32.mrf.mxu0
    %v2445 = vadd.f32 0.0, %v2444
    %v2446 = vpop.f32.mrf.mxu0
    %v2447 = vadd.f32 0.0, %v2446
    %2448 = vmatprep.mubr.bf16.mxu0 0
    %2449 = vmatmul.mubr.bf16.gmra.mxu0 %v475
    %v2450 = vpop.f32.mrf.mxu0
    %v2451 = vadd.f32 0.0, %v2450
    %v2452 = vpop.f32.mrf.mxu0
    %v2453 = vadd.f32 0.0, %v2452
    %v2454 = vpop.f32.mrf.mxu0
    %v2455 = vadd.f32 0.0, %v2454
    %v2456 = vpop.f32.mrf.mxu0
    %v2457 = vadd.f32 0.0, %v2456
    %2458 = vmatprep.mubr.bf16.mxu0 0
    %2459 = vmatmul.mubr.bf16.gmra.mxu0 %v478
    %v2460 = vpop.f32.mrf.mxu0
    %v2461 = vadd.f32 0.0, %v2460
    %v2462 = vpop.f32.mrf.mxu0
    %v2463 = vadd.f32 0.0, %v2462
    %v2464 = vpop.f32.mrf.mxu0
    %v2465 = vadd.f32 0.0, %v2464
    %v2466 = vpop.f32.mrf.mxu0
    %v2467 = vadd.f32 0.0, %v2466
    %2468 = vmatprep.mubr.bf16.mxu0 0
    %2469 = vmatmul.mubr.bf16.gmra.mxu0 %v481
    %v2470 = vpop.f32.mrf.mxu0
    %v2471 = vadd.f32 0.0, %v2470
    %v2472 = vpop.f32.mrf.mxu0
    %v2473 = vadd.f32 0.0, %v2472
    %v2474 = vpop.f32.mrf.mxu0
    %v2475 = vadd.f32 0.0, %v2474
    %v2476 = vpop.f32.mrf.mxu0
    %v2477 = vadd.f32 0.0, %v2476
    %2478 = vmatprep.mubr.bf16.mxu0 0
    %2479 = vmatmul.mubr.bf16.gmra.mxu0 %v484
    %v2480 = vpop.f32.mrf.mxu0
    %v2481 = vadd.f32 0.0, %v2480
    %v2482 = vpop.f32.mrf.mxu0
    %v2483 = vadd.f32 0.0, %v2482
    %v2484 = vpop.f32.mrf.mxu0
    %v2485 = vadd.f32 0.0, %v2484
    %v2486 = vpop.f32.mrf.mxu0
    %v2487 = vadd.f32 0.0, %v2486
    %2488 = vmatprep.mubr.bf16.mxu0 0
    %2489 = vmatmul.mubr.bf16.gmra.mxu0 %v487
    %v2490 = vpop.f32.mrf.mxu0
    %v2491 = vadd.f32 0.0, %v2490
    %v2492 = vpop.f32.mrf.mxu0
    %v2493 = vadd.f32 0.0, %v2492
    %v2494 = vpop.f32.mrf.mxu0
    %v2495 = vadd.f32 0.0, %v2494
    %v2496 = vpop.f32.mrf.mxu0
    %v2497 = vadd.f32 0.0, %v2496
    %2498 = vmatprep.mubr.bf16.mxu0 0
    %2499 = vmatmul.mubr.bf16.gmra.mxu0 %v490
    %v2500 = vpop.f32.mrf.mxu0
    %v2501 = vadd.f32 0.0, %v2500
    %v2502 = vpop.f32.mrf.mxu0
    %v2503 = vadd.f32 0.0, %v2502
    %v2504 = vpop.f32.mrf.mxu0
    %v2505 = vadd.f32 0.0, %v2504
    %v2506 = vpop.f32.mrf.mxu0
    %v2507 = vadd.f32 0.0, %v2506
    %2508 = vmatprep.mubr.bf16.mxu0 0
    %2509 = vmatmul.mubr.bf16.gmra.mxu0 %v457
    %v2510 = vpop.f32.mrf.mxu0
    %v2511 = vadd.f32 0.0, %v2510
    %v2512 = vpop.f32.mrf.mxu0
    %v2513 = vadd.f32 0.0, %v2512
    %v2514 = vpop.f32.mrf.mxu0
    %v2515 = vadd.f32 0.0, %v2514
    %v2516 = vpop.f32.mrf.mxu0
    %v2517 = vadd.f32 0.0, %v2516
    %2518 = vmatprep.mubr.bf16.mxu0 0
    %2519 = vmatmul.mubr.bf16.gmra.mxu0 %v460
    %v2520 = vpop.f32.mrf.mxu0
    %v2521 = vadd.f32 0.0, %v2520
    %v2522 = vpop.f32.mrf.mxu0
    %v2523 = vadd.f32 0.0, %v2522
    %v2524 = vpop.f32.mrf.mxu0
    %v2525 = vadd.f32 0.0, %v2524
    %v2526 = vpop.f32.mrf.mxu0
    %v2527 = vadd.f32 0.0, %v2526
    %2528 = vmatprep.mubr.bf16.mxu0 0
    %2529 = vmatmul.mubr.bf16.gmra.mxu0 %v463
    %v2530 = vpop.f32.mrf.mxu0
    %v2531 = vadd.f32 0.0, %v2530
    %v2532 = vpop.f32.mrf.mxu0
    %v2533 = vadd.f32 0.0, %v2532
    %v2534 = vpop.f32.mrf.mxu0
    %v2535 = vadd.f32 0.0, %v2534
    %v2536 = vpop.f32.mrf.mxu0
    %v2537 = vadd.f32 0.0, %v2536
    %2538 = vmatprep.mubr.bf16.mxu0 0
    %2539 = vmatmul.mubr.bf16.gmra.mxu0 %v466
    %v2540 = vpop.f32.mrf.mxu0
    %v2541 = vadd.f32 0.0, %v2540
    %v2542 = vpop.f32.mrf.mxu0
    %v2543 = vadd.f32 0.0, %v2542
    %v2544 = vpop.f32.mrf.mxu0
    %v2545 = vadd.f32 0.0, %v2544
    %v2546 = vpop.f32.mrf.mxu0
    %v2547 = vadd.f32 0.0, %v2546
    %2548 = vmatprep.mubr.bf16.mxu0 0
    %2549 = vmatmul.mubr.bf16.gmra.mxu0 %v1981
    %v2550 = vpop.f32.mrf.mxu0
    %v2551 = vadd.f32 0.0, %v2550
    %v2552 = vpop.f32.mrf.mxu0
    %v2553 = vadd.f32 0.0, %v2552
    %v2554 = vpop.f32.mrf.mxu0
    %v2555 = vadd.f32 0.0, %v2554
    %v2556 = vpop.f32.mrf.mxu0
    %v2557 = vadd.f32 0.0, %v2556
    %2558 = vmatprep.mubr.bf16.mxu0 0
    %2559 = vmatmul.mubr.bf16.gmra.mxu0 %v1984
    %v2560 = vpop.f32.mrf.mxu0
    %v2561 = vadd.f32 0.0, %v2560
    %v2562 = vpop.f32.mrf.mxu0
    %v2563 = vadd.f32 0.0, %v2562
    %v2564 = vpop.f32.mrf.mxu0
    %v2565 = vadd.f32 0.0, %v2564
    %v2566 = vpop.f32.mrf.mxu0
    %v2567 = vadd.f32 0.0, %v2566
    %2568 = vmatprep.mubr.bf16.mxu0 0
    %2569 = vmatmul.mubr.bf16.gmra.mxu0 %v1987
    %v2570 = vpop.f32.mrf.mxu0
    %v2571 = vadd.f32 0.0, %v2570
    %v2572 = vpop.f32.mrf.mxu0
    %v2573 = vadd.f32 0.0, %v2572
    %v2574 = vpop.f32.mrf.mxu0
    %v2575 = vadd.f32 0.0, %v2574
    %v2576 = vpop.f32.mrf.mxu0
    %v2577 = vadd.f32 0.0, %v2576
    %2578 = vmatprep.mubr.bf16.mxu0 0
    %2579 = vmatmul.mubr.bf16.gmra.mxu0 %v1990
    %v2580 = vpop.f32.mrf.mxu0
    %v2581 = vadd.f32 0.0, %v2580
    %v2582 = vpop.f32.mrf.mxu0
    %v2583 = vadd.f32 0.0, %v2582
    %v2584 = vpop.f32.mrf.mxu0
    %v2585 = vadd.f32 0.0, %v2584
    %v2586 = vpop.f32.mrf.mxu0
    %v2587 = vadd.f32 0.0, %v2586
    %2588 = vdwg.mxu0
    %v2589 = vadd.f32 %v1229, %v2045
    %v2590 = vadd.f32 %v1231, %v2047
    %v2591 = vadd.f32 %v1422, %v2238
    %v2592 = vadd.f32 %v1424, %v2240
    %v2593 = vadd.f32 %v1615, %v2431
    %v2594 = vadd.f32 %v1617, %v2433
    %v2595 = vadd.f32 %v1233, %v2049
    %v2596 = vadd.f32 %v1235, %v2051
    %v2597 = vadd.f32 %v1426, %v2242
    %v2598 = vadd.f32 %v1428, %v2244
    %v2599 = vadd.f32 %v1619, %v2435
    %v2600 = vadd.f32 %v1621, %v2437
    %v2601 = vadd.f32 %v1239, %v2055
    %v2602 = vadd.f32 %v1241, %v2057
    %v2603 = vadd.f32 %v1432, %v2248
    %v2604 = vadd.f32 %v1434, %v2250
    %v2605 = vadd.f32 %v1625, %v2441
    %v2606 = vadd.f32 %v1627, %v2443
    %v2607 = vadd.f32 %v1243, %v2059
    %v2608 = vadd.f32 %v1245, %v2061
    %v2609 = vadd.f32 %v1436, %v2252
    %v2610 = vadd.f32 %v1438, %v2254
    %v2611 = vadd.f32 %v1629, %v2445
    %v2612 = vadd.f32 %v1631, %v2447
    %v2613 = vadd.f32 %v1249, %v2065
    %v2614 = vadd.f32 %v1251, %v2067
    %v2615 = vadd.f32 %v1442, %v2258
    %v2616 = vadd.f32 %v1444, %v2260
    %v2617 = vadd.f32 %v1635, %v2451
    %v2618 = vadd.f32 %v1637, %v2453
    %v2619 = vadd.f32 %v1253, %v2069
    %v2620 = vadd.f32 %v1255, %v2071
    %v2621 = vadd.f32 %v1446, %v2262
    %v2622 = vadd.f32 %v1448, %v2264
    %v2623 = vadd.f32 %v1639, %v2455
    %v2624 = vadd.f32 %v1641, %v2457
    %v2625 = vadd.f32 %v1259, %v2075
    %v2626 = vadd.f32 %v1261, %v2077
    %v2627 = vadd.f32 %v1452, %v2268
    %v2628 = vadd.f32 %v1454, %v2270
    %v2629 = vadd.f32 %v1645, %v2461
    %v2630 = vadd.f32 %v1647, %v2463
    %v2631 = vadd.f32 %v1263, %v2079
    %v2632 = vadd.f32 %v1265, %v2081
    %v2633 = vadd.f32 %v1456, %v2272
    %v2634 = vadd.f32 %v1458, %v2274
    %v2635 = vadd.f32 %v1649, %v2465
    %v2636 = vadd.f32 %v1651, %v2467
    %v2637 = vadd.f32 %v1269, %v2085
    %v2638 = vadd.f32 %v1271, %v2087
    %v2639 = vadd.f32 %v1462, %v2278
    %v2640 = vadd.f32 %v1464, %v2280
    %v2641 = vadd.f32 %v1655, %v2471
    %v2642 = vadd.f32 %v1657, %v2473
    %v2643 = vadd.f32 %v1273, %v2089
    %v2644 = vadd.f32 %v1275, %v2091
    %v2645 = vadd.f32 %v1466, %v2282
    %v2646 = vadd.f32 %v1468, %v2284
    %v2647 = vadd.f32 %v1659, %v2475
    %v2648 = vadd.f32 %v1661, %v2477
    %v2649 = vadd.f32 %v1279, %v2095
    %v2650 = vadd.f32 %v1281, %v2097
    %v2651 = vadd.f32 %v1472, %v2288
    %v2652 = vadd.f32 %v1474, %v2290
    %v2653 = vadd.f32 %v1665, %v2481
    %v2654 = vadd.f32 %v1667, %v2483
    %v2655 = vadd.f32 %v1283, %v2099
    %v2656 = vadd.f32 %v1285, %v2101
    %v2657 = vadd.f32 %v1476, %v2292
    %v2658 = vadd.f32 %v1478, %v2294
    %v2659 = vadd.f32 %v1669, %v2485
    %v2660 = vadd.f32 %v1671, %v2487
    %v2661 = vadd.f32 %v1289, %v2105
    %v2662 = vadd.f32 %v1291, %v2107
    %v2663 = vadd.f32 %v1482, %v2298
    %v2664 = vadd.f32 %v1484, %v2300
    %v2665 = vadd.f32 %v1675, %v2491
    %v2666 = vadd.f32 %v1677, %v2493
    %v2667 = vadd.f32 %v1293, %v2109
    %v2668 = vadd.f32 %v1295, %v2111
    %v2669 = vadd.f32 %v1486, %v2302
    %v2670 = vadd.f32 %v1488, %v2304
    %v2671 = vadd.f32 %v1679, %v2495
    %v2672 = vadd.f32 %v1681, %v2497
    %v2673 = vadd.f32 %v1299, %v2115
    %v2674 = vadd.f32 %v1301, %v2117
    %v2675 = vadd.f32 %v1492, %v2308
    %v2676 = vadd.f32 %v1494, %v2310
    %v2677 = vadd.f32 %v1685, %v2501
    %v2678 = vadd.f32 %v1687, %v2503
    %v2679 = vadd.f32 %v1303, %v2119
    %v2680 = vadd.f32 %v1305, %v2121
    %v2681 = vadd.f32 %v1496, %v2312
    %v2682 = vadd.f32 %v1498, %v2314
    %v2683 = vadd.f32 %v1689, %v2505
    %v2684 = vadd.f32 %v1691, %v2507
    %v2685 = vadd.f32 %v1309, %v2125
    %v2686 = vadd.f32 %v1311, %v2127
    %v2687 = vadd.f32 %v1502, %v2318
    %v2688 = vadd.f32 %v1504, %v2320
    %v2689 = vadd.f32 %v1695, %v2511
    %v2690 = vadd.f32 %v1697, %v2513
    %v2691 = vadd.f32 %v1313, %v2129
    %v2692 = vadd.f32 %v1315, %v2131
    %v2693 = vadd.f32 %v1506, %v2322
    %v2694 = vadd.f32 %v1508, %v2324
    %v2695 = vadd.f32 %v1699, %v2515
    %v2696 = vadd.f32 %v1701, %v2517
    %v2697 = vadd.f32 %v1319, %v2135
    %v2698 = vadd.f32 %v1321, %v2137
    %v2699 = vadd.f32 %v1512, %v2328
    %v2700 = vadd.f32 %v1514, %v2330
    %v2701 = vadd.f32 %v1705, %v2521
    %v2702 = vadd.f32 %v1707, %v2523
    %v2703 = vadd.f32 %v1323, %v2139
    %v2704 = vadd.f32 %v1325, %v2141
    %v2705 = vadd.f32 %v1516, %v2332
    %v2706 = vadd.f32 %v1518, %v2334
    %v2707 = vadd.f32 %v1709, %v2525
    %v2708 = vadd.f32 %v1711, %v2527
    %v2709 = vadd.f32 %v1329, %v2145
    %v2710 = vadd.f32 %v1331, %v2147
    %v2711 = vadd.f32 %v1522, %v2338
    %v2712 = vadd.f32 %v1524, %v2340
    %v2713 = vadd.f32 %v1715, %v2531
    %v2714 = vadd.f32 %v1717, %v2533
    %v2715 = vadd.f32 %v1333, %v2149
    %v2716 = vadd.f32 %v1335, %v2151
    %v2717 = vadd.f32 %v1526, %v2342
    %v2718 = vadd.f32 %v1528, %v2344
    %v2719 = vadd.f32 %v1719, %v2535
    %v2720 = vadd.f32 %v1721, %v2537
    %v2721 = vadd.f32 %v1339, %v2155
    %v2722 = vadd.f32 %v1341, %v2157
    %v2723 = vadd.f32 %v1532, %v2348
    %v2724 = vadd.f32 %v1534, %v2350
    %v2725 = vadd.f32 %v1725, %v2541
    %v2726 = vadd.f32 %v1727, %v2543
    %v2727 = vadd.f32 %v1343, %v2159
    %v2728 = vadd.f32 %v1345, %v2161
    %v2729 = vadd.f32 %v1536, %v2352
    %v2730 = vadd.f32 %v1538, %v2354
    %v2731 = vadd.f32 %v1729, %v2545
    %v2732 = vadd.f32 %v1731, %v2547
    %v2733 = vadd.f32 %v1349, %v2165
    %v2734 = vadd.f32 %v1351, %v2167
    %v2735 = vadd.f32 %v1542, %v2358
    %v2736 = vadd.f32 %v1544, %v2360
    %v2737 = vadd.f32 %v1735, %v2551
    %v2738 = vadd.f32 %v1737, %v2553
    %v2739 = vadd.f32 %v1353, %v2169
    %v2740 = vadd.f32 %v1355, %v2171
    %v2741 = vadd.f32 %v1546, %v2362
    %v2742 = vadd.f32 %v1548, %v2364
    %v2743 = vadd.f32 %v1739, %v2555
    %v2744 = vadd.f32 %v1741, %v2557
    %v2745 = vadd.f32 %v1359, %v2175
    %v2746 = vadd.f32 %v1361, %v2177
    %v2747 = vadd.f32 %v1552, %v2368
    %v2748 = vadd.f32 %v1554, %v2370
    %v2749 = vadd.f32 %v1745, %v2561
    %v2750 = vadd.f32 %v1747, %v2563
    %v2751 = vadd.f32 %v1363, %v2179
    %v2752 = vadd.f32 %v1365, %v2181
    %v2753 = vadd.f32 %v1556, %v2372
    %v2754 = vadd.f32 %v1558, %v2374
    %v2755 = vadd.f32 %v1749, %v2565
    %v2756 = vadd.f32 %v1751, %v2567
    %v2757 = vadd.f32 %v1369, %v2185
    %v2758 = vadd.f32 %v1371, %v2187
    %v2759 = vadd.f32 %v1562, %v2378
    %v2760 = vadd.f32 %v1564, %v2380
    %v2761 = vadd.f32 %v1755, %v2571
    %v2762 = vadd.f32 %v1757, %v2573
    %v2763 = vadd.f32 %v1373, %v2189
    %v2764 = vadd.f32 %v1375, %v2191
    %v2765 = vadd.f32 %v1566, %v2382
    %v2766 = vadd.f32 %v1568, %v2384
    %v2767 = vadd.f32 %v1759, %v2575
    %v2768 = vadd.f32 %v1761, %v2577
    %v2769 = vadd.f32 %v1379, %v2195
    %v2770 = vadd.f32 %v1381, %v2197
    %v2771 = vadd.f32 %v1572, %v2388
    %v2772 = vadd.f32 %v1574, %v2390
    %v2773 = vadd.f32 %v1765, %v2581
    %v2774 = vadd.f32 %v1767, %v2583
    %v2775 = vadd.f32 %v1383, %v2199
    %v2776 = vadd.f32 %v1385, %v2201
    %v2777 = vadd.f32 %v1576, %v2392
    %v2778 = vadd.f32 %v1578, %v2394
    %v2779 = vadd.f32 %v1769, %v2585
    %v2780 = vadd.f32 %v1771, %v2587
    %v2781 = vld [vmem:[%s142] sm:$0xf]
    %v2782 = vld [vmem:[%s142 + $0x4] sm:$0x1]
    %v2783 = vld [vmem:[%s142 + $0x20] sm:$0xf]
    %v2784 = vld [vmem:[%s142 + $0x24] sm:$0x1]
    %v2785 = vld [vmem:[%s142 + $0x40] sm:$0xf]
    %v2786 = vld [vmem:[%s142 + $0x44] sm:$0x1]
    %v2787 = vld [vmem:[%s142 + $0x60] sm:$0xf]
    %v2788 = vld [vmem:[%s142 + $0x64] sm:$0x1]
    %v2789 = vld [vmem:[%s142 + $0x80] sm:$0xf]
    %v2790 = vld [vmem:[%s142 + $0x84] sm:$0x1]
    %v2791 = vld [vmem:[%s142 + $0xa0] sm:$0xf]
    %v2792 = vld [vmem:[%s142 + $0xa4] sm:$0x1]
    %v2793 = vld [vmem:[%s142 + $0xc0] sm:$0xf]
    %v2794 = vld [vmem:[%s142 + $0xc4] sm:$0x1]
    %v2795 = vld [vmem:[%s142 + $0xe0] sm:$0xf]
    %v2796 = vld [vmem:[%s142 + $0xe4] sm:$0x1]
    %v2798 = vshrl.u32 %v2781, 16
    %v2800 = vrot.slane %v2798, 4
    %v2801 = vshll.u32 %v2781, 16
    %v2803 = vrot.slane %v2801, 5
    %v2804 = vor.u32 %v2800, %v2803
    %v2805 = vrot.slane %v2804, 4
    %v2807 = vshll.u32 %v2782, 16
    %v2809 = vrot.slane %v2807, 5
    %v2810 = vsel %vm191, %v2805, %v2809
    %v2812 = vshrl.u32 %v2783, 16
    %v2814 = vrot.slane %v2812, 4
    %v2815 = vshll.u32 %v2783, 16
    %v2817 = vrot.slane %v2815, 5
    %v2818 = vor.u32 %v2814, %v2817
    %v2819 = vrot.slane %v2818, 4
    %v2821 = vshll.u32 %v2784, 16
    %v2823 = vrot.slane %v2821, 5
    %v2824 = vsel %vm191, %v2819, %v2823
    %v2826 = vshrl.u32 %v2785, 16
    %v2828 = vrot.slane %v2826, 4
    %v2829 = vshll.u32 %v2785, 16
    %v2831 = vrot.slane %v2829, 5
    %v2832 = vor.u32 %v2828, %v2831
    %v2833 = vrot.slane %v2832, 4
    %v2835 = vshll.u32 %v2786, 16
    %v2837 = vrot.slane %v2835, 5
    %v2838 = vsel %vm191, %v2833, %v2837
    %v2840 = vshrl.u32 %v2787, 16
    %v2842 = vrot.slane %v2840, 4
    %v2843 = vshll.u32 %v2787, 16
    %v2845 = vrot.slane %v2843, 5
    %v2846 = vor.u32 %v2842, %v2845
    %v2847 = vrot.slane %v2846, 4
    %v2849 = vshll.u32 %v2788, 16
    %v2851 = vrot.slane %v2849, 5
    %v2852 = vsel %vm191, %v2847, %v2851
    %v2854 = vshrl.u32 %v2789, 16
    %v2856 = vrot.slane %v2854, 4
    %v2857 = vshll.u32 %v2789, 16
    %v2859 = vrot.slane %v2857, 5
    %v2860 = vor.u32 %v2856, %v2859
    %v2861 = vrot.slane %v2860, 4
    %v2863 = vshll.u32 %v2790, 16
    %v2865 = vrot.slane %v2863, 5
    %v2866 = vsel %vm191, %v2861, %v2865
    %v2868 = vshrl.u32 %v2791, 16
    %v2870 = vrot.slane %v2868, 4
    %v2871 = vshll.u32 %v2791, 16
    %v2873 = vrot.slane %v2871, 5
    %v2874 = vor.u32 %v2870, %v2873
    %v2875 = vrot.slane %v2874, 4
    %v2877 = vshll.u32 %v2792, 16
    %v2879 = vrot.slane %v2877, 5
    %v2880 = vsel %vm191, %v2875, %v2879
    %v2882 = vshrl.u32 %v2793, 16
    %v2884 = vrot.slane %v2882, 4
    %v2885 = vshll.u32 %v2793, 16
    %v2887 = vrot.slane %v2885, 5
    %v2888 = vor.u32 %v2884, %v2887
    %v2889 = vrot.slane %v2888, 4
    %v2891 = vshll.u32 %v2794, 16
    %v2893 = vrot.slane %v2891, 5
    %v2894 = vsel %vm191, %v2889, %v2893
    %v2896 = vshrl.u32 %v2795, 16
    %v2898 = vrot.slane %v2896, 4
    %v2899 = vshll.u32 %v2795, 16
    %v2901 = vrot.slane %v2899, 5
    %v2902 = vor.u32 %v2898, %v2901
    %v2903 = vrot.slane %v2902, 4
    %v2905 = vshll.u32 %v2796, 16
    %v2907 = vrot.slane %v2905, 5
    %v2908 = vsel %vm191, %v2903, %v2907
    %s2909 = scalar_lea.vmem [#allocation2], 288
    %v2910 = vld [vmem:[%s2909] sm:$0xff]
    %v2911 = vld [vmem:[%s2909 + $0x8] sm:$0xff]
    %v2912 = vld [vmem:[%s2909 + $0x10] sm:$0xff]
    %v2913 = vld [vmem:[%s2909 + $0x18] sm:$0xff]
    %v2914 = vld [vmem:[%s2909 + $0x20] sm:$0xff]
    %v2915 = vld [vmem:[%s2909 + $0x28] sm:$0xff]
    %v2916 = vld [vmem:[%s2909 + $0x30] sm:$0xff]
    %v2917 = vld [vmem:[%s2909 + $0x38] sm:$0xff]
    %v2918 = vld [vmem:[%s2909 + $0x40] sm:$0xff]
    %v2919 = vld [vmem:[%s2909 + $0x48] sm:$0x33]
    %v2920 = vld [vmem:[%s2909 + $0x50] sm:$0x33]
    %v2921 = vld [vmem:[%s2909 + $0x58] sm:$0x33]
    %v2922 = vunpack.c.l.b16 %v2810
    %v2923 = vunpack.c.l.b16 %v2824
    %v2924 = vunpack.c.l.b16 %v2838
    %v2925 = vunpack.c.l.b16 %v2852
    %v2926 = vunpack.c.l.b16 %v2866
    %v2927 = vunpack.c.l.b16 %v2880
    %v2928 = vunpack.c.l.b16 %v2894
    %v2929 = vunpack.c.l.b16 %v2908
    %v2930 = vpack.c.b16 %v2923, %v2922
    %v2931 = vpack.c.b16 %v2925, %v2924
    %v2932 = vpack.c.b16 %v2927, %v2926
    %v2933 = vpack.c.b16 %v2929, %v2928
    %v2946 = vunpack.c.l.b16 %v2910
    %v2947 = vunpack.c.h.b16 %v2910
    %v2948 = vunpack.c.l.b16 %v2911
    %v2949 = vunpack.c.h.b16 %v2911
    %v2950 = vunpack.c.l.b16 %v2912
    %v2951 = vunpack.c.h.b16 %v2912
    %v2952 = vunpack.c.l.b16 %v2913
    %v2953 = vunpack.c.h.b16 %v2913
    %v2954 = vunpack.c.l.b16 %v2914
    %v2955 = vunpack.c.h.b16 %v2914
    %v2956 = vunpack.c.l.b16 %v2915
    %v2957 = vunpack.c.h.b16 %v2915
    %v2958 = vunpack.c.l.b16 %v2916
    %v2959 = vunpack.c.h.b16 %v2916
    %v2960 = vunpack.c.l.b16 %v2917
    %v2961 = vunpack.c.h.b16 %v2917
    %v2962 = vunpack.c.l.b16 %v2918
    %v2963 = vunpack.c.h.b16 %v2918
    %v2964 = vunpack.c.l.b16 %v2919
    %v2965 = vunpack.c.h.b16 %v2919
    %v2966 = vunpack.c.l.b16 %v2920
    %v2967 = vunpack.c.h.b16 %v2920
    %v2968 = vunpack.c.l.b16 %v2921
    %v2969 = vunpack.c.h.b16 %v2921
    %v2970 = vpack.c.b16 %v2952, %v2946
    %v2971 = vpack.c.b16 %v2953, %v2947
    %v2972 = vpack.c.b16 %v2954, %v2948
    %v2973 = vpack.c.b16 %v2955, %v2949
    %v2974 = vpack.c.b16 %v2956, %v2950
    %v2975 = vpack.c.b16 %v2957, %v2951
    %v2976 = vpack.c.b16 %v2964, %v2958
    %v2977 = vpack.c.b16 %v2965, %v2959
    %v2978 = vpack.c.b16 %v2966, %v2960
    %v2979 = vpack.c.b16 %v2967, %v2961
    %v2980 = vpack.c.b16 %v2968, %v2962
    %v2981 = vpack.c.b16 %v2969, %v2963
    %v2989 = vsel %vm443, %v2930, 0
    %v2992 = vsel %vm443, %v2931, 0
    %v2995 = vsel %vm443, %v2932, 0
    %v2998 = vsel %vm443, %v2933, 0
    %v3001 = vsel %vm492, %v2976, 0
    %v3004 = vsel %vm492, %v2977, 0
    %v3007 = vsel %vm492, %v2978, 0
    %v3010 = vsel %vm492, %v2979, 0
    %v3013 = vsel %vm492, %v2980, 0
    %v3016 = vsel %vm492, %v2981, 0
    %3018 = vmatprep.subr.bf16.mxu0 0
    %3019 = vmatpush1.bf16.msra.mxu0 0
    %3020 = vmatprep.subr.bf16.mxu0 0
    %3021 = vmatpush1.bf16.msra.mxu0 0
    %3022 = vmatprep.subr.bf16.mxu0 0
    %3023 = vmatpush1.bf16.msra.mxu0 0
    %3024 = vmatprep.subr.bf16.mxu0 0
    %3025 = vmatpush1.bf16.msra.mxu0 0
    %3026 = vmatprep.subr.bf16.mxu0 0
    %3027 = vmatpush1.bf16.msra.mxu0 0
    %3028 = vmatprep.subr.bf16.mxu0 0
    %3029 = vmatpush1.bf16.msra.mxu0 0
    %3030 = vmatprep.subr.bf16.mxu0 %v3004
    %3031 = vmatpush1.bf16.msra.mxu0 %v3001
    %3032 = vmatprep.subr.bf16.mxu0 %v2971
    %3033 = vmatpush1.bf16.msra.mxu0 %v2970
    %3034 = vmatprep.subr.bf16.mxu0 0
    %3035 = vmatpush2.bf16.msra.mxu0 0
    %3036 = vmatprep.subr.bf16.mxu0 0
    %3037 = vmatpush2.bf16.msra.mxu0 0
    %3038 = vmatprep.subr.bf16.mxu0 0
    %3039 = vmatpush2.bf16.msra.mxu0 0
    %3040 = vmatprep.subr.bf16.mxu0 0
    %3041 = vmatpush2.bf16.msra.mxu0 0
    %3042 = vmatprep.subr.bf16.mxu0 0
    %3043 = vmatpush2.bf16.msra.mxu0 0
    %3044 = vmatprep.subr.bf16.mxu0 0
    %3045 = vmatpush2.bf16.msra.mxu0 0
    %3046 = vmatprep.subr.bf16.mxu0 0
    %3047 = vmatpush2.bf16.msra.mxu0 0
    %3048 = vmatprep.subr.bf16.mxu0 0
    %3049 = vmatpush2.bf16.msra.mxu0 0
    %3050 = vmatprep.mubr.bf16.mxu0 0
    %3051 = vmatmul.mubr.bf16.gmra.mxu0 %v457
    %v3052 = vpop.f32.mrf.mxu0
    %v3053 = vadd.f32 0.0, %v3052
    %v3054 = vpop.f32.mrf.mxu0
    %v3055 = vadd.f32 0.0, %v3054
    %v3056 = vpop.f32.mrf.mxu0
    %v3057 = vadd.f32 0.0, %v3056
    %v3058 = vpop.f32.mrf.mxu0
    %v3059 = vadd.f32 0.0, %v3058
    %3060 = vmatprep.mubr.bf16.mxu0 0
    %3061 = vmatmul.mubr.bf16.gmra.mxu0 %v460
    %v3062 = vpop.f32.mrf.mxu0
    %v3063 = vadd.f32 0.0, %v3062
    %v3064 = vpop.f32.mrf.mxu0
    %v3065 = vadd.f32 0.0, %v3064
    %v3066 = vpop.f32.mrf.mxu0
    %v3067 = vadd.f32 0.0, %v3066
    %v3068 = vpop.f32.mrf.mxu0
    %v3069 = vadd.f32 0.0, %v3068
    %3070 = vmatprep.mubr.bf16.mxu0 0
    %3071 = vmatmul.mubr.bf16.gmra.mxu0 %v463
    %v3072 = vpop.f32.mrf.mxu0
    %v3073 = vadd.f32 0.0, %v3072
    %v3074 = vpop.f32.mrf.mxu0
    %v3075 = vadd.f32 0.0, %v3074
    %v3076 = vpop.f32.mrf.mxu0
    %v3077 = vadd.f32 0.0, %v3076
    %v3078 = vpop.f32.mrf.mxu0
    %v3079 = vadd.f32 0.0, %v3078
    %3080 = vmatprep.mubr.bf16.mxu0 0
    %3081 = vmatmul.mubr.bf16.gmra.mxu0 %v466
    %v3082 = vpop.f32.mrf.mxu0
    %v3083 = vadd.f32 0.0, %v3082
    %v3084 = vpop.f32.mrf.mxu0
    %v3085 = vadd.f32 0.0, %v3084
    %v3086 = vpop.f32.mrf.mxu0
    %v3087 = vadd.f32 0.0, %v3086
    %v3088 = vpop.f32.mrf.mxu0
    %v3089 = vadd.f32 0.0, %v3088
    %3090 = vmatprep.mubr.bf16.mxu0 0
    %3091 = vmatmul.mubr.bf16.gmra.mxu0 %v1981
    %v3092 = vpop.f32.mrf.mxu0
    %v3093 = vadd.f32 0.0, %v3092
    %v3094 = vpop.f32.mrf.mxu0
    %v3095 = vadd.f32 0.0, %v3094
    %v3096 = vpop.f32.mrf.mxu0
    %v3097 = vadd.f32 0.0, %v3096
    %v3098 = vpop.f32.mrf.mxu0
    %v3099 = vadd.f32 0.0, %v3098
    %3100 = vmatprep.mubr.bf16.mxu0 0
    %3101 = vmatmul.mubr.bf16.gmra.mxu0 %v1984
    %v3102 = vpop.f32.mrf.mxu0
    %v3103 = vadd.f32 0.0, %v3102
    %v3104 = vpop.f32.mrf.mxu0
    %v3105 = vadd.f32 0.0, %v3104
    %v3106 = vpop.f32.mrf.mxu0
    %v3107 = vadd.f32 0.0, %v3106
    %v3108 = vpop.f32.mrf.mxu0
    %v3109 = vadd.f32 0.0, %v3108
    %3110 = vmatprep.mubr.bf16.mxu0 0
    %3111 = vmatmul.mubr.bf16.gmra.mxu0 %v1987
    %v3112 = vpop.f32.mrf.mxu0
    %v3113 = vadd.f32 0.0, %v3112
    %v3114 = vpop.f32.mrf.mxu0
    %v3115 = vadd.f32 0.0, %v3114
    %v3116 = vpop.f32.mrf.mxu0
    %v3117 = vadd.f32 0.0, %v3116
    %v3118 = vpop.f32.mrf.mxu0
    %v3119 = vadd.f32 0.0, %v3118
    %3120 = vmatprep.mubr.bf16.mxu0 0
    %3121 = vmatmul.mubr.bf16.gmra.mxu0 %v1990
    %v3122 = vpop.f32.mrf.mxu0
    %v3123 = vadd.f32 0.0, %v3122
    %v3124 = vpop.f32.mrf.mxu0
    %v3125 = vadd.f32 0.0, %v3124
    %v3126 = vpop.f32.mrf.mxu0
    %v3127 = vadd.f32 0.0, %v3126
    %v3128 = vpop.f32.mrf.mxu0
    %v3129 = vadd.f32 0.0, %v3128
    %3130 = vmatprep.mubr.bf16.mxu0 0
    %3131 = vmatmul.mubr.bf16.gmra.mxu0 %v481
    %v3132 = vpop.f32.mrf.mxu0
    %v3133 = vadd.f32 0.0, %v3132
    %v3134 = vpop.f32.mrf.mxu0
    %v3135 = vadd.f32 0.0, %v3134
    %v3136 = vpop.f32.mrf.mxu0
    %v3137 = vadd.f32 0.0, %v3136
    %v3138 = vpop.f32.mrf.mxu0
    %v3139 = vadd.f32 0.0, %v3138
    %3140 = vmatprep.mubr.bf16.mxu0 0
    %3141 = vmatmul.mubr.bf16.gmra.mxu0 %v484
    %v3142 = vpop.f32.mrf.mxu0
    %v3143 = vadd.f32 0.0, %v3142
    %v3144 = vpop.f32.mrf.mxu0
    %v3145 = vadd.f32 0.0, %v3144
    %v3146 = vpop.f32.mrf.mxu0
    %v3147 = vadd.f32 0.0, %v3146
    %v3148 = vpop.f32.mrf.mxu0
    %v3149 = vadd.f32 0.0, %v3148
    %3150 = vmatprep.mubr.bf16.mxu0 0
    %3151 = vmatmul.mubr.bf16.gmra.mxu0 %v487
    %v3152 = vpop.f32.mrf.mxu0
    %v3153 = vadd.f32 0.0, %v3152
    %v3154 = vpop.f32.mrf.mxu0
    %v3155 = vadd.f32 0.0, %v3154
    %v3156 = vpop.f32.mrf.mxu0
    %v3157 = vadd.f32 0.0, %v3156
    %v3158 = vpop.f32.mrf.mxu0
    %v3159 = vadd.f32 0.0, %v3158
    %3160 = vmatprep.mubr.bf16.mxu0 0
    %3161 = vmatmul.mubr.bf16.gmra.mxu0 %v490
    %v3162 = vpop.f32.mrf.mxu0
    %v3163 = vadd.f32 0.0, %v3162
    %v3164 = vpop.f32.mrf.mxu0
    %v3165 = vadd.f32 0.0, %v3164
    %v3166 = vpop.f32.mrf.mxu0
    %v3167 = vadd.f32 0.0, %v3166
    %v3168 = vpop.f32.mrf.mxu0
    %v3169 = vadd.f32 0.0, %v3168
    %3170 = vmatprep.mubr.bf16.mxu0 0
    %3171 = vmatmul.mubr.bf16.gmra.mxu0 %v2989
    %v3172 = vpop.f32.mrf.mxu0
    %v3173 = vadd.f32 0.0, %v3172
    %v3174 = vpop.f32.mrf.mxu0
    %v3175 = vadd.f32 0.0, %v3174
    %v3176 = vpop.f32.mrf.mxu0
    %v3177 = vadd.f32 0.0, %v3176
    %v3178 = vpop.f32.mrf.mxu0
    %v3179 = vadd.f32 0.0, %v3178
    %3180 = vmatprep.mubr.bf16.mxu0 0
    %3181 = vmatmul.mubr.bf16.gmra.mxu0 %v2992
    %v3182 = vpop.f32.mrf.mxu0
    %v3183 = vadd.f32 0.0, %v3182
    %v3184 = vpop.f32.mrf.mxu0
    %v3185 = vadd.f32 0.0, %v3184
    %v3186 = vpop.f32.mrf.mxu0
    %v3187 = vadd.f32 0.0, %v3186
    %v3188 = vpop.f32.mrf.mxu0
    %v3189 = vadd.f32 0.0, %v3188
    %3190 = vmatprep.mubr.bf16.mxu0 0
    %3191 = vmatmul.mubr.bf16.gmra.mxu0 %v2995
    %v3192 = vpop.f32.mrf.mxu0
    %v3193 = vadd.f32 0.0, %v3192
    %v3194 = vpop.f32.mrf.mxu0
    %v3195 = vadd.f32 0.0, %v3194
    %v3196 = vpop.f32.mrf.mxu0
    %v3197 = vadd.f32 0.0, %v3196
    %v3198 = vpop.f32.mrf.mxu0
    %v3199 = vadd.f32 0.0, %v3198
    %3200 = vmatprep.mubr.bf16.mxu0 0
    %3201 = vmatmul.mubr.bf16.gmra.mxu0 %v2998
    %v3202 = vpop.f32.mrf.mxu0
    %v3203 = vadd.f32 0.0, %v3202
    %v3204 = vpop.f32.mrf.mxu0
    %v3205 = vadd.f32 0.0, %v3204
    %v3206 = vpop.f32.mrf.mxu0
    %v3207 = vadd.f32 0.0, %v3206
    %v3208 = vpop.f32.mrf.mxu0
    %v3209 = vadd.f32 0.0, %v3208
    %3210 = vdwg.mxu0
    %3211 = vmatprep.subr.bf16.mxu0 0
    %3212 = vmatpush1.bf16.msra.mxu0 0
    %3213 = vmatprep.subr.bf16.mxu0 0
    %3214 = vmatpush1.bf16.msra.mxu0 0
    %3215 = vmatprep.subr.bf16.mxu0 0
    %3216 = vmatpush1.bf16.msra.mxu0 0
    %3217 = vmatprep.subr.bf16.mxu0 0
    %3218 = vmatpush1.bf16.msra.mxu0 0
    %3219 = vmatprep.subr.bf16.mxu0 0
    %3220 = vmatpush1.bf16.msra.mxu0 0
    %3221 = vmatprep.subr.bf16.mxu0 0
    %3222 = vmatpush1.bf16.msra.mxu0 0
    %3223 = vmatprep.subr.bf16.mxu0 %v3010
    %3224 = vmatpush1.bf16.msra.mxu0 %v3007
    %3225 = vmatprep.subr.bf16.mxu0 %v2973
    %3226 = vmatpush1.bf16.msra.mxu0 %v2972
    %3227 = vmatprep.subr.bf16.mxu0 0
    %3228 = vmatpush2.bf16.msra.mxu0 0
    %3229 = vmatprep.subr.bf16.mxu0 0
    %3230 = vmatpush2.bf16.msra.mxu0 0
    %3231 = vmatprep.subr.bf16.mxu0 0
    %3232 = vmatpush2.bf16.msra.mxu0 0
    %3233 = vmatprep.subr.bf16.mxu0 0
    %3234 = vmatpush2.bf16.msra.mxu0 0
    %3235 = vmatprep.subr.bf16.mxu0 0
    %3236 = vmatpush2.bf16.msra.mxu0 0
    %3237 = vmatprep.subr.bf16.mxu0 0
    %3238 = vmatpush2.bf16.msra.mxu0 0
    %3239 = vmatprep.subr.bf16.mxu0 0
    %3240 = vmatpush2.bf16.msra.mxu0 0
    %3241 = vmatprep.subr.bf16.mxu0 0
    %3242 = vmatpush2.bf16.msra.mxu0 0
    %3243 = vmatprep.mubr.bf16.mxu0 0
    %3244 = vmatmul.mubr.bf16.gmra.mxu0 %v457
    %v3245 = vpop.f32.mrf.mxu0
    %v3246 = vadd.f32 0.0, %v3245
    %v3247 = vpop.f32.mrf.mxu0
    %v3248 = vadd.f32 0.0, %v3247
    %v3249 = vpop.f32.mrf.mxu0
    %v3250 = vadd.f32 0.0, %v3249
    %v3251 = vpop.f32.mrf.mxu0
    %v3252 = vadd.f32 0.0, %v3251
    %3253 = vmatprep.mubr.bf16.mxu0 0
    %3254 = vmatmul.mubr.bf16.gmra.mxu0 %v460
    %v3255 = vpop.f32.mrf.mxu0
    %v3256 = vadd.f32 0.0, %v3255
    %v3257 = vpop.f32.mrf.mxu0
    %v3258 = vadd.f32 0.0, %v3257
    %v3259 = vpop.f32.mrf.mxu0
    %v3260 = vadd.f32 0.0, %v3259
    %v3261 = vpop.f32.mrf.mxu0
    %v3262 = vadd.f32 0.0, %v3261
    %3263 = vmatprep.mubr.bf16.mxu0 0
    %3264 = vmatmul.mubr.bf16.gmra.mxu0 %v463
    %v3265 = vpop.f32.mrf.mxu0
    %v3266 = vadd.f32 0.0, %v3265
    %v3267 = vpop.f32.mrf.mxu0
    %v3268 = vadd.f32 0.0, %v3267
    %v3269 = vpop.f32.mrf.mxu0
    %v3270 = vadd.f32 0.0, %v3269
    %v3271 = vpop.f32.mrf.mxu0
    %v3272 = vadd.f32 0.0, %v3271
    %3273 = vmatprep.mubr.bf16.mxu0 0
    %3274 = vmatmul.mubr.bf16.gmra.mxu0 %v466
    %v3275 = vpop.f32.mrf.mxu0
    %v3276 = vadd.f32 0.0, %v3275
    %v3277 = vpop.f32.mrf.mxu0
    %v3278 = vadd.f32 0.0, %v3277
    %v3279 = vpop.f32.mrf.mxu0
    %v3280 = vadd.f32 0.0, %v3279
    %v3281 = vpop.f32.mrf.mxu0
    %v3282 = vadd.f32 0.0, %v3281
    %3283 = vmatprep.mubr.bf16.mxu0 0
    %3284 = vmatmul.mubr.bf16.gmra.mxu0 %v1981
    %v3285 = vpop.f32.mrf.mxu0
    %v3286 = vadd.f32 0.0, %v3285
    %v3287 = vpop.f32.mrf.mxu0
    %v3288 = vadd.f32 0.0, %v3287
    %v3289 = vpop.f32.mrf.mxu0
    %v3290 = vadd.f32 0.0, %v3289
    %v3291 = vpop.f32.mrf.mxu0
    %v3292 = vadd.f32 0.0, %v3291
    %3293 = vmatprep.mubr.bf16.mxu0 0
    %3294 = vmatmul.mubr.bf16.gmra.mxu0 %v1984
    %v3295 = vpop.f32.mrf.mxu0
    %v3296 = vadd.f32 0.0, %v3295
    %v3297 = vpop.f32.mrf.mxu0
    %v3298 = vadd.f32 0.0, %v3297
    %v3299 = vpop.f32.mrf.mxu0
    %v3300 = vadd.f32 0.0, %v3299
    %v3301 = vpop.f32.mrf.mxu0
    %v3302 = vadd.f32 0.0, %v3301
    %3303 = vmatprep.mubr.bf16.mxu0 0
    %3304 = vmatmul.mubr.bf16.gmra.mxu0 %v1987
    %v3305 = vpop.f32.mrf.mxu0
    %v3306 = vadd.f32 0.0, %v3305
    %v3307 = vpop.f32.mrf.mxu0
    %v3308 = vadd.f32 0.0, %v3307
    %v3309 = vpop.f32.mrf.mxu0
    %v3310 = vadd.f32 0.0, %v3309
    %v3311 = vpop.f32.mrf.mxu0
    %v3312 = vadd.f32 0.0, %v3311
    %3313 = vmatprep.mubr.bf16.mxu0 0
    %3314 = vmatmul.mubr.bf16.gmra.mxu0 %v1990
    %v3315 = vpop.f32.mrf.mxu0
    %v3316 = vadd.f32 0.0, %v3315
    %v3317 = vpop.f32.mrf.mxu0
    %v3318 = vadd.f32 0.0, %v3317
    %v3319 = vpop.f32.mrf.mxu0
    %v3320 = vadd.f32 0.0, %v3319
    %v3321 = vpop.f32.mrf.mxu0
    %v3322 = vadd.f32 0.0, %v3321
    %3323 = vmatprep.mubr.bf16.mxu0 0
    %3324 = vmatmul.mubr.bf16.gmra.mxu0 %v481
    %v3325 = vpop.f32.mrf.mxu0
    %v3326 = vadd.f32 0.0, %v3325
    %v3327 = vpop.f32.mrf.mxu0
    %v3328 = vadd.f32 0.0, %v3327
    %v3329 = vpop.f32.mrf.mxu0
    %v3330 = vadd.f32 0.0, %v3329
    %v3331 = vpop.f32.mrf.mxu0
    %v3332 = vadd.f32 0.0, %v3331
    %3333 = vmatprep.mubr.bf16.mxu0 0
    %3334 = vmatmul.mubr.bf16.gmra.mxu0 %v484
    %v3335 = vpop.f32.mrf.mxu0
    %v3336 = vadd.f32 0.0, %v3335
    %v3337 = vpop.f32.mrf.mxu0
    %v3338 = vadd.f32 0.0, %v3337
    %v3339 = vpop.f32.mrf.mxu0
    %v3340 = vadd.f32 0.0, %v3339
    %v3341 = vpop.f32.mrf.mxu0
    %v3342 = vadd.f32 0.0, %v3341
    %3343 = vmatprep.mubr.bf16.mxu0 0
    %3344 = vmatmul.mubr.bf16.gmra.mxu0 %v487
    %v3345 = vpop.f32.mrf.mxu0
    %v3346 = vadd.f32 0.0, %v3345
    %v3347 = vpop.f32.mrf.mxu0
    %v3348 = vadd.f32 0.0, %v3347
    %v3349 = vpop.f32.mrf.mxu0
    %v3350 = vadd.f32 0.0, %v3349
    %v3351 = vpop.f32.mrf.mxu0
    %v3352 = vadd.f32 0.0, %v3351
    %3353 = vmatprep.mubr.bf16.mxu0 0
    %3354 = vmatmul.mubr.bf16.gmra.mxu0 %v490
    %v3355 = vpop.f32.mrf.mxu0
    %v3356 = vadd.f32 0.0, %v3355
    %v3357 = vpop.f32.mrf.mxu0
    %v3358 = vadd.f32 0.0, %v3357
    %v3359 = vpop.f32.mrf.mxu0
    %v3360 = vadd.f32 0.0, %v3359
    %v3361 = vpop.f32.mrf.mxu0
    %v3362 = vadd.f32 0.0, %v3361
    %3363 = vmatprep.mubr.bf16.mxu0 0
    %3364 = vmatmul.mubr.bf16.gmra.mxu0 %v2989
    %v3365 = vpop.f32.mrf.mxu0
    %v3366 = vadd.f32 0.0, %v3365
    %v3367 = vpop.f32.mrf.mxu0
    %v3368 = vadd.f32 0.0, %v3367
    %v3369 = vpop.f32.mrf.mxu0
    %v3370 = vadd.f32 0.0, %v3369
    %v3371 = vpop.f32.mrf.mxu0
    %v3372 = vadd.f32 0.0, %v3371
    %3373 = vmatprep.mubr.bf16.mxu0 0
    %3374 = vmatmul.mubr.bf16.gmra.mxu0 %v2992
    %v3375 = vpop.f32.mrf.mxu0
    %v3376 = vadd.f32 0.0, %v3375
    %v3377 = vpop.f32.mrf.mxu0
    %v3378 = vadd.f32 0.0, %v3377
    %v3379 = vpop.f32.mrf.mxu0
    %v3380 = vadd.f32 0.0, %v3379
    %v3381 = vpop.f32.mrf.mxu0
    %v3382 = vadd.f32 0.0, %v3381
    %3383 = vmatprep.mubr.bf16.mxu0 0
    %3384 = vmatmul.mubr.bf16.gmra.mxu0 %v2995
    %v3385 = vpop.f32.mrf.mxu0
    %v3386 = vadd.f32 0.0, %v3385
    %v3387 = vpop.f32.mrf.mxu0
    %v3388 = vadd.f32 0.0, %v3387
    %v3389 = vpop.f32.mrf.mxu0
    %v3390 = vadd.f32 0.0, %v3389
    %v3391 = vpop.f32.mrf.mxu0
    %v3392 = vadd.f32 0.0, %v3391
    %3393 = vmatprep.mubr.bf16.mxu0 0
    %3394 = vmatmul.mubr.bf16.gmra.mxu0 %v2998
    %v3395 = vpop.f32.mrf.mxu0
    %v3396 = vadd.f32 0.0, %v3395
    %v3397 = vpop.f32.mrf.mxu0
    %v3398 = vadd.f32 0.0, %v3397
    %v3399 = vpop.f32.mrf.mxu0
    %v3400 = vadd.f32 0.0, %v3399
    %v3401 = vpop.f32.mrf.mxu0
    %v3402 = vadd.f32 0.0, %v3401
    %3403 = vdwg.mxu0
    %3404 = vmatprep.subr.bf16.mxu0 0
    %3405 = vmatpush1.bf16.msra.mxu0 0
    %3406 = vmatprep.subr.bf16.mxu0 0
    %3407 = vmatpush1.bf16.msra.mxu0 0
    %3408 = vmatprep.subr.bf16.mxu0 0
    %3409 = vmatpush1.bf16.msra.mxu0 0
    %3410 = vmatprep.subr.bf16.mxu0 0
    %3411 = vmatpush1.bf16.msra.mxu0 0
    %3412 = vmatprep.subr.bf16.mxu0 0
    %3413 = vmatpush1.bf16.msra.mxu0 0
    %3414 = vmatprep.subr.bf16.mxu0 0
    %3415 = vmatpush1.bf16.msra.mxu0 0
    %3416 = vmatprep.subr.bf16.mxu0 %v3016
    %3417 = vmatpush1.bf16.msra.mxu0 %v3013
    %3418 = vmatprep.subr.bf16.mxu0 %v2975
    %3419 = vmatpush1.bf16.msra.mxu0 %v2974
    %3420 = vmatprep.subr.bf16.mxu0 0
    %3421 = vmatpush2.bf16.msra.mxu0 0
    %3422 = vmatprep.subr.bf16.mxu0 0
    %3423 = vmatpush2.bf16.msra.mxu0 0
    %3424 = vmatprep.subr.bf16.mxu0 0
    %3425 = vmatpush2.bf16.msra.mxu0 0
    %3426 = vmatprep.subr.bf16.mxu0 0
    %3427 = vmatpush2.bf16.msra.mxu0 0
    %3428 = vmatprep.subr.bf16.mxu0 0
    %3429 = vmatpush2.bf16.msra.mxu0 0
    %3430 = vmatprep.subr.bf16.mxu0 0
    %3431 = vmatpush2.bf16.msra.mxu0 0
    %3432 = vmatprep.subr.bf16.mxu0 0
    %3433 = vmatpush2.bf16.msra.mxu0 0
    %3434 = vmatprep.subr.bf16.mxu0 0
    %3435 = vmatpush2.bf16.msra.mxu0 0
    %3436 = vmatprep.mubr.bf16.mxu0 0
    %3437 = vmatmul.mubr.bf16.gmra.mxu0 %v457
    %v3438 = vpop.f32.mrf.mxu0
    %v3439 = vadd.f32 0.0, %v3438
    %v3440 = vpop.f32.mrf.mxu0
    %v3441 = vadd.f32 0.0, %v3440
    %v3442 = vpop.f32.mrf.mxu0
    %v3443 = vadd.f32 0.0, %v3442
    %v3444 = vpop.f32.mrf.mxu0
    %v3445 = vadd.f32 0.0, %v3444
    %3446 = vmatprep.mubr.bf16.mxu0 0
    %3447 = vmatmul.mubr.bf16.gmra.mxu0 %v460
    %v3448 = vpop.f32.mrf.mxu0
    %v3449 = vadd.f32 0.0, %v3448
    %v3450 = vpop.f32.mrf.mxu0
    %v3451 = vadd.f32 0.0, %v3450
    %v3452 = vpop.f32.mrf.mxu0
    %v3453 = vadd.f32 0.0, %v3452
    %v3454 = vpop.f32.mrf.mxu0
    %v3455 = vadd.f32 0.0, %v3454
    %3456 = vmatprep.mubr.bf16.mxu0 0
    %3457 = vmatmul.mubr.bf16.gmra.mxu0 %v463
    %v3458 = vpop.f32.mrf.mxu0
    %v3459 = vadd.f32 0.0, %v3458
    %v3460 = vpop.f32.mrf.mxu0
    %v3461 = vadd.f32 0.0, %v3460
    %v3462 = vpop.f32.mrf.mxu0
    %v3463 = vadd.f32 0.0, %v3462
    %v3464 = vpop.f32.mrf.mxu0
    %v3465 = vadd.f32 0.0, %v3464
    %3466 = vmatprep.mubr.bf16.mxu0 0
    %3467 = vmatmul.mubr.bf16.gmra.mxu0 %v466
    %v3468 = vpop.f32.mrf.mxu0
    %v3469 = vadd.f32 0.0, %v3468
    %v3470 = vpop.f32.mrf.mxu0
    %v3471 = vadd.f32 0.0, %v3470
    %v3472 = vpop.f32.mrf.mxu0
    %v3473 = vadd.f32 0.0, %v3472
    %v3474 = vpop.f32.mrf.mxu0
    %v3475 = vadd.f32 0.0, %v3474
    %3476 = vmatprep.mubr.bf16.mxu0 0
    %3477 = vmatmul.mubr.bf16.gmra.mxu0 %v1981
    %v3478 = vpop.f32.mrf.mxu0
    %v3479 = vadd.f32 0.0, %v3478
    %v3480 = vpop.f32.mrf.mxu0
    %v3481 = vadd.f32 0.0, %v3480
    %v3482 = vpop.f32.mrf.mxu0
    %v3483 = vadd.f32 0.0, %v3482
    %v3484 = vpop.f32.mrf.mxu0
    %v3485 = vadd.f32 0.0, %v3484
    %3486 = vmatprep.mubr.bf16.mxu0 0
    %3487 = vmatmul.mubr.bf16.gmra.mxu0 %v1984
    %v3488 = vpop.f32.mrf.mxu0
    %v3489 = vadd.f32 0.0, %v3488
    %v3490 = vpop.f32.mrf.mxu0
    %v3491 = vadd.f32 0.0, %v3490
    %v3492 = vpop.f32.mrf.mxu0
    %v3493 = vadd.f32 0.0, %v3492
    %v3494 = vpop.f32.mrf.mxu0
    %v3495 = vadd.f32 0.0, %v3494
    %3496 = vmatprep.mubr.bf16.mxu0 0
    %3497 = vmatmul.mubr.bf16.gmra.mxu0 %v1987
    %v3498 = vpop.f32.mrf.mxu0
    %v3499 = vadd.f32 0.0, %v3498
    %v3500 = vpop.f32.mrf.mxu0
    %v3501 = vadd.f32 0.0, %v3500
    %v3502 = vpop.f32.mrf.mxu0
    %v3503 = vadd.f32 0.0, %v3502
    %v3504 = vpop.f32.mrf.mxu0
    %v3505 = vadd.f32 0.0, %v3504
    %3506 = vmatprep.mubr.bf16.mxu0 0
    %3507 = vmatmul.mubr.bf16.gmra.mxu0 %v1990
    %v3508 = vpop.f32.mrf.mxu0
    %v3509 = vadd.f32 0.0, %v3508
    %v3510 = vpop.f32.mrf.mxu0
    %v3511 = vadd.f32 0.0, %v3510
    %v3512 = vpop.f32.mrf.mxu0
    %v3513 = vadd.f32 0.0, %v3512
    %v3514 = vpop.f32.mrf.mxu0
    %v3515 = vadd.f32 0.0, %v3514
    %3516 = vmatprep.mubr.bf16.mxu0 0
    %3517 = vmatmul.mubr.bf16.gmra.mxu0 %v481
    %v3518 = vpop.f32.mrf.mxu0
    %v3519 = vadd.f32 0.0, %v3518
    %v3520 = vpop.f32.mrf.mxu0
    %v3521 = vadd.f32 0.0, %v3520
    %v3522 = vpop.f32.mrf.mxu0
    %v3523 = vadd.f32 0.0, %v3522
    %v3524 = vpop.f32.mrf.mxu0
    %v3525 = vadd.f32 0.0, %v3524
    %3526 = vmatprep.mubr.bf16.mxu0 0
    %3527 = vmatmul.mubr.bf16.gmra.mxu0 %v484
    %v3528 = vpop.f32.mrf.mxu0
    %v3529 = vadd.f32 0.0, %v3528
    %v3530 = vpop.f32.mrf.mxu0
    %v3531 = vadd.f32 0.0, %v3530
    %v3532 = vpop.f32.mrf.mxu0
    %v3533 = vadd.f32 0.0, %v3532
    %v3534 = vpop.f32.mrf.mxu0
    %v3535 = vadd.f32 0.0, %v3534
    %3536 = vmatprep.mubr.bf16.mxu0 0
    %3537 = vmatmul.mubr.bf16.gmra.mxu0 %v487
    %v3538 = vpop.f32.mrf.mxu0
    %v3539 = vadd.f32 0.0, %v3538
    %v3540 = vpop.f32.mrf.mxu0
    %v3541 = vadd.f32 0.0, %v3540
    %v3542 = vpop.f32.mrf.mxu0
    %v3543 = vadd.f32 0.0, %v3542
    %v3544 = vpop.f32.mrf.mxu0
    %v3545 = vadd.f32 0.0, %v3544
    %3546 = vmatprep.mubr.bf16.mxu0 0
    %3547 = vmatmul.mubr.bf16.gmra.mxu0 %v490
    %v3548 = vpop.f32.mrf.mxu0
    %v3549 = vadd.f32 0.0, %v3548
    %v3550 = vpop.f32.mrf.mxu0
    %v3551 = vadd.f32 0.0, %v3550
    %v3552 = vpop.f32.mrf.mxu0
    %v3553 = vadd.f32 0.0, %v3552
    %v3554 = vpop.f32.mrf.mxu0
    %v3555 = vadd.f32 0.0, %v3554
    %3556 = vmatprep.mubr.bf16.mxu0 0
    %3557 = vmatmul.mubr.bf16.gmra.mxu0 %v2989
    %v3558 = vpop.f32.mrf.mxu0
    %v3559 = vadd.f32 0.0, %v3558
    %v3560 = vpop.f32.mrf.mxu0
    %v3561 = vadd.f32 0.0, %v3560
    %v3562 = vpop.f32.mrf.mxu0
    %v3563 = vadd.f32 0.0, %v3562
    %v3564 = vpop.f32.mrf.mxu0
    %v3565 = vadd.f32 0.0, %v3564
    %3566 = vmatprep.mubr.bf16.mxu0 0
    %3567 = vmatmul.mubr.bf16.gmra.mxu0 %v2992
    %v3568 = vpop.f32.mrf.mxu0
    %v3569 = vadd.f32 0.0, %v3568
    %v3570 = vpop.f32.mrf.mxu0
    %v3571 = vadd.f32 0.0, %v3570
    %v3572 = vpop.f32.mrf.mxu0
    %v3573 = vadd.f32 0.0, %v3572
    %v3574 = vpop.f32.mrf.mxu0
    %v3575 = vadd.f32 0.0, %v3574
    %3576 = vmatprep.mubr.bf16.mxu0 0
    %3577 = vmatmul.mubr.bf16.gmra.mxu0 %v2995
    %v3578 = vpop.f32.mrf.mxu0
    %v3579 = vadd.f32 0.0, %v3578
    %v3580 = vpop.f32.mrf.mxu0
    %v3581 = vadd.f32 0.0, %v3580
    %v3582 = vpop.f32.mrf.mxu0
    %v3583 = vadd.f32 0.0, %v3582
    %v3584 = vpop.f32.mrf.mxu0
    %v3585 = vadd.f32 0.0, %v3584
    %3586 = vmatprep.mubr.bf16.mxu0 0
    %3587 = vmatmul.mubr.bf16.gmra.mxu0 %v2998
    %v3588 = vpop.f32.mrf.mxu0
    %v3589 = vadd.f32 0.0, %v3588
    %v3590 = vpop.f32.mrf.mxu0
    %v3591 = vadd.f32 0.0, %v3590
    %v3592 = vpop.f32.mrf.mxu0
    %v3593 = vadd.f32 0.0, %v3592
    %v3594 = vpop.f32.mrf.mxu0
    %v3595 = vadd.f32 0.0, %v3594
    %3596 = vdwg.mxu0
    %v3597 = vadd.f32 %v2589, %v3053
    %v3598 = vadd.f32 %v2590, %v3055
    %v3599 = vadd.f32 %v2591, %v3246
    %v3600 = vadd.f32 %v2592, %v3248
    %v3601 = vadd.f32 %v2593, %v3439
    %v3602 = vadd.f32 %v2594, %v3441
    %v3603 = vadd.f32 %v2595, %v3057
    %v3604 = vadd.f32 %v2596, %v3059
    %v3605 = vadd.f32 %v2597, %v3250
    %v3606 = vadd.f32 %v2598, %v3252
    %v3607 = vadd.f32 %v2599, %v3443
    %v3608 = vadd.f32 %v2600, %v3445
    %v3609 = vadd.f32 %v2601, %v3063
    %v3610 = vadd.f32 %v2602, %v3065
    %v3611 = vadd.f32 %v2603, %v3256
    %v3612 = vadd.f32 %v2604, %v3258
    %v3613 = vadd.f32 %v2605, %v3449
    %v3614 = vadd.f32 %v2606, %v3451
    %v3615 = vadd.f32 %v2607, %v3067
    %v3616 = vadd.f32 %v2608, %v3069
    %v3617 = vadd.f32 %v2609, %v3260
    %v3618 = vadd.f32 %v2610, %v3262
    %v3619 = vadd.f32 %v2611, %v3453
    %v3620 = vadd.f32 %v2612, %v3455
    %v3621 = vadd.f32 %v2613, %v3073
    %v3622 = vadd.f32 %v2614, %v3075
    %v3623 = vadd.f32 %v2615, %v3266
    %v3624 = vadd.f32 %v2616, %v3268
    %v3625 = vadd.f32 %v2617, %v3459
    %v3626 = vadd.f32 %v2618, %v3461
    %v3627 = vadd.f32 %v2619, %v3077
    %v3628 = vadd.f32 %v2620, %v3079
    %v3629 = vadd.f32 %v2621, %v3270
    %v3630 = vadd.f32 %v2622, %v3272
    %v3631 = vadd.f32 %v2623, %v3463
    %v3632 = vadd.f32 %v2624, %v3465
    %v3633 = vadd.f32 %v2625, %v3083
    %v3634 = vadd.f32 %v2626, %v3085
    %v3635 = vadd.f32 %v2627, %v3276
    %v3636 = vadd.f32 %v2628, %v3278
    %v3637 = vadd.f32 %v2629, %v3469
    %v3638 = vadd.f32 %v2630, %v3471
    %v3639 = vadd.f32 %v2631, %v3087
    %v3640 = vadd.f32 %v2632, %v3089
    %v3641 = vadd.f32 %v2633, %v3280
    %v3642 = vadd.f32 %v2634, %v3282
    %v3643 = vadd.f32 %v2635, %v3473
    %v3644 = vadd.f32 %v2636, %v3475
    %v3645 = vadd.f32 %v2637, %v3093
    %v3646 = vadd.f32 %v2638, %v3095
    %v3647 = vadd.f32 %v2639, %v3286
    %v3648 = vadd.f32 %v2640, %v3288
    %v3649 = vadd.f32 %v2641, %v3479
    %v3650 = vadd.f32 %v2642, %v3481
    %v3651 = vadd.f32 %v2643, %v3097
    %v3652 = vadd.f32 %v2644, %v3099
    %v3653 = vadd.f32 %v2645, %v3290
    %v3654 = vadd.f32 %v2646, %v3292
    %v3655 = vadd.f32 %v2647, %v3483
    %v3656 = vadd.f32 %v2648, %v3485
    %v3657 = vadd.f32 %v2649, %v3103
    %v3658 = vadd.f32 %v2650, %v3105
    %v3659 = vadd.f32 %v2651, %v3296
    %v3660 = vadd.f32 %v2652, %v3298
    %v3661 = vadd.f32 %v2653, %v3489
    %v3662 = vadd.f32 %v2654, %v3491
    %v3663 = vadd.f32 %v2655, %v3107
    %v3664 = vadd.f32 %v2656, %v3109
    %v3665 = vadd.f32 %v2657, %v3300
    %v3666 = vadd.f32 %v2658, %v3302
    %v3667 = vadd.f32 %v2659, %v3493
    %v3668 = vadd.f32 %v2660, %v3495
    %v3669 = vadd.f32 %v2661, %v3113
    %v3670 = vadd.f32 %v2662, %v3115
    %v3671 = vadd.f32 %v2663, %v3306
    %v3672 = vadd.f32 %v2664, %v3308
    %v3673 = vadd.f32 %v2665, %v3499
    %v3674 = vadd.f32 %v2666, %v3501
    %v3675 = vadd.f32 %v2667, %v3117
    %v3676 = vadd.f32 %v2668, %v3119
    %v3677 = vadd.f32 %v2669, %v3310
    %v3678 = vadd.f32 %v2670, %v3312
    %v3679 = vadd.f32 %v2671, %v3503
    %v3680 = vadd.f32 %v2672, %v3505
    %v3681 = vadd.f32 %v2673, %v3123
    %v3682 = vadd.f32 %v2674, %v3125
    %v3683 = vadd.f32 %v2675, %v3316
    %v3684 = vadd.f32 %v2676, %v3318
    %v3685 = vadd.f32 %v2677, %v3509
    %v3686 = vadd.f32 %v2678, %v3511
    %v3687 = vadd.f32 %v2679, %v3127
    %v3688 = vadd.f32 %v2680, %v3129
    %v3689 = vadd.f32 %v2681, %v3320
    %v3690 = vadd.f32 %v2682, %v3322
    %v3691 = vadd.f32 %v2683, %v3513
    %v3692 = vadd.f32 %v2684, %v3515
    %v3693 = vadd.f32 %v2685, %v3133
    %v3694 = vadd.f32 %v2686, %v3135
    %v3695 = vadd.f32 %v2687, %v3326
    %v3696 = vadd.f32 %v2688, %v3328
    %v3697 = vadd.f32 %v2689, %v3519
    %v3698 = vadd.f32 %v2690, %v3521
    %v3699 = vadd.f32 %v2691, %v3137
    %v3700 = vadd.f32 %v2692, %v3139
    %v3701 = vadd.f32 %v2693, %v3330
    %v3702 = vadd.f32 %v2694, %v3332
    %v3703 = vadd.f32 %v2695, %v3523
    %v3704 = vadd.f32 %v2696, %v3525
    %v3705 = vadd.f32 %v2697, %v3143
    %v3706 = vadd.f32 %v2698, %v3145
    %v3707 = vadd.f32 %v2699, %v3336
    %v3708 = vadd.f32 %v2700, %v3338
    %v3709 = vadd.f32 %v2701, %v3529
    %v3710 = vadd.f32 %v2702, %v3531
    %v3711 = vadd.f32 %v2703, %v3147
    %v3712 = vadd.f32 %v2704, %v3149
    %v3713 = vadd.f32 %v2705, %v3340
    %v3714 = vadd.f32 %v2706, %v3342
    %v3715 = vadd.f32 %v2707, %v3533
    %v3716 = vadd.f32 %v2708, %v3535
    %v3717 = vadd.f32 %v2709, %v3153
    %v3718 = vadd.f32 %v2710, %v3155
    %v3719 = vadd.f32 %v2711, %v3346
    %v3720 = vadd.f32 %v2712, %v3348
    %v3721 = vadd.f32 %v2713, %v3539
    %v3722 = vadd.f32 %v2714, %v3541
    %v3723 = vadd.f32 %v2715, %v3157
    %v3724 = vadd.f32 %v2716, %v3159
    %v3725 = vadd.f32 %v2717, %v3350
    %v3726 = vadd.f32 %v2718, %v3352
    %v3727 = vadd.f32 %v2719, %v3543
    %v3728 = vadd.f32 %v2720, %v3545
    %v3729 = vadd.f32 %v2721, %v3163
    %v3730 = vadd.f32 %v2722, %v3165
    %v3731 = vadd.f32 %v2723, %v3356
    %v3732 = vadd.f32 %v2724, %v3358
    %v3733 = vadd.f32 %v2725, %v3549
    %v3734 = vadd.f32 %v2726, %v3551
    %v3735 = vadd.f32 %v2727, %v3167
    %v3736 = vadd.f32 %v2728, %v3169
    %v3737 = vadd.f32 %v2729, %v3360
    %v3738 = vadd.f32 %v2730, %v3362
    %v3739 = vadd.f32 %v2731, %v3553
    %v3740 = vadd.f32 %v2732, %v3555
    %v3741 = vadd.f32 %v2733, %v3173
    %v3742 = vadd.f32 %v2734, %v3175
    %v3743 = vadd.f32 %v2735, %v3366
    %v3744 = vadd.f32 %v2736, %v3368
    %v3745 = vadd.f32 %v2737, %v3559
    %v3746 = vadd.f32 %v2738, %v3561
    %v3747 = vadd.f32 %v2739, %v3177
    %v3748 = vadd.f32 %v2740, %v3179
    %v3749 = vadd.f32 %v2741, %v3370
    %v3750 = vadd.f32 %v2742, %v3372
    %v3751 = vadd.f32 %v2743, %v3563
    %v3752 = vadd.f32 %v2744, %v3565
    %v3753 = vadd.f32 %v2745, %v3183
    %v3754 = vadd.f32 %v2746, %v3185
    %v3755 = vadd.f32 %v2747, %v3376
    %v3756 = vadd.f32 %v2748, %v3378
    %v3757 = vadd.f32 %v2749, %v3569
    %v3758 = vadd.f32 %v2750, %v3571
    %v3759 = vadd.f32 %v2751, %v3187
    %v3760 = vadd.f32 %v2752, %v3189
    %v3761 = vadd.f32 %v2753, %v3380
    %v3762 = vadd.f32 %v2754, %v3382
    %v3763 = vadd.f32 %v2755, %v3573
    %v3764 = vadd.f32 %v2756, %v3575
    %v3765 = vadd.f32 %v2757, %v3193
    %v3766 = vadd.f32 %v2758, %v3195
    %v3767 = vadd.f32 %v2759, %v3386
    %v3768 = vadd.f32 %v2760, %v3388
    %v3769 = vadd.f32 %v2761, %v3579
    %v3770 = vadd.f32 %v2762, %v3581
    %v3771 = vadd.f32 %v2763, %v3197
    %v3772 = vadd.f32 %v2764, %v3199
    %v3773 = vadd.f32 %v2765, %v3390
    %v3774 = vadd.f32 %v2766, %v3392
    %v3775 = vadd.f32 %v2767, %v3583
    %v3776 = vadd.f32 %v2768, %v3585
    %v3777 = vadd.f32 %v2769, %v3203
    %v3778 = vadd.f32 %v2770, %v3205
    %v3779 = vadd.f32 %v2771, %v3396
    %v3780 = vadd.f32 %v2772, %v3398
    %v3781 = vadd.f32 %v2773, %v3589
    %v3782 = vadd.f32 %v2774, %v3591
    %v3783 = vadd.f32 %v2775, %v3207
    %v3784 = vadd.f32 %v2776, %v3209
    %v3785 = vadd.f32 %v2777, %v3400
    %v3786 = vadd.f32 %v2778, %v3402
    %v3787 = vadd.f32 %v2779, %v3593
    %v3788 = vadd.f32 %v2780, %v3595
    %v3789 = vld [vmem:[%s160] sm:$0xf]
    %v3790 = vld [vmem:[%s160 + $0x4] sm:$0x1]
    %v3791 = vld [vmem:[%s160 + $0x20] sm:$0xf]
    %v3792 = vld [vmem:[%s160 + $0x24] sm:$0x1]
    %v3793 = vld [vmem:[%s160 + $0x40] sm:$0xf]
    %v3794 = vld [vmem:[%s160 + $0x44] sm:$0x1]
    %v3795 = vld [vmem:[%s160 + $0x60] sm:$0xf]
    %v3796 = vld [vmem:[%s160 + $0x64] sm:$0x1]
    %v3797 = vld [vmem:[%s160 + $0x80] sm:$0xf]
    %v3798 = vld [vmem:[%s160 + $0x84] sm:$0x1]
    %v3799 = vld [vmem:[%s160 + $0xa0] sm:$0xf]
    %v3800 = vld [vmem:[%s160 + $0xa4] sm:$0x1]
    %v3801 = vld [vmem:[%s160 + $0xc0] sm:$0xf]
    %v3802 = vld [vmem:[%s160 + $0xc4] sm:$0x1]
    %v3803 = vld [vmem:[%s160 + $0xe0] sm:$0xf]
    %v3804 = vld [vmem:[%s160 + $0xe4] sm:$0x1]
    %v3806 = vshrl.u32 %v3789, 16
    %v3808 = vrot.slane %v3806, 4
    %v3809 = vshll.u32 %v3789, 16
    %v3811 = vrot.slane %v3809, 5
    %v3812 = vor.u32 %v3808, %v3811
    %v3813 = vrot.slane %v3812, 4
    %v3815 = vshll.u32 %v3790, 16
    %v3817 = vrot.slane %v3815, 5
    %v3818 = vsel %vm191, %v3813, %v3817
    %v3820 = vshrl.u32 %v3791, 16
    %v3822 = vrot.slane %v3820, 4
    %v3823 = vshll.u32 %v3791, 16
    %v3825 = vrot.slane %v3823, 5
    %v3826 = vor.u32 %v3822, %v3825
    %v3827 = vrot.slane %v3826, 4
    %v3829 = vshll.u32 %v3792, 16
    %v3831 = vrot.slane %v3829, 5
    %v3832 = vsel %vm191, %v3827, %v3831
    %v3834 = vshrl.u32 %v3793, 16
    %v3836 = vrot.slane %v3834, 4
    %v3837 = vshll.u32 %v3793, 16
    %v3839 = vrot.slane %v3837, 5
    %v3840 = vor.u32 %v3836, %v3839
    %v3841 = vrot.slane %v3840, 4
    %v3843 = vshll.u32 %v3794, 16
    %v3845 = vrot.slane %v3843, 5
    %v3846 = vsel %vm191, %v3841, %v3845
    %v3848 = vshrl.u32 %v3795, 16
    %v3850 = vrot.slane %v3848, 4
    %v3851 = vshll.u32 %v3795, 16
    %v3853 = vrot.slane %v3851, 5
    %v3854 = vor.u32 %v3850, %v3853
    %v3855 = vrot.slane %v3854, 4
    %v3857 = vshll.u32 %v3796, 16
    %v3859 = vrot.slane %v3857, 5
    %v3860 = vsel %vm191, %v3855, %v3859
    %v3862 = vshrl.u32 %v3797, 16
    %v3864 = vrot.slane %v3862, 4
    %v3865 = vshll.u32 %v3797, 16
    %v3867 = vrot.slane %v3865, 5
    %v3868 = vor.u32 %v3864, %v3867
    %v3869 = vrot.slane %v3868, 4
    %v3871 = vshll.u32 %v3798, 16
    %v3873 = vrot.slane %v3871, 5
    %v3874 = vsel %vm191, %v3869, %v3873
    %v3876 = vshrl.u32 %v3799, 16
    %v3878 = vrot.slane %v3876, 4
    %v3879 = vshll.u32 %v3799, 16
    %v3881 = vrot.slane %v3879, 5
    %v3882 = vor.u32 %v3878, %v3881
    %v3883 = vrot.slane %v3882, 4
    %v3885 = vshll.u32 %v3800, 16
    %v3887 = vrot.slane %v3885, 5
    %v3888 = vsel %vm191, %v3883, %v3887
    %v3890 = vshrl.u32 %v3801, 16
    %v3892 = vrot.slane %v3890, 4
    %v3893 = vshll.u32 %v3801, 16
    %v3895 = vrot.slane %v3893, 5
    %v3896 = vor.u32 %v3892, %v3895
    %v3897 = vrot.slane %v3896, 4
    %v3899 = vshll.u32 %v3802, 16
    %v3901 = vrot.slane %v3899, 5
    %v3902 = vsel %vm191, %v3897, %v3901
    %v3904 = vshrl.u32 %v3803, 16
    %v3906 = vrot.slane %v3904, 4
    %v3907 = vshll.u32 %v3803, 16
    %v3909 = vrot.slane %v3907, 5
    %v3910 = vor.u32 %v3906, %v3909
    %v3911 = vrot.slane %v3910, 4
    %v3913 = vshll.u32 %v3804, 16
    %v3915 = vrot.slane %v3913, 5
    %v3916 = vsel %vm191, %v3911, %v3915
    %s3917 = scalar_lea.vmem [#allocation2], 384
    %v3918 = vld [vmem:[%s3917] sm:$0xff]
    %v3919 = vld [vmem:[%s3917 + $0x8] sm:$0xff]
    %v3920 = vld [vmem:[%s3917 + $0x10] sm:$0xff]
    %v3921 = vld [vmem:[%s3917 + $0x18] sm:$0xff]
    %v3922 = vld [vmem:[%s3917 + $0x20] sm:$0xff]
    %v3923 = vld [vmem:[%s3917 + $0x28] sm:$0xff]
    %v3924 = vld [vmem:[%s3917 + $0x30] sm:$0xff]
    %v3925 = vld [vmem:[%s3917 + $0x38] sm:$0xff]
    %v3926 = vld [vmem:[%s3917 + $0x40] sm:$0xff]
    %v3927 = vld [vmem:[%s3917 + $0x48] sm:$0x33]
    %v3928 = vld [vmem:[%s3917 + $0x50] sm:$0x33]
    %v3929 = vld [vmem:[%s3917 + $0x58] sm:$0x33]
    %v3930 = vunpack.c.l.b16 %v3818
    %v3931 = vunpack.c.l.b16 %v3832
    %v3932 = vunpack.c.l.b16 %v3846
    %v3933 = vunpack.c.l.b16 %v3860
    %v3934 = vunpack.c.l.b16 %v3874
    %v3935 = vunpack.c.l.b16 %v3888
    %v3936 = vunpack.c.l.b16 %v3902
    %v3937 = vunpack.c.l.b16 %v3916
    %v3938 = vpack.c.b16 %v3931, %v3930
    %v3939 = vpack.c.b16 %v3933, %v3932
    %v3940 = vpack.c.b16 %v3935, %v3934
    %v3941 = vpack.c.b16 %v3937, %v3936
    %v3954 = vunpack.c.l.b16 %v3918
    %v3955 = vunpack.c.h.b16 %v3918
    %v3956 = vunpack.c.l.b16 %v3919
    %v3957 = vunpack.c.h.b16 %v3919
    %v3958 = vunpack.c.l.b16 %v3920
    %v3959 = vunpack.c.h.b16 %v3920
    %v3960 = vunpack.c.l.b16 %v3921
    %v3961 = vunpack.c.h.b16 %v3921
    %v3962 = vunpack.c.l.b16 %v3922
    %v3963 = vunpack.c.h.b16 %v3922
    %v3964 = vunpack.c.l.b16 %v3923
    %v3965 = vunpack.c.h.b16 %v3923
    %v3966 = vunpack.c.l.b16 %v3924
    %v3967 = vunpack.c.h.b16 %v3924
    %v3968 = vunpack.c.l.b16 %v3925
    %v3969 = vunpack.c.h.b16 %v3925
    %v3970 = vunpack.c.l.b16 %v3926
    %v3971 = vunpack.c.h.b16 %v3926
    %v3972 = vunpack.c.l.b16 %v3927
    %v3973 = vunpack.c.h.b16 %v3927
    %v3974 = vunpack.c.l.b16 %v3928
    %v3975 = vunpack.c.h.b16 %v3928
    %v3976 = vunpack.c.l.b16 %v3929
    %v3977 = vunpack.c.h.b16 %v3929
    %v3978 = vpack.c.b16 %v3960, %v3954
    %v3979 = vpack.c.b16 %v3961, %v3955
    %v3980 = vpack.c.b16 %v3962, %v3956
    %v3981 = vpack.c.b16 %v3963, %v3957
    %v3982 = vpack.c.b16 %v3964, %v3958
    %v3983 = vpack.c.b16 %v3965, %v3959
    %v3984 = vpack.c.b16 %v3972, %v3966
    %v3985 = vpack.c.b16 %v3973, %v3967
    %v3986 = vpack.c.b16 %v3974, %v3968
    %v3987 = vpack.c.b16 %v3975, %v3969
    %v3988 = vpack.c.b16 %v3976, %v3970
    %v3989 = vpack.c.b16 %v3977, %v3971
    %v3997 = vsel %vm443, %v3938, 0
    %v4000 = vsel %vm443, %v3939, 0
    %v4003 = vsel %vm443, %v3940, 0
    %v4006 = vsel %vm443, %v3941, 0
    %v4009 = vsel %vm492, %v3984, 0
    %v4012 = vsel %vm492, %v3985, 0
    %v4015 = vsel %vm492, %v3986, 0
    %v4018 = vsel %vm492, %v3987, 0
    %v4021 = vsel %vm492, %v3988, 0
    %v4024 = vsel %vm492, %v3989, 0
    %4026 = vmatprep.subr.bf16.mxu0 0
    %4027 = vmatpush1.bf16.msra.mxu0 0
    %4028 = vmatprep.subr.bf16.mxu0 0
    %4029 = vmatpush1.bf16.msra.mxu0 0
    %4030 = vmatprep.subr.bf16.mxu0 0
    %4031 = vmatpush1.bf16.msra.mxu0 0
    %4032 = vmatprep.subr.bf16.mxu0 0
    %4033 = vmatpush1.bf16.msra.mxu0 0
    %4034 = vmatprep.subr.bf16.mxu0 0
    %4035 = vmatpush1.bf16.msra.mxu0 0
    %4036 = vmatprep.subr.bf16.mxu0 0
    %4037 = vmatpush1.bf16.msra.mxu0 0
    %4038 = vmatprep.subr.bf16.mxu0 %v4012
    %4039 = vmatpush1.bf16.msra.mxu0 %v4009
    %4040 = vmatprep.subr.bf16.mxu0 %v3979
    %4041 = vmatpush1.bf16.msra.mxu0 %v3978
    %4042 = vmatprep.subr.bf16.mxu0 0
    %4043 = vmatpush2.bf16.msra.mxu0 0
    %4044 = vmatprep.subr.bf16.mxu0 0
    %4045 = vmatpush2.bf16.msra.mxu0 0
    %4046 = vmatprep.subr.bf16.mxu0 0
    %4047 = vmatpush2.bf16.msra.mxu0 0
    %4048 = vmatprep.subr.bf16.mxu0 0
    %4049 = vmatpush2.bf16.msra.mxu0 0
    %4050 = vmatprep.subr.bf16.mxu0 0
    %4051 = vmatpush2.bf16.msra.mxu0 0
    %4052 = vmatprep.subr.bf16.mxu0 0
    %4053 = vmatpush2.bf16.msra.mxu0 0
    %4054 = vmatprep.subr.bf16.mxu0 0
    %4055 = vmatpush2.bf16.msra.mxu0 0
    %4056 = vmatprep.subr.bf16.mxu0 0
    %4057 = vmatpush2.bf16.msra.mxu0 0
    %4058 = vmatprep.mubr.bf16.mxu0 0
    %4059 = vmatmul.mubr.bf16.gmra.mxu0 %v481
    %v4060 = vpop.f32.mrf.mxu0
    %v4061 = vadd.f32 0.0, %v4060
    %v4062 = vpop.f32.mrf.mxu0
    %v4063 = vadd.f32 0.0, %v4062
    %v4064 = vpop.f32.mrf.mxu0
    %v4065 = vadd.f32 0.0, %v4064
    %v4066 = vpop.f32.mrf.mxu0
    %v4067 = vadd.f32 0.0, %v4066
    %4068 = vmatprep.mubr.bf16.mxu0 0
    %4069 = vmatmul.mubr.bf16.gmra.mxu0 %v484
    %v4070 = vpop.f32.mrf.mxu0
    %v4071 = vadd.f32 0.0, %v4070
    %v4072 = vpop.f32.mrf.mxu0
    %v4073 = vadd.f32 0.0, %v4072
    %v4074 = vpop.f32.mrf.mxu0
    %v4075 = vadd.f32 0.0, %v4074
    %v4076 = vpop.f32.mrf.mxu0
    %v4077 = vadd.f32 0.0, %v4076
    %4078 = vmatprep.mubr.bf16.mxu0 0
    %4079 = vmatmul.mubr.bf16.gmra.mxu0 %v487
    %v4080 = vpop.f32.mrf.mxu0
    %v4081 = vadd.f32 0.0, %v4080
    %v4082 = vpop.f32.mrf.mxu0
    %v4083 = vadd.f32 0.0, %v4082
    %v4084 = vpop.f32.mrf.mxu0
    %v4085 = vadd.f32 0.0, %v4084
    %v4086 = vpop.f32.mrf.mxu0
    %v4087 = vadd.f32 0.0, %v4086
    %4088 = vmatprep.mubr.bf16.mxu0 0
    %4089 = vmatmul.mubr.bf16.gmra.mxu0 %v490
    %v4090 = vpop.f32.mrf.mxu0
    %v4091 = vadd.f32 0.0, %v4090
    %v4092 = vpop.f32.mrf.mxu0
    %v4093 = vadd.f32 0.0, %v4092
    %v4094 = vpop.f32.mrf.mxu0
    %v4095 = vadd.f32 0.0, %v4094
    %v4096 = vpop.f32.mrf.mxu0
    %v4097 = vadd.f32 0.0, %v4096
    %4098 = vmatprep.mubr.bf16.mxu0 0
    %4099 = vmatmul.mubr.bf16.gmra.mxu0 %v2989
    %v4100 = vpop.f32.mrf.mxu0
    %v4101 = vadd.f32 0.0, %v4100
    %v4102 = vpop.f32.mrf.mxu0
    %v4103 = vadd.f32 0.0, %v4102
    %v4104 = vpop.f32.mrf.mxu0
    %v4105 = vadd.f32 0.0, %v4104
    %v4106 = vpop.f32.mrf.mxu0
    %v4107 = vadd.f32 0.0, %v4106
    %4108 = vmatprep.mubr.bf16.mxu0 0
    %4109 = vmatmul.mubr.bf16.gmra.mxu0 %v2992
    %v4110 = vpop.f32.mrf.mxu0
    %v4111 = vadd.f32 0.0, %v4110
    %v4112 = vpop.f32.mrf.mxu0
    %v4113 = vadd.f32 0.0, %v4112
    %v4114 = vpop.f32.mrf.mxu0
    %v4115 = vadd.f32 0.0, %v4114
    %v4116 = vpop.f32.mrf.mxu0
    %v4117 = vadd.f32 0.0, %v4116
    %4118 = vmatprep.mubr.bf16.mxu0 0
    %4119 = vmatmul.mubr.bf16.gmra.mxu0 %v2995
    %v4120 = vpop.f32.mrf.mxu0
    %v4121 = vadd.f32 0.0, %v4120
    %v4122 = vpop.f32.mrf.mxu0
    %v4123 = vadd.f32 0.0, %v4122
    %v4124 = vpop.f32.mrf.mxu0
    %v4125 = vadd.f32 0.0, %v4124
    %v4126 = vpop.f32.mrf.mxu0
    %v4127 = vadd.f32 0.0, %v4126
    %4128 = vmatprep.mubr.bf16.mxu0 0
    %4129 = vmatmul.mubr.bf16.gmra.mxu0 %v2998
    %v4130 = vpop.f32.mrf.mxu0
    %v4131 = vadd.f32 0.0, %v4130
    %v4132 = vpop.f32.mrf.mxu0
    %v4133 = vadd.f32 0.0, %v4132
    %v4134 = vpop.f32.mrf.mxu0
    %v4135 = vadd.f32 0.0, %v4134
    %v4136 = vpop.f32.mrf.mxu0
    %v4137 = vadd.f32 0.0, %v4136
    %4138 = vmatprep.mubr.bf16.mxu0 0
    %4139 = vmatmul.mubr.bf16.gmra.mxu0 %v1981
    %v4140 = vpop.f32.mrf.mxu0
    %v4141 = vadd.f32 0.0, %v4140
    %v4142 = vpop.f32.mrf.mxu0
    %v4143 = vadd.f32 0.0, %v4142
    %v4144 = vpop.f32.mrf.mxu0
    %v4145 = vadd.f32 0.0, %v4144
    %v4146 = vpop.f32.mrf.mxu0
    %v4147 = vadd.f32 0.0, %v4146
    %4148 = vmatprep.mubr.bf16.mxu0 0
    %4149 = vmatmul.mubr.bf16.gmra.mxu0 %v1984
    %v4150 = vpop.f32.mrf.mxu0
    %v4151 = vadd.f32 0.0, %v4150
    %v4152 = vpop.f32.mrf.mxu0
    %v4153 = vadd.f32 0.0, %v4152
    %v4154 = vpop.f32.mrf.mxu0
    %v4155 = vadd.f32 0.0, %v4154
    %v4156 = vpop.f32.mrf.mxu0
    %v4157 = vadd.f32 0.0, %v4156
    %4158 = vmatprep.mubr.bf16.mxu0 0
    %4159 = vmatmul.mubr.bf16.gmra.mxu0 %v1987
    %v4160 = vpop.f32.mrf.mxu0
    %v4161 = vadd.f32 0.0, %v4160
    %v4162 = vpop.f32.mrf.mxu0
    %v4163 = vadd.f32 0.0, %v4162
    %v4164 = vpop.f32.mrf.mxu0
    %v4165 = vadd.f32 0.0, %v4164
    %v4166 = vpop.f32.mrf.mxu0
    %v4167 = vadd.f32 0.0, %v4166
    %4168 = vmatprep.mubr.bf16.mxu0 0
    %4169 = vmatmul.mubr.bf16.gmra.mxu0 %v1990
    %v4170 = vpop.f32.mrf.mxu0
    %v4171 = vadd.f32 0.0, %v4170
    %v4172 = vpop.f32.mrf.mxu0
    %v4173 = vadd.f32 0.0, %v4172
    %v4174 = vpop.f32.mrf.mxu0
    %v4175 = vadd.f32 0.0, %v4174
    %v4176 = vpop.f32.mrf.mxu0
    %v4177 = vadd.f32 0.0, %v4176
    %4178 = vmatprep.mubr.bf16.mxu0 0
    %4179 = vmatmul.mubr.bf16.gmra.mxu0 %v3997
    %v4180 = vpop.f32.mrf.mxu0
    %v4181 = vadd.f32 0.0, %v4180
    %v4182 = vpop.f32.mrf.mxu0
    %v4183 = vadd.f32 0.0, %v4182
    %v4184 = vpop.f32.mrf.mxu0
    %v4185 = vadd.f32 0.0, %v4184
    %v4186 = vpop.f32.mrf.mxu0
    %v4187 = vadd.f32 0.0, %v4186
    %4188 = vmatprep.mubr.bf16.mxu0 0
    %4189 = vmatmul.mubr.bf16.gmra.mxu0 %v4000
    %v4190 = vpop.f32.mrf.mxu0
    %v4191 = vadd.f32 0.0, %v4190
    %v4192 = vpop.f32.mrf.mxu0
    %v4193 = vadd.f32 0.0, %v4192
    %v4194 = vpop.f32.mrf.mxu0
    %v4195 = vadd.f32 0.0, %v4194
    %v4196 = vpop.f32.mrf.mxu0
    %v4197 = vadd.f32 0.0, %v4196
    %4198 = vmatprep.mubr.bf16.mxu0 0
    %4199 = vmatmul.mubr.bf16.gmra.mxu0 %v4003
    %v4200 = vpop.f32.mrf.mxu0
    %v4201 = vadd.f32 0.0, %v4200
    %v4202 = vpop.f32.mrf.mxu0
    %v4203 = vadd.f32 0.0, %v4202
    %v4204 = vpop.f32.mrf.mxu0
    %v4205 = vadd.f32 0.0, %v4204
    %v4206 = vpop.f32.mrf.mxu0
    %v4207 = vadd.f32 0.0, %v4206
    %4208 = vmatprep.mubr.bf16.mxu0 0
    %4209 = vmatmul.mubr.bf16.gmra.mxu0 %v4006
    %v4210 = vpop.f32.mrf.mxu0
    %v4211 = vadd.f32 0.0, %v4210
    %v4212 = vpop.f32.mrf.mxu0
    %v4213 = vadd.f32 0.0, %v4212
    %v4214 = vpop.f32.mrf.mxu0
    %v4215 = vadd.f32 0.0, %v4214
    %v4216 = vpop.f32.mrf.mxu0
    %v4217 = vadd.f32 0.0, %v4216
    %4218 = vdwg.mxu0
    %4219 = vmatprep.subr.bf16.mxu0 0
    %4220 = vmatpush1.bf16.msra.mxu0 0
    %4221 = vmatprep.subr.bf16.mxu0 0
    %4222 = vmatpush1.bf16.msra.mxu0 0
    %4223 = vmatprep.subr.bf16.mxu0 0
    %4224 = vmatpush1.bf16.msra.mxu0 0
    %4225 = vmatprep.subr.bf16.mxu0 0
    %4226 = vmatpush1.bf16.msra.mxu0 0
    %4227 = vmatprep.subr.bf16.mxu0 0
    %4228 = vmatpush1.bf16.msra.mxu0 0
    %4229 = vmatprep.subr.bf16.mxu0 0
    %4230 = vmatpush1.bf16.msra.mxu0 0
    %4231 = vmatprep.subr.bf16.mxu0 %v4018
    %4232 = vmatpush1.bf16.msra.mxu0 %v4015
    %4233 = vmatprep.subr.bf16.mxu0 %v3981
    %4234 = vmatpush1.bf16.msra.mxu0 %v3980
    %4235 = vmatprep.subr.bf16.mxu0 0
    %4236 = vmatpush2.bf16.msra.mxu0 0
    %4237 = vmatprep.subr.bf16.mxu0 0
    %4238 = vmatpush2.bf16.msra.mxu0 0
    %4239 = vmatprep.subr.bf16.mxu0 0
    %4240 = vmatpush2.bf16.msra.mxu0 0
    %4241 = vmatprep.subr.bf16.mxu0 0
    %4242 = vmatpush2.bf16.msra.mxu0 0
    %4243 = vmatprep.subr.bf16.mxu0 0
    %4244 = vmatpush2.bf16.msra.mxu0 0
    %4245 = vmatprep.subr.bf16.mxu0 0
    %4246 = vmatpush2.bf16.msra.mxu0 0
    %4247 = vmatprep.subr.bf16.mxu0 0
    %4248 = vmatpush2.bf16.msra.mxu0 0
    %4249 = vmatprep.subr.bf16.mxu0 0
    %4250 = vmatpush2.bf16.msra.mxu0 0
    %4251 = vmatprep.mubr.bf16.mxu0 0
    %4252 = vmatmul.mubr.bf16.gmra.mxu0 %v481
    %v4253 = vpop.f32.mrf.mxu0
    %v4254 = vadd.f32 0.0, %v4253
    %v4255 = vpop.f32.mrf.mxu0
    %v4256 = vadd.f32 0.0, %v4255
    %v4257 = vpop.f32.mrf.mxu0
    %v4258 = vadd.f32 0.0, %v4257
    %v4259 = vpop.f32.mrf.mxu0
    %v4260 = vadd.f32 0.0, %v4259
    %4261 = vmatprep.mubr.bf16.mxu0 0
    %4262 = vmatmul.mubr.bf16.gmra.mxu0 %v484
    %v4263 = vpop.f32.mrf.mxu0
    %v4264 = vadd.f32 0.0, %v4263
    %v4265 = vpop.f32.mrf.mxu0
    %v4266 = vadd.f32 0.0, %v4265
    %v4267 = vpop.f32.mrf.mxu0
    %v4268 = vadd.f32 0.0, %v4267
    %v4269 = vpop.f32.mrf.mxu0
    %v4270 = vadd.f32 0.0, %v4269
    %4271 = vmatprep.mubr.bf16.mxu0 0
    %4272 = vmatmul.mubr.bf16.gmra.mxu0 %v487
    %v4273 = vpop.f32.mrf.mxu0
    %v4274 = vadd.f32 0.0, %v4273
    %v4275 = vpop.f32.mrf.mxu0
    %v4276 = vadd.f32 0.0, %v4275
    %v4277 = vpop.f32.mrf.mxu0
    %v4278 = vadd.f32 0.0, %v4277
    %v4279 = vpop.f32.mrf.mxu0
    %v4280 = vadd.f32 0.0, %v4279
    %4281 = vmatprep.mubr.bf16.mxu0 0
    %4282 = vmatmul.mubr.bf16.gmra.mxu0 %v490
    %v4283 = vpop.f32.mrf.mxu0
    %v4284 = vadd.f32 0.0, %v4283
    %v4285 = vpop.f32.mrf.mxu0
    %v4286 = vadd.f32 0.0, %v4285
    %v4287 = vpop.f32.mrf.mxu0
    %v4288 = vadd.f32 0.0, %v4287
    %v4289 = vpop.f32.mrf.mxu0
    %v4290 = vadd.f32 0.0, %v4289
    %4291 = vmatprep.mubr.bf16.mxu0 0
    %4292 = vmatmul.mubr.bf16.gmra.mxu0 %v2989
    %v4293 = vpop.f32.mrf.mxu0
    %v4294 = vadd.f32 0.0, %v4293
    %v4295 = vpop.f32.mrf.mxu0
    %v4296 = vadd.f32 0.0, %v4295
    %v4297 = vpop.f32.mrf.mxu0
    %v4298 = vadd.f32 0.0, %v4297
    %v4299 = vpop.f32.mrf.mxu0
    %v4300 = vadd.f32 0.0, %v4299
    %4301 = vmatprep.mubr.bf16.mxu0 0
    %4302 = vmatmul.mubr.bf16.gmra.mxu0 %v2992
    %v4303 = vpop.f32.mrf.mxu0
    %v4304 = vadd.f32 0.0, %v4303
    %v4305 = vpop.f32.mrf.mxu0
    %v4306 = vadd.f32 0.0, %v4305
    %v4307 = vpop.f32.mrf.mxu0
    %v4308 = vadd.f32 0.0, %v4307
    %v4309 = vpop.f32.mrf.mxu0
    %v4310 = vadd.f32 0.0, %v4309
    %4311 = vmatprep.mubr.bf16.mxu0 0
    %4312 = vmatmul.mubr.bf16.gmra.mxu0 %v2995
    %v4313 = vpop.f32.mrf.mxu0
    %v4314 = vadd.f32 0.0, %v4313
    %v4315 = vpop.f32.mrf.mxu0
    %v4316 = vadd.f32 0.0, %v4315
    %v4317 = vpop.f32.mrf.mxu0
    %v4318 = vadd.f32 0.0, %v4317
    %v4319 = vpop.f32.mrf.mxu0
    %v4320 = vadd.f32 0.0, %v4319
    %4321 = vmatprep.mubr.bf16.mxu0 0
    %4322 = vmatmul.mubr.bf16.gmra.mxu0 %v2998
    %v4323 = vpop.f32.mrf.mxu0
    %v4324 = vadd.f32 0.0, %v4323
    %v4325 = vpop.f32.mrf.mxu0
    %v4326 = vadd.f32 0.0, %v4325
    %v4327 = vpop.f32.mrf.mxu0
    %v4328 = vadd.f32 0.0, %v4327
    %v4329 = vpop.f32.mrf.mxu0
    %v4330 = vadd.f32 0.0, %v4329
    %4331 = vmatprep.mubr.bf16.mxu0 0
    %4332 = vmatmul.mubr.bf16.gmra.mxu0 %v1981
    %v4333 = vpop.f32.mrf.mxu0
    %v4334 = vadd.f32 0.0, %v4333
    %v4335 = vpop.f32.mrf.mxu0
    %v4336 = vadd.f32 0.0, %v4335
    %v4337 = vpop.f32.mrf.mxu0
    %v4338 = vadd.f32 0.0, %v4337
    %v4339 = vpop.f32.mrf.mxu0
    %v4340 = vadd.f32 0.0, %v4339
    %4341 = vmatprep.mubr.bf16.mxu0 0
    %4342 = vmatmul.mubr.bf16.gmra.mxu0 %v1984
    %v4343 = vpop.f32.mrf.mxu0
    %v4344 = vadd.f32 0.0, %v4343
    %v4345 = vpop.f32.mrf.mxu0
    %v4346 = vadd.f32 0.0, %v4345
    %v4347 = vpop.f32.mrf.mxu0
    %v4348 = vadd.f32 0.0, %v4347
    %v4349 = vpop.f32.mrf.mxu0
    %v4350 = vadd.f32 0.0, %v4349
    %4351 = vmatprep.mubr.bf16.mxu0 0
    %4352 = vmatmul.mubr.bf16.gmra.mxu0 %v1987
    %v4353 = vpop.f32.mrf.mxu0
    %v4354 = vadd.f32 0.0, %v4353
    %v4355 = vpop.f32.mrf.mxu0
    %v4356 = vadd.f32 0.0, %v4355
    %v4357 = vpop.f32.mrf.mxu0
    %v4358 = vadd.f32 0.0, %v4357
    %v4359 = vpop.f32.mrf.mxu0
    %v4360 = vadd.f32 0.0, %v4359
    %4361 = vmatprep.mubr.bf16.mxu0 0
    %4362 = vmatmul.mubr.bf16.gmra.mxu0 %v1990
    %v4363 = vpop.f32.mrf.mxu0
    %v4364 = vadd.f32 0.0, %v4363
    %v4365 = vpop.f32.mrf.mxu0
    %v4366 = vadd.f32 0.0, %v4365
    %v4367 = vpop.f32.mrf.mxu0
    %v4368 = vadd.f32 0.0, %v4367
    %v4369 = vpop.f32.mrf.mxu0
    %v4370 = vadd.f32 0.0, %v4369
    %4371 = vmatprep.mubr.bf16.mxu0 0
    %4372 = vmatmul.mubr.bf16.gmra.mxu0 %v3997
    %v4373 = vpop.f32.mrf.mxu0
    %v4374 = vadd.f32 0.0, %v4373
    %v4375 = vpop.f32.mrf.mxu0
    %v4376 = vadd.f32 0.0, %v4375
    %v4377 = vpop.f32.mrf.mxu0
    %v4378 = vadd.f32 0.0, %v4377
    %v4379 = vpop.f32.mrf.mxu0
    %v4380 = vadd.f32 0.0, %v4379
    %4381 = vmatprep.mubr.bf16.mxu0 0
    %4382 = vmatmul.mubr.bf16.gmra.mxu0 %v4000
    %v4383 = vpop.f32.mrf.mxu0
    %v4384 = vadd.f32 0.0, %v4383
    %v4385 = vpop.f32.mrf.mxu0
    %v4386 = vadd.f32 0.0, %v4385
    %v4387 = vpop.f32.mrf.mxu0
    %v4388 = vadd.f32 0.0, %v4387
    %v4389 = vpop.f32.mrf.mxu0
    %v4390 = vadd.f32 0.0, %v4389
    %4391 = vmatprep.mubr.bf16.mxu0 0
    %4392 = vmatmul.mubr.bf16.gmra.mxu0 %v4003
    %v4393 = vpop.f32.mrf.mxu0
    %v4394 = vadd.f32 0.0, %v4393
    %v4395 = vpop.f32.mrf.mxu0
    %v4396 = vadd.f32 0.0, %v4395
    %v4397 = vpop.f32.mrf.mxu0
    %v4398 = vadd.f32 0.0, %v4397
    %v4399 = vpop.f32.mrf.mxu0
    %v4400 = vadd.f32 0.0, %v4399
    %4401 = vmatprep.mubr.bf16.mxu0 0
    %4402 = vmatmul.mubr.bf16.gmra.mxu0 %v4006
    %v4403 = vpop.f32.mrf.mxu0
    %v4404 = vadd.f32 0.0, %v4403
    %v4405 = vpop.f32.mrf.mxu0
    %v4406 = vadd.f32 0.0, %v4405
    %v4407 = vpop.f32.mrf.mxu0
    %v4408 = vadd.f32 0.0, %v4407
    %v4409 = vpop.f32.mrf.mxu0
    %v4410 = vadd.f32 0.0, %v4409
    %4411 = vdwg.mxu0
    %4412 = vmatprep.subr.bf16.mxu0 0
    %4413 = vmatpush1.bf16.msra.mxu0 0
    %4414 = vmatprep.subr.bf16.mxu0 0
    %4415 = vmatpush1.bf16.msra.mxu0 0
    %4416 = vmatprep.subr.bf16.mxu0 0
    %4417 = vmatpush1.bf16.msra.mxu0 0
    %4418 = vmatprep.subr.bf16.mxu0 0
    %4419 = vmatpush1.bf16.msra.mxu0 0
    %4420 = vmatprep.subr.bf16.mxu0 0
    %4421 = vmatpush1.bf16.msra.mxu0 0
    %4422 = vmatprep.subr.bf16.mxu0 0
    %4423 = vmatpush1.bf16.msra.mxu0 0
    %4424 = vmatprep.subr.bf16.mxu0 %v4024
    %4425 = vmatpush1.bf16.msra.mxu0 %v4021
    %4426 = vmatprep.subr.bf16.mxu0 %v3983
    %4427 = vmatpush1.bf16.msra.mxu0 %v3982
    %4428 = vmatprep.subr.bf16.mxu0 0
    %4429 = vmatpush2.bf16.msra.mxu0 0
    %4430 = vmatprep.subr.bf16.mxu0 0
    %4431 = vmatpush2.bf16.msra.mxu0 0
    %4432 = vmatprep.subr.bf16.mxu0 0
    %4433 = vmatpush2.bf16.msra.mxu0 0
    %4434 = vmatprep.subr.bf16.mxu0 0
    %4435 = vmatpush2.bf16.msra.mxu0 0
    %4436 = vmatprep.subr.bf16.mxu0 0
    %4437 = vmatpush2.bf16.msra.mxu0 0
    %4438 = vmatprep.subr.bf16.mxu0 0
    %4439 = vmatpush2.bf16.msra.mxu0 0
    %4440 = vmatprep.subr.bf16.mxu0 0
    %4441 = vmatpush2.bf16.msra.mxu0 0
    %4442 = vmatprep.subr.bf16.mxu0 0
    %4443 = vmatpush2.bf16.msra.mxu0 0
    %4444 = vmatprep.mubr.bf16.mxu0 0
    %4445 = vmatmul.mubr.bf16.gmra.mxu0 %v481
    %v4446 = vpop.f32.mrf.mxu0
    %v4447 = vadd.f32 0.0, %v4446
    %v4448 = vpop.f32.mrf.mxu0
    %v4449 = vadd.f32 0.0, %v4448
    %v4450 = vpop.f32.mrf.mxu0
    %v4451 = vadd.f32 0.0, %v4450
    %v4452 = vpop.f32.mrf.mxu0
    %v4453 = vadd.f32 0.0, %v4452
    %4454 = vmatprep.mubr.bf16.mxu0 0
    %4455 = vmatmul.mubr.bf16.gmra.mxu0 %v484
    %v4456 = vpop.f32.mrf.mxu0
    %v4457 = vadd.f32 0.0, %v4456
    %v4458 = vpop.f32.mrf.mxu0
    %v4459 = vadd.f32 0.0, %v4458
    %v4460 = vpop.f32.mrf.mxu0
    %v4461 = vadd.f32 0.0, %v4460
    %v4462 = vpop.f32.mrf.mxu0
    %v4463 = vadd.f32 0.0, %v4462
    %4464 = vmatprep.mubr.bf16.mxu0 0
    %4465 = vmatmul.mubr.bf16.gmra.mxu0 %v487
    %v4466 = vpop.f32.mrf.mxu0
    %v4467 = vadd.f32 0.0, %v4466
    %v4468 = vpop.f32.mrf.mxu0
    %v4469 = vadd.f32 0.0, %v4468
    %v4470 = vpop.f32.mrf.mxu0
    %v4471 = vadd.f32 0.0, %v4470
    %v4472 = vpop.f32.mrf.mxu0
    %v4473 = vadd.f32 0.0, %v4472
    %4474 = vmatprep.mubr.bf16.mxu0 0
    %4475 = vmatmul.mubr.bf16.gmra.mxu0 %v490
    %v4476 = vpop.f32.mrf.mxu0
    %v4477 = vadd.f32 0.0, %v4476
    %v4478 = vpop.f32.mrf.mxu0
    %v4479 = vadd.f32 0.0, %v4478
    %v4480 = vpop.f32.mrf.mxu0
    %v4481 = vadd.f32 0.0, %v4480
    %v4482 = vpop.f32.mrf.mxu0
    %v4483 = vadd.f32 0.0, %v4482
    %4484 = vmatprep.mubr.bf16.mxu0 0
    %4485 = vmatmul.mubr.bf16.gmra.mxu0 %v2989
    %v4486 = vpop.f32.mrf.mxu0
    %v4487 = vadd.f32 0.0, %v4486
    %v4488 = vpop.f32.mrf.mxu0
    %v4489 = vadd.f32 0.0, %v4488
    %v4490 = vpop.f32.mrf.mxu0
    %v4491 = vadd.f32 0.0, %v4490
    %v4492 = vpop.f32.mrf.mxu0
    %v4493 = vadd.f32 0.0, %v4492
    %4494 = vmatprep.mubr.bf16.mxu0 0
    %4495 = vmatmul.mubr.bf16.gmra.mxu0 %v2992
    %v4496 = vpop.f32.mrf.mxu0
    %v4497 = vadd.f32 0.0, %v4496
    %v4498 = vpop.f32.mrf.mxu0
    %v4499 = vadd.f32 0.0, %v4498
    %v4500 = vpop.f32.mrf.mxu0
    %v4501 = vadd.f32 0.0, %v4500
    %v4502 = vpop.f32.mrf.mxu0
    %v4503 = vadd.f32 0.0, %v4502
    %4504 = vmatprep.mubr.bf16.mxu0 0
    %4505 = vmatmul.mubr.bf16.gmra.mxu0 %v2995
    %v4506 = vpop.f32.mrf.mxu0
    %v4507 = vadd.f32 0.0, %v4506
    %v4508 = vpop.f32.mrf.mxu0
    %v4509 = vadd.f32 0.0, %v4508
    %v4510 = vpop.f32.mrf.mxu0
    %v4511 = vadd.f32 0.0, %v4510
    %v4512 = vpop.f32.mrf.mxu0
    %v4513 = vadd.f32 0.0, %v4512
    %4514 = vmatprep.mubr.bf16.mxu0 0
    %4515 = vmatmul.mubr.bf16.gmra.mxu0 %v2998
    %v4516 = vpop.f32.mrf.mxu0
    %v4517 = vadd.f32 0.0, %v4516
    %v4518 = vpop.f32.mrf.mxu0
    %v4519 = vadd.f32 0.0, %v4518
    %v4520 = vpop.f32.mrf.mxu0
    %v4521 = vadd.f32 0.0, %v4520
    %v4522 = vpop.f32.mrf.mxu0
    %v4523 = vadd.f32 0.0, %v4522
    %4524 = vmatprep.mubr.bf16.mxu0 0
    %4525 = vmatmul.mubr.bf16.gmra.mxu0 %v1981
    %v4526 = vpop.f32.mrf.mxu0
    %v4527 = vadd.f32 0.0, %v4526
    %v4528 = vpop.f32.mrf.mxu0
    %v4529 = vadd.f32 0.0, %v4528
    %v4530 = vpop.f32.mrf.mxu0
    %v4531 = vadd.f32 0.0, %v4530
    %v4532 = vpop.f32.mrf.mxu0
    %v4533 = vadd.f32 0.0, %v4532
    %4534 = vmatprep.mubr.bf16.mxu0 0
    %4535 = vmatmul.mubr.bf16.gmra.mxu0 %v1984
    %v4536 = vpop.f32.mrf.mxu0
    %v4537 = vadd.f32 0.0, %v4536
    %v4538 = vpop.f32.mrf.mxu0
    %v4539 = vadd.f32 0.0, %v4538
    %v4540 = vpop.f32.mrf.mxu0
    %v4541 = vadd.f32 0.0, %v4540
    %v4542 = vpop.f32.mrf.mxu0
    %v4543 = vadd.f32 0.0, %v4542
    %4544 = vmatprep.mubr.bf16.mxu0 0
    %4545 = vmatmul.mubr.bf16.gmra.mxu0 %v1987
    %v4546 = vpop.f32.mrf.mxu0
    %v4547 = vadd.f32 0.0, %v4546
    %v4548 = vpop.f32.mrf.mxu0
    %v4549 = vadd.f32 0.0, %v4548
    %v4550 = vpop.f32.mrf.mxu0
    %v4551 = vadd.f32 0.0, %v4550
    %v4552 = vpop.f32.mrf.mxu0
    %v4553 = vadd.f32 0.0, %v4552
    %4554 = vmatprep.mubr.bf16.mxu0 0
    %4555 = vmatmul.mubr.bf16.gmra.mxu0 %v1990
    %v4556 = vpop.f32.mrf.mxu0
    %v4557 = vadd.f32 0.0, %v4556
    %v4558 = vpop.f32.mrf.mxu0
    %v4559 = vadd.f32 0.0, %v4558
    %v4560 = vpop.f32.mrf.mxu0
    %v4561 = vadd.f32 0.0, %v4560
    %v4562 = vpop.f32.mrf.mxu0
    %v4563 = vadd.f32 0.0, %v4562
    %4564 = vmatprep.mubr.bf16.mxu0 0
    %4565 = vmatmul.mubr.bf16.gmra.mxu0 %v3997
    %v4566 = vpop.f32.mrf.mxu0
    %v4567 = vadd.f32 0.0, %v4566
    %v4568 = vpop.f32.mrf.mxu0
    %v4569 = vadd.f32 0.0, %v4568
    %v4570 = vpop.f32.mrf.mxu0
    %v4571 = vadd.f32 0.0, %v4570
    %v4572 = vpop.f32.mrf.mxu0
    %v4573 = vadd.f32 0.0, %v4572
    %4574 = vmatprep.mubr.bf16.mxu0 0
    %4575 = vmatmul.mubr.bf16.gmra.mxu0 %v4000
    %v4576 = vpop.f32.mrf.mxu0
    %v4577 = vadd.f32 0.0, %v4576
    %v4578 = vpop.f32.mrf.mxu0
    %v4579 = vadd.f32 0.0, %v4578
    %v4580 = vpop.f32.mrf.mxu0
    %v4581 = vadd.f32 0.0, %v4580
    %v4582 = vpop.f32.mrf.mxu0
    %v4583 = vadd.f32 0.0, %v4582
    %4584 = vmatprep.mubr.bf16.mxu0 0
    %4585 = vmatmul.mubr.bf16.gmra.mxu0 %v4003
    %v4586 = vpop.f32.mrf.mxu0
    %v4587 = vadd.f32 0.0, %v4586
    %v4588 = vpop.f32.mrf.mxu0
    %v4589 = vadd.f32 0.0, %v4588
    %v4590 = vpop.f32.mrf.mxu0
    %v4591 = vadd.f32 0.0, %v4590
    %v4592 = vpop.f32.mrf.mxu0
    %v4593 = vadd.f32 0.0, %v4592
    %4594 = vmatprep.mubr.bf16.mxu0 0
    %4595 = vmatmul.mubr.bf16.gmra.mxu0 %v4006
    %v4596 = vpop.f32.mrf.mxu0
    %v4597 = vadd.f32 0.0, %v4596
    %v4598 = vpop.f32.mrf.mxu0
    %v4599 = vadd.f32 0.0, %v4598
    %v4600 = vpop.f32.mrf.mxu0
    %v4601 = vadd.f32 0.0, %v4600
    %v4602 = vpop.f32.mrf.mxu0
    %v4603 = vadd.f32 0.0, %v4602
    %4604 = vdwg.mxu0
    %v4605 = vadd.f32 %v3597, %v4061
    %v4606 = vadd.f32 %v3598, %v4063
    %v4607 = vadd.f32 %v3599, %v4254
    %v4608 = vadd.f32 %v3600, %v4256
    %v4609 = vadd.f32 %v3601, %v4447
    %v4610 = vadd.f32 %v3602, %v4449
    %v4611 = vadd.f32 %v3603, %v4065
    %v4612 = vadd.f32 %v3604, %v4067
    %v4613 = vadd.f32 %v3605, %v4258
    %v4614 = vadd.f32 %v3606, %v4260
    %v4615 = vadd.f32 %v3607, %v4451
    %v4616 = vadd.f32 %v3608, %v4453
    %v4617 = vadd.f32 %v3609, %v4071
    %v4618 = vadd.f32 %v3610, %v4073
    %v4619 = vadd.f32 %v3611, %v4264
    %v4620 = vadd.f32 %v3612, %v4266
    %v4621 = vadd.f32 %v3613, %v4457
    %v4622 = vadd.f32 %v3614, %v4459
    %v4623 = vadd.f32 %v3615, %v4075
    %v4624 = vadd.f32 %v3616, %v4077
    %v4625 = vadd.f32 %v3617, %v4268
    %v4626 = vadd.f32 %v3618, %v4270
    %v4627 = vadd.f32 %v3619, %v4461
    %v4628 = vadd.f32 %v3620, %v4463
    %v4629 = vadd.f32 %v3621, %v4081
    %v4630 = vadd.f32 %v3622, %v4083
    %v4631 = vadd.f32 %v3623, %v4274
    %v4632 = vadd.f32 %v3624, %v4276
    %v4633 = vadd.f32 %v3625, %v4467
    %v4634 = vadd.f32 %v3626, %v4469
    %v4635 = vadd.f32 %v3627, %v4085
    %v4636 = vadd.f32 %v3628, %v4087
    %v4637 = vadd.f32 %v3629, %v4278
    %v4638 = vadd.f32 %v3630, %v4280
    %v4639 = vadd.f32 %v3631, %v4471
    %v4640 = vadd.f32 %v3632, %v4473
    %v4641 = vadd.f32 %v3633, %v4091
    %v4642 = vadd.f32 %v3634, %v4093
    %v4643 = vadd.f32 %v3635, %v4284
    %v4644 = vadd.f32 %v3636, %v4286
    %v4645 = vadd.f32 %v3637, %v4477
    %v4646 = vadd.f32 %v3638, %v4479
    %v4647 = vadd.f32 %v3639, %v4095
    %v4648 = vadd.f32 %v3640, %v4097
    %v4649 = vadd.f32 %v3641, %v4288
    %v4650 = vadd.f32 %v3642, %v4290
    %v4651 = vadd.f32 %v3643, %v4481
    %v4652 = vadd.f32 %v3644, %v4483
    %v4653 = vadd.f32 %v3645, %v4101
    %v4654 = vadd.f32 %v3646, %v4103
    %v4655 = vadd.f32 %v3647, %v4294
    %v4656 = vadd.f32 %v3648, %v4296
    %v4657 = vadd.f32 %v3649, %v4487
    %v4658 = vadd.f32 %v3650, %v4489
    %v4659 = vadd.f32 %v3651, %v4105
    %v4660 = vadd.f32 %v3652, %v4107
    %v4661 = vadd.f32 %v3653, %v4298
    %v4662 = vadd.f32 %v3654, %v4300
    %v4663 = vadd.f32 %v3655, %v4491
    %v4664 = vadd.f32 %v3656, %v4493
    %v4665 = vadd.f32 %v3657, %v4111
    %v4666 = vadd.f32 %v3658, %v4113
    %v4667 = vadd.f32 %v3659, %v4304
    %v4668 = vadd.f32 %v3660, %v4306
    %v4669 = vadd.f32 %v3661, %v4497
    %v4670 = vadd.f32 %v3662, %v4499
    %v4671 = vadd.f32 %v3663, %v4115
    %v4672 = vadd.f32 %v3664, %v4117
    %v4673 = vadd.f32 %v3665, %v4308
    %v4674 = vadd.f32 %v3666, %v4310
    %v4675 = vadd.f32 %v3667, %v4501
    %v4676 = vadd.f32 %v3668, %v4503
    %v4677 = vadd.f32 %v3669, %v4121
    %v4678 = vadd.f32 %v3670, %v4123
    %v4679 = vadd.f32 %v3671, %v4314
    %v4680 = vadd.f32 %v3672, %v4316
    %v4681 = vadd.f32 %v3673, %v4507
    %v4682 = vadd.f32 %v3674, %v4509
    %v4683 = vadd.f32 %v3675, %v4125
    %v4684 = vadd.f32 %v3676, %v4127
    %v4685 = vadd.f32 %v3677, %v4318
    %v4686 = vadd.f32 %v3678, %v4320
    %v4687 = vadd.f32 %v3679, %v4511
    %v4688 = vadd.f32 %v3680, %v4513
    %v4689 = vadd.f32 %v3681, %v4131
    %v4690 = vadd.f32 %v3682, %v4133
    %v4691 = vadd.f32 %v3683, %v4324
    %v4692 = vadd.f32 %v3684, %v4326
    %v4693 = vadd.f32 %v3685, %v4517
    %v4694 = vadd.f32 %v3686, %v4519
    %v4695 = vadd.f32 %v3687, %v4135
    %v4696 = vadd.f32 %v3688, %v4137
    %v4697 = vadd.f32 %v3689, %v4328
    %v4698 = vadd.f32 %v3690, %v4330
    %v4699 = vadd.f32 %v3691, %v4521
    %v4700 = vadd.f32 %v3692, %v4523
    %v4701 = vadd.f32 %v3693, %v4141
    %v4702 = vadd.f32 %v3694, %v4143
    %v4703 = vadd.f32 %v3695, %v4334
    %v4704 = vadd.f32 %v3696, %v4336
    %v4705 = vadd.f32 %v3697, %v4527
    %v4706 = vadd.f32 %v3698, %v4529
    %v4707 = vadd.f32 %v3699, %v4145
    %v4708 = vadd.f32 %v3700, %v4147
    %v4709 = vadd.f32 %v3701, %v4338
    %v4710 = vadd.f32 %v3702, %v4340
    %v4711 = vadd.f32 %v3703, %v4531
    %v4712 = vadd.f32 %v3704, %v4533
    %v4713 = vadd.f32 %v3705, %v4151
    %v4714 = vadd.f32 %v3706, %v4153
    %v4715 = vadd.f32 %v3707, %v4344
    %v4716 = vadd.f32 %v3708, %v4346
    %v4717 = vadd.f32 %v3709, %v4537
    %v4718 = vadd.f32 %v3710, %v4539
    %v4719 = vadd.f32 %v3711, %v4155
    %v4720 = vadd.f32 %v3712, %v4157
    %v4721 = vadd.f32 %v3713, %v4348
    %v4722 = vadd.f32 %v3714, %v4350
    %v4723 = vadd.f32 %v3715, %v4541
    %v4724 = vadd.f32 %v3716, %v4543
    %v4725 = vadd.f32 %v3717, %v4161
    %v4726 = vadd.f32 %v3718, %v4163
    %v4727 = vadd.f32 %v3719, %v4354
    %v4728 = vadd.f32 %v3720, %v4356
    %v4729 = vadd.f32 %v3721, %v4547
    %v4730 = vadd.f32 %v3722, %v4549
    %v4731 = vadd.f32 %v3723, %v4165
    %v4732 = vadd.f32 %v3724, %v4167
    %v4733 = vadd.f32 %v3725, %v4358
    %v4734 = vadd.f32 %v3726, %v4360
    %v4735 = vadd.f32 %v3727, %v4551
    %v4736 = vadd.f32 %v3728, %v4553
    %v4737 = vadd.f32 %v3729, %v4171
    %v4738 = vadd.f32 %v3730, %v4173
    %v4739 = vadd.f32 %v3731, %v4364
    %v4740 = vadd.f32 %v3732, %v4366
    %v4741 = vadd.f32 %v3733, %v4557
    %v4742 = vadd.f32 %v3734, %v4559
    %v4743 = vadd.f32 %v3735, %v4175
    %v4744 = vadd.f32 %v3736, %v4177
    %v4745 = vadd.f32 %v3737, %v4368
    %v4746 = vadd.f32 %v3738, %v4370
    %v4747 = vadd.f32 %v3739, %v4561
    %v4748 = vadd.f32 %v3740, %v4563
    %v4749 = vadd.f32 %v3741, %v4181
    %v4750 = vadd.f32 %v3742, %v4183
    %v4751 = vadd.f32 %v3743, %v4374
    %v4752 = vadd.f32 %v3744, %v4376
    %v4753 = vadd.f32 %v3745, %v4567
    %v4754 = vadd.f32 %v3746, %v4569
    %v4755 = vadd.f32 %v3747, %v4185
    %v4756 = vadd.f32 %v3748, %v4187
    %v4757 = vadd.f32 %v3749, %v4378
    %v4758 = vadd.f32 %v3750, %v4380
    %v4759 = vadd.f32 %v3751, %v4571
    %v4760 = vadd.f32 %v3752, %v4573
    %v4761 = vadd.f32 %v3753, %v4191
    %v4762 = vadd.f32 %v3754, %v4193
    %v4763 = vadd.f32 %v3755, %v4384
    %v4764 = vadd.f32 %v3756, %v4386
    %v4765 = vadd.f32 %v3757, %v4577
    %v4766 = vadd.f32 %v3758, %v4579
    %v4767 = vadd.f32 %v3759, %v4195
    %v4768 = vadd.f32 %v3760, %v4197
    %v4769 = vadd.f32 %v3761, %v4388
    %v4770 = vadd.f32 %v3762, %v4390
    %v4771 = vadd.f32 %v3763, %v4581
    %v4772 = vadd.f32 %v3764, %v4583
    %v4773 = vadd.f32 %v3765, %v4201
    %v4774 = vadd.f32 %v3766, %v4203
    %v4775 = vadd.f32 %v3767, %v4394
    %v4776 = vadd.f32 %v3768, %v4396
    %v4777 = vadd.f32 %v3769, %v4587
    %v4778 = vadd.f32 %v3770, %v4589
    %v4779 = vadd.f32 %v3771, %v4205
    %v4780 = vadd.f32 %v3772, %v4207
    %v4781 = vadd.f32 %v3773, %v4398
    %v4782 = vadd.f32 %v3774, %v4400
    %v4783 = vadd.f32 %v3775, %v4591
    %v4784 = vadd.f32 %v3776, %v4593
    %v4785 = vadd.f32 %v3777, %v4211
    %v4786 = vadd.f32 %v3778, %v4213
    %v4787 = vadd.f32 %v3779, %v4404
    %v4788 = vadd.f32 %v3780, %v4406
    %v4789 = vadd.f32 %v3781, %v4597
    %v4790 = vadd.f32 %v3782, %v4599
    %v4791 = vadd.f32 %v3783, %v4215
    %v4792 = vadd.f32 %v3784, %v4217
    %v4793 = vadd.f32 %v3785, %v4408
    %v4794 = vadd.f32 %v3786, %v4410
    %v4795 = vadd.f32 %v3787, %v4601
    %v4796 = vadd.f32 %v3788, %v4603
    %v4797 = vmax.f32 %v4605, %v4701
    %v4798 = vmax.f32 %v4606, %v4702
    %v4799 = vmax.f32 %v4607, %v4703
    %v4800 = vmax.f32 %v4608, %v4704
    %v4801 = vmax.f32 %v4609, %v4705
    %v4802 = vmax.f32 %v4610, %v4706
    %v4803 = vmax.f32 %v4611, %v4707
    %v4804 = vmax.f32 %v4612, %v4708
    %v4805 = vmax.f32 %v4613, %v4709
    %v4806 = vmax.f32 %v4614, %v4710
    %v4807 = vmax.f32 %v4615, %v4711
    %v4808 = vmax.f32 %v4616, %v4712
    %v4809 = vmax.f32 %v4617, %v4713
    %v4810 = vmax.f32 %v4618, %v4714
    %v4811 = vmax.f32 %v4619, %v4715
    %v4812 = vmax.f32 %v4620, %v4716
    %v4813 = vmax.f32 %v4621, %v4717
    %v4814 = vmax.f32 %v4622, %v4718
    %v4815 = vmax.f32 %v4623, %v4719
    %v4816 = vmax.f32 %v4624, %v4720
    %v4817 = vmax.f32 %v4625, %v4721
    %v4818 = vmax.f32 %v4626, %v4722
    %v4819 = vmax.f32 %v4627, %v4723
    %v4820 = vmax.f32 %v4628, %v4724
    %v4821 = vmax.f32 %v4629, %v4725
    %v4822 = vmax.f32 %v4630, %v4726
    %v4823 = vmax.f32 %v4631, %v4727
    %v4824 = vmax.f32 %v4632, %v4728
    %v4825 = vmax.f32 %v4633, %v4729
    %v4826 = vmax.f32 %v4634, %v4730
    %v4827 = vmax.f32 %v4635, %v4731
    %v4828 = vmax.f32 %v4636, %v4732
    %v4829 = vmax.f32 %v4637, %v4733
    %v4830 = vmax.f32 %v4638, %v4734
    %v4831 = vmax.f32 %v4639, %v4735
    %v4832 = vmax.f32 %v4640, %v4736
    %v4833 = vmax.f32 %v4641, %v4737
    %v4834 = vmax.f32 %v4642, %v4738
    %v4835 = vmax.f32 %v4643, %v4739
    %v4836 = vmax.f32 %v4644, %v4740
    %v4837 = vmax.f32 %v4645, %v4741
    %v4838 = vmax.f32 %v4646, %v4742
    %v4839 = vmax.f32 %v4647, %v4743
    %v4840 = vmax.f32 %v4648, %v4744
    %v4841 = vmax.f32 %v4649, %v4745
    %v4842 = vmax.f32 %v4650, %v4746
    %v4843 = vmax.f32 %v4651, %v4747
    %v4844 = vmax.f32 %v4652, %v4748
    %v4845 = vmax.f32 %v4653, %v4749
    %v4846 = vmax.f32 %v4654, %v4750
    %v4847 = vmax.f32 %v4655, %v4751
    %v4848 = vmax.f32 %v4656, %v4752
    %v4849 = vmax.f32 %v4657, %v4753
    %v4850 = vmax.f32 %v4658, %v4754
    %v4851 = vmax.f32 %v4659, %v4755
    %v4852 = vmax.f32 %v4660, %v4756
    %v4853 = vmax.f32 %v4661, %v4757
    %v4854 = vmax.f32 %v4662, %v4758
    %v4855 = vmax.f32 %v4663, %v4759
    %v4856 = vmax.f32 %v4664, %v4760
    %v4857 = vmax.f32 %v4665, %v4761
    %v4858 = vmax.f32 %v4666, %v4762
    %v4859 = vmax.f32 %v4667, %v4763
    %v4860 = vmax.f32 %v4668, %v4764
    %v4861 = vmax.f32 %v4669, %v4765
    %v4862 = vmax.f32 %v4670, %v4766
    %v4863 = vmax.f32 %v4671, %v4767
    %v4864 = vmax.f32 %v4672, %v4768
    %v4865 = vmax.f32 %v4673, %v4769
    %v4866 = vmax.f32 %v4674, %v4770
    %v4867 = vmax.f32 %v4675, %v4771
    %v4868 = vmax.f32 %v4676, %v4772
    %v4869 = vmax.f32 %v4677, %v4773
    %v4870 = vmax.f32 %v4678, %v4774
    %v4871 = vmax.f32 %v4679, %v4775
    %v4872 = vmax.f32 %v4680, %v4776
    %v4873 = vmax.f32 %v4681, %v4777
    %v4874 = vmax.f32 %v4682, %v4778
    %v4875 = vmax.f32 %v4683, %v4779
    %v4876 = vmax.f32 %v4684, %v4780
    %v4877 = vmax.f32 %v4685, %v4781
    %v4878 = vmax.f32 %v4686, %v4782
    %v4879 = vmax.f32 %v4687, %v4783
    %v4880 = vmax.f32 %v4688, %v4784
    %v4881 = vmax.f32 %v4689, %v4785
    %v4882 = vmax.f32 %v4690, %v4786
    %v4883 = vmax.f32 %v4691, %v4787
    %v4884 = vmax.f32 %v4692, %v4788
    %v4885 = vmax.f32 %v4693, %v4789
    %v4886 = vmax.f32 %v4694, %v4790
    %v4887 = vmax.f32 %v4695, %v4791
    %v4888 = vmax.f32 %v4696, %v4792
    %v4889 = vmax.f32 %v4697, %v4793
    %v4890 = vmax.f32 %v4698, %v4794
    %v4891 = vmax.f32 %v4699, %v4795
    %v4892 = vmax.f32 %v4700, %v4796
    %v4893 = vmax.f32 %v4797, %v4800
    %v4894 = vmax.f32 %v4798, %v4801
    %v4895 = vmax.f32 %v4799, %v4802
    %v4896 = vmax.f32 %v4803, %v4806
    %v4897 = vmax.f32 %v4804, %v4807
    %v4898 = vmax.f32 %v4805, %v4808
    %v4899 = vmax.f32 %v4809, %v4812
    %v4900 = vmax.f32 %v4810, %v4813
    %v4901 = vmax.f32 %v4811, %v4814
    %v4902 = vmax.f32 %v4815, %v4818
    %v4903 = vmax.f32 %v4816, %v4819
    %v4904 = vmax.f32 %v4817, %v4820
    %v4905 = vmax.f32 %v4821, %v4824
    %v4906 = vmax.f32 %v4822, %v4825
    %v4907 = vmax.f32 %v4823, %v4826
    %v4908 = vmax.f32 %v4827, %v4830
    %v4909 = vmax.f32 %v4828, %v4831
    %v4910 = vmax.f32 %v4829, %v4832
    %v4911 = vmax.f32 %v4833, %v4836
    %v4912 = vmax.f32 %v4834, %v4837
    %v4913 = vmax.f32 %v4835, %v4838
    %v4914 = vmax.f32 %v4839, %v4842
    %v4915 = vmax.f32 %v4840, %v4843
    %v4916 = vmax.f32 %v4841, %v4844
    %v4917 = vmax.f32 %v4845, %v4848
    %v4918 = vmax.f32 %v4846, %v4849
    %v4919 = vmax.f32 %v4847, %v4850
    %v4920 = vmax.f32 %v4851, %v4854
    %v4921 = vmax.f32 %v4852, %v4855
    %v4922 = vmax.f32 %v4853, %v4856
    %v4923 = vmax.f32 %v4857, %v4860
    %v4924 = vmax.f32 %v4858, %v4861
    %v4925 = vmax.f32 %v4859, %v4862
    %v4926 = vmax.f32 %v4863, %v4866
    %v4927 = vmax.f32 %v4864, %v4867
    %v4928 = vmax.f32 %v4865, %v4868
    %v4929 = vmax.f32 %v4869, %v4872
    %v4930 = vmax.f32 %v4870, %v4873
    %v4931 = vmax.f32 %v4871, %v4874
    %v4932 = vmax.f32 %v4875, %v4878
    %v4933 = vmax.f32 %v4876, %v4879
    %v4934 = vmax.f32 %v4877, %v4880
    %v4935 = vmax.f32 %v4881, %v4884
    %v4936 = vmax.f32 %v4882, %v4885
    %v4937 = vmax.f32 %v4883, %v4886
    %v4938 = vmax.f32 %v4887, %v4890
    %v4939 = vmax.f32 %v4888, %v4891
    %v4940 = vmax.f32 %v4889, %v4892
    %v4941 = vld [vmem:[#allocation4] sm:$0x7]
    %v4943 = vlaneseq
    %v4944 = vshrl.u32 %v4943, 7
    %v4945 = vsub.s32 0, %v4944
    %v4946 = vrot.slane %v4941, %v4945
    %v4947 = vlaneseq
    %v4948 = vshrl.u32 %v4947, 7
    %v4949 = vsub.s32 1, %v4948
    %v4950 = vrot.slane %v4941, %v4949
    %v4951 = vlaneseq
    %v4952 = vshrl.u32 %v4951, 7
    %v4953 = vsub.s32 2, %v4952
    %v4954 = vrot.slane %v4941, %v4953
    %v4958 = vadd.f32 %v4893, %v4946
    %v4959 = vadd.f32 %v4894, %v4950
    %v4960 = vadd.f32 %v4895, %v4954
    %v4961 = vadd.f32 %v4896, %v4946
    %v4962 = vadd.f32 %v4897, %v4950
    %v4963 = vadd.f32 %v4898, %v4954
    %v4964 = vadd.f32 %v4899, %v4946
    %v4965 = vadd.f32 %v4900, %v4950
    %v4966 = vadd.f32 %v4901, %v4954
    %v4967 = vadd.f32 %v4902, %v4946
    %v4968 = vadd.f32 %v4903, %v4950
    %v4969 = vadd.f32 %v4904, %v4954
    %v4970 = vadd.f32 %v4905, %v4946
    %v4971 = vadd.f32 %v4906, %v4950
    %v4972 = vadd.f32 %v4907, %v4954
    %v4973 = vadd.f32 %v4908, %v4946
    %v4974 = vadd.f32 %v4909, %v4950
    %v4975 = vadd.f32 %v4910, %v4954
    %v4976 = vadd.f32 %v4911, %v4946
    %v4977 = vadd.f32 %v4912, %v4950
    %v4978 = vadd.f32 %v4913, %v4954
    %v4979 = vadd.f32 %v4914, %v4946
    %v4980 = vadd.f32 %v4915, %v4950
    %v4981 = vadd.f32 %v4916, %v4954
    %v4982 = vadd.f32 %v4917, %v4946
    %v4983 = vadd.f32 %v4918, %v4950
    %v4984 = vadd.f32 %v4919, %v4954
    %v4985 = vadd.f32 %v4920, %v4946
    %v4986 = vadd.f32 %v4921, %v4950
    %v4987 = vadd.f32 %v4922, %v4954
    %v4988 = vadd.f32 %v4923, %v4946
    %v4989 = vadd.f32 %v4924, %v4950
    %v4990 = vadd.f32 %v4925, %v4954
    %v4991 = vadd.f32 %v4926, %v4946
    %v4992 = vadd.f32 %v4927, %v4950
    %v4993 = vadd.f32 %v4928, %v4954
    %v4994 = vadd.f32 %v4929, %v4946
    %v4995 = vadd.f32 %v4930, %v4950
    %v4996 = vadd.f32 %v4931, %v4954
    %v4997 = vadd.f32 %v4932, %v4946
    %v4998 = vadd.f32 %v4933, %v4950
    %v4999 = vadd.f32 %v4934, %v4954
    %v5000 = vadd.f32 %v4935, %v4946
    %v5001 = vadd.f32 %v4936, %v4950
    %v5002 = vadd.f32 %v4937, %v4954
    %v5003 = vadd.f32 %v4938, %v4946
    %v5004 = vadd.f32 %v4939, %v4950
    %v5005 = vadd.f32 %v4940, %v4954
    %v5006 = vmax.f32 %v4958, 0.0
    %v5007 = vmax.f32 %v4959, 0.0
    %v5008 = vmax.f32 %v4960, 0.0
    %v5009 = vmax.f32 %v4961, 0.0
    %v5010 = vmax.f32 %v4962, 0.0
    %v5011 = vmax.f32 %v4963, 0.0
    %v5012 = vmax.f32 %v4964, 0.0
    %v5013 = vmax.f32 %v4965, 0.0
    %v5014 = vmax.f32 %v4966, 0.0
    %v5015 = vmax.f32 %v4967, 0.0
    %v5016 = vmax.f32 %v4968, 0.0
    %v5017 = vmax.f32 %v4969, 0.0
    %v5018 = vmax.f32 %v4970, 0.0
    %v5019 = vmax.f32 %v4971, 0.0
    %v5020 = vmax.f32 %v4972, 0.0
    %v5021 = vmax.f32 %v4973, 0.0
    %v5022 = vmax.f32 %v4974, 0.0
    %v5023 = vmax.f32 %v4975, 0.0
    %v5024 = vmax.f32 %v4976, 0.0
    %v5025 = vmax.f32 %v4977, 0.0
    %v5026 = vmax.f32 %v4978, 0.0
    %v5027 = vmax.f32 %v4979, 0.0
    %v5028 = vmax.f32 %v4980, 0.0
    %v5029 = vmax.f32 %v4981, 0.0
    %v5030 = vmax.f32 %v4982, 0.0
    %v5031 = vmax.f32 %v4983, 0.0
    %v5032 = vmax.f32 %v4984, 0.0
    %v5033 = vmax.f32 %v4985, 0.0
    %v5034 = vmax.f32 %v4986, 0.0
    %v5035 = vmax.f32 %v4987, 0.0
    %v5036 = vmax.f32 %v4988, 0.0
    %v5037 = vmax.f32 %v4989, 0.0
    %v5038 = vmax.f32 %v4990, 0.0
    %v5039 = vmax.f32 %v4991, 0.0
    %v5040 = vmax.f32 %v4992, 0.0
    %v5041 = vmax.f32 %v4993, 0.0
    %v5042 = vmax.f32 %v4994, 0.0
    %v5043 = vmax.f32 %v4995, 0.0
    %v5044 = vmax.f32 %v4996, 0.0
    %v5045 = vmax.f32 %v4997, 0.0
    %v5046 = vmax.f32 %v4998, 0.0
    %v5047 = vmax.f32 %v4999, 0.0
    %v5048 = vmax.f32 %v5000, 0.0
    %v5049 = vmax.f32 %v5001, 0.0
    %v5050 = vmax.f32 %v5002, 0.0
    %v5051 = vmax.f32 %v5003, 0.0
    %v5052 = vmax.f32 %v5004, 0.0
    %v5053 = vmax.f32 %v5005, 0.0
    %v5054 = vpack.c.bf16 %v5006, %v5006
    %v5055 = vpack.c.bf16 %v5007, %v5007
    %v5056 = vpack.c.bf16 %v5008, %v5008
    %v5057 = vpack.c.bf16 %v5009, %v5009
    %v5058 = vpack.c.bf16 %v5010, %v5010
    %v5059 = vpack.c.bf16 %v5011, %v5011
    %v5060 = vpack.c.bf16 %v5012, %v5012
    %v5061 = vpack.c.bf16 %v5013, %v5013
    %v5062 = vpack.c.bf16 %v5014, %v5014
    %v5063 = vpack.c.bf16 %v5015, %v5015
    %v5064 = vpack.c.bf16 %v5016, %v5016
    %v5065 = vpack.c.bf16 %v5017, %v5017
    %v5066 = vpack.c.bf16 %v5018, %v5018
    %v5067 = vpack.c.bf16 %v5019, %v5019
    %v5068 = vpack.c.bf16 %v5020, %v5020
    %v5069 = vpack.c.bf16 %v5021, %v5021
    %v5070 = vpack.c.bf16 %v5022, %v5022
    %v5071 = vpack.c.bf16 %v5023, %v5023
    %v5072 = vpack.c.bf16 %v5024, %v5024
    %v5073 = vpack.c.bf16 %v5025, %v5025
    %v5074 = vpack.c.bf16 %v5026, %v5026
    %v5075 = vpack.c.bf16 %v5027, %v5027
    %v5076 = vpack.c.bf16 %v5028, %v5028
    %v5077 = vpack.c.bf16 %v5029, %v5029
    %v5078 = vpack.c.bf16 %v5030, %v5030
    %v5079 = vpack.c.bf16 %v5031, %v5031
    %v5080 = vpack.c.bf16 %v5032, %v5032
    %v5081 = vpack.c.bf16 %v5033, %v5033
    %v5082 = vpack.c.bf16 %v5034, %v5034
    %v5083 = vpack.c.bf16 %v5035, %v5035
    %v5084 = vpack.c.bf16 %v5036, %v5036
    %v5085 = vpack.c.bf16 %v5037, %v5037
    %v5086 = vpack.c.bf16 %v5038, %v5038
    %v5087 = vpack.c.bf16 %v5039, %v5039
    %v5088 = vpack.c.bf16 %v5040, %v5040
    %v5089 = vpack.c.bf16 %v5041, %v5041
    %v5090 = vpack.c.bf16 %v5042, %v5042
    %v5091 = vpack.c.bf16 %v5043, %v5043
    %v5092 = vpack.c.bf16 %v5044, %v5044
    %v5093 = vpack.c.bf16 %v5045, %v5045
    %v5094 = vpack.c.bf16 %v5046, %v5046
    %v5095 = vpack.c.bf16 %v5047, %v5047
    %v5096 = vpack.c.bf16 %v5048, %v5048
    %v5097 = vpack.c.bf16 %v5049, %v5049
    %v5098 = vpack.c.bf16 %v5050, %v5050
    %v5099 = vpack.c.bf16 %v5051, %v5051
    %v5100 = vpack.c.bf16 %v5052, %v5052
    %v5101 = vpack.c.bf16 %v5053, %v5053
    %v5150 = vunpack.c.l.b16 %v5054
    %v5151 = vunpack.c.l.b16 %v5055
    %v5152 = vunpack.c.l.b16 %v5056
    %v5153 = vunpack.c.l.b16 %v5057
    %v5154 = vunpack.c.l.b16 %v5058
    %v5155 = vunpack.c.l.b16 %v5059
    %v5156 = vunpack.c.l.b16 %v5060
    %v5157 = vunpack.c.l.b16 %v5061
    %v5158 = vunpack.c.l.b16 %v5062
    %v5159 = vunpack.c.l.b16 %v5063
    %v5160 = vunpack.c.l.b16 %v5064
    %v5161 = vunpack.c.l.b16 %v5065
    %v5162 = vunpack.c.l.b16 %v5066
    %v5163 = vunpack.c.l.b16 %v5067
    %v5164 = vunpack.c.l.b16 %v5068
    %v5165 = vunpack.c.l.b16 %v5069
    %v5166 = vunpack.c.l.b16 %v5070
    %v5167 = vunpack.c.l.b16 %v5071
    %v5168 = vunpack.c.l.b16 %v5072
    %v5169 = vunpack.c.l.b16 %v5073
    %v5170 = vunpack.c.l.b16 %v5074
    %v5171 = vunpack.c.l.b16 %v5075
    %v5172 = vunpack.c.l.b16 %v5076
    %v5173 = vunpack.c.l.b16 %v5077
    %v5174 = vunpack.c.l.b16 %v5078
    %v5175 = vunpack.c.l.b16 %v5079
    %v5176 = vunpack.c.l.b16 %v5080
    %v5177 = vunpack.c.l.b16 %v5081
    %v5178 = vunpack.c.l.b16 %v5082
    %v5179 = vunpack.c.l.b16 %v5083
    %v5180 = vunpack.c.l.b16 %v5084
    %v5181 = vunpack.c.l.b16 %v5085
    %v5182 = vunpack.c.l.b16 %v5086
    %v5183 = vunpack.c.l.b16 %v5087
    %v5184 = vunpack.c.l.b16 %v5088
    %v5185 = vunpack.c.l.b16 %v5089
    %v5186 = vunpack.c.l.b16 %v5090
    %v5187 = vunpack.c.l.b16 %v5091
    %v5188 = vunpack.c.l.b16 %v5092
    %v5189 = vunpack.c.l.b16 %v5093
    %v5190 = vunpack.c.l.b16 %v5094
    %v5191 = vunpack.c.l.b16 %v5095
    %v5192 = vunpack.c.l.b16 %v5096
    %v5193 = vunpack.c.l.b16 %v5097
    %v5194 = vunpack.c.l.b16 %v5098
    %v5195 = vunpack.c.l.b16 %v5099
    %v5196 = vunpack.c.l.b16 %v5100
    %v5197 = vunpack.c.l.b16 %v5101
    %v5198 = vld [vmem:[#allocation6] sm:$0xff]
    %v5199 = vld [vmem:[#allocation6 + $0x8] sm:$0xff]
    %v5200 = vld [vmem:[#allocation6 + $0x10] sm:$0xff]
    %v5201 = vld [vmem:[#allocation6 + $0x18] sm:$0xff]
    %v5202 = vld [vmem:[#allocation6 + $0x20] sm:$0xff]
    %v5203 = vld [vmem:[#allocation6 + $0x28] sm:$0xff]
    %v5204 = vld [vmem:[#allocation6 + $0x30] sm:$0xff]
    %v5205 = vld [vmem:[#allocation6 + $0x38] sm:$0xff]
    %v5206 = vld [vmem:[#allocation6 + $0x40] sm:$0xff]
    %v5207 = vld [vmem:[#allocation6 + $0x48] sm:$0xff]
    %v5208 = vld [vmem:[#allocation6 + $0x50] sm:$0xff]
    %v5209 = vld [vmem:[#allocation6 + $0x58] sm:$0xff]
    %v5210 = vld [vmem:[#allocation6 + $0x60] sm:$0xff]
    %v5211 = vld [vmem:[#allocation6 + $0x68] sm:$0xff]
    %v5212 = vld [vmem:[#allocation6 + $0x70] sm:$0xff]
    %v5213 = vld [vmem:[#allocation6 + $0x78] sm:$0xff]
    %v5214 = vld [vmem:[#allocation6 + $0x80] sm:$0xff]
    %v5215 = vld [vmem:[#allocation6 + $0x88] sm:$0xff]
    %v5216 = vld [vmem:[#allocation6 + $0x90] sm:$0xff]
    %v5217 = vld [vmem:[#allocation6 + $0x98] sm:$0xff]
    %v5218 = vld [vmem:[#allocation6 + $0xa0] sm:$0xff]
    %v5219 = vld [vmem:[#allocation6 + $0xa8] sm:$0xff]
    %v5220 = vld [vmem:[#allocation6 + $0xb0] sm:$0xff]
    %v5221 = vld [vmem:[#allocation6 + $0xb8] sm:$0xff]
    %v5222 = vld [vmem:[#allocation6 + $0xc0] sm:$0xff]
    %v5223 = vld [vmem:[#allocation6 + $0xc8] sm:$0xff]
    %v5224 = vld [vmem:[#allocation6 + $0xd0] sm:$0xff]
    %v5225 = vld [vmem:[#allocation6 + $0xd8] sm:$0xff]
    %v5226 = vld [vmem:[#allocation6 + $0xe0] sm:$0xff]
    %v5227 = vld [vmem:[#allocation6 + $0xe8] sm:$0xff]
    %v5228 = vld [vmem:[#allocation6 + $0xf0] sm:$0xff]
    %v5229 = vld [vmem:[#allocation6 + $0xf8] sm:$0xff]
    %v5230 = vld [vmem:[#allocation6 + $0x100] sm:$0xff]
    %v5231 = vld [vmem:[#allocation6 + $0x108] sm:$0xff]
    %v5232 = vld [vmem:[#allocation6 + $0x110] sm:$0xff]
    %v5233 = vld [vmem:[#allocation6 + $0x118] sm:$0xff]
    %v5234 = vld [vmem:[#allocation6 + $0x120] sm:$0xff]
    %v5235 = vld [vmem:[#allocation6 + $0x128] sm:$0xff]
    %v5236 = vld [vmem:[#allocation6 + $0x130] sm:$0xff]
    %v5237 = vld [vmem:[#allocation6 + $0x138] sm:$0xff]
    %v5238 = vld [vmem:[#allocation6 + $0x140] sm:$0xff]
    %v5239 = vld [vmem:[#allocation6 + $0x148] sm:$0xff]
    %v5240 = vld [vmem:[#allocation6 + $0x150] sm:$0xff]
    %v5241 = vld [vmem:[#allocation6 + $0x158] sm:$0xff]
    %v5242 = vld [vmem:[#allocation6 + $0x160] sm:$0xff]
    %v5243 = vld [vmem:[#allocation6 + $0x168] sm:$0xff]
    %v5244 = vld [vmem:[#allocation6 + $0x170] sm:$0xff]
    %v5245 = vld [vmem:[#allocation6 + $0x178] sm:$0xff]
    %v5246 = vld [vmem:[#allocation6 + $0x180] sm:$0xff]
    %v5247 = vld [vmem:[#allocation6 + $0x188] sm:$0xff]
    %v5248 = vld [vmem:[#allocation6 + $0x190] sm:$0xff]
    %v5249 = vld [vmem:[#allocation6 + $0x198] sm:$0xff]
    %v5250 = vld [vmem:[#allocation6 + $0x1a0] sm:$0xff]
    %v5251 = vld [vmem:[#allocation6 + $0x1a8] sm:$0xff]
    %v5252 = vld [vmem:[#allocation6 + $0x1b0] sm:$0xff]
    %v5253 = vld [vmem:[#allocation6 + $0x1b8] sm:$0xff]
    %v5254 = vld [vmem:[#allocation6 + $0x1c0] sm:$0xff]
    %v5255 = vld [vmem:[#allocation6 + $0x1c8] sm:$0xff]
    %v5256 = vld [vmem:[#allocation6 + $0x1d0] sm:$0xff]
    %v5257 = vld [vmem:[#allocation6 + $0x1d8] sm:$0xff]
    %v5258 = vld [vmem:[#allocation6 + $0x1e0] sm:$0xff]
    %v5259 = vld [vmem:[#allocation6 + $0x1e8] sm:$0xff]
    %v5260 = vld [vmem:[#allocation6 + $0x1f0] sm:$0xff]
    %v5261 = vld [vmem:[#allocation6 + $0x1f8] sm:$0xff]
    %v5262 = vld [vmem:[#allocation6 + $0x200] sm:$0xff]
    %v5263 = vld [vmem:[#allocation6 + $0x208] sm:$0xff]
    %v5264 = vld [vmem:[#allocation6 + $0x210] sm:$0xff]
    %v5265 = vld [vmem:[#allocation6 + $0x218] sm:$0xff]
    %v5266 = vld [vmem:[#allocation6 + $0x220] sm:$0xff]
    %v5267 = vld [vmem:[#allocation6 + $0x228] sm:$0xff]
    %v5268 = vld [vmem:[#allocation6 + $0x230] sm:$0xff]
    %v5269 = vld [vmem:[#allocation6 + $0x238] sm:$0xff]
    %v5270 = vld [vmem:[#allocation6 + $0x240] sm:$0xff]
    %v5271 = vld [vmem:[#allocation6 + $0x248] sm:$0xff]
    %v5272 = vld [vmem:[#allocation6 + $0x250] sm:$0xff]
    %v5273 = vld [vmem:[#allocation6 + $0x258] sm:$0xff]
    %v5274 = vld [vmem:[#allocation6 + $0x260] sm:$0xff]
    %v5275 = vld [vmem:[#allocation6 + $0x268] sm:$0xff]
    %v5276 = vld [vmem:[#allocation6 + $0x270] sm:$0xff]
    %v5277 = vld [vmem:[#allocation6 + $0x278] sm:$0xff]
    %v5278 = vld [vmem:[#allocation6 + $0x280] sm:$0xff]
    %v5279 = vld [vmem:[#allocation6 + $0x288] sm:$0xff]
    %v5280 = vld [vmem:[#allocation6 + $0x290] sm:$0xff]
    %v5281 = vld [vmem:[#allocation6 + $0x298] sm:$0xff]
    %v5282 = vld [vmem:[#allocation6 + $0x2a0] sm:$0xff]
    %v5283 = vld [vmem:[#allocation6 + $0x2a8] sm:$0xff]
    %v5284 = vld [vmem:[#allocation6 + $0x2b0] sm:$0xff]
    %v5285 = vld [vmem:[#allocation6 + $0x2b8] sm:$0xff]
    %v5286 = vld [vmem:[#allocation6 + $0x2c0] sm:$0xff]
    %v5287 = vld [vmem:[#allocation6 + $0x2c8] sm:$0xff]
    %v5288 = vld [vmem:[#allocation6 + $0x2d0] sm:$0xff]
    %v5289 = vld [vmem:[#allocation6 + $0x2d8] sm:$0xff]
    %v5290 = vld [vmem:[#allocation6 + $0x2e0] sm:$0xff]
    %v5291 = vld [vmem:[#allocation6 + $0x2e8] sm:$0xff]
    %v5292 = vld [vmem:[#allocation6 + $0x2f0] sm:$0xff]
    %v5293 = vld [vmem:[#allocation6 + $0x2f8] sm:$0xff]
    %v5294 = vpack.c.b16 %v5153, %v5150
    %v5295 = vpack.c.b16 %v5154, %v5151
    %v5296 = vpack.c.b16 %v5155, %v5152
    %v5297 = vpack.c.b16 %v5159, %v5156
    %v5298 = vpack.c.b16 %v5160, %v5157
    %v5299 = vpack.c.b16 %v5161, %v5158
    %v5300 = vpack.c.b16 %v5165, %v5162
    %v5301 = vpack.c.b16 %v5166, %v5163
    %v5302 = vpack.c.b16 %v5167, %v5164
    %v5303 = vpack.c.b16 %v5171, %v5168
    %v5304 = vpack.c.b16 %v5172, %v5169
    %v5305 = vpack.c.b16 %v5173, %v5170
    %v5306 = vpack.c.b16 %v5177, %v5174
    %v5307 = vpack.c.b16 %v5178, %v5175
    %v5308 = vpack.c.b16 %v5179, %v5176
    %v5309 = vpack.c.b16 %v5183, %v5180
    %v5310 = vpack.c.b16 %v5184, %v5181
    %v5311 = vpack.c.b16 %v5185, %v5182
    %v5312 = vpack.c.b16 %v5189, %v5186
    %v5313 = vpack.c.b16 %v5190, %v5187
    %v5314 = vpack.c.b16 %v5191, %v5188
    %v5315 = vpack.c.b16 %v5195, %v5192
    %v5316 = vpack.c.b16 %v5196, %v5193
    %v5317 = vpack.c.b16 %v5197, %v5194
    %v5438 = vunpack.c.l.b16 %v5198
    %v5439 = vunpack.c.h.b16 %v5198
    %v5440 = vunpack.c.l.b16 %v5199
    %v5441 = vunpack.c.h.b16 %v5199
    %v5442 = vunpack.c.l.b16 %v5200
    %v5443 = vunpack.c.h.b16 %v5200
    %v5444 = vunpack.c.l.b16 %v5201
    %v5445 = vunpack.c.h.b16 %v5201
    %v5446 = vunpack.c.l.b16 %v5202
    %v5447 = vunpack.c.h.b16 %v5202
    %v5448 = vunpack.c.l.b16 %v5203
    %v5449 = vunpack.c.h.b16 %v5203
    %v5450 = vunpack.c.l.b16 %v5204
    %v5451 = vunpack.c.h.b16 %v5204
    %v5452 = vunpack.c.l.b16 %v5205
    %v5453 = vunpack.c.h.b16 %v5205
    %v5454 = vunpack.c.l.b16 %v5206
    %v5455 = vunpack.c.h.b16 %v5206
    %v5456 = vunpack.c.l.b16 %v5207
    %v5457 = vunpack.c.h.b16 %v5207
    %v5458 = vunpack.c.l.b16 %v5208
    %v5459 = vunpack.c.h.b16 %v5208
    %v5460 = vunpack.c.l.b16 %v5209
    %v5461 = vunpack.c.h.b16 %v5209
    %v5462 = vunpack.c.l.b16 %v5210
    %v5463 = vunpack.c.h.b16 %v5210
    %v5464 = vunpack.c.l.b16 %v5211
    %v5465 = vunpack.c.h.b16 %v5211
    %v5466 = vunpack.c.l.b16 %v5212
    %v5467 = vunpack.c.h.b16 %v5212
    %v5468 = vunpack.c.l.b16 %v5213
    %v5469 = vunpack.c.h.b16 %v5213
    %v5470 = vunpack.c.l.b16 %v5214
    %v5471 = vunpack.c.h.b16 %v5214
    %v5472 = vunpack.c.l.b16 %v5215
    %v5473 = vunpack.c.h.b16 %v5215
    %v5474 = vunpack.c.l.b16 %v5216
    %v5475 = vunpack.c.h.b16 %v5216
    %v5476 = vunpack.c.l.b16 %v5217
    %v5477 = vunpack.c.h.b16 %v5217
    %v5478 = vunpack.c.l.b16 %v5218
    %v5479 = vunpack.c.h.b16 %v5218
    %v5480 = vunpack.c.l.b16 %v5219
    %v5481 = vunpack.c.h.b16 %v5219
    %v5482 = vunpack.c.l.b16 %v5220
    %v5483 = vunpack.c.h.b16 %v5220
    %v5484 = vunpack.c.l.b16 %v5221
    %v5485 = vunpack.c.h.b16 %v5221
    %v5486 = vunpack.c.l.b16 %v5222
    %v5487 = vunpack.c.h.b16 %v5222
    %v5488 = vunpack.c.l.b16 %v5223
    %v5489 = vunpack.c.h.b16 %v5223
    %v5490 = vunpack.c.l.b16 %v5224
    %v5491 = vunpack.c.h.b16 %v5224
    %v5492 = vunpack.c.l.b16 %v5225
    %v5493 = vunpack.c.h.b16 %v5225
    %v5494 = vunpack.c.l.b16 %v5226
    %v5495 = vunpack.c.h.b16 %v5226
    %v5496 = vunpack.c.l.b16 %v5227
    %v5497 = vunpack.c.h.b16 %v5227
    %v5498 = vunpack.c.l.b16 %v5228
    %v5499 = vunpack.c.h.b16 %v5228
    %v5500 = vunpack.c.l.b16 %v5229
    %v5501 = vunpack.c.h.b16 %v5229
    %v5502 = vunpack.c.l.b16 %v5230
    %v5503 = vunpack.c.h.b16 %v5230
    %v5504 = vunpack.c.l.b16 %v5231
    %v5505 = vunpack.c.h.b16 %v5231
    %v5506 = vunpack.c.l.b16 %v5232
    %v5507 = vunpack.c.h.b16 %v5232
    %v5508 = vunpack.c.l.b16 %v5233
    %v5509 = vunpack.c.h.b16 %v5233
    %v5510 = vunpack.c.l.b16 %v5234
    %v5511 = vunpack.c.h.b16 %v5234
    %v5512 = vunpack.c.l.b16 %v5235
    %v5513 = vunpack.c.h.b16 %v5235
    %v5514 = vunpack.c.l.b16 %v5236
    %v5515 = vunpack.c.h.b16 %v5236
    %v5516 = vunpack.c.l.b16 %v5237
    %v5517 = vunpack.c.h.b16 %v5237
    %v5518 = vunpack.c.l.b16 %v5238
    %v5519 = vunpack.c.h.b16 %v5238
    %v5520 = vunpack.c.l.b16 %v5239
    %v5521 = vunpack.c.h.b16 %v5239
    %v5522 = vunpack.c.l.b16 %v5240
    %v5523 = vunpack.c.h.b16 %v5240
    %v5524 = vunpack.c.l.b16 %v5241
    %v5525 = vunpack.c.h.b16 %v5241
    %v5526 = vunpack.c.l.b16 %v5242
    %v5527 = vunpack.c.h.b16 %v5242
    %v5528 = vunpack.c.l.b16 %v5243
    %v5529 = vunpack.c.h.b16 %v5243
    %v5530 = vunpack.c.l.b16 %v5244
    %v5531 = vunpack.c.h.b16 %v5244
    %v5532 = vunpack.c.l.b16 %v5245
    %v5533 = vunpack.c.h.b16 %v5245
    %v5534 = vunpack.c.l.b16 %v5246
    %v5535 = vunpack.c.h.b16 %v5246
    %v5536 = vunpack.c.l.b16 %v5247
    %v5537 = vunpack.c.h.b16 %v5247
    %v5538 = vunpack.c.l.b16 %v5248
    %v5539 = vunpack.c.h.b16 %v5248
    %v5540 = vunpack.c.l.b16 %v5249
    %v5541 = vunpack.c.h.b16 %v5249
    %v5542 = vunpack.c.l.b16 %v5250
    %v5543 = vunpack.c.h.b16 %v5250
    %v5544 = vunpack.c.l.b16 %v5251
    %v5545 = vunpack.c.h.b16 %v5251
    %v5546 = vunpack.c.l.b16 %v5252
    %v5547 = vunpack.c.h.b16 %v5252
    %v5548 = vunpack.c.l.b16 %v5253
    %v5549 = vunpack.c.h.b16 %v5253
    %v5550 = vunpack.c.l.b16 %v5254
    %v5551 = vunpack.c.h.b16 %v5254
    %v5552 = vunpack.c.l.b16 %v5255
    %v5553 = vunpack.c.h.b16 %v5255
    %v5554 = vunpack.c.l.b16 %v5256
    %v5555 = vunpack.c.h.b16 %v5256
    %v5556 = vunpack.c.l.b16 %v5257
    %v5557 = vunpack.c.h.b16 %v5257
    %v5558 = vunpack.c.l.b16 %v5258
    %v5559 = vunpack.c.h.b16 %v5258
    %v5560 = vunpack.c.l.b16 %v5259
    %v5561 = vunpack.c.h.b16 %v5259
    %v5562 = vunpack.c.l.b16 %v5260
    %v5563 = vunpack.c.h.b16 %v5260
    %v5564 = vunpack.c.l.b16 %v5261
    %v5565 = vunpack.c.h.b16 %v5261
    %v5566 = vunpack.c.l.b16 %v5262
    %v5567 = vunpack.c.h.b16 %v5262
    %v5568 = vunpack.c.l.b16 %v5263
    %v5569 = vunpack.c.h.b16 %v5263
    %v5570 = vunpack.c.l.b16 %v5264
    %v5571 = vunpack.c.h.b16 %v5264
    %v5572 = vunpack.c.l.b16 %v5265
    %v5573 = vunpack.c.h.b16 %v5265
    %v5574 = vunpack.c.l.b16 %v5266
    %v5575 = vunpack.c.h.b16 %v5266
    %v5576 = vunpack.c.l.b16 %v5267
    %v5577 = vunpack.c.h.b16 %v5267
    %v5578 = vunpack.c.l.b16 %v5268
    %v5579 = vunpack.c.h.b16 %v5268
    %v5580 = vunpack.c.l.b16 %v5269
    %v5581 = vunpack.c.h.b16 %v5269
    %v5582 = vunpack.c.l.b16 %v5270
    %v5583 = vunpack.c.h.b16 %v5270
    %v5584 = vunpack.c.l.b16 %v5271
    %v5585 = vunpack.c.h.b16 %v5271
    %v5586 = vunpack.c.l.b16 %v5272
    %v5587 = vunpack.c.h.b16 %v5272
    %v5588 = vunpack.c.l.b16 %v5273
    %v5589 = vunpack.c.h.b16 %v5273
    %v5590 = vunpack.c.l.b16 %v5274
    %v5591 = vunpack.c.h.b16 %v5274
    %v5592 = vunpack.c.l.b16 %v5275
    %v5593 = vunpack.c.h.b16 %v5275
    %v5594 = vunpack.c.l.b16 %v5276
    %v5595 = vunpack.c.h.b16 %v5276
    %v5596 = vunpack.c.l.b16 %v5277
    %v5597 = vunpack.c.h.b16 %v5277
    %v5598 = vunpack.c.l.b16 %v5278
    %v5599 = vunpack.c.h.b16 %v5278
    %v5600 = vunpack.c.l.b16 %v5279
    %v5601 = vunpack.c.h.b16 %v5279
    %v5602 = vunpack.c.l.b16 %v5280
    %v5603 = vunpack.c.h.b16 %v5280
    %v5604 = vunpack.c.l.b16 %v5281
    %v5605 = vunpack.c.h.b16 %v5281
    %v5606 = vunpack.c.l.b16 %v5282
    %v5607 = vunpack.c.h.b16 %v5282
    %v5608 = vunpack.c.l.b16 %v5283
    %v5609 = vunpack.c.h.b16 %v5283
    %v5610 = vunpack.c.l.b16 %v5284
    %v5611 = vunpack.c.h.b16 %v5284
    %v5612 = vunpack.c.l.b16 %v5285
    %v5613 = vunpack.c.h.b16 %v5285
    %v5614 = vunpack.c.l.b16 %v5286
    %v5615 = vunpack.c.h.b16 %v5286
    %v5616 = vunpack.c.l.b16 %v5287
    %v5617 = vunpack.c.h.b16 %v5287
    %v5618 = vunpack.c.l.b16 %v5288
    %v5619 = vunpack.c.h.b16 %v5288
    %v5620 = vunpack.c.l.b16 %v5289
    %v5621 = vunpack.c.h.b16 %v5289
    %v5622 = vunpack.c.l.b16 %v5290
    %v5623 = vunpack.c.h.b16 %v5290
    %v5624 = vunpack.c.l.b16 %v5291
    %v5625 = vunpack.c.h.b16 %v5291
    %v5626 = vunpack.c.l.b16 %v5292
    %v5627 = vunpack.c.h.b16 %v5292
    %v5628 = vunpack.c.l.b16 %v5293
    %v5629 = vunpack.c.h.b16 %v5293
    %v5630 = vpack.c.b16 %v5442, %v5438
    %v5631 = vpack.c.b16 %v5443, %v5439
    %v5632 = vpack.c.b16 %v5444, %v5440
    %v5633 = vpack.c.b16 %v5445, %v5441
    %v5634 = vpack.c.b16 %v5450, %v5446
    %v5635 = vpack.c.b16 %v5451, %v5447
    %v5636 = vpack.c.b16 %v5452, %v5448
    %v5637 = vpack.c.b16 %v5453, %v5449
    %v5638 = vpack.c.b16 %v5458, %v5454
    %v5639 = vpack.c.b16 %v5459, %v5455
    %v5640 = vpack.c.b16 %v5460, %v5456
    %v5641 = vpack.c.b16 %v5461, %v5457
    %v5642 = vpack.c.b16 %v5466, %v5462
    %v5643 = vpack.c.b16 %v5467, %v5463
    %v5644 = vpack.c.b16 %v5468, %v5464
    %v5645 = vpack.c.b16 %v5469, %v5465
    %v5646 = vpack.c.b16 %v5474, %v5470
    %v5647 = vpack.c.b16 %v5475, %v5471
    %v5648 = vpack.c.b16 %v5476, %v5472
    %v5649 = vpack.c.b16 %v5477, %v5473
    %v5650 = vpack.c.b16 %v5482, %v5478
    %v5651 = vpack.c.b16 %v5483, %v5479
    %v5652 = vpack.c.b16 %v5484, %v5480
    %v5653 = vpack.c.b16 %v5485, %v5481
    %v5654 = vpack.c.b16 %v5490, %v5486
    %v5655 = vpack.c.b16 %v5491, %v5487
    %v5656 = vpack.c.b16 %v5492, %v5488
    %v5657 = vpack.c.b16 %v5493, %v5489
    %v5658 = vpack.c.b16 %v5498, %v5494
    %v5659 = vpack.c.b16 %v5499, %v5495
    %v5660 = vpack.c.b16 %v5500, %v5496
    %v5661 = vpack.c.b16 %v5501, %v5497
    %v5662 = vpack.c.b16 %v5506, %v5502
    %v5663 = vpack.c.b16 %v5507, %v5503
    %v5664 = vpack.c.b16 %v5508, %v5504
    %v5665 = vpack.c.b16 %v5509, %v5505
    %v5666 = vpack.c.b16 %v5514, %v5510
    %v5667 = vpack.c.b16 %v5515, %v5511
    %v5668 = vpack.c.b16 %v5516, %v5512
    %v5669 = vpack.c.b16 %v5517, %v5513
    %v5670 = vpack.c.b16 %v5522, %v5518
    %v5671 = vpack.c.b16 %v5523, %v5519
    %v5672 = vpack.c.b16 %v5524, %v5520
    %v5673 = vpack.c.b16 %v5525, %v5521
    %v5674 = vpack.c.b16 %v5530, %v5526
    %v5675 = vpack.c.b16 %v5531, %v5527
    %v5676 = vpack.c.b16 %v5532, %v5528
    %v5677 = vpack.c.b16 %v5533, %v5529
    %v5678 = vpack.c.b16 %v5538, %v5534
    %v5679 = vpack.c.b16 %v5539, %v5535
    %v5680 = vpack.c.b16 %v5540, %v5536
    %v5681 = vpack.c.b16 %v5541, %v5537
    %v5682 = vpack.c.b16 %v5546, %v5542
    %v5683 = vpack.c.b16 %v5547, %v5543
    %v5684 = vpack.c.b16 %v5548, %v5544
    %v5685 = vpack.c.b16 %v5549, %v5545
    %v5686 = vpack.c.b16 %v5554, %v5550
    %v5687 = vpack.c.b16 %v5555, %v5551
    %v5688 = vpack.c.b16 %v5556, %v5552
    %v5689 = vpack.c.b16 %v5557, %v5553
    %v5690 = vpack.c.b16 %v5562, %v5558
    %v5691 = vpack.c.b16 %v5563, %v5559
    %v5692 = vpack.c.b16 %v5564, %v5560
    %v5693 = vpack.c.b16 %v5565, %v5561
    %v5694 = vpack.c.b16 %v5570, %v5566
    %v5695 = vpack.c.b16 %v5571, %v5567
    %v5696 = vpack.c.b16 %v5572, %v5568
    %v5697 = vpack.c.b16 %v5573, %v5569
    %v5698 = vpack.c.b16 %v5578, %v5574
    %v5699 = vpack.c.b16 %v5579, %v5575
    %v5700 = vpack.c.b16 %v5580, %v5576
    %v5701 = vpack.c.b16 %v5581, %v5577
    %v5702 = vpack.c.b16 %v5586, %v5582
    %v5703 = vpack.c.b16 %v5587, %v5583
    %v5704 = vpack.c.b16 %v5588, %v5584
    %v5705 = vpack.c.b16 %v5589, %v5585
    %v5706 = vpack.c.b16 %v5594, %v5590
    %v5707 = vpack.c.b16 %v5595, %v5591
    %v5708 = vpack.c.b16 %v5596, %v5592
    %v5709 = vpack.c.b16 %v5597, %v5593
    %v5710 = vpack.c.b16 %v5602, %v5598
    %v5711 = vpack.c.b16 %v5603, %v5599
    %v5712 = vpack.c.b16 %v5604, %v5600
    %v5713 = vpack.c.b16 %v5605, %v5601
    %v5714 = vpack.c.b16 %v5610, %v5606
    %v5715 = vpack.c.b16 %v5611, %v5607
    %v5716 = vpack.c.b16 %v5612, %v5608
    %v5717 = vpack.c.b16 %v5613, %v5609
    %v5718 = vpack.c.b16 %v5618, %v5614
    %v5719 = vpack.c.b16 %v5619, %v5615
    %v5720 = vpack.c.b16 %v5620, %v5616
    %v5721 = vpack.c.b16 %v5621, %v5617
    %v5722 = vpack.c.b16 %v5626, %v5622
    %v5723 = vpack.c.b16 %v5627, %v5623
    %v5724 = vpack.c.b16 %v5628, %v5624
    %v5725 = vpack.c.b16 %v5629, %v5625
    %5822 = vmatprep.subr.bf16.mxu0 %v5659
    %5823 = vmatpush1.bf16.msra.mxu0 %v5658
    %5824 = vmatprep.subr.bf16.mxu0 %v5655
    %5825 = vmatpush1.bf16.msra.mxu0 %v5654
    %5826 = vmatprep.subr.bf16.mxu0 %v5651
    %5827 = vmatpush1.bf16.msra.mxu0 %v5650
    %5828 = vmatprep.subr.bf16.mxu0 %v5647
    %5829 = vmatpush1.bf16.msra.mxu0 %v5646
    %5830 = vmatprep.subr.bf16.mxu0 %v5643
    %5831 = vmatpush1.bf16.msra.mxu0 %v5642
    %5832 = vmatprep.subr.bf16.mxu0 %v5639
    %5833 = vmatpush1.bf16.msra.mxu0 %v5638
    %5834 = vmatprep.subr.bf16.mxu0 %v5635
    %5835 = vmatpush1.bf16.msra.mxu0 %v5634
    %5836 = vmatprep.subr.bf16.mxu0 %v5631
    %5837 = vmatpush1.bf16.msra.mxu0 %v5630
    %5838 = vmatprep.subr.bf16.mxu0 %v5691
    %5839 = vmatpush2.bf16.msra.mxu0 %v5690
    %5840 = vmatprep.subr.bf16.mxu0 %v5687
    %5841 = vmatpush2.bf16.msra.mxu0 %v5686
    %5842 = vmatprep.subr.bf16.mxu0 %v5683
    %5843 = vmatpush2.bf16.msra.mxu0 %v5682
    %5844 = vmatprep.subr.bf16.mxu0 %v5679
    %5845 = vmatpush2.bf16.msra.mxu0 %v5678
    %5846 = vmatprep.subr.bf16.mxu0 %v5675
    %5847 = vmatpush2.bf16.msra.mxu0 %v5674
    %5848 = vmatprep.subr.bf16.mxu0 %v5671
    %5849 = vmatpush2.bf16.msra.mxu0 %v5670
    %5850 = vmatprep.subr.bf16.mxu0 %v5667
    %5851 = vmatpush2.bf16.msra.mxu0 %v5666
    %5852 = vmatprep.subr.bf16.mxu0 %v5663
    %5853 = vmatpush2.bf16.msra.mxu0 %v5662
    %5854 = vmatprep.mubr.bf16.mxu0 %v5295
    %5855 = vmatmul.mubr.bf16.gmra.mxu0 %v5294
    %v5856 = vpop.f32.mrf.mxu0
    %v5857 = vadd.f32 0.0, %v5856
    %v5858 = vpop.f32.mrf.mxu0
    %v5859 = vadd.f32 0.0, %v5858
    %v5860 = vpop.f32.mrf.mxu0
    %v5861 = vadd.f32 0.0, %v5860
    %v5862 = vpop.f32.mrf.mxu0
    %v5863 = vadd.f32 0.0, %v5862
    %5864 = vmatprep.mubr.bf16.mxu0 %v5298
    %5865 = vmatmul.mubr.bf16.gmra.mxu0 %v5297
    %v5866 = vpop.f32.mrf.mxu0
    %v5867 = vadd.f32 0.0, %v5866
    %v5868 = vpop.f32.mrf.mxu0
    %v5869 = vadd.f32 0.0, %v5868
    %v5870 = vpop.f32.mrf.mxu0
    %v5871 = vadd.f32 0.0, %v5870
    %v5872 = vpop.f32.mrf.mxu0
    %v5873 = vadd.f32 0.0, %v5872
    %5874 = vmatprep.mubr.bf16.mxu0 %v5301
    %5875 = vmatmul.mubr.bf16.gmra.mxu0 %v5300
    %v5876 = vpop.f32.mrf.mxu0
    %v5877 = vadd.f32 0.0, %v5876
    %v5878 = vpop.f32.mrf.mxu0
    %v5879 = vadd.f32 0.0, %v5878
    %v5880 = vpop.f32.mrf.mxu0
    %v5881 = vadd.f32 0.0, %v5880
    %v5882 = vpop.f32.mrf.mxu0
    %v5883 = vadd.f32 0.0, %v5882
    %5884 = vmatprep.mubr.bf16.mxu0 %v5304
    %5885 = vmatmul.mubr.bf16.gmra.mxu0 %v5303
    %v5886 = vpop.f32.mrf.mxu0
    %v5887 = vadd.f32 0.0, %v5886
    %v5888 = vpop.f32.mrf.mxu0
    %v5889 = vadd.f32 0.0, %v5888
    %v5890 = vpop.f32.mrf.mxu0
    %v5891 = vadd.f32 0.0, %v5890
    %v5892 = vpop.f32.mrf.mxu0
    %v5893 = vadd.f32 0.0, %v5892
    %5894 = vmatprep.mubr.bf16.mxu0 %v5307
    %5895 = vmatmul.mubr.bf16.gmra.mxu0 %v5306
    %v5896 = vpop.f32.mrf.mxu0
    %v5897 = vadd.f32 0.0, %v5896
    %v5898 = vpop.f32.mrf.mxu0
    %v5899 = vadd.f32 0.0, %v5898
    %v5900 = vpop.f32.mrf.mxu0
    %v5901 = vadd.f32 0.0, %v5900
    %v5902 = vpop.f32.mrf.mxu0
    %v5903 = vadd.f32 0.0, %v5902
    %5904 = vmatprep.mubr.bf16.mxu0 %v5310
    %5905 = vmatmul.mubr.bf16.gmra.mxu0 %v5309
    %v5906 = vpop.f32.mrf.mxu0
    %v5907 = vadd.f32 0.0, %v5906
    %v5908 = vpop.f32.mrf.mxu0
    %v5909 = vadd.f32 0.0, %v5908
    %v5910 = vpop.f32.mrf.mxu0
    %v5911 = vadd.f32 0.0, %v5910
    %v5912 = vpop.f32.mrf.mxu0
    %v5913 = vadd.f32 0.0, %v5912
    %5914 = vmatprep.mubr.bf16.mxu0 %v5313
    %5915 = vmatmul.mubr.bf16.gmra.mxu0 %v5312
    %v5916 = vpop.f32.mrf.mxu0
    %v5917 = vadd.f32 0.0, %v5916
    %v5918 = vpop.f32.mrf.mxu0
    %v5919 = vadd.f32 0.0, %v5918
    %v5920 = vpop.f32.mrf.mxu0
    %v5921 = vadd.f32 0.0, %v5920
    %v5922 = vpop.f32.mrf.mxu0
    %v5923 = vadd.f32 0.0, %v5922
    %5924 = vmatprep.mubr.bf16.mxu0 %v5316
    %5925 = vmatmul.mubr.bf16.gmra.mxu0 %v5315
    %v5926 = vpop.f32.mrf.mxu0
    %v5927 = vadd.f32 0.0, %v5926
    %v5928 = vpop.f32.mrf.mxu0
    %v5929 = vadd.f32 0.0, %v5928
    %v5930 = vpop.f32.mrf.mxu0
    %v5931 = vadd.f32 0.0, %v5930
    %v5932 = vpop.f32.mrf.mxu0
    %v5933 = vadd.f32 0.0, %v5932
    %5934 = vdwg.mxu0
    %5935 = vmatprep.subr.bf16.mxu0 %v5723
    %5936 = vmatpush1.bf16.msra.mxu0 %v5722
    %5937 = vmatprep.subr.bf16.mxu0 %v5719
    %5938 = vmatpush1.bf16.msra.mxu0 %v5718
    %5939 = vmatprep.subr.bf16.mxu0 %v5715
    %5940 = vmatpush1.bf16.msra.mxu0 %v5714
    %5941 = vmatprep.subr.bf16.mxu0 %v5711
    %5942 = vmatpush1.bf16.msra.mxu0 %v5710
    %5943 = vmatprep.subr.bf16.mxu0 %v5707
    %5944 = vmatpush1.bf16.msra.mxu0 %v5706
    %5945 = vmatprep.subr.bf16.mxu0 %v5703
    %5946 = vmatpush1.bf16.msra.mxu0 %v5702
    %5947 = vmatprep.subr.bf16.mxu0 %v5699
    %5948 = vmatpush1.bf16.msra.mxu0 %v5698
    %5949 = vmatprep.subr.bf16.mxu0 %v5695
    %5950 = vmatpush1.bf16.msra.mxu0 %v5694
    %5951 = vmatprep.subr.bf16.mxu0 0
    %5952 = vmatpush2.bf16.msra.mxu0 0
    %5953 = vmatprep.subr.bf16.mxu0 0
    %5954 = vmatpush2.bf16.msra.mxu0 0
    %5955 = vmatprep.subr.bf16.mxu0 0
    %5956 = vmatpush2.bf16.msra.mxu0 0
    %5957 = vmatprep.subr.bf16.mxu0 0
    %5958 = vmatpush2.bf16.msra.mxu0 0
    %5959 = vmatprep.subr.bf16.mxu0 0
    %5960 = vmatpush2.bf16.msra.mxu0 0
    %5961 = vmatprep.subr.bf16.mxu0 0
    %5962 = vmatpush2.bf16.msra.mxu0 0
    %5963 = vmatprep.subr.bf16.mxu0 0
    %5964 = vmatpush2.bf16.msra.mxu0 0
    %5965 = vmatprep.subr.bf16.mxu0 0
    %5966 = vmatpush2.bf16.msra.mxu0 0
    %5967 = vmatprep.mubr.bf16.mxu0 0
    %5968 = vmatmul.mubr.bf16.gmra.mxu0 %v5296
    %v5969 = vpop.f32.mrf.mxu0
    %v5970 = vadd.f32 %v5857, %v5969
    %v5971 = vpop.f32.mrf.mxu0
    %v5972 = vadd.f32 %v5859, %v5971
    %v5973 = vpop.f32.mrf.mxu0
    %v5974 = vadd.f32 %v5861, %v5973
    %v5975 = vpop.f32.mrf.mxu0
    %v5976 = vadd.f32 %v5863, %v5975
    %5977 = vmatprep.mubr.bf16.mxu0 0
    %5978 = vmatmul.mubr.bf16.gmra.mxu0 %v5299
    %v5979 = vpop.f32.mrf.mxu0
    %v5980 = vadd.f32 %v5867, %v5979
    %v5981 = vpop.f32.mrf.mxu0
    %v5982 = vadd.f32 %v5869, %v5981
    %v5983 = vpop.f32.mrf.mxu0
    %v5984 = vadd.f32 %v5871, %v5983
    %v5985 = vpop.f32.mrf.mxu0
    %v5986 = vadd.f32 %v5873, %v5985
    %5987 = vmatprep.mubr.bf16.mxu0 0
    %5988 = vmatmul.mubr.bf16.gmra.mxu0 %v5302
    %v5989 = vpop.f32.mrf.mxu0
    %v5990 = vadd.f32 %v5877, %v5989
    %v5991 = vpop.f32.mrf.mxu0
    %v5992 = vadd.f32 %v5879, %v5991
    %v5993 = vpop.f32.mrf.mxu0
    %v5994 = vadd.f32 %v5881, %v5993
    %v5995 = vpop.f32.mrf.mxu0
    %v5996 = vadd.f32 %v5883, %v5995
    %5997 = vmatprep.mubr.bf16.mxu0 0
    %5998 = vmatmul.mubr.bf16.gmra.mxu0 %v5305
    %v5999 = vpop.f32.mrf.mxu0
    %v6000 = vadd.f32 %v5887, %v5999
    %v6001 = vpop.f32.mrf.mxu0
    %v6002 = vadd.f32 %v5889, %v6001
    %v6003 = vpop.f32.mrf.mxu0
    %v6004 = vadd.f32 %v5891, %v6003
    %v6005 = vpop.f32.mrf.mxu0
    %v6006 = vadd.f32 %v5893, %v6005
    %6007 = vmatprep.mubr.bf16.mxu0 0
    %6008 = vmatmul.mubr.bf16.gmra.mxu0 %v5308
    %v6009 = vpop.f32.mrf.mxu0
    %v6010 = vadd.f32 %v5897, %v6009
    %v6011 = vpop.f32.mrf.mxu0
    %v6012 = vadd.f32 %v5899, %v6011
    %v6013 = vpop.f32.mrf.mxu0
    %v6014 = vadd.f32 %v5901, %v6013
    %v6015 = vpop.f32.mrf.mxu0
    %v6016 = vadd.f32 %v5903, %v6015
    %6017 = vmatprep.mubr.bf16.mxu0 0
    %6018 = vmatmul.mubr.bf16.gmra.mxu0 %v5311
    %v6019 = vpop.f32.mrf.mxu0
    %v6020 = vadd.f32 %v5907, %v6019
    %v6021 = vpop.f32.mrf.mxu0
    %v6022 = vadd.f32 %v5909, %v6021
    %v6023 = vpop.f32.mrf.mxu0
    %v6024 = vadd.f32 %v5911, %v6023
    %v6025 = vpop.f32.mrf.mxu0
    %v6026 = vadd.f32 %v5913, %v6025
    %6027 = vmatprep.mubr.bf16.mxu0 0
    %6028 = vmatmul.mubr.bf16.gmra.mxu0 %v5314
    %v6029 = vpop.f32.mrf.mxu0
    %v6030 = vadd.f32 %v5917, %v6029
    %v6031 = vpop.f32.mrf.mxu0
    %v6032 = vadd.f32 %v5919, %v6031
    %v6033 = vpop.f32.mrf.mxu0
    %v6034 = vadd.f32 %v5921, %v6033
    %v6035 = vpop.f32.mrf.mxu0
    %v6036 = vadd.f32 %v5923, %v6035
    %6037 = vmatprep.mubr.bf16.mxu0 0
    %6038 = vmatmul.mubr.bf16.gmra.mxu0 %v5317
    %v6039 = vpop.f32.mrf.mxu0
    %v6040 = vadd.f32 %v5927, %v6039
    %v6041 = vpop.f32.mrf.mxu0
    %v6042 = vadd.f32 %v5929, %v6041
    %v6043 = vpop.f32.mrf.mxu0
    %v6044 = vadd.f32 %v5931, %v6043
    %v6045 = vpop.f32.mrf.mxu0
    %v6046 = vadd.f32 %v5933, %v6045
    %6047 = vdwg.mxu0
    %6048 = vmatprep.subr.bf16.mxu0 %v5661
    %6049 = vmatpush1.bf16.msra.mxu0 %v5660
    %6050 = vmatprep.subr.bf16.mxu0 %v5657
    %6051 = vmatpush1.bf16.msra.mxu0 %v5656
    %6052 = vmatprep.subr.bf16.mxu0 %v5653
    %6053 = vmatpush1.bf16.msra.mxu0 %v5652
    %6054 = vmatprep.subr.bf16.mxu0 %v5649
    %6055 = vmatpush1.bf16.msra.mxu0 %v5648
    %6056 = vmatprep.subr.bf16.mxu0 %v5645
    %6057 = vmatpush1.bf16.msra.mxu0 %v5644
    %6058 = vmatprep.subr.bf16.mxu0 %v5641
    %6059 = vmatpush1.bf16.msra.mxu0 %v5640
    %6060 = vmatprep.subr.bf16.mxu0 %v5637
    %6061 = vmatpush1.bf16.msra.mxu0 %v5636
    %6062 = vmatprep.subr.bf16.mxu0 %v5633
    %6063 = vmatpush1.bf16.msra.mxu0 %v5632
    %6064 = vmatprep.subr.bf16.mxu0 %v5693
    %6065 = vmatpush2.bf16.msra.mxu0 %v5692
    %6066 = vmatprep.subr.bf16.mxu0 %v5689
    %6067 = vmatpush2.bf16.msra.mxu0 %v5688
    %6068 = vmatprep.subr.bf16.mxu0 %v5685
    %6069 = vmatpush2.bf16.msra.mxu0 %v5684
    %6070 = vmatprep.subr.bf16.mxu0 %v5681
    %6071 = vmatpush2.bf16.msra.mxu0 %v5680
    %6072 = vmatprep.subr.bf16.mxu0 %v5677
    %6073 = vmatpush2.bf16.msra.mxu0 %v5676
    %6074 = vmatprep.subr.bf16.mxu0 %v5673
    %6075 = vmatpush2.bf16.msra.mxu0 %v5672
    %6076 = vmatprep.subr.bf16.mxu0 %v5669
    %6077 = vmatpush2.bf16.msra.mxu0 %v5668
    %6078 = vmatprep.subr.bf16.mxu0 %v5665
    %6079 = vmatpush2.bf16.msra.mxu0 %v5664
    %6080 = vmatprep.mubr.bf16.mxu0 %v5295
    %6081 = vmatmul.mubr.bf16.gmra.mxu0 %v5294
    %v6082 = vpop.f32.mrf.mxu0
    %v6083 = vadd.f32 0.0, %v6082
    %v6084 = vpop.f32.mrf.mxu0
    %v6085 = vadd.f32 0.0, %v6084
    %v6086 = vpop.f32.mrf.mxu0
    %v6087 = vadd.f32 0.0, %v6086
    %v6088 = vpop.f32.mrf.mxu0
    %v6089 = vadd.f32 0.0, %v6088
    %6090 = vmatprep.mubr.bf16.mxu0 %v5298
    %6091 = vmatmul.mubr.bf16.gmra.mxu0 %v5297
    %v6092 = vpop.f32.mrf.mxu0
    %v6093 = vadd.f32 0.0, %v6092
    %v6094 = vpop.f32.mrf.mxu0
    %v6095 = vadd.f32 0.0, %v6094
    %v6096 = vpop.f32.mrf.mxu0
    %v6097 = vadd.f32 0.0, %v6096
    %v6098 = vpop.f32.mrf.mxu0
    %v6099 = vadd.f32 0.0, %v6098
    %6100 = vmatprep.mubr.bf16.mxu0 %v5301
    %6101 = vmatmul.mubr.bf16.gmra.mxu0 %v5300
    %v6102 = vpop.f32.mrf.mxu0
    %v6103 = vadd.f32 0.0, %v6102
    %v6104 = vpop.f32.mrf.mxu0
    %v6105 = vadd.f32 0.0, %v6104
    %v6106 = vpop.f32.mrf.mxu0
    %v6107 = vadd.f32 0.0, %v6106
    %v6108 = vpop.f32.mrf.mxu0
    %v6109 = vadd.f32 0.0, %v6108
    %6110 = vmatprep.mubr.bf16.mxu0 %v5304
    %6111 = vmatmul.mubr.bf16.gmra.mxu0 %v5303
    %v6112 = vpop.f32.mrf.mxu0
    %v6113 = vadd.f32 0.0, %v6112
    %v6114 = vpop.f32.mrf.mxu0
    %v6115 = vadd.f32 0.0, %v6114
    %v6116 = vpop.f32.mrf.mxu0
    %v6117 = vadd.f32 0.0, %v6116
    %v6118 = vpop.f32.mrf.mxu0
    %v6119 = vadd.f32 0.0, %v6118
    %6120 = vmatprep.mubr.bf16.mxu0 %v5307
    %6121 = vmatmul.mubr.bf16.gmra.mxu0 %v5306
    %v6122 = vpop.f32.mrf.mxu0
    %v6123 = vadd.f32 0.0, %v6122
    %v6124 = vpop.f32.mrf.mxu0
    %v6125 = vadd.f32 0.0, %v6124
    %v6126 = vpop.f32.mrf.mxu0
    %v6127 = vadd.f32 0.0, %v6126
    %v6128 = vpop.f32.mrf.mxu0
    %v6129 = vadd.f32 0.0, %v6128
    %6130 = vmatprep.mubr.bf16.mxu0 %v5310
    %6131 = vmatmul.mubr.bf16.gmra.mxu0 %v5309
    %v6132 = vpop.f32.mrf.mxu0
    %v6133 = vadd.f32 0.0, %v6132
    %v6134 = vpop.f32.mrf.mxu0
    %v6135 = vadd.f32 0.0, %v6134
    %v6136 = vpop.f32.mrf.mxu0
    %v6137 = vadd.f32 0.0, %v6136
    %v6138 = vpop.f32.mrf.mxu0
    %v6139 = vadd.f32 0.0, %v6138
    %6140 = vmatprep.mubr.bf16.mxu0 %v5313
    %6141 = vmatmul.mubr.bf16.gmra.mxu0 %v5312
    %v6142 = vpop.f32.mrf.mxu0
    %v6143 = vadd.f32 0.0, %v6142
    %v6144 = vpop.f32.mrf.mxu0
    %v6145 = vadd.f32 0.0, %v6144
    %v6146 = vpop.f32.mrf.mxu0
    %v6147 = vadd.f32 0.0, %v6146
    %v6148 = vpop.f32.mrf.mxu0
    %v6149 = vadd.f32 0.0, %v6148
    %6150 = vmatprep.mubr.bf16.mxu0 %v5316
    %6151 = vmatmul.mubr.bf16.gmra.mxu0 %v5315
    %v6152 = vpop.f32.mrf.mxu0
    %v6153 = vadd.f32 0.0, %v6152
    %v6154 = vpop.f32.mrf.mxu0
    %v6155 = vadd.f32 0.0, %v6154
    %v6156 = vpop.f32.mrf.mxu0
    %v6157 = vadd.f32 0.0, %v6156
    %v6158 = vpop.f32.mrf.mxu0
    %v6159 = vadd.f32 0.0, %v6158
    %6160 = vdwg.mxu0
    %6161 = vmatprep.subr.bf16.mxu0 %v5725
    %6162 = vmatpush1.bf16.msra.mxu0 %v5724
    %6163 = vmatprep.subr.bf16.mxu0 %v5721
    %6164 = vmatpush1.bf16.msra.mxu0 %v5720
    %6165 = vmatprep.subr.bf16.mxu0 %v5717
    %6166 = vmatpush1.bf16.msra.mxu0 %v5716
    %6167 = vmatprep.subr.bf16.mxu0 %v5713
    %6168 = vmatpush1.bf16.msra.mxu0 %v5712
    %6169 = vmatprep.subr.bf16.mxu0 %v5709
    %6170 = vmatpush1.bf16.msra.mxu0 %v5708
    %6171 = vmatprep.subr.bf16.mxu0 %v5705
    %6172 = vmatpush1.bf16.msra.mxu0 %v5704
    %6173 = vmatprep.subr.bf16.mxu0 %v5701
    %6174 = vmatpush1.bf16.msra.mxu0 %v5700
    %6175 = vmatprep.subr.bf16.mxu0 %v5697
    %6176 = vmatpush1.bf16.msra.mxu0 %v5696
    %6177 = vmatprep.subr.bf16.mxu0 0
    %6178 = vmatpush2.bf16.msra.mxu0 0
    %6179 = vmatprep.subr.bf16.mxu0 0
    %6180 = vmatpush2.bf16.msra.mxu0 0
    %6181 = vmatprep.subr.bf16.mxu0 0
    %6182 = vmatpush2.bf16.msra.mxu0 0
    %6183 = vmatprep.subr.bf16.mxu0 0
    %6184 = vmatpush2.bf16.msra.mxu0 0
    %6185 = vmatprep.subr.bf16.mxu0 0
    %6186 = vmatpush2.bf16.msra.mxu0 0
    %6187 = vmatprep.subr.bf16.mxu0 0
    %6188 = vmatpush2.bf16.msra.mxu0 0
    %6189 = vmatprep.subr.bf16.mxu0 0
    %6190 = vmatpush2.bf16.msra.mxu0 0
    %6191 = vmatprep.subr.bf16.mxu0 0
    %6192 = vmatpush2.bf16.msra.mxu0 0
    %6193 = vmatprep.mubr.bf16.mxu0 0
    %6194 = vmatmul.mubr.bf16.gmra.mxu0 %v5296
    %v6195 = vpop.f32.mrf.mxu0
    %v6196 = vadd.f32 %v6083, %v6195
    %v6197 = vpop.f32.mrf.mxu0
    %v6198 = vadd.f32 %v6085, %v6197
    %v6199 = vpop.f32.mrf.mxu0
    %v6200 = vadd.f32 %v6087, %v6199
    %v6201 = vpop.f32.mrf.mxu0
    %v6202 = vadd.f32 %v6089, %v6201
    %6203 = vmatprep.mubr.bf16.mxu0 0
    %6204 = vmatmul.mubr.bf16.gmra.mxu0 %v5299
    %v6205 = vpop.f32.mrf.mxu0
    %v6206 = vadd.f32 %v6093, %v6205
    %v6207 = vpop.f32.mrf.mxu0
    %v6208 = vadd.f32 %v6095, %v6207
    %v6209 = vpop.f32.mrf.mxu0
    %v6210 = vadd.f32 %v6097, %v6209
    %v6211 = vpop.f32.mrf.mxu0
    %v6212 = vadd.f32 %v6099, %v6211
    %6213 = vmatprep.mubr.bf16.mxu0 0
    %6214 = vmatmul.mubr.bf16.gmra.mxu0 %v5302
    %v6215 = vpop.f32.mrf.mxu0
    %v6216 = vadd.f32 %v6103, %v6215
    %v6217 = vpop.f32.mrf.mxu0
    %v6218 = vadd.f32 %v6105, %v6217
    %v6219 = vpop.f32.mrf.mxu0
    %v6220 = vadd.f32 %v6107, %v6219
    %v6221 = vpop.f32.mrf.mxu0
    %v6222 = vadd.f32 %v6109, %v6221
    %6223 = vmatprep.mubr.bf16.mxu0 0
    %6224 = vmatmul.mubr.bf16.gmra.mxu0 %v5305
    %v6225 = vpop.f32.mrf.mxu0
    %v6226 = vadd.f32 %v6113, %v6225
    %v6227 = vpop.f32.mrf.mxu0
    %v6228 = vadd.f32 %v6115, %v6227
    %v6229 = vpop.f32.mrf.mxu0
    %v6230 = vadd.f32 %v6117, %v6229
    %v6231 = vpop.f32.mrf.mxu0
    %v6232 = vadd.f32 %v6119, %v6231
    %6233 = vmatprep.mubr.bf16.mxu0 0
    %6234 = vmatmul.mubr.bf16.gmra.mxu0 %v5308
    %v6235 = vpop.f32.mrf.mxu0
    %v6236 = vadd.f32 %v6123, %v6235
    %v6237 = vpop.f32.mrf.mxu0
    %v6238 = vadd.f32 %v6125, %v6237
    %v6239 = vpop.f32.mrf.mxu0
    %v6240 = vadd.f32 %v6127, %v6239
    %v6241 = vpop.f32.mrf.mxu0
    %v6242 = vadd.f32 %v6129, %v6241
    %6243 = vmatprep.mubr.bf16.mxu0 0
    %6244 = vmatmul.mubr.bf16.gmra.mxu0 %v5311
    %v6245 = vpop.f32.mrf.mxu0
    %v6246 = vadd.f32 %v6133, %v6245
    %v6247 = vpop.f32.mrf.mxu0
    %v6248 = vadd.f32 %v6135, %v6247
    %v6249 = vpop.f32.mrf.mxu0
    %v6250 = vadd.f32 %v6137, %v6249
    %v6251 = vpop.f32.mrf.mxu0
    %v6252 = vadd.f32 %v6139, %v6251
    %6253 = vmatprep.mubr.bf16.mxu0 0
    %6254 = vmatmul.mubr.bf16.gmra.mxu0 %v5314
    %v6255 = vpop.f32.mrf.mxu0
    %v6256 = vadd.f32 %v6143, %v6255
    %v6257 = vpop.f32.mrf.mxu0
    %v6258 = vadd.f32 %v6145, %v6257
    %v6259 = vpop.f32.mrf.mxu0
    %v6260 = vadd.f32 %v6147, %v6259
    %v6261 = vpop.f32.mrf.mxu0
    %v6262 = vadd.f32 %v6149, %v6261
    %6263 = vmatprep.mubr.bf16.mxu0 0
    %6264 = vmatmul.mubr.bf16.gmra.mxu0 %v5317
    %v6265 = vpop.f32.mrf.mxu0
    %v6266 = vadd.f32 %v6153, %v6265
    %v6267 = vpop.f32.mrf.mxu0
    %v6268 = vadd.f32 %v6155, %v6267
    %v6269 = vpop.f32.mrf.mxu0
    %v6270 = vadd.f32 %v6157, %v6269
    %v6271 = vpop.f32.mrf.mxu0
    %v6272 = vadd.f32 %v6159, %v6271
    %6273 = vdwg.mxu0
    %s6274 = scalar_lea.vmem [#allocation6], 768
    %v6275 = vld [vmem:[%s6274] sm:$0xff]
    %v6276 = vld [vmem:[%s6274 + $0x8] sm:$0xff]
    %v6277 = vld [vmem:[%s6274 + $0x10] sm:$0xff]
    %v6278 = vld [vmem:[%s6274 + $0x18] sm:$0xff]
    %v6279 = vld [vmem:[%s6274 + $0x20] sm:$0xff]
    %v6280 = vld [vmem:[%s6274 + $0x28] sm:$0xff]
    %v6281 = vld [vmem:[%s6274 + $0x30] sm:$0xff]
    %v6282 = vld [vmem:[%s6274 + $0x38] sm:$0xff]
    %v6283 = vld [vmem:[%s6274 + $0x40] sm:$0xff]
    %v6284 = vld [vmem:[%s6274 + $0x48] sm:$0xff]
    %v6285 = vld [vmem:[%s6274 + $0x50] sm:$0xff]
    %v6286 = vld [vmem:[%s6274 + $0x58] sm:$0xff]
    %v6287 = vld [vmem:[%s6274 + $0x60] sm:$0xff]
    %v6288 = vld [vmem:[%s6274 + $0x68] sm:$0xff]
    %v6289 = vld [vmem:[%s6274 + $0x70] sm:$0xff]
    %v6290 = vld [vmem:[%s6274 + $0x78] sm:$0xff]
    %v6291 = vld [vmem:[%s6274 + $0x80] sm:$0xff]
    %v6292 = vld [vmem:[%s6274 + $0x88] sm:$0xff]
    %v6293 = vld [vmem:[%s6274 + $0x90] sm:$0xff]
    %v6294 = vld [vmem:[%s6274 + $0x98] sm:$0xff]
    %v6295 = vld [vmem:[%s6274 + $0xa0] sm:$0xff]
    %v6296 = vld [vmem:[%s6274 + $0xa8] sm:$0xff]
    %v6297 = vld [vmem:[%s6274 + $0xb0] sm:$0xff]
    %v6298 = vld [vmem:[%s6274 + $0xb8] sm:$0xff]
    %v6299 = vld [vmem:[%s6274 + $0xc0] sm:$0xff]
    %v6300 = vld [vmem:[%s6274 + $0xc8] sm:$0xff]
    %v6301 = vld [vmem:[%s6274 + $0xd0] sm:$0xff]
    %v6302 = vld [vmem:[%s6274 + $0xd8] sm:$0xff]
    %v6303 = vld [vmem:[%s6274 + $0xe0] sm:$0xff]
    %v6304 = vld [vmem:[%s6274 + $0xe8] sm:$0xff]
    %v6305 = vld [vmem:[%s6274 + $0xf0] sm:$0xff]
    %v6306 = vld [vmem:[%s6274 + $0xf8] sm:$0xff]
    %v6307 = vld [vmem:[%s6274 + $0x100] sm:$0xff]
    %v6308 = vld [vmem:[%s6274 + $0x108] sm:$0xff]
    %v6309 = vld [vmem:[%s6274 + $0x110] sm:$0xff]
    %v6310 = vld [vmem:[%s6274 + $0x118] sm:$0xff]
    %v6311 = vld [vmem:[%s6274 + $0x120] sm:$0xff]
    %v6312 = vld [vmem:[%s6274 + $0x128] sm:$0xff]
    %v6313 = vld [vmem:[%s6274 + $0x130] sm:$0xff]
    %v6314 = vld [vmem:[%s6274 + $0x138] sm:$0xff]
    %v6315 = vld [vmem:[%s6274 + $0x140] sm:$0xff]
    %v6316 = vld [vmem:[%s6274 + $0x148] sm:$0xff]
    %v6317 = vld [vmem:[%s6274 + $0x150] sm:$0xff]
    %v6318 = vld [vmem:[%s6274 + $0x158] sm:$0xff]
    %v6319 = vld [vmem:[%s6274 + $0x160] sm:$0xff]
    %v6320 = vld [vmem:[%s6274 + $0x168] sm:$0xff]
    %v6321 = vld [vmem:[%s6274 + $0x170] sm:$0xff]
    %v6322 = vld [vmem:[%s6274 + $0x178] sm:$0xff]
    %v6323 = vld [vmem:[%s6274 + $0x180] sm:$0xff]
    %v6324 = vld [vmem:[%s6274 + $0x188] sm:$0xff]
    %v6325 = vld [vmem:[%s6274 + $0x190] sm:$0xff]
    %v6326 = vld [vmem:[%s6274 + $0x198] sm:$0xff]
    %v6327 = vld [vmem:[%s6274 + $0x1a0] sm:$0xff]
    %v6328 = vld [vmem:[%s6274 + $0x1a8] sm:$0xff]
    %v6329 = vld [vmem:[%s6274 + $0x1b0] sm:$0xff]
    %v6330 = vld [vmem:[%s6274 + $0x1b8] sm:$0xff]
    %v6331 = vld [vmem:[%s6274 + $0x1c0] sm:$0xff]
    %v6332 = vld [vmem:[%s6274 + $0x1c8] sm:$0xff]
    %v6333 = vld [vmem:[%s6274 + $0x1d0] sm:$0xff]
    %v6334 = vld [vmem:[%s6274 + $0x1d8] sm:$0xff]
    %v6335 = vld [vmem:[%s6274 + $0x1e0] sm:$0xff]
    %v6336 = vld [vmem:[%s6274 + $0x1e8] sm:$0xff]
    %v6337 = vld [vmem:[%s6274 + $0x1f0] sm:$0xff]
    %v6338 = vld [vmem:[%s6274 + $0x1f8] sm:$0xff]
    %v6339 = vld [vmem:[%s6274 + $0x200] sm:$0xff]
    %v6340 = vld [vmem:[%s6274 + $0x208] sm:$0xff]
    %v6341 = vld [vmem:[%s6274 + $0x210] sm:$0xff]
    %v6342 = vld [vmem:[%s6274 + $0x218] sm:$0xff]
    %v6343 = vld [vmem:[%s6274 + $0x220] sm:$0xff]
    %v6344 = vld [vmem:[%s6274 + $0x228] sm:$0xff]
    %v6345 = vld [vmem:[%s6274 + $0x230] sm:$0xff]
    %v6346 = vld [vmem:[%s6274 + $0x238] sm:$0xff]
    %v6347 = vld [vmem:[%s6274 + $0x240] sm:$0xff]
    %v6348 = vld [vmem:[%s6274 + $0x248] sm:$0xff]
    %v6349 = vld [vmem:[%s6274 + $0x250] sm:$0xff]
    %v6350 = vld [vmem:[%s6274 + $0x258] sm:$0xff]
    %v6351 = vld [vmem:[%s6274 + $0x260] sm:$0xff]
    %v6352 = vld [vmem:[%s6274 + $0x268] sm:$0xff]
    %v6353 = vld [vmem:[%s6274 + $0x270] sm:$0xff]
    %v6354 = vld [vmem:[%s6274 + $0x278] sm:$0xff]
    %v6355 = vld [vmem:[%s6274 + $0x280] sm:$0xff]
    %v6356 = vld [vmem:[%s6274 + $0x288] sm:$0xff]
    %v6357 = vld [vmem:[%s6274 + $0x290] sm:$0xff]
    %v6358 = vld [vmem:[%s6274 + $0x298] sm:$0xff]
    %v6359 = vld [vmem:[%s6274 + $0x2a0] sm:$0xff]
    %v6360 = vld [vmem:[%s6274 + $0x2a8] sm:$0xff]
    %v6361 = vld [vmem:[%s6274 + $0x2b0] sm:$0xff]
    %v6362 = vld [vmem:[%s6274 + $0x2b8] sm:$0xff]
    %v6363 = vld [vmem:[%s6274 + $0x2c0] sm:$0xff]
    %v6364 = vld [vmem:[%s6274 + $0x2c8] sm:$0xff]
    %v6365 = vld [vmem:[%s6274 + $0x2d0] sm:$0xff]
    %v6366 = vld [vmem:[%s6274 + $0x2d8] sm:$0xff]
    %v6367 = vld [vmem:[%s6274 + $0x2e0] sm:$0xff]
    %v6368 = vld [vmem:[%s6274 + $0x2e8] sm:$0xff]
    %v6369 = vld [vmem:[%s6274 + $0x2f0] sm:$0xff]
    %v6370 = vld [vmem:[%s6274 + $0x2f8] sm:$0xff]
    %v6467 = vunpack.c.l.b16 %v6275
    %v6468 = vunpack.c.h.b16 %v6275
    %v6469 = vunpack.c.l.b16 %v6276
    %v6470 = vunpack.c.h.b16 %v6276
    %v6471 = vunpack.c.l.b16 %v6277
    %v6472 = vunpack.c.h.b16 %v6277
    %v6473 = vunpack.c.l.b16 %v6278
    %v6474 = vunpack.c.h.b16 %v6278
    %v6475 = vunpack.c.l.b16 %v6279
    %v6476 = vunpack.c.h.b16 %v6279
    %v6477 = vunpack.c.l.b16 %v6280
    %v6478 = vunpack.c.h.b16 %v6280
    %v6479 = vunpack.c.l.b16 %v6281
    %v6480 = vunpack.c.h.b16 %v6281
    %v6481 = vunpack.c.l.b16 %v6282
    %v6482 = vunpack.c.h.b16 %v6282
    %v6483 = vunpack.c.l.b16 %v6283
    %v6484 = vunpack.c.h.b16 %v6283
    %v6485 = vunpack.c.l.b16 %v6284
    %v6486 = vunpack.c.h.b16 %v6284
    %v6487 = vunpack.c.l.b16 %v6285
    %v6488 = vunpack.c.h.b16 %v6285
    %v6489 = vunpack.c.l.b16 %v6286
    %v6490 = vunpack.c.h.b16 %v6286
    %v6491 = vunpack.c.l.b16 %v6287
    %v6492 = vunpack.c.h.b16 %v6287
    %v6493 = vunpack.c.l.b16 %v6288
    %v6494 = vunpack.c.h.b16 %v6288
    %v6495 = vunpack.c.l.b16 %v6289
    %v6496 = vunpack.c.h.b16 %v6289
    %v6497 = vunpack.c.l.b16 %v6290
    %v6498 = vunpack.c.h.b16 %v6290
    %v6499 = vunpack.c.l.b16 %v6291
    %v6500 = vunpack.c.h.b16 %v6291
    %v6501 = vunpack.c.l.b16 %v6292
    %v6502 = vunpack.c.h.b16 %v6292
    %v6503 = vunpack.c.l.b16 %v6293
    %v6504 = vunpack.c.h.b16 %v6293
    %v6505 = vunpack.c.l.b16 %v6294
    %v6506 = vunpack.c.h.b16 %v6294
    %v6507 = vunpack.c.l.b16 %v6295
    %v6508 = vunpack.c.h.b16 %v6295
    %v6509 = vunpack.c.l.b16 %v6296
    %v6510 = vunpack.c.h.b16 %v6296
    %v6511 = vunpack.c.l.b16 %v6297
    %v6512 = vunpack.c.h.b16 %v6297
    %v6513 = vunpack.c.l.b16 %v6298
    %v6514 = vunpack.c.h.b16 %v6298
    %v6515 = vunpack.c.l.b16 %v6299
    %v6516 = vunpack.c.h.b16 %v6299
    %v6517 = vunpack.c.l.b16 %v6300
    %v6518 = vunpack.c.h.b16 %v6300
    %v6519 = vunpack.c.l.b16 %v6301
    %v6520 = vunpack.c.h.b16 %v6301
    %v6521 = vunpack.c.l.b16 %v6302
    %v6522 = vunpack.c.h.b16 %v6302
    %v6523 = vunpack.c.l.b16 %v6303
    %v6524 = vunpack.c.h.b16 %v6303
    %v6525 = vunpack.c.l.b16 %v6304
    %v6526 = vunpack.c.h.b16 %v6304
    %v6527 = vunpack.c.l.b16 %v6305
    %v6528 = vunpack.c.h.b16 %v6305
    %v6529 = vunpack.c.l.b16 %v6306
    %v6530 = vunpack.c.h.b16 %v6306
    %v6531 = vunpack.c.l.b16 %v6307
    %v6532 = vunpack.c.h.b16 %v6307
    %v6533 = vunpack.c.l.b16 %v6308
    %v6534 = vunpack.c.h.b16 %v6308
    %v6535 = vunpack.c.l.b16 %v6309
    %v6536 = vunpack.c.h.b16 %v6309
    %v6537 = vunpack.c.l.b16 %v6310
    %v6538 = vunpack.c.h.b16 %v6310
    %v6539 = vunpack.c.l.b16 %v6311
    %v6540 = vunpack.c.h.b16 %v6311
    %v6541 = vunpack.c.l.b16 %v6312
    %v6542 = vunpack.c.h.b16 %v6312
    %v6543 = vunpack.c.l.b16 %v6313
    %v6544 = vunpack.c.h.b16 %v6313
    %v6545 = vunpack.c.l.b16 %v6314
    %v6546 = vunpack.c.h.b16 %v6314
    %v6547 = vunpack.c.l.b16 %v6315
    %v6548 = vunpack.c.h.b16 %v6315
    %v6549 = vunpack.c.l.b16 %v6316
    %v6550 = vunpack.c.h.b16 %v6316
    %v6551 = vunpack.c.l.b16 %v6317
    %v6552 = vunpack.c.h.b16 %v6317
    %v6553 = vunpack.c.l.b16 %v6318
    %v6554 = vunpack.c.h.b16 %v6318
    %v6555 = vunpack.c.l.b16 %v6319
    %v6556 = vunpack.c.h.b16 %v6319
    %v6557 = vunpack.c.l.b16 %v6320
    %v6558 = vunpack.c.h.b16 %v6320
    %v6559 = vunpack.c.l.b16 %v6321
    %v6560 = vunpack.c.h.b16 %v6321
    %v6561 = vunpack.c.l.b16 %v6322
    %v6562 = vunpack.c.h.b16 %v6322
    %v6563 = vunpack.c.l.b16 %v6323
    %v6564 = vunpack.c.h.b16 %v6323
    %v6565 = vunpack.c.l.b16 %v6324
    %v6566 = vunpack.c.h.b16 %v6324
    %v6567 = vunpack.c.l.b16 %v6325
    %v6568 = vunpack.c.h.b16 %v6325
    %v6569 = vunpack.c.l.b16 %v6326
    %v6570 = vunpack.c.h.b16 %v6326
    %v6571 = vunpack.c.l.b16 %v6327
    %v6572 = vunpack.c.h.b16 %v6327
    %v6573 = vunpack.c.l.b16 %v6328
    %v6574 = vunpack.c.h.b16 %v6328
    %v6575 = vunpack.c.l.b16 %v6329
    %v6576 = vunpack.c.h.b16 %v6329
    %v6577 = vunpack.c.l.b16 %v6330
    %v6578 = vunpack.c.h.b16 %v6330
    %v6579 = vunpack.c.l.b16 %v6331
    %v6580 = vunpack.c.h.b16 %v6331
    %v6581 = vunpack.c.l.b16 %v6332
    %v6582 = vunpack.c.h.b16 %v6332
    %v6583 = vunpack.c.l.b16 %v6333
    %v6584 = vunpack.c.h.b16 %v6333
    %v6585 = vunpack.c.l.b16 %v6334
    %v6586 = vunpack.c.h.b16 %v6334
    %v6587 = vunpack.c.l.b16 %v6335
    %v6588 = vunpack.c.h.b16 %v6335
    %v6589 = vunpack.c.l.b16 %v6336
    %v6590 = vunpack.c.h.b16 %v6336
    %v6591 = vunpack.c.l.b16 %v6337
    %v6592 = vunpack.c.h.b16 %v6337
    %v6593 = vunpack.c.l.b16 %v6338
    %v6594 = vunpack.c.h.b16 %v6338
    %v6595 = vunpack.c.l.b16 %v6339
    %v6596 = vunpack.c.h.b16 %v6339
    %v6597 = vunpack.c.l.b16 %v6340
    %v6598 = vunpack.c.h.b16 %v6340
    %v6599 = vunpack.c.l.b16 %v6341
    %v6600 = vunpack.c.h.b16 %v6341
    %v6601 = vunpack.c.l.b16 %v6342
    %v6602 = vunpack.c.h.b16 %v6342
    %v6603 = vunpack.c.l.b16 %v6343
    %v6604 = vunpack.c.h.b16 %v6343
    %v6605 = vunpack.c.l.b16 %v6344
    %v6606 = vunpack.c.h.b16 %v6344
    %v6607 = vunpack.c.l.b16 %v6345
    %v6608 = vunpack.c.h.b16 %v6345
    %v6609 = vunpack.c.l.b16 %v6346
    %v6610 = vunpack.c.h.b16 %v6346
    %v6611 = vunpack.c.l.b16 %v6347
    %v6612 = vunpack.c.h.b16 %v6347
    %v6613 = vunpack.c.l.b16 %v6348
    %v6614 = vunpack.c.h.b16 %v6348
    %v6615 = vunpack.c.l.b16 %v6349
    %v6616 = vunpack.c.h.b16 %v6349
    %v6617 = vunpack.c.l.b16 %v6350
    %v6618 = vunpack.c.h.b16 %v6350
    %v6619 = vunpack.c.l.b16 %v6351
    %v6620 = vunpack.c.h.b16 %v6351
    %v6621 = vunpack.c.l.b16 %v6352
    %v6622 = vunpack.c.h.b16 %v6352
    %v6623 = vunpack.c.l.b16 %v6353
    %v6624 = vunpack.c.h.b16 %v6353
    %v6625 = vunpack.c.l.b16 %v6354
    %v6626 = vunpack.c.h.b16 %v6354
    %v6627 = vunpack.c.l.b16 %v6355
    %v6628 = vunpack.c.h.b16 %v6355
    %v6629 = vunpack.c.l.b16 %v6356
    %v6630 = vunpack.c.h.b16 %v6356
    %v6631 = vunpack.c.l.b16 %v6357
    %v6632 = vunpack.c.h.b16 %v6357
    %v6633 = vunpack.c.l.b16 %v6358
    %v6634 = vunpack.c.h.b16 %v6358
    %v6635 = vunpack.c.l.b16 %v6359
    %v6636 = vunpack.c.h.b16 %v6359
    %v6637 = vunpack.c.l.b16 %v6360
    %v6638 = vunpack.c.h.b16 %v6360
    %v6639 = vunpack.c.l.b16 %v6361
    %v6640 = vunpack.c.h.b16 %v6361
    %v6641 = vunpack.c.l.b16 %v6362
    %v6642 = vunpack.c.h.b16 %v6362
    %v6643 = vunpack.c.l.b16 %v6363
    %v6644 = vunpack.c.h.b16 %v6363
    %v6645 = vunpack.c.l.b16 %v6364
    %v6646 = vunpack.c.h.b16 %v6364
    %v6647 = vunpack.c.l.b16 %v6365
    %v6648 = vunpack.c.h.b16 %v6365
    %v6649 = vunpack.c.l.b16 %v6366
    %v6650 = vunpack.c.h.b16 %v6366
    %v6651 = vunpack.c.l.b16 %v6367
    %v6652 = vunpack.c.h.b16 %v6367
    %v6653 = vunpack.c.l.b16 %v6368
    %v6654 = vunpack.c.h.b16 %v6368
    %v6655 = vunpack.c.l.b16 %v6369
    %v6656 = vunpack.c.h.b16 %v6369
    %v6657 = vunpack.c.l.b16 %v6370
    %v6658 = vunpack.c.h.b16 %v6370
    %v6659 = vpack.c.b16 %v6471, %v6467
    %v6660 = vpack.c.b16 %v6472, %v6468
    %v6661 = vpack.c.b16 %v6473, %v6469
    %v6662 = vpack.c.b16 %v6474, %v6470
    %v6663 = vpack.c.b16 %v6479, %v6475
    %v6664 = vpack.c.b16 %v6480, %v6476
    %v6665 = vpack.c.b16 %v6481, %v6477
    %v6666 = vpack.c.b16 %v6482, %v6478
    %v6667 = vpack.c.b16 %v6487, %v6483
    %v6668 = vpack.c.b16 %v6488, %v6484
    %v6669 = vpack.c.b16 %v6489, %v6485
    %v6670 = vpack.c.b16 %v6490, %v6486
    %v6671 = vpack.c.b16 %v6495, %v6491
    %v6672 = vpack.c.b16 %v6496, %v6492
    %v6673 = vpack.c.b16 %v6497, %v6493
    %v6674 = vpack.c.b16 %v6498, %v6494
    %v6675 = vpack.c.b16 %v6503, %v6499
    %v6676 = vpack.c.b16 %v6504, %v6500
    %v6677 = vpack.c.b16 %v6505, %v6501
    %v6678 = vpack.c.b16 %v6506, %v6502
    %v6679 = vpack.c.b16 %v6511, %v6507
    %v6680 = vpack.c.b16 %v6512, %v6508
    %v6681 = vpack.c.b16 %v6513, %v6509
    %v6682 = vpack.c.b16 %v6514, %v6510
    %v6683 = vpack.c.b16 %v6519, %v6515
    %v6684 = vpack.c.b16 %v6520, %v6516
    %v6685 = vpack.c.b16 %v6521, %v6517
    %v6686 = vpack.c.b16 %v6522, %v6518
    %v6687 = vpack.c.b16 %v6527, %v6523
    %v6688 = vpack.c.b16 %v6528, %v6524
    %v6689 = vpack.c.b16 %v6529, %v6525
    %v6690 = vpack.c.b16 %v6530, %v6526
    %v6691 = vpack.c.b16 %v6535, %v6531
    %v6692 = vpack.c.b16 %v6536, %v6532
    %v6693 = vpack.c.b16 %v6537, %v6533
    %v6694 = vpack.c.b16 %v6538, %v6534
    %v6695 = vpack.c.b16 %v6543, %v6539
    %v6696 = vpack.c.b16 %v6544, %v6540
    %v6697 = vpack.c.b16 %v6545, %v6541
    %v6698 = vpack.c.b16 %v6546, %v6542
    %v6699 = vpack.c.b16 %v6551, %v6547
    %v6700 = vpack.c.b16 %v6552, %v6548
    %v6701 = vpack.c.b16 %v6553, %v6549
    %v6702 = vpack.c.b16 %v6554, %v6550
    %v6703 = vpack.c.b16 %v6559, %v6555
    %v6704 = vpack.c.b16 %v6560, %v6556
    %v6705 = vpack.c.b16 %v6561, %v6557
    %v6706 = vpack.c.b16 %v6562, %v6558
    %v6707 = vpack.c.b16 %v6567, %v6563
    %v6708 = vpack.c.b16 %v6568, %v6564
    %v6709 = vpack.c.b16 %v6569, %v6565
    %v6710 = vpack.c.b16 %v6570, %v6566
    %v6711 = vpack.c.b16 %v6575, %v6571
    %v6712 = vpack.c.b16 %v6576, %v6572
    %v6713 = vpack.c.b16 %v6577, %v6573
    %v6714 = vpack.c.b16 %v6578, %v6574
    %v6715 = vpack.c.b16 %v6583, %v6579
    %v6716 = vpack.c.b16 %v6584, %v6580
    %v6717 = vpack.c.b16 %v6585, %v6581
    %v6718 = vpack.c.b16 %v6586, %v6582
    %v6719 = vpack.c.b16 %v6591, %v6587
    %v6720 = vpack.c.b16 %v6592, %v6588
    %v6721 = vpack.c.b16 %v6593, %v6589
    %v6722 = vpack.c.b16 %v6594, %v6590
    %v6723 = vpack.c.b16 %v6599, %v6595
    %v6724 = vpack.c.b16 %v6600, %v6596
    %v6725 = vpack.c.b16 %v6601, %v6597
    %v6726 = vpack.c.b16 %v6602, %v6598
    %v6727 = vpack.c.b16 %v6607, %v6603
    %v6728 = vpack.c.b16 %v6608, %v6604
    %v6729 = vpack.c.b16 %v6609, %v6605
    %v6730 = vpack.c.b16 %v6610, %v6606
    %v6731 = vpack.c.b16 %v6615, %v6611
    %v6732 = vpack.c.b16 %v6616, %v6612
    %v6733 = vpack.c.b16 %v6617, %v6613
    %v6734 = vpack.c.b16 %v6618, %v6614
    %v6735 = vpack.c.b16 %v6623, %v6619
    %v6736 = vpack.c.b16 %v6624, %v6620
    %v6737 = vpack.c.b16 %v6625, %v6621
    %v6738 = vpack.c.b16 %v6626, %v6622
    %v6739 = vpack.c.b16 %v6631, %v6627
    %v6740 = vpack.c.b16 %v6632, %v6628
    %v6741 = vpack.c.b16 %v6633, %v6629
    %v6742 = vpack.c.b16 %v6634, %v6630
    %v6743 = vpack.c.b16 %v6639, %v6635
    %v6744 = vpack.c.b16 %v6640, %v6636
    %v6745 = vpack.c.b16 %v6641, %v6637
    %v6746 = vpack.c.b16 %v6642, %v6638
    %v6747 = vpack.c.b16 %v6647, %v6643
    %v6748 = vpack.c.b16 %v6648, %v6644
    %v6749 = vpack.c.b16 %v6649, %v6645
    %v6750 = vpack.c.b16 %v6650, %v6646
    %v6751 = vpack.c.b16 %v6655, %v6651
    %v6752 = vpack.c.b16 %v6656, %v6652
    %v6753 = vpack.c.b16 %v6657, %v6653
    %v6754 = vpack.c.b16 %v6658, %v6654
    %6851 = vmatprep.subr.bf16.mxu0 %v6688
    %6852 = vmatpush1.bf16.msra.mxu0 %v6687
    %6853 = vmatprep.subr.bf16.mxu0 %v6684
    %6854 = vmatpush1.bf16.msra.mxu0 %v6683
    %6855 = vmatprep.subr.bf16.mxu0 %v6680
    %6856 = vmatpush1.bf16.msra.mxu0 %v6679
    %6857 = vmatprep.subr.bf16.mxu0 %v6676
    %6858 = vmatpush1.bf16.msra.mxu0 %v6675
    %6859 = vmatprep.subr.bf16.mxu0 %v6672
    %6860 = vmatpush1.bf16.msra.mxu0 %v6671
    %6861 = vmatprep.subr.bf16.mxu0 %v6668
    %6862 = vmatpush1.bf16.msra.mxu0 %v6667
    %6863 = vmatprep.subr.bf16.mxu0 %v6664
    %6864 = vmatpush1.bf16.msra.mxu0 %v6663
    %6865 = vmatprep.subr.bf16.mxu0 %v6660
    %6866 = vmatpush1.bf16.msra.mxu0 %v6659
    %6867 = vmatprep.subr.bf16.mxu0 %v6720
    %6868 = vmatpush2.bf16.msra.mxu0 %v6719
    %6869 = vmatprep.subr.bf16.mxu0 %v6716
    %6870 = vmatpush2.bf16.msra.mxu0 %v6715
    %6871 = vmatprep.subr.bf16.mxu0 %v6712
    %6872 = vmatpush2.bf16.msra.mxu0 %v6711
    %6873 = vmatprep.subr.bf16.mxu0 %v6708
    %6874 = vmatpush2.bf16.msra.mxu0 %v6707
    %6875 = vmatprep.subr.bf16.mxu0 %v6704
    %6876 = vmatpush2.bf16.msra.mxu0 %v6703
    %6877 = vmatprep.subr.bf16.mxu0 %v6700
    %6878 = vmatpush2.bf16.msra.mxu0 %v6699
    %6879 = vmatprep.subr.bf16.mxu0 %v6696
    %6880 = vmatpush2.bf16.msra.mxu0 %v6695
    %6881 = vmatprep.subr.bf16.mxu0 %v6692
    %6882 = vmatpush2.bf16.msra.mxu0 %v6691
    %6883 = vmatprep.mubr.bf16.mxu0 %v5307
    %6884 = vmatmul.mubr.bf16.gmra.mxu0 %v5306
    %v6885 = vpop.f32.mrf.mxu0
    %v6886 = vadd.f32 0.0, %v6885
    %v6887 = vpop.f32.mrf.mxu0
    %v6888 = vadd.f32 0.0, %v6887
    %v6889 = vpop.f32.mrf.mxu0
    %v6890 = vadd.f32 0.0, %v6889
    %v6891 = vpop.f32.mrf.mxu0
    %v6892 = vadd.f32 0.0, %v6891
    %6893 = vmatprep.mubr.bf16.mxu0 %v5310
    %6894 = vmatmul.mubr.bf16.gmra.mxu0 %v5309
    %v6895 = vpop.f32.mrf.mxu0
    %v6896 = vadd.f32 0.0, %v6895
    %v6897 = vpop.f32.mrf.mxu0
    %v6898 = vadd.f32 0.0, %v6897
    %v6899 = vpop.f32.mrf.mxu0
    %v6900 = vadd.f32 0.0, %v6899
    %v6901 = vpop.f32.mrf.mxu0
    %v6902 = vadd.f32 0.0, %v6901
    %6903 = vmatprep.mubr.bf16.mxu0 %v5313
    %6904 = vmatmul.mubr.bf16.gmra.mxu0 %v5312
    %v6905 = vpop.f32.mrf.mxu0
    %v6906 = vadd.f32 0.0, %v6905
    %v6907 = vpop.f32.mrf.mxu0
    %v6908 = vadd.f32 0.0, %v6907
    %v6909 = vpop.f32.mrf.mxu0
    %v6910 = vadd.f32 0.0, %v6909
    %v6911 = vpop.f32.mrf.mxu0
    %v6912 = vadd.f32 0.0, %v6911
    %6913 = vmatprep.mubr.bf16.mxu0 %v5316
    %6914 = vmatmul.mubr.bf16.gmra.mxu0 %v5315
    %v6915 = vpop.f32.mrf.mxu0
    %v6916 = vadd.f32 0.0, %v6915
    %v6917 = vpop.f32.mrf.mxu0
    %v6918 = vadd.f32 0.0, %v6917
    %v6919 = vpop.f32.mrf.mxu0
    %v6920 = vadd.f32 0.0, %v6919
    %v6921 = vpop.f32.mrf.mxu0
    %v6922 = vadd.f32 0.0, %v6921
    %6923 = vmatprep.mubr.bf16.mxu0 %v5295
    %6924 = vmatmul.mubr.bf16.gmra.mxu0 %v5294
    %v6925 = vpop.f32.mrf.mxu0
    %v6926 = vadd.f32 0.0, %v6925
    %v6927 = vpop.f32.mrf.mxu0
    %v6928 = vadd.f32 0.0, %v6927
    %v6929 = vpop.f32.mrf.mxu0
    %v6930 = vadd.f32 0.0, %v6929
    %v6931 = vpop.f32.mrf.mxu0
    %v6932 = vadd.f32 0.0, %v6931
    %6933 = vmatprep.mubr.bf16.mxu0 %v5298
    %6934 = vmatmul.mubr.bf16.gmra.mxu0 %v5297
    %v6935 = vpop.f32.mrf.mxu0
    %v6936 = vadd.f32 0.0, %v6935
    %v6937 = vpop.f32.mrf.mxu0
    %v6938 = vadd.f32 0.0, %v6937
    %v6939 = vpop.f32.mrf.mxu0
    %v6940 = vadd.f32 0.0, %v6939
    %v6941 = vpop.f32.mrf.mxu0
    %v6942 = vadd.f32 0.0, %v6941
    %6943 = vmatprep.mubr.bf16.mxu0 %v5301
    %6944 = vmatmul.mubr.bf16.gmra.mxu0 %v5300
    %v6945 = vpop.f32.mrf.mxu0
    %v6946 = vadd.f32 0.0, %v6945
    %v6947 = vpop.f32.mrf.mxu0
    %v6948 = vadd.f32 0.0, %v6947
    %v6949 = vpop.f32.mrf.mxu0
    %v6950 = vadd.f32 0.0, %v6949
    %v6951 = vpop.f32.mrf.mxu0
    %v6952 = vadd.f32 0.0, %v6951
    %6953 = vmatprep.mubr.bf16.mxu0 %v5304
    %6954 = vmatmul.mubr.bf16.gmra.mxu0 %v5303
    %v6955 = vpop.f32.mrf.mxu0
    %v6956 = vadd.f32 0.0, %v6955
    %v6957 = vpop.f32.mrf.mxu0
    %v6958 = vadd.f32 0.0, %v6957
    %v6959 = vpop.f32.mrf.mxu0
    %v6960 = vadd.f32 0.0, %v6959
    %v6961 = vpop.f32.mrf.mxu0
    %v6962 = vadd.f32 0.0, %v6961
    %6963 = vdwg.mxu0
    %6964 = vmatprep.subr.bf16.mxu0 %v6752
    %6965 = vmatpush1.bf16.msra.mxu0 %v6751
    %6966 = vmatprep.subr.bf16.mxu0 %v6748
    %6967 = vmatpush1.bf16.msra.mxu0 %v6747
    %6968 = vmatprep.subr.bf16.mxu0 %v6744
    %6969 = vmatpush1.bf16.msra.mxu0 %v6743
    %6970 = vmatprep.subr.bf16.mxu0 %v6740
    %6971 = vmatpush1.bf16.msra.mxu0 %v6739
    %6972 = vmatprep.subr.bf16.mxu0 %v6736
    %6973 = vmatpush1.bf16.msra.mxu0 %v6735
    %6974 = vmatprep.subr.bf16.mxu0 %v6732
    %6975 = vmatpush1.bf16.msra.mxu0 %v6731
    %6976 = vmatprep.subr.bf16.mxu0 %v6728
    %6977 = vmatpush1.bf16.msra.mxu0 %v6727
    %6978 = vmatprep.subr.bf16.mxu0 %v6724
    %6979 = vmatpush1.bf16.msra.mxu0 %v6723
    %6980 = vmatprep.subr.bf16.mxu0 0
    %6981 = vmatpush2.bf16.msra.mxu0 0
    %6982 = vmatprep.subr.bf16.mxu0 0
    %6983 = vmatpush2.bf16.msra.mxu0 0
    %6984 = vmatprep.subr.bf16.mxu0 0
    %6985 = vmatpush2.bf16.msra.mxu0 0
    %6986 = vmatprep.subr.bf16.mxu0 0
    %6987 = vmatpush2.bf16.msra.mxu0 0
    %6988 = vmatprep.subr.bf16.mxu0 0
    %6989 = vmatpush2.bf16.msra.mxu0 0
    %6990 = vmatprep.subr.bf16.mxu0 0
    %6991 = vmatpush2.bf16.msra.mxu0 0
    %6992 = vmatprep.subr.bf16.mxu0 0
    %6993 = vmatpush2.bf16.msra.mxu0 0
    %6994 = vmatprep.subr.bf16.mxu0 0
    %6995 = vmatpush2.bf16.msra.mxu0 0
    %6996 = vmatprep.mubr.bf16.mxu0 0
    %6997 = vmatmul.mubr.bf16.gmra.mxu0 %v5308
    %v6998 = vpop.f32.mrf.mxu0
    %v6999 = vadd.f32 %v6886, %v6998
    %v7000 = vpop.f32.mrf.mxu0
    %v7001 = vadd.f32 %v6888, %v7000
    %v7002 = vpop.f32.mrf.mxu0
    %v7003 = vadd.f32 %v6890, %v7002
    %v7004 = vpop.f32.mrf.mxu0
    %v7005 = vadd.f32 %v6892, %v7004
    %7006 = vmatprep.mubr.bf16.mxu0 0
    %7007 = vmatmul.mubr.bf16.gmra.mxu0 %v5311
    %v7008 = vpop.f32.mrf.mxu0
    %v7009 = vadd.f32 %v6896, %v7008
    %v7010 = vpop.f32.mrf.mxu0
    %v7011 = vadd.f32 %v6898, %v7010
    %v7012 = vpop.f32.mrf.mxu0
    %v7013 = vadd.f32 %v6900, %v7012
    %v7014 = vpop.f32.mrf.mxu0
    %v7015 = vadd.f32 %v6902, %v7014
    %7016 = vmatprep.mubr.bf16.mxu0 0
    %7017 = vmatmul.mubr.bf16.gmra.mxu0 %v5314
    %v7018 = vpop.f32.mrf.mxu0
    %v7019 = vadd.f32 %v6906, %v7018
    %v7020 = vpop.f32.mrf.mxu0
    %v7021 = vadd.f32 %v6908, %v7020
    %v7022 = vpop.f32.mrf.mxu0
    %v7023 = vadd.f32 %v6910, %v7022
    %v7024 = vpop.f32.mrf.mxu0
    %v7025 = vadd.f32 %v6912, %v7024
    %7026 = vmatprep.mubr.bf16.mxu0 0
    %7027 = vmatmul.mubr.bf16.gmra.mxu0 %v5317
    %v7028 = vpop.f32.mrf.mxu0
    %v7029 = vadd.f32 %v6916, %v7028
    %v7030 = vpop.f32.mrf.mxu0
    %v7031 = vadd.f32 %v6918, %v7030
    %v7032 = vpop.f32.mrf.mxu0
    %v7033 = vadd.f32 %v6920, %v7032
    %v7034 = vpop.f32.mrf.mxu0
    %v7035 = vadd.f32 %v6922, %v7034
    %7036 = vmatprep.mubr.bf16.mxu0 0
    %7037 = vmatmul.mubr.bf16.gmra.mxu0 %v5296
    %v7038 = vpop.f32.mrf.mxu0
    %v7039 = vadd.f32 %v6926, %v7038
    %v7040 = vpop.f32.mrf.mxu0
    %v7041 = vadd.f32 %v6928, %v7040
    %v7042 = vpop.f32.mrf.mxu0
    %v7043 = vadd.f32 %v6930, %v7042
    %v7044 = vpop.f32.mrf.mxu0
    %v7045 = vadd.f32 %v6932, %v7044
    %7046 = vmatprep.mubr.bf16.mxu0 0
    %7047 = vmatmul.mubr.bf16.gmra.mxu0 %v5299
    %v7048 = vpop.f32.mrf.mxu0
    %v7049 = vadd.f32 %v6936, %v7048
    %v7050 = vpop.f32.mrf.mxu0
    %v7051 = vadd.f32 %v6938, %v7050
    %v7052 = vpop.f32.mrf.mxu0
    %v7053 = vadd.f32 %v6940, %v7052
    %v7054 = vpop.f32.mrf.mxu0
    %v7055 = vadd.f32 %v6942, %v7054
    %7056 = vmatprep.mubr.bf16.mxu0 0
    %7057 = vmatmul.mubr.bf16.gmra.mxu0 %v5302
    %v7058 = vpop.f32.mrf.mxu0
    %v7059 = vadd.f32 %v6946, %v7058
    %v7060 = vpop.f32.mrf.mxu0
    %v7061 = vadd.f32 %v6948, %v7060
    %v7062 = vpop.f32.mrf.mxu0
    %v7063 = vadd.f32 %v6950, %v7062
    %v7064 = vpop.f32.mrf.mxu0
    %v7065 = vadd.f32 %v6952, %v7064
    %7066 = vmatprep.mubr.bf16.mxu0 0
    %7067 = vmatmul.mubr.bf16.gmra.mxu0 %v5305
    %v7068 = vpop.f32.mrf.mxu0
    %v7069 = vadd.f32 %v6956, %v7068
    %v7070 = vpop.f32.mrf.mxu0
    %v7071 = vadd.f32 %v6958, %v7070
    %v7072 = vpop.f32.mrf.mxu0
    %v7073 = vadd.f32 %v6960, %v7072
    %v7074 = vpop.f32.mrf.mxu0
    %v7075 = vadd.f32 %v6962, %v7074
    %7076 = vdwg.mxu0
    %7077 = vmatprep.subr.bf16.mxu0 %v6690
    %7078 = vmatpush1.bf16.msra.mxu0 %v6689
    %7079 = vmatprep.subr.bf16.mxu0 %v6686
    %7080 = vmatpush1.bf16.msra.mxu0 %v6685
    %7081 = vmatprep.subr.bf16.mxu0 %v6682
    %7082 = vmatpush1.bf16.msra.mxu0 %v6681
    %7083 = vmatprep.subr.bf16.mxu0 %v6678
    %7084 = vmatpush1.bf16.msra.mxu0 %v6677
    %7085 = vmatprep.subr.bf16.mxu0 %v6674
    %7086 = vmatpush1.bf16.msra.mxu0 %v6673
    %7087 = vmatprep.subr.bf16.mxu0 %v6670
    %7088 = vmatpush1.bf16.msra.mxu0 %v6669
    %7089 = vmatprep.subr.bf16.mxu0 %v6666
    %7090 = vmatpush1.bf16.msra.mxu0 %v6665
    %7091 = vmatprep.subr.bf16.mxu0 %v6662
    %7092 = vmatpush1.bf16.msra.mxu0 %v6661
    %7093 = vmatprep.subr.bf16.mxu0 %v6722
    %7094 = vmatpush2.bf16.msra.mxu0 %v6721
    %7095 = vmatprep.subr.bf16.mxu0 %v6718
    %7096 = vmatpush2.bf16.msra.mxu0 %v6717
    %7097 = vmatprep.subr.bf16.mxu0 %v6714
    %7098 = vmatpush2.bf16.msra.mxu0 %v6713
    %7099 = vmatprep.subr.bf16.mxu0 %v6710
    %7100 = vmatpush2.bf16.msra.mxu0 %v6709
    %7101 = vmatprep.subr.bf16.mxu0 %v6706
    %7102 = vmatpush2.bf16.msra.mxu0 %v6705
    %7103 = vmatprep.subr.bf16.mxu0 %v6702
    %7104 = vmatpush2.bf16.msra.mxu0 %v6701
    %7105 = vmatprep.subr.bf16.mxu0 %v6698
    %7106 = vmatpush2.bf16.msra.mxu0 %v6697
    %7107 = vmatprep.subr.bf16.mxu0 %v6694
    %7108 = vmatpush2.bf16.msra.mxu0 %v6693
    %7109 = vmatprep.mubr.bf16.mxu0 %v5307
    %7110 = vmatmul.mubr.bf16.gmra.mxu0 %v5306
    %v7111 = vpop.f32.mrf.mxu0
    %v7112 = vadd.f32 0.0, %v7111
    %v7113 = vpop.f32.mrf.mxu0
    %v7114 = vadd.f32 0.0, %v7113
    %v7115 = vpop.f32.mrf.mxu0
    %v7116 = vadd.f32 0.0, %v7115
    %v7117 = vpop.f32.mrf.mxu0
    %v7118 = vadd.f32 0.0, %v7117
    %7119 = vmatprep.mubr.bf16.mxu0 %v5310
    %7120 = vmatmul.mubr.bf16.gmra.mxu0 %v5309
    %v7121 = vpop.f32.mrf.mxu0
    %v7122 = vadd.f32 0.0, %v7121
    %v7123 = vpop.f32.mrf.mxu0
    %v7124 = vadd.f32 0.0, %v7123
    %v7125 = vpop.f32.mrf.mxu0
    %v7126 = vadd.f32 0.0, %v7125
    %v7127 = vpop.f32.mrf.mxu0
    %v7128 = vadd.f32 0.0, %v7127
    %7129 = vmatprep.mubr.bf16.mxu0 %v5313
    %7130 = vmatmul.mubr.bf16.gmra.mxu0 %v5312
    %v7131 = vpop.f32.mrf.mxu0
    %v7132 = vadd.f32 0.0, %v7131
    %v7133 = vpop.f32.mrf.mxu0
    %v7134 = vadd.f32 0.0, %v7133
    %v7135 = vpop.f32.mrf.mxu0
    %v7136 = vadd.f32 0.0, %v7135
    %v7137 = vpop.f32.mrf.mxu0
    %v7138 = vadd.f32 0.0, %v7137
    %7139 = vmatprep.mubr.bf16.mxu0 %v5316
    %7140 = vmatmul.mubr.bf16.gmra.mxu0 %v5315
    %v7141 = vpop.f32.mrf.mxu0
    %v7142 = vadd.f32 0.0, %v7141
    %v7143 = vpop.f32.mrf.mxu0
    %v7144 = vadd.f32 0.0, %v7143
    %v7145 = vpop.f32.mrf.mxu0
    %v7146 = vadd.f32 0.0, %v7145
    %v7147 = vpop.f32.mrf.mxu0
    %v7148 = vadd.f32 0.0, %v7147
    %7149 = vmatprep.mubr.bf16.mxu0 %v5295
    %7150 = vmatmul.mubr.bf16.gmra.mxu0 %v5294
    %v7151 = vpop.f32.mrf.mxu0
    %v7152 = vadd.f32 0.0, %v7151
    %v7153 = vpop.f32.mrf.mxu0
    %v7154 = vadd.f32 0.0, %v7153
    %v7155 = vpop.f32.mrf.mxu0
    %v7156 = vadd.f32 0.0, %v7155
    %v7157 = vpop.f32.mrf.mxu0
    %v7158 = vadd.f32 0.0, %v7157
    %7159 = vmatprep.mubr.bf16.mxu0 %v5298
    %7160 = vmatmul.mubr.bf16.gmra.mxu0 %v5297
    %v7161 = vpop.f32.mrf.mxu0
    %v7162 = vadd.f32 0.0, %v7161
    %v7163 = vpop.f32.mrf.mxu0
    %v7164 = vadd.f32 0.0, %v7163
    %v7165 = vpop.f32.mrf.mxu0
    %v7166 = vadd.f32 0.0, %v7165
    %v7167 = vpop.f32.mrf.mxu0
    %v7168 = vadd.f32 0.0, %v7167
    %7169 = vmatprep.mubr.bf16.mxu0 %v5301
    %7170 = vmatmul.mubr.bf16.gmra.mxu0 %v5300
    %v7171 = vpop.f32.mrf.mxu0
    %v7172 = vadd.f32 0.0, %v7171
    %v7173 = vpop.f32.mrf.mxu0
    %v7174 = vadd.f32 0.0, %v7173
    %v7175 = vpop.f32.mrf.mxu0
    %v7176 = vadd.f32 0.0, %v7175
    %v7177 = vpop.f32.mrf.mxu0
    %v7178 = vadd.f32 0.0, %v7177
    %7179 = vmatprep.mubr.bf16.mxu0 %v5304
    %7180 = vmatmul.mubr.bf16.gmra.mxu0 %v5303
    %v7181 = vpop.f32.mrf.mxu0
    %v7182 = vadd.f32 0.0, %v7181
    %v7183 = vpop.f32.mrf.mxu0
    %v7184 = vadd.f32 0.0, %v7183
    %v7185 = vpop.f32.mrf.mxu0
    %v7186 = vadd.f32 0.0, %v7185
    %v7187 = vpop.f32.mrf.mxu0
    %v7188 = vadd.f32 0.0, %v7187
    %7189 = vdwg.mxu0
    %7190 = vmatprep.subr.bf16.mxu0 %v6754
    %7191 = vmatpush1.bf16.msra.mxu0 %v6753
    %7192 = vmatprep.subr.bf16.mxu0 %v6750
    %7193 = vmatpush1.bf16.msra.mxu0 %v6749
    %7194 = vmatprep.subr.bf16.mxu0 %v6746
    %7195 = vmatpush1.bf16.msra.mxu0 %v6745
    %7196 = vmatprep.subr.bf16.mxu0 %v6742
    %7197 = vmatpush1.bf16.msra.mxu0 %v6741
    %7198 = vmatprep.subr.bf16.mxu0 %v6738
    %7199 = vmatpush1.bf16.msra.mxu0 %v6737
    %7200 = vmatprep.subr.bf16.mxu0 %v6734
    %7201 = vmatpush1.bf16.msra.mxu0 %v6733
    %7202 = vmatprep.subr.bf16.mxu0 %v6730
    %7203 = vmatpush1.bf16.msra.mxu0 %v6729
    %7204 = vmatprep.subr.bf16.mxu0 %v6726
    %7205 = vmatpush1.bf16.msra.mxu0 %v6725
    %7206 = vmatprep.subr.bf16.mxu0 0
    %7207 = vmatpush2.bf16.msra.mxu0 0
    %7208 = vmatprep.subr.bf16.mxu0 0
    %7209 = vmatpush2.bf16.msra.mxu0 0
    %7210 = vmatprep.subr.bf16.mxu0 0
    %7211 = vmatpush2.bf16.msra.mxu0 0
    %7212 = vmatprep.subr.bf16.mxu0 0
    %7213 = vmatpush2.bf16.msra.mxu0 0
    %7214 = vmatprep.subr.bf16.mxu0 0
    %7215 = vmatpush2.bf16.msra.mxu0 0
    %7216 = vmatprep.subr.bf16.mxu0 0
    %7217 = vmatpush2.bf16.msra.mxu0 0
    %7218 = vmatprep.subr.bf16.mxu0 0
    %7219 = vmatpush2.bf16.msra.mxu0 0
    %7220 = vmatprep.subr.bf16.mxu0 0
    %7221 = vmatpush2.bf16.msra.mxu0 0
    %7222 = vmatprep.mubr.bf16.mxu0 0
    %7223 = vmatmul.mubr.bf16.gmra.mxu0 %v5308
    %v7224 = vpop.f32.mrf.mxu0
    %v7225 = vadd.f32 %v7112, %v7224
    %v7226 = vpop.f32.mrf.mxu0
    %v7227 = vadd.f32 %v7114, %v7226
    %v7228 = vpop.f32.mrf.mxu0
    %v7229 = vadd.f32 %v7116, %v7228
    %v7230 = vpop.f32.mrf.mxu0
    %v7231 = vadd.f32 %v7118, %v7230
    %7232 = vmatprep.mubr.bf16.mxu0 0
    %7233 = vmatmul.mubr.bf16.gmra.mxu0 %v5311
    %v7234 = vpop.f32.mrf.mxu0
    %v7235 = vadd.f32 %v7122, %v7234
    %v7236 = vpop.f32.mrf.mxu0
    %v7237 = vadd.f32 %v7124, %v7236
    %v7238 = vpop.f32.mrf.mxu0
    %v7239 = vadd.f32 %v7126, %v7238
    %v7240 = vpop.f32.mrf.mxu0
    %v7241 = vadd.f32 %v7128, %v7240
    %7242 = vmatprep.mubr.bf16.mxu0 0
    %7243 = vmatmul.mubr.bf16.gmra.mxu0 %v5314
    %v7244 = vpop.f32.mrf.mxu0
    %v7245 = vadd.f32 %v7132, %v7244
    %v7246 = vpop.f32.mrf.mxu0
    %v7247 = vadd.f32 %v7134, %v7246
    %v7248 = vpop.f32.mrf.mxu0
    %v7249 = vadd.f32 %v7136, %v7248
    %v7250 = vpop.f32.mrf.mxu0
    %v7251 = vadd.f32 %v7138, %v7250
    %7252 = vmatprep.mubr.bf16.mxu0 0
    %7253 = vmatmul.mubr.bf16.gmra.mxu0 %v5317
    %v7254 = vpop.f32.mrf.mxu0
    %v7255 = vadd.f32 %v7142, %v7254
    %v7256 = vpop.f32.mrf.mxu0
    %v7257 = vadd.f32 %v7144, %v7256
    %v7258 = vpop.f32.mrf.mxu0
    %v7259 = vadd.f32 %v7146, %v7258
    %v7260 = vpop.f32.mrf.mxu0
    %v7261 = vadd.f32 %v7148, %v7260
    %7262 = vmatprep.mubr.bf16.mxu0 0
    %7263 = vmatmul.mubr.bf16.gmra.mxu0 %v5296
    %v7264 = vpop.f32.mrf.mxu0
    %v7265 = vadd.f32 %v7152, %v7264
    %v7266 = vpop.f32.mrf.mxu0
    %v7267 = vadd.f32 %v7154, %v7266
    %v7268 = vpop.f32.mrf.mxu0
    %v7269 = vadd.f32 %v7156, %v7268
    %v7270 = vpop.f32.mrf.mxu0
    %v7271 = vadd.f32 %v7158, %v7270
    %7272 = vmatprep.mubr.bf16.mxu0 0
    %7273 = vmatmul.mubr.bf16.gmra.mxu0 %v5299
    %v7274 = vpop.f32.mrf.mxu0
    %v7275 = vadd.f32 %v7162, %v7274
    %v7276 = vpop.f32.mrf.mxu0
    %v7277 = vadd.f32 %v7164, %v7276
    %v7278 = vpop.f32.mrf.mxu0
    %v7279 = vadd.f32 %v7166, %v7278
    %v7280 = vpop.f32.mrf.mxu0
    %v7281 = vadd.f32 %v7168, %v7280
    %7282 = vmatprep.mubr.bf16.mxu0 0
    %7283 = vmatmul.mubr.bf16.gmra.mxu0 %v5302
    %v7284 = vpop.f32.mrf.mxu0
    %v7285 = vadd.f32 %v7172, %v7284
    %v7286 = vpop.f32.mrf.mxu0
    %v7287 = vadd.f32 %v7174, %v7286
    %v7288 = vpop.f32.mrf.mxu0
    %v7289 = vadd.f32 %v7176, %v7288
    %v7290 = vpop.f32.mrf.mxu0
    %v7291 = vadd.f32 %v7178, %v7290
    %7292 = vmatprep.mubr.bf16.mxu0 0
    %7293 = vmatmul.mubr.bf16.gmra.mxu0 %v5305
    %v7294 = vpop.f32.mrf.mxu0
    %v7295 = vadd.f32 %v7182, %v7294
    %v7296 = vpop.f32.mrf.mxu0
    %v7297 = vadd.f32 %v7184, %v7296
    %v7298 = vpop.f32.mrf.mxu0
    %v7299 = vadd.f32 %v7186, %v7298
    %v7300 = vpop.f32.mrf.mxu0
    %v7301 = vadd.f32 %v7188, %v7300
    %7302 = vdwg.mxu0
    %v7303 = vadd.f32 %v5970, %v6999
    %v7304 = vadd.f32 %v5972, %v7001
    %v7305 = vadd.f32 %v6196, %v7225
    %v7306 = vadd.f32 %v6198, %v7227
    %v7307 = vadd.f32 %v5974, %v7003
    %v7308 = vadd.f32 %v5976, %v7005
    %v7309 = vadd.f32 %v6200, %v7229
    %v7310 = vadd.f32 %v6202, %v7231
    %v7311 = vadd.f32 %v5980, %v7009
    %v7312 = vadd.f32 %v5982, %v7011
    %v7313 = vadd.f32 %v6206, %v7235
    %v7314 = vadd.f32 %v6208, %v7237
    %v7315 = vadd.f32 %v5984, %v7013
    %v7316 = vadd.f32 %v5986, %v7015
    %v7317 = vadd.f32 %v6210, %v7239
    %v7318 = vadd.f32 %v6212, %v7241
    %v7319 = vadd.f32 %v5990, %v7019
    %v7320 = vadd.f32 %v5992, %v7021
    %v7321 = vadd.f32 %v6216, %v7245
    %v7322 = vadd.f32 %v6218, %v7247
    %v7323 = vadd.f32 %v5994, %v7023
    %v7324 = vadd.f32 %v5996, %v7025
    %v7325 = vadd.f32 %v6220, %v7249
    %v7326 = vadd.f32 %v6222, %v7251
    %v7327 = vadd.f32 %v6000, %v7029
    %v7328 = vadd.f32 %v6002, %v7031
    %v7329 = vadd.f32 %v6226, %v7255
    %v7330 = vadd.f32 %v6228, %v7257
    %v7331 = vadd.f32 %v6004, %v7033
    %v7332 = vadd.f32 %v6006, %v7035
    %v7333 = vadd.f32 %v6230, %v7259
    %v7334 = vadd.f32 %v6232, %v7261
    %v7367 = vrot.slane %v7039, 1
    %v7368 = vrot.slane %v7041, 1
    %v7369 = vrot.slane %v7265, 1
    %v7370 = vrot.slane %v7267, 1
    %v7371 = vrot.slane %v7043, 1
    %v7372 = vrot.slane %v7045, 1
    %v7373 = vrot.slane %v7269, 1
    %v7374 = vrot.slane %v7271, 1
    %v7375 = vrot.slane %v7049, 1
    %v7376 = vrot.slane %v7051, 1
    %v7377 = vrot.slane %v7275, 1
    %v7378 = vrot.slane %v7277, 1
    %v7379 = vrot.slane %v7053, 1
    %v7380 = vrot.slane %v7055, 1
    %v7381 = vrot.slane %v7279, 1
    %v7382 = vrot.slane %v7281, 1
    %v7383 = vrot.slane %v7059, 1
    %v7384 = vrot.slane %v7061, 1
    %v7385 = vrot.slane %v7285, 1
    %v7386 = vrot.slane %v7287, 1
    %v7387 = vrot.slane %v7063, 1
    %v7388 = vrot.slane %v7065, 1
    %v7389 = vrot.slane %v7289, 1
    %v7390 = vrot.slane %v7291, 1
    %v7391 = vrot.slane %v7069, 1
    %v7392 = vrot.slane %v7071, 1
    %v7393 = vrot.slane %v7295, 1
    %v7394 = vrot.slane %v7297, 1
    %v7395 = vrot.slane %v7073, 1
    %v7396 = vrot.slane %v7075, 1
    %v7397 = vrot.slane %v7299, 1
    %v7398 = vrot.slane %v7301, 1
    %v7431 = vadd.f32 %v6010, %v7367
    %v7432 = vadd.f32 %v6012, %v7368
    %v7433 = vadd.f32 %v6236, %v7369
    %v7434 = vadd.f32 %v6238, %v7370
    %v7435 = vadd.f32 %v6014, %v7371
    %v7436 = vadd.f32 %v6016, %v7372
    %v7437 = vadd.f32 %v6240, %v7373
    %v7438 = vadd.f32 %v6242, %v7374
    %v7439 = vadd.f32 %v6020, %v7375
    %v7440 = vadd.f32 %v6022, %v7376
    %v7441 = vadd.f32 %v6246, %v7377
    %v7442 = vadd.f32 %v6248, %v7378
    %v7443 = vadd.f32 %v6024, %v7379
    %v7444 = vadd.f32 %v6026, %v7380
    %v7445 = vadd.f32 %v6250, %v7381
    %v7446 = vadd.f32 %v6252, %v7382
    %v7447 = vadd.f32 %v6030, %v7383
    %v7448 = vadd.f32 %v6032, %v7384
    %v7449 = vadd.f32 %v6256, %v7385
    %v7450 = vadd.f32 %v6258, %v7386
    %v7451 = vadd.f32 %v6034, %v7387
    %v7452 = vadd.f32 %v6036, %v7388
    %v7453 = vadd.f32 %v6260, %v7389
    %v7454 = vadd.f32 %v6262, %v7390
    %v7455 = vadd.f32 %v6040, %v7391
    %v7456 = vadd.f32 %v6042, %v7392
    %v7457 = vadd.f32 %v6266, %v7393
    %v7458 = vadd.f32 %v6268, %v7394
    %v7459 = vadd.f32 %v6044, %v7395
    %v7460 = vadd.f32 %v6046, %v7396
    %v7461 = vadd.f32 %v6270, %v7397
    %v7462 = vadd.f32 %v6272, %v7398
    %s7463 = scalar_lea.vmem [#allocation6], 1536
    %v7464 = vld [vmem:[%s7463] sm:$0xff]
    %v7465 = vld [vmem:[%s7463 + $0x8] sm:$0xff]
    %v7466 = vld [vmem:[%s7463 + $0x10] sm:$0xff]
    %v7467 = vld [vmem:[%s7463 + $0x18] sm:$0xff]
    %v7468 = vld [vmem:[%s7463 + $0x20] sm:$0xff]
    %v7469 = vld [vmem:[%s7463 + $0x28] sm:$0xff]
    %v7470 = vld [vmem:[%s7463 + $0x30] sm:$0xff]
    %v7471 = vld [vmem:[%s7463 + $0x38] sm:$0xff]
    %v7472 = vld [vmem:[%s7463 + $0x40] sm:$0xff]
    %v7473 = vld [vmem:[%s7463 + $0x48] sm:$0xff]
    %v7474 = vld [vmem:[%s7463 + $0x50] sm:$0xff]
    %v7475 = vld [vmem:[%s7463 + $0x58] sm:$0xff]
    %v7476 = vld [vmem:[%s7463 + $0x60] sm:$0xff]
    %v7477 = vld [vmem:[%s7463 + $0x68] sm:$0xff]
    %v7478 = vld [vmem:[%s7463 + $0x70] sm:$0xff]
    %v7479 = vld [vmem:[%s7463 + $0x78] sm:$0xff]
    %v7480 = vld [vmem:[%s7463 + $0x80] sm:$0xff]
    %v7481 = vld [vmem:[%s7463 + $0x88] sm:$0xff]
    %v7482 = vld [vmem:[%s7463 + $0x90] sm:$0xff]
    %v7483 = vld [vmem:[%s7463 + $0x98] sm:$0xff]
    %v7484 = vld [vmem:[%s7463 + $0xa0] sm:$0xff]
    %v7485 = vld [vmem:[%s7463 + $0xa8] sm:$0xff]
    %v7486 = vld [vmem:[%s7463 + $0xb0] sm:$0xff]
    %v7487 = vld [vmem:[%s7463 + $0xb8] sm:$0xff]
    %v7488 = vld [vmem:[%s7463 + $0xc0] sm:$0xff]
    %v7489 = vld [vmem:[%s7463 + $0xc8] sm:$0xff]
    %v7490 = vld [vmem:[%s7463 + $0xd0] sm:$0xff]
    %v7491 = vld [vmem:[%s7463 + $0xd8] sm:$0xff]
    %v7492 = vld [vmem:[%s7463 + $0xe0] sm:$0xff]
    %v7493 = vld [vmem:[%s7463 + $0xe8] sm:$0xff]
    %v7494 = vld [vmem:[%s7463 + $0xf0] sm:$0xff]
    %v7495 = vld [vmem:[%s7463 + $0xf8] sm:$0xff]
    %v7496 = vld [vmem:[%s7463 + $0x100] sm:$0xff]
    %v7497 = vld [vmem:[%s7463 + $0x108] sm:$0xff]
    %v7498 = vld [vmem:[%s7463 + $0x110] sm:$0xff]
    %v7499 = vld [vmem:[%s7463 + $0x118] sm:$0xff]
    %v7500 = vld [vmem:[%s7463 + $0x120] sm:$0xff]
    %v7501 = vld [vmem:[%s7463 + $0x128] sm:$0xff]
    %v7502 = vld [vmem:[%s7463 + $0x130] sm:$0xff]
    %v7503 = vld [vmem:[%s7463 + $0x138] sm:$0xff]
    %v7504 = vld [vmem:[%s7463 + $0x140] sm:$0xff]
    %v7505 = vld [vmem:[%s7463 + $0x148] sm:$0xff]
    %v7506 = vld [vmem:[%s7463 + $0x150] sm:$0xff]
    %v7507 = vld [vmem:[%s7463 + $0x158] sm:$0xff]
    %v7508 = vld [vmem:[%s7463 + $0x160] sm:$0xff]
    %v7509 = vld [vmem:[%s7463 + $0x168] sm:$0xff]
    %v7510 = vld [vmem:[%s7463 + $0x170] sm:$0xff]
    %v7511 = vld [vmem:[%s7463 + $0x178] sm:$0xff]
    %v7512 = vld [vmem:[%s7463 + $0x180] sm:$0xff]
    %v7513 = vld [vmem:[%s7463 + $0x188] sm:$0xff]
    %v7514 = vld [vmem:[%s7463 + $0x190] sm:$0xff]
    %v7515 = vld [vmem:[%s7463 + $0x198] sm:$0xff]
    %v7516 = vld [vmem:[%s7463 + $0x1a0] sm:$0xff]
    %v7517 = vld [vmem:[%s7463 + $0x1a8] sm:$0xff]
    %v7518 = vld [vmem:[%s7463 + $0x1b0] sm:$0xff]
    %v7519 = vld [vmem:[%s7463 + $0x1b8] sm:$0xff]
    %v7520 = vld [vmem:[%s7463 + $0x1c0] sm:$0xff]
    %v7521 = vld [vmem:[%s7463 + $0x1c8] sm:$0xff]
    %v7522 = vld [vmem:[%s7463 + $0x1d0] sm:$0xff]
    %v7523 = vld [vmem:[%s7463 + $0x1d8] sm:$0xff]
    %v7524 = vld [vmem:[%s7463 + $0x1e0] sm:$0xff]
    %v7525 = vld [vmem:[%s7463 + $0x1e8] sm:$0xff]
    %v7526 = vld [vmem:[%s7463 + $0x1f0] sm:$0xff]
    %v7527 = vld [vmem:[%s7463 + $0x1f8] sm:$0xff]
    %v7528 = vld [vmem:[%s7463 + $0x200] sm:$0xff]
    %v7529 = vld [vmem:[%s7463 + $0x208] sm:$0xff]
    %v7530 = vld [vmem:[%s7463 + $0x210] sm:$0xff]
    %v7531 = vld [vmem:[%s7463 + $0x218] sm:$0xff]
    %v7532 = vld [vmem:[%s7463 + $0x220] sm:$0xff]
    %v7533 = vld [vmem:[%s7463 + $0x228] sm:$0xff]
    %v7534 = vld [vmem:[%s7463 + $0x230] sm:$0xff]
    %v7535 = vld [vmem:[%s7463 + $0x238] sm:$0xff]
    %v7536 = vld [vmem:[%s7463 + $0x240] sm:$0xff]
    %v7537 = vld [vmem:[%s7463 + $0x248] sm:$0xff]
    %v7538 = vld [vmem:[%s7463 + $0x250] sm:$0xff]
    %v7539 = vld [vmem:[%s7463 + $0x258] sm:$0xff]
    %v7540 = vld [vmem:[%s7463 + $0x260] sm:$0xff]
    %v7541 = vld [vmem:[%s7463 + $0x268] sm:$0xff]
    %v7542 = vld [vmem:[%s7463 + $0x270] sm:$0xff]
    %v7543 = vld [vmem:[%s7463 + $0x278] sm:$0xff]
    %v7544 = vld [vmem:[%s7463 + $0x280] sm:$0xff]
    %v7545 = vld [vmem:[%s7463 + $0x288] sm:$0xff]
    %v7546 = vld [vmem:[%s7463 + $0x290] sm:$0xff]
    %v7547 = vld [vmem:[%s7463 + $0x298] sm:$0xff]
    %v7548 = vld [vmem:[%s7463 + $0x2a0] sm:$0xff]
    %v7549 = vld [vmem:[%s7463 + $0x2a8] sm:$0xff]
    %v7550 = vld [vmem:[%s7463 + $0x2b0] sm:$0xff]
    %v7551 = vld [vmem:[%s7463 + $0x2b8] sm:$0xff]
    %v7552 = vld [vmem:[%s7463 + $0x2c0] sm:$0xff]
    %v7553 = vld [vmem:[%s7463 + $0x2c8] sm:$0xff]
    %v7554 = vld [vmem:[%s7463 + $0x2d0] sm:$0xff]
    %v7555 = vld [vmem:[%s7463 + $0x2d8] sm:$0xff]
    %v7556 = vld [vmem:[%s7463 + $0x2e0] sm:$0xff]
    %v7557 = vld [vmem:[%s7463 + $0x2e8] sm:$0xff]
    %v7558 = vld [vmem:[%s7463 + $0x2f0] sm:$0xff]
    %v7559 = vld [vmem:[%s7463 + $0x2f8] sm:$0xff]
    %v7656 = vunpack.c.l.b16 %v7464
    %v7657 = vunpack.c.h.b16 %v7464
    %v7658 = vunpack.c.l.b16 %v7465
    %v7659 = vunpack.c.h.b16 %v7465
    %v7660 = vunpack.c.l.b16 %v7466
    %v7661 = vunpack.c.h.b16 %v7466
    %v7662 = vunpack.c.l.b16 %v7467
    %v7663 = vunpack.c.h.b16 %v7467
    %v7664 = vunpack.c.l.b16 %v7468
    %v7665 = vunpack.c.h.b16 %v7468
    %v7666 = vunpack.c.l.b16 %v7469
    %v7667 = vunpack.c.h.b16 %v7469
    %v7668 = vunpack.c.l.b16 %v7470
    %v7669 = vunpack.c.h.b16 %v7470
    %v7670 = vunpack.c.l.b16 %v7471
    %v7671 = vunpack.c.h.b16 %v7471
    %v7672 = vunpack.c.l.b16 %v7472
    %v7673 = vunpack.c.h.b16 %v7472
    %v7674 = vunpack.c.l.b16 %v7473
    %v7675 = vunpack.c.h.b16 %v7473
    %v7676 = vunpack.c.l.b16 %v7474
    %v7677 = vunpack.c.h.b16 %v7474
    %v7678 = vunpack.c.l.b16 %v7475
    %v7679 = vunpack.c.h.b16 %v7475
    %v7680 = vunpack.c.l.b16 %v7476
    %v7681 = vunpack.c.h.b16 %v7476
    %v7682 = vunpack.c.l.b16 %v7477
    %v7683 = vunpack.c.h.b16 %v7477
    %v7684 = vunpack.c.l.b16 %v7478
    %v7685 = vunpack.c.h.b16 %v7478
    %v7686 = vunpack.c.l.b16 %v7479
    %v7687 = vunpack.c.h.b16 %v7479
    %v7688 = vunpack.c.l.b16 %v7480
    %v7689 = vunpack.c.h.b16 %v7480
    %v7690 = vunpack.c.l.b16 %v7481
    %v7691 = vunpack.c.h.b16 %v7481
    %v7692 = vunpack.c.l.b16 %v7482
    %v7693 = vunpack.c.h.b16 %v7482
    %v7694 = vunpack.c.l.b16 %v7483
    %v7695 = vunpack.c.h.b16 %v7483
    %v7696 = vunpack.c.l.b16 %v7484
    %v7697 = vunpack.c.h.b16 %v7484
    %v7698 = vunpack.c.l.b16 %v7485
    %v7699 = vunpack.c.h.b16 %v7485
    %v7700 = vunpack.c.l.b16 %v7486
    %v7701 = vunpack.c.h.b16 %v7486
    %v7702 = vunpack.c.l.b16 %v7487
    %v7703 = vunpack.c.h.b16 %v7487
    %v7704 = vunpack.c.l.b16 %v7488
    %v7705 = vunpack.c.h.b16 %v7488
    %v7706 = vunpack.c.l.b16 %v7489
    %v7707 = vunpack.c.h.b16 %v7489
    %v7708 = vunpack.c.l.b16 %v7490
    %v7709 = vunpack.c.h.b16 %v7490
    %v7710 = vunpack.c.l.b16 %v7491
    %v7711 = vunpack.c.h.b16 %v7491
    %v7712 = vunpack.c.l.b16 %v7492
    %v7713 = vunpack.c.h.b16 %v7492
    %v7714 = vunpack.c.l.b16 %v7493
    %v7715 = vunpack.c.h.b16 %v7493
    %v7716 = vunpack.c.l.b16 %v7494
    %v7717 = vunpack.c.h.b16 %v7494
    %v7718 = vunpack.c.l.b16 %v7495
    %v7719 = vunpack.c.h.b16 %v7495
    %v7720 = vunpack.c.l.b16 %v7496
    %v7721 = vunpack.c.h.b16 %v7496
    %v7722 = vunpack.c.l.b16 %v7497
    %v7723 = vunpack.c.h.b16 %v7497
    %v7724 = vunpack.c.l.b16 %v7498
    %v7725 = vunpack.c.h.b16 %v7498
    %v7726 = vunpack.c.l.b16 %v7499
    %v7727 = vunpack.c.h.b16 %v7499
    %v7728 = vunpack.c.l.b16 %v7500
    %v7729 = vunpack.c.h.b16 %v7500
    %v7730 = vunpack.c.l.b16 %v7501
    %v7731 = vunpack.c.h.b16 %v7501
    %v7732 = vunpack.c.l.b16 %v7502
    %v7733 = vunpack.c.h.b16 %v7502
    %v7734 = vunpack.c.l.b16 %v7503
    %v7735 = vunpack.c.h.b16 %v7503
    %v7736 = vunpack.c.l.b16 %v7504
    %v7737 = vunpack.c.h.b16 %v7504
    %v7738 = vunpack.c.l.b16 %v7505
    %v7739 = vunpack.c.h.b16 %v7505
    %v7740 = vunpack.c.l.b16 %v7506
    %v7741 = vunpack.c.h.b16 %v7506
    %v7742 = vunpack.c.l.b16 %v7507
    %v7743 = vunpack.c.h.b16 %v7507
    %v7744 = vunpack.c.l.b16 %v7508
    %v7745 = vunpack.c.h.b16 %v7508
    %v7746 = vunpack.c.l.b16 %v7509
    %v7747 = vunpack.c.h.b16 %v7509
    %v7748 = vunpack.c.l.b16 %v7510
    %v7749 = vunpack.c.h.b16 %v7510
    %v7750 = vunpack.c.l.b16 %v7511
    %v7751 = vunpack.c.h.b16 %v7511
    %v7752 = vunpack.c.l.b16 %v7512
    %v7753 = vunpack.c.h.b16 %v7512
    %v7754 = vunpack.c.l.b16 %v7513
    %v7755 = vunpack.c.h.b16 %v7513
    %v7756 = vunpack.c.l.b16 %v7514
    %v7757 = vunpack.c.h.b16 %v7514
    %v7758 = vunpack.c.l.b16 %v7515
    %v7759 = vunpack.c.h.b16 %v7515
    %v7760 = vunpack.c.l.b16 %v7516
    %v7761 = vunpack.c.h.b16 %v7516
    %v7762 = vunpack.c.l.b16 %v7517
    %v7763 = vunpack.c.h.b16 %v7517
    %v7764 = vunpack.c.l.b16 %v7518
    %v7765 = vunpack.c.h.b16 %v7518
    %v7766 = vunpack.c.l.b16 %v7519
    %v7767 = vunpack.c.h.b16 %v7519
    %v7768 = vunpack.c.l.b16 %v7520
    %v7769 = vunpack.c.h.b16 %v7520
    %v7770 = vunpack.c.l.b16 %v7521
    %v7771 = vunpack.c.h.b16 %v7521
    %v7772 = vunpack.c.l.b16 %v7522
    %v7773 = vunpack.c.h.b16 %v7522
    %v7774 = vunpack.c.l.b16 %v7523
    %v7775 = vunpack.c.h.b16 %v7523
    %v7776 = vunpack.c.l.b16 %v7524
    %v7777 = vunpack.c.h.b16 %v7524
    %v7778 = vunpack.c.l.b16 %v7525
    %v7779 = vunpack.c.h.b16 %v7525
    %v7780 = vunpack.c.l.b16 %v7526
    %v7781 = vunpack.c.h.b16 %v7526
    %v7782 = vunpack.c.l.b16 %v7527
    %v7783 = vunpack.c.h.b16 %v7527
    %v7784 = vunpack.c.l.b16 %v7528
    %v7785 = vunpack.c.h.b16 %v7528
    %v7786 = vunpack.c.l.b16 %v7529
    %v7787 = vunpack.c.h.b16 %v7529
    %v7788 = vunpack.c.l.b16 %v7530
    %v7789 = vunpack.c.h.b16 %v7530
    %v7790 = vunpack.c.l.b16 %v7531
    %v7791 = vunpack.c.h.b16 %v7531
    %v7792 = vunpack.c.l.b16 %v7532
    %v7793 = vunpack.c.h.b16 %v7532
    %v7794 = vunpack.c.l.b16 %v7533
    %v7795 = vunpack.c.h.b16 %v7533
    %v7796 = vunpack.c.l.b16 %v7534
    %v7797 = vunpack.c.h.b16 %v7534
    %v7798 = vunpack.c.l.b16 %v7535
    %v7799 = vunpack.c.h.b16 %v7535
    %v7800 = vunpack.c.l.b16 %v7536
    %v7801 = vunpack.c.h.b16 %v7536
    %v7802 = vunpack.c.l.b16 %v7537
    %v7803 = vunpack.c.h.b16 %v7537
    %v7804 = vunpack.c.l.b16 %v7538
    %v7805 = vunpack.c.h.b16 %v7538
    %v7806 = vunpack.c.l.b16 %v7539
    %v7807 = vunpack.c.h.b16 %v7539
    %v7808 = vunpack.c.l.b16 %v7540
    %v7809 = vunpack.c.h.b16 %v7540
    %v7810 = vunpack.c.l.b16 %v7541
    %v7811 = vunpack.c.h.b16 %v7541
    %v7812 = vunpack.c.l.b16 %v7542
    %v7813 = vunpack.c.h.b16 %v7542
    %v7814 = vunpack.c.l.b16 %v7543
    %v7815 = vunpack.c.h.b16 %v7543
    %v7816 = vunpack.c.l.b16 %v7544
    %v7817 = vunpack.c.h.b16 %v7544
    %v7818 = vunpack.c.l.b16 %v7545
    %v7819 = vunpack.c.h.b16 %v7545
    %v7820 = vunpack.c.l.b16 %v7546
    %v7821 = vunpack.c.h.b16 %v7546
    %v7822 = vunpack.c.l.b16 %v7547
    %v7823 = vunpack.c.h.b16 %v7547
    %v7824 = vunpack.c.l.b16 %v7548
    %v7825 = vunpack.c.h.b16 %v7548
    %v7826 = vunpack.c.l.b16 %v7549
    %v7827 = vunpack.c.h.b16 %v7549
    %v7828 = vunpack.c.l.b16 %v7550
    %v7829 = vunpack.c.h.b16 %v7550
    %v7830 = vunpack.c.l.b16 %v7551
    %v7831 = vunpack.c.h.b16 %v7551
    %v7832 = vunpack.c.l.b16 %v7552
    %v7833 = vunpack.c.h.b16 %v7552
    %v7834 = vunpack.c.l.b16 %v7553
    %v7835 = vunpack.c.h.b16 %v7553
    %v7836 = vunpack.c.l.b16 %v7554
    %v7837 = vunpack.c.h.b16 %v7554
    %v7838 = vunpack.c.l.b16 %v7555
    %v7839 = vunpack.c.h.b16 %v7555
    %v7840 = vunpack.c.l.b16 %v7556
    %v7841 = vunpack.c.h.b16 %v7556
    %v7842 = vunpack.c.l.b16 %v7557
    %v7843 = vunpack.c.h.b16 %v7557
    %v7844 = vunpack.c.l.b16 %v7558
    %v7845 = vunpack.c.h.b16 %v7558
    %v7846 = vunpack.c.l.b16 %v7559
    %v7847 = vunpack.c.h.b16 %v7559
    %v7848 = vpack.c.b16 %v7660, %v7656
    %v7849 = vpack.c.b16 %v7661, %v7657
    %v7850 = vpack.c.b16 %v7662, %v7658
    %v7851 = vpack.c.b16 %v7663, %v7659
    %v7852 = vpack.c.b16 %v7668, %v7664
    %v7853 = vpack.c.b16 %v7669, %v7665
    %v7854 = vpack.c.b16 %v7670, %v7666
    %v7855 = vpack.c.b16 %v7671, %v7667
    %v7856 = vpack.c.b16 %v7676, %v7672
    %v7857 = vpack.c.b16 %v7677, %v7673
    %v7858 = vpack.c.b16 %v7678, %v7674
    %v7859 = vpack.c.b16 %v7679, %v7675
    %v7860 = vpack.c.b16 %v7684, %v7680
    %v7861 = vpack.c.b16 %v7685, %v7681
    %v7862 = vpack.c.b16 %v7686, %v7682
    %v7863 = vpack.c.b16 %v7687, %v7683
    %v7864 = vpack.c.b16 %v7692, %v7688
    %v7865 = vpack.c.b16 %v7693, %v7689
    %v7866 = vpack.c.b16 %v7694, %v7690
    %v7867 = vpack.c.b16 %v7695, %v7691
    %v7868 = vpack.c.b16 %v7700, %v7696
    %v7869 = vpack.c.b16 %v7701, %v7697
    %v7870 = vpack.c.b16 %v7702, %v7698
    %v7871 = vpack.c.b16 %v7703, %v7699
    %v7872 = vpack.c.b16 %v7708, %v7704
    %v7873 = vpack.c.b16 %v7709, %v7705
    %v7874 = vpack.c.b16 %v7710, %v7706
    %v7875 = vpack.c.b16 %v7711, %v7707
    %v7876 = vpack.c.b16 %v7716, %v7712
    %v7877 = vpack.c.b16 %v7717, %v7713
    %v7878 = vpack.c.b16 %v7718, %v7714
    %v7879 = vpack.c.b16 %v7719, %v7715
    %v7880 = vpack.c.b16 %v7724, %v7720
    %v7881 = vpack.c.b16 %v7725, %v7721
    %v7882 = vpack.c.b16 %v7726, %v7722
    %v7883 = vpack.c.b16 %v7727, %v7723
    %v7884 = vpack.c.b16 %v7732, %v7728
    %v7885 = vpack.c.b16 %v7733, %v7729
    %v7886 = vpack.c.b16 %v7734, %v7730
    %v7887 = vpack.c.b16 %v7735, %v7731
    %v7888 = vpack.c.b16 %v7740, %v7736
    %v7889 = vpack.c.b16 %v7741, %v7737
    %v7890 = vpack.c.b16 %v7742, %v7738
    %v7891 = vpack.c.b16 %v7743, %v7739
    %v7892 = vpack.c.b16 %v7748, %v7744
    %v7893 = vpack.c.b16 %v7749, %v7745
    %v7894 = vpack.c.b16 %v7750, %v7746
    %v7895 = vpack.c.b16 %v7751, %v7747
    %v7896 = vpack.c.b16 %v7756, %v7752
    %v7897 = vpack.c.b16 %v7757, %v7753
    %v7898 = vpack.c.b16 %v7758, %v7754
    %v7899 = vpack.c.b16 %v7759, %v7755
    %v7900 = vpack.c.b16 %v7764, %v7760
    %v7901 = vpack.c.b16 %v7765, %v7761
    %v7902 = vpack.c.b16 %v7766, %v7762
    %v7903 = vpack.c.b16 %v7767, %v7763
    %v7904 = vpack.c.b16 %v7772, %v7768
    %v7905 = vpack.c.b16 %v7773, %v7769
    %v7906 = vpack.c.b16 %v7774, %v7770
    %v7907 = vpack.c.b16 %v7775, %v7771
    %v7908 = vpack.c.b16 %v7780, %v7776
    %v7909 = vpack.c.b16 %v7781, %v7777
    %v7910 = vpack.c.b16 %v7782, %v7778
    %v7911 = vpack.c.b16 %v7783, %v7779
    %v7912 = vpack.c.b16 %v7788, %v7784
    %v7913 = vpack.c.b16 %v7789, %v7785
    %v7914 = vpack.c.b16 %v7790, %v7786
    %v7915 = vpack.c.b16 %v7791, %v7787
    %v7916 = vpack.c.b16 %v7796, %v7792
    %v7917 = vpack.c.b16 %v7797, %v7793
    %v7918 = vpack.c.b16 %v7798, %v7794
    %v7919 = vpack.c.b16 %v7799, %v7795
    %v7920 = vpack.c.b16 %v7804, %v7800
    %v7921 = vpack.c.b16 %v7805, %v7801
    %v7922 = vpack.c.b16 %v7806, %v7802
    %v7923 = vpack.c.b16 %v7807, %v7803
    %v7924 = vpack.c.b16 %v7812, %v7808
    %v7925 = vpack.c.b16 %v7813, %v7809
    %v7926 = vpack.c.b16 %v7814, %v7810
    %v7927 = vpack.c.b16 %v7815, %v7811
    %v7928 = vpack.c.b16 %v7820, %v7816
    %v7929 = vpack.c.b16 %v7821, %v7817
    %v7930 = vpack.c.b16 %v7822, %v7818
    %v7931 = vpack.c.b16 %v7823, %v7819
    %v7932 = vpack.c.b16 %v7828, %v7824
    %v7933 = vpack.c.b16 %v7829, %v7825
    %v7934 = vpack.c.b16 %v7830, %v7826
    %v7935 = vpack.c.b16 %v7831, %v7827
    %v7936 = vpack.c.b16 %v7836, %v7832
    %v7937 = vpack.c.b16 %v7837, %v7833
    %v7938 = vpack.c.b16 %v7838, %v7834
    %v7939 = vpack.c.b16 %v7839, %v7835
    %v7940 = vpack.c.b16 %v7844, %v7840
    %v7941 = vpack.c.b16 %v7845, %v7841
    %v7942 = vpack.c.b16 %v7846, %v7842
    %v7943 = vpack.c.b16 %v7847, %v7843
    %8040 = vmatprep.subr.bf16.mxu0 %v7877
    %8041 = vmatpush1.bf16.msra.mxu0 %v7876
    %8042 = vmatprep.subr.bf16.mxu0 %v7873
    %8043 = vmatpush1.bf16.msra.mxu0 %v7872
    %8044 = vmatprep.subr.bf16.mxu0 %v7869
    %8045 = vmatpush1.bf16.msra.mxu0 %v7868
    %8046 = vmatprep.subr.bf16.mxu0 %v7865
    %8047 = vmatpush1.bf16.msra.mxu0 %v7864
    %8048 = vmatprep.subr.bf16.mxu0 %v7861
    %8049 = vmatpush1.bf16.msra.mxu0 %v7860
    %8050 = vmatprep.subr.bf16.mxu0 %v7857
    %8051 = vmatpush1.bf16.msra.mxu0 %v7856
    %8052 = vmatprep.subr.bf16.mxu0 %v7853
    %8053 = vmatpush1.bf16.msra.mxu0 %v7852
    %8054 = vmatprep.subr.bf16.mxu0 %v7849
    %8055 = vmatpush1.bf16.msra.mxu0 %v7848
    %8056 = vmatprep.subr.bf16.mxu0 %v7909
    %8057 = vmatpush2.bf16.msra.mxu0 %v7908
    %8058 = vmatprep.subr.bf16.mxu0 %v7905
    %8059 = vmatpush2.bf16.msra.mxu0 %v7904
    %8060 = vmatprep.subr.bf16.mxu0 %v7901
    %8061 = vmatpush2.bf16.msra.mxu0 %v7900
    %8062 = vmatprep.subr.bf16.mxu0 %v7897
    %8063 = vmatpush2.bf16.msra.mxu0 %v7896
    %8064 = vmatprep.subr.bf16.mxu0 %v7893
    %8065 = vmatpush2.bf16.msra.mxu0 %v7892
    %8066 = vmatprep.subr.bf16.mxu0 %v7889
    %8067 = vmatpush2.bf16.msra.mxu0 %v7888
    %8068 = vmatprep.subr.bf16.mxu0 %v7885
    %8069 = vmatpush2.bf16.msra.mxu0 %v7884
    %8070 = vmatprep.subr.bf16.mxu0 %v7881
    %8071 = vmatpush2.bf16.msra.mxu0 %v7880
    %8072 = vmatprep.mubr.bf16.mxu0 %v5295
    %8073 = vmatmul.mubr.bf16.gmra.mxu0 %v5294
    %v8074 = vpop.f32.mrf.mxu0
    %v8075 = vadd.f32 0.0, %v8074
    %v8076 = vpop.f32.mrf.mxu0
    %v8077 = vadd.f32 0.0, %v8076
    %v8078 = vpop.f32.mrf.mxu0
    %v8079 = vadd.f32 0.0, %v8078
    %v8080 = vpop.f32.mrf.mxu0
    %v8081 = vadd.f32 0.0, %v8080
    %8082 = vmatprep.mubr.bf16.mxu0 %v5298
    %8083 = vmatmul.mubr.bf16.gmra.mxu0 %v5297
    %v8084 = vpop.f32.mrf.mxu0
    %v8085 = vadd.f32 0.0, %v8084
    %v8086 = vpop.f32.mrf.mxu0
    %v8087 = vadd.f32 0.0, %v8086
    %v8088 = vpop.f32.mrf.mxu0
    %v8089 = vadd.f32 0.0, %v8088
    %v8090 = vpop.f32.mrf.mxu0
    %v8091 = vadd.f32 0.0, %v8090
    %8092 = vmatprep.mubr.bf16.mxu0 %v5301
    %8093 = vmatmul.mubr.bf16.gmra.mxu0 %v5300
    %v8094 = vpop.f32.mrf.mxu0
    %v8095 = vadd.f32 0.0, %v8094
    %v8096 = vpop.f32.mrf.mxu0
    %v8097 = vadd.f32 0.0, %v8096
    %v8098 = vpop.f32.mrf.mxu0
    %v8099 = vadd.f32 0.0, %v8098
    %v8100 = vpop.f32.mrf.mxu0
    %v8101 = vadd.f32 0.0, %v8100
    %8102 = vmatprep.mubr.bf16.mxu0 %v5304
    %8103 = vmatmul.mubr.bf16.gmra.mxu0 %v5303
    %v8104 = vpop.f32.mrf.mxu0
    %v8105 = vadd.f32 0.0, %v8104
    %v8106 = vpop.f32.mrf.mxu0
    %v8107 = vadd.f32 0.0, %v8106
    %v8108 = vpop.f32.mrf.mxu0
    %v8109 = vadd.f32 0.0, %v8108
    %v8110 = vpop.f32.mrf.mxu0
    %v8111 = vadd.f32 0.0, %v8110
    %8112 = vmatprep.mubr.bf16.mxu0 %v5307
    %8113 = vmatmul.mubr.bf16.gmra.mxu0 %v5306
    %v8114 = vpop.f32.mrf.mxu0
    %v8115 = vadd.f32 0.0, %v8114
    %v8116 = vpop.f32.mrf.mxu0
    %v8117 = vadd.f32 0.0, %v8116
    %v8118 = vpop.f32.mrf.mxu0
    %v8119 = vadd.f32 0.0, %v8118
    %v8120 = vpop.f32.mrf.mxu0
    %v8121 = vadd.f32 0.0, %v8120
    %8122 = vmatprep.mubr.bf16.mxu0 %v5310
    %8123 = vmatmul.mubr.bf16.gmra.mxu0 %v5309
    %v8124 = vpop.f32.mrf.mxu0
    %v8125 = vadd.f32 0.0, %v8124
    %v8126 = vpop.f32.mrf.mxu0
    %v8127 = vadd.f32 0.0, %v8126
    %v8128 = vpop.f32.mrf.mxu0
    %v8129 = vadd.f32 0.0, %v8128
    %v8130 = vpop.f32.mrf.mxu0
    %v8131 = vadd.f32 0.0, %v8130
    %8132 = vmatprep.mubr.bf16.mxu0 %v5313
    %8133 = vmatmul.mubr.bf16.gmra.mxu0 %v5312
    %v8134 = vpop.f32.mrf.mxu0
    %v8135 = vadd.f32 0.0, %v8134
    %v8136 = vpop.f32.mrf.mxu0
    %v8137 = vadd.f32 0.0, %v8136
    %v8138 = vpop.f32.mrf.mxu0
    %v8139 = vadd.f32 0.0, %v8138
    %v8140 = vpop.f32.mrf.mxu0
    %v8141 = vadd.f32 0.0, %v8140
    %8142 = vmatprep.mubr.bf16.mxu0 %v5316
    %8143 = vmatmul.mubr.bf16.gmra.mxu0 %v5315
    %v8144 = vpop.f32.mrf.mxu0
    %v8145 = vadd.f32 0.0, %v8144
    %v8146 = vpop.f32.mrf.mxu0
    %v8147 = vadd.f32 0.0, %v8146
    %v8148 = vpop.f32.mrf.mxu0
    %v8149 = vadd.f32 0.0, %v8148
    %v8150 = vpop.f32.mrf.mxu0
    %v8151 = vadd.f32 0.0, %v8150
    %8152 = vdwg.mxu0
    %8153 = vmatprep.subr.bf16.mxu0 %v7941
    %8154 = vmatpush1.bf16.msra.mxu0 %v7940
    %8155 = vmatprep.subr.bf16.mxu0 %v7937
    %8156 = vmatpush1.bf16.msra.mxu0 %v7936
    %8157 = vmatprep.subr.bf16.mxu0 %v7933
    %8158 = vmatpush1.bf16.msra.mxu0 %v7932
    %8159 = vmatprep.subr.bf16.mxu0 %v7929
    %8160 = vmatpush1.bf16.msra.mxu0 %v7928
    %8161 = vmatprep.subr.bf16.mxu0 %v7925
    %8162 = vmatpush1.bf16.msra.mxu0 %v7924
    %8163 = vmatprep.subr.bf16.mxu0 %v7921
    %8164 = vmatpush1.bf16.msra.mxu0 %v7920
    %8165 = vmatprep.subr.bf16.mxu0 %v7917
    %8166 = vmatpush1.bf16.msra.mxu0 %v7916
    %8167 = vmatprep.subr.bf16.mxu0 %v7913
    %8168 = vmatpush1.bf16.msra.mxu0 %v7912
    %8169 = vmatprep.subr.bf16.mxu0 0
    %8170 = vmatpush2.bf16.msra.mxu0 0
    %8171 = vmatprep.subr.bf16.mxu0 0
    %8172 = vmatpush2.bf16.msra.mxu0 0
    %8173 = vmatprep.subr.bf16.mxu0 0
    %8174 = vmatpush2.bf16.msra.mxu0 0
    %8175 = vmatprep.subr.bf16.mxu0 0
    %8176 = vmatpush2.bf16.msra.mxu0 0
    %8177 = vmatprep.subr.bf16.mxu0 0
    %8178 = vmatpush2.bf16.msra.mxu0 0
    %8179 = vmatprep.subr.bf16.mxu0 0
    %8180 = vmatpush2.bf16.msra.mxu0 0
    %8181 = vmatprep.subr.bf16.mxu0 0
    %8182 = vmatpush2.bf16.msra.mxu0 0
    %8183 = vmatprep.subr.bf16.mxu0 0
    %8184 = vmatpush2.bf16.msra.mxu0 0
    %8185 = vmatprep.mubr.bf16.mxu0 0
    %8186 = vmatmul.mubr.bf16.gmra.mxu0 %v5296
    %v8187 = vpop.f32.mrf.mxu0
    %v8188 = vadd.f32 %v8075, %v8187
    %v8189 = vpop.f32.mrf.mxu0
    %v8190 = vadd.f32 %v8077, %v8189
    %v8191 = vpop.f32.mrf.mxu0
    %v8192 = vadd.f32 %v8079, %v8191
    %v8193 = vpop.f32.mrf.mxu0
    %v8194 = vadd.f32 %v8081, %v8193
    %8195 = vmatprep.mubr.bf16.mxu0 0
    %8196 = vmatmul.mubr.bf16.gmra.mxu0 %v5299
    %v8197 = vpop.f32.mrf.mxu0
    %v8198 = vadd.f32 %v8085, %v8197
    %v8199 = vpop.f32.mrf.mxu0
    %v8200 = vadd.f32 %v8087, %v8199
    %v8201 = vpop.f32.mrf.mxu0
    %v8202 = vadd.f32 %v8089, %v8201
    %v8203 = vpop.f32.mrf.mxu0
    %v8204 = vadd.f32 %v8091, %v8203
    %8205 = vmatprep.mubr.bf16.mxu0 0
    %8206 = vmatmul.mubr.bf16.gmra.mxu0 %v5302
    %v8207 = vpop.f32.mrf.mxu0
    %v8208 = vadd.f32 %v8095, %v8207
    %v8209 = vpop.f32.mrf.mxu0
    %v8210 = vadd.f32 %v8097, %v8209
    %v8211 = vpop.f32.mrf.mxu0
    %v8212 = vadd.f32 %v8099, %v8211
    %v8213 = vpop.f32.mrf.mxu0
    %v8214 = vadd.f32 %v8101, %v8213
    %8215 = vmatprep.mubr.bf16.mxu0 0
    %8216 = vmatmul.mubr.bf16.gmra.mxu0 %v5305
    %v8217 = vpop.f32.mrf.mxu0
    %v8218 = vadd.f32 %v8105, %v8217
    %v8219 = vpop.f32.mrf.mxu0
    %v8220 = vadd.f32 %v8107, %v8219
    %v8221 = vpop.f32.mrf.mxu0
    %v8222 = vadd.f32 %v8109, %v8221
    %v8223 = vpop.f32.mrf.mxu0
    %v8224 = vadd.f32 %v8111, %v8223
    %8225 = vmatprep.mubr.bf16.mxu0 0
    %8226 = vmatmul.mubr.bf16.gmra.mxu0 %v5308
    %v8227 = vpop.f32.mrf.mxu0
    %v8228 = vadd.f32 %v8115, %v8227
    %v8229 = vpop.f32.mrf.mxu0
    %v8230 = vadd.f32 %v8117, %v8229
    %v8231 = vpop.f32.mrf.mxu0
    %v8232 = vadd.f32 %v8119, %v8231
    %v8233 = vpop.f32.mrf.mxu0
    %v8234 = vadd.f32 %v8121, %v8233
    %8235 = vmatprep.mubr.bf16.mxu0 0
    %8236 = vmatmul.mubr.bf16.gmra.mxu0 %v5311
    %v8237 = vpop.f32.mrf.mxu0
    %v8238 = vadd.f32 %v8125, %v8237
    %v8239 = vpop.f32.mrf.mxu0
    %v8240 = vadd.f32 %v8127, %v8239
    %v8241 = vpop.f32.mrf.mxu0
    %v8242 = vadd.f32 %v8129, %v8241
    %v8243 = vpop.f32.mrf.mxu0
    %v8244 = vadd.f32 %v8131, %v8243
    %8245 = vmatprep.mubr.bf16.mxu0 0
    %8246 = vmatmul.mubr.bf16.gmra.mxu0 %v5314
    %v8247 = vpop.f32.mrf.mxu0
    %v8248 = vadd.f32 %v8135, %v8247
    %v8249 = vpop.f32.mrf.mxu0
    %v8250 = vadd.f32 %v8137, %v8249
    %v8251 = vpop.f32.mrf.mxu0
    %v8252 = vadd.f32 %v8139, %v8251
    %v8253 = vpop.f32.mrf.mxu0
    %v8254 = vadd.f32 %v8141, %v8253
    %8255 = vmatprep.mubr.bf16.mxu0 0
    %8256 = vmatmul.mubr.bf16.gmra.mxu0 %v5317
    %v8257 = vpop.f32.mrf.mxu0
    %v8258 = vadd.f32 %v8145, %v8257
    %v8259 = vpop.f32.mrf.mxu0
    %v8260 = vadd.f32 %v8147, %v8259
    %v8261 = vpop.f32.mrf.mxu0
    %v8262 = vadd.f32 %v8149, %v8261
    %v8263 = vpop.f32.mrf.mxu0
    %v8264 = vadd.f32 %v8151, %v8263
    %8265 = vdwg.mxu0
    %8266 = vmatprep.subr.bf16.mxu0 %v7879
    %8267 = vmatpush1.bf16.msra.mxu0 %v7878
    %8268 = vmatprep.subr.bf16.mxu0 %v7875
    %8269 = vmatpush1.bf16.msra.mxu0 %v7874
    %8270 = vmatprep.subr.bf16.mxu0 %v7871
    %8271 = vmatpush1.bf16.msra.mxu0 %v7870
    %8272 = vmatprep.subr.bf16.mxu0 %v7867
    %8273 = vmatpush1.bf16.msra.mxu0 %v7866
    %8274 = vmatprep.subr.bf16.mxu0 %v7863
    %8275 = vmatpush1.bf16.msra.mxu0 %v7862
    %8276 = vmatprep.subr.bf16.mxu0 %v7859
    %8277 = vmatpush1.bf16.msra.mxu0 %v7858
    %8278 = vmatprep.subr.bf16.mxu0 %v7855
    %8279 = vmatpush1.bf16.msra.mxu0 %v7854
    %8280 = vmatprep.subr.bf16.mxu0 %v7851
    %8281 = vmatpush1.bf16.msra.mxu0 %v7850
    %8282 = vmatprep.subr.bf16.mxu0 %v7911
    %8283 = vmatpush2.bf16.msra.mxu0 %v7910
    %8284 = vmatprep.subr.bf16.mxu0 %v7907
    %8285 = vmatpush2.bf16.msra.mxu0 %v7906
    %8286 = vmatprep.subr.bf16.mxu0 %v7903
    %8287 = vmatpush2.bf16.msra.mxu0 %v7902
    %8288 = vmatprep.subr.bf16.mxu0 %v7899
    %8289 = vmatpush2.bf16.msra.mxu0 %v7898
    %8290 = vmatprep.subr.bf16.mxu0 %v7895
    %8291 = vmatpush2.bf16.msra.mxu0 %v7894
    %8292 = vmatprep.subr.bf16.mxu0 %v7891
    %8293 = vmatpush2.bf16.msra.mxu0 %v7890
    %8294 = vmatprep.subr.bf16.mxu0 %v7887
    %8295 = vmatpush2.bf16.msra.mxu0 %v7886
    %8296 = vmatprep.subr.bf16.mxu0 %v7883
    %8297 = vmatpush2.bf16.msra.mxu0 %v7882
    %8298 = vmatprep.mubr.bf16.mxu0 %v5295
    %8299 = vmatmul.mubr.bf16.gmra.mxu0 %v5294
    %v8300 = vpop.f32.mrf.mxu0
    %v8301 = vadd.f32 0.0, %v8300
    %v8302 = vpop.f32.mrf.mxu0
    %v8303 = vadd.f32 0.0, %v8302
    %v8304 = vpop.f32.mrf.mxu0
    %v8305 = vadd.f32 0.0, %v8304
    %v8306 = vpop.f32.mrf.mxu0
    %v8307 = vadd.f32 0.0, %v8306
    %8308 = vmatprep.mubr.bf16.mxu0 %v5298
    %8309 = vmatmul.mubr.bf16.gmra.mxu0 %v5297
    %v8310 = vpop.f32.mrf.mxu0
    %v8311 = vadd.f32 0.0, %v8310
    %v8312 = vpop.f32.mrf.mxu0
    %v8313 = vadd.f32 0.0, %v8312
    %v8314 = vpop.f32.mrf.mxu0
    %v8315 = vadd.f32 0.0, %v8314
    %v8316 = vpop.f32.mrf.mxu0
    %v8317 = vadd.f32 0.0, %v8316
    %8318 = vmatprep.mubr.bf16.mxu0 %v5301
    %8319 = vmatmul.mubr.bf16.gmra.mxu0 %v5300
    %v8320 = vpop.f32.mrf.mxu0
    %v8321 = vadd.f32 0.0, %v8320
    %v8322 = vpop.f32.mrf.mxu0
    %v8323 = vadd.f32 0.0, %v8322
    %v8324 = vpop.f32.mrf.mxu0
    %v8325 = vadd.f32 0.0, %v8324
    %v8326 = vpop.f32.mrf.mxu0
    %v8327 = vadd.f32 0.0, %v8326
    %8328 = vmatprep.mubr.bf16.mxu0 %v5304
    %8329 = vmatmul.mubr.bf16.gmra.mxu0 %v5303
    %v8330 = vpop.f32.mrf.mxu0
    %v8331 = vadd.f32 0.0, %v8330
    %v8332 = vpop.f32.mrf.mxu0
    %v8333 = vadd.f32 0.0, %v8332
    %v8334 = vpop.f32.mrf.mxu0
    %v8335 = vadd.f32 0.0, %v8334
    %v8336 = vpop.f32.mrf.mxu0
    %v8337 = vadd.f32 0.0, %v8336
    %8338 = vmatprep.mubr.bf16.mxu0 %v5307
    %8339 = vmatmul.mubr.bf16.gmra.mxu0 %v5306
    %v8340 = vpop.f32.mrf.mxu0
    %v8341 = vadd.f32 0.0, %v8340
    %v8342 = vpop.f32.mrf.mxu0
    %v8343 = vadd.f32 0.0, %v8342
    %v8344 = vpop.f32.mrf.mxu0
    %v8345 = vadd.f32 0.0, %v8344
    %v8346 = vpop.f32.mrf.mxu0
    %v8347 = vadd.f32 0.0, %v8346
    %8348 = vmatprep.mubr.bf16.mxu0 %v5310
    %8349 = vmatmul.mubr.bf16.gmra.mxu0 %v5309
    %v8350 = vpop.f32.mrf.mxu0
    %v8351 = vadd.f32 0.0, %v8350
    %v8352 = vpop.f32.mrf.mxu0
    %v8353 = vadd.f32 0.0, %v8352
    %v8354 = vpop.f32.mrf.mxu0
    %v8355 = vadd.f32 0.0, %v8354
    %v8356 = vpop.f32.mrf.mxu0
    %v8357 = vadd.f32 0.0, %v8356
    %8358 = vmatprep.mubr.bf16.mxu0 %v5313
    %8359 = vmatmul.mubr.bf16.gmra.mxu0 %v5312
    %v8360 = vpop.f32.mrf.mxu0
    %v8361 = vadd.f32 0.0, %v8360
    %v8362 = vpop.f32.mrf.mxu0
    %v8363 = vadd.f32 0.0, %v8362
    %v8364 = vpop.f32.mrf.mxu0
    %v8365 = vadd.f32 0.0, %v8364
    %v8366 = vpop.f32.mrf.mxu0
    %v8367 = vadd.f32 0.0, %v8366
    %8368 = vmatprep.mubr.bf16.mxu0 %v5316
    %8369 = vmatmul.mubr.bf16.gmra.mxu0 %v5315
    %v8370 = vpop.f32.mrf.mxu0
    %v8371 = vadd.f32 0.0, %v8370
    %v8372 = vpop.f32.mrf.mxu0
    %v8373 = vadd.f32 0.0, %v8372
    %v8374 = vpop.f32.mrf.mxu0
    %v8375 = vadd.f32 0.0, %v8374
    %v8376 = vpop.f32.mrf.mxu0
    %v8377 = vadd.f32 0.0, %v8376
    %8378 = vdwg.mxu0
    %8379 = vmatprep.subr.bf16.mxu0 %v7943
    %8380 = vmatpush1.bf16.msra.mxu0 %v7942
    %8381 = vmatprep.subr.bf16.mxu0 %v7939
    %8382 = vmatpush1.bf16.msra.mxu0 %v7938
    %8383 = vmatprep.subr.bf16.mxu0 %v7935
    %8384 = vmatpush1.bf16.msra.mxu0 %v7934
    %8385 = vmatprep.subr.bf16.mxu0 %v7931
    %8386 = vmatpush1.bf16.msra.mxu0 %v7930
    %8387 = vmatprep.subr.bf16.mxu0 %v7927
    %8388 = vmatpush1.bf16.msra.mxu0 %v7926
    %8389 = vmatprep.subr.bf16.mxu0 %v7923
    %8390 = vmatpush1.bf16.msra.mxu0 %v7922
    %8391 = vmatprep.subr.bf16.mxu0 %v7919
    %8392 = vmatpush1.bf16.msra.mxu0 %v7918
    %8393 = vmatprep.subr.bf16.mxu0 %v7915
    %8394 = vmatpush1.bf16.msra.mxu0 %v7914
    %8395 = vmatprep.subr.bf16.mxu0 0
    %8396 = vmatpush2.bf16.msra.mxu0 0
    %8397 = vmatprep.subr.bf16.mxu0 0
    %8398 = vmatpush2.bf16.msra.mxu0 0
    %8399 = vmatprep.subr.bf16.mxu0 0
    %8400 = vmatpush2.bf16.msra.mxu0 0
    %8401 = vmatprep.subr.bf16.mxu0 0
    %8402 = vmatpush2.bf16.msra.mxu0 0
    %8403 = vmatprep.subr.bf16.mxu0 0
    %8404 = vmatpush2.bf16.msra.mxu0 0
    %8405 = vmatprep.subr.bf16.mxu0 0
    %8406 = vmatpush2.bf16.msra.mxu0 0
    %8407 = vmatprep.subr.bf16.mxu0 0
    %8408 = vmatpush2.bf16.msra.mxu0 0
    %8409 = vmatprep.subr.bf16.mxu0 0
    %8410 = vmatpush2.bf16.msra.mxu0 0
    %8411 = vmatprep.mubr.bf16.mxu0 0
    %8412 = vmatmul.mubr.bf16.gmra.mxu0 %v5296
    %v8413 = vpop.f32.mrf.mxu0
    %v8414 = vadd.f32 %v8301, %v8413
    %v8415 = vpop.f32.mrf.mxu0
    %v8416 = vadd.f32 %v8303, %v8415
    %v8417 = vpop.f32.mrf.mxu0
    %v8418 = vadd.f32 %v8305, %v8417
    %v8419 = vpop.f32.mrf.mxu0
    %v8420 = vadd.f32 %v8307, %v8419
    %8421 = vmatprep.mubr.bf16.mxu0 0
    %8422 = vmatmul.mubr.bf16.gmra.mxu0 %v5299
    %v8423 = vpop.f32.mrf.mxu0
    %v8424 = vadd.f32 %v8311, %v8423
    %v8425 = vpop.f32.mrf.mxu0
    %v8426 = vadd.f32 %v8313, %v8425
    %v8427 = vpop.f32.mrf.mxu0
    %v8428 = vadd.f32 %v8315, %v8427
    %v8429 = vpop.f32.mrf.mxu0
    %v8430 = vadd.f32 %v8317, %v8429
    %8431 = vmatprep.mubr.bf16.mxu0 0
    %8432 = vmatmul.mubr.bf16.gmra.mxu0 %v5302
    %v8433 = vpop.f32.mrf.mxu0
    %v8434 = vadd.f32 %v8321, %v8433
    %v8435 = vpop.f32.mrf.mxu0
    %v8436 = vadd.f32 %v8323, %v8435
    %v8437 = vpop.f32.mrf.mxu0
    %v8438 = vadd.f32 %v8325, %v8437
    %v8439 = vpop.f32.mrf.mxu0
    %v8440 = vadd.f32 %v8327, %v8439
    %8441 = vmatprep.mubr.bf16.mxu0 0
    %8442 = vmatmul.mubr.bf16.gmra.mxu0 %v5305
    %v8443 = vpop.f32.mrf.mxu0
    %v8444 = vadd.f32 %v8331, %v8443
    %v8445 = vpop.f32.mrf.mxu0
    %v8446 = vadd.f32 %v8333, %v8445
    %v8447 = vpop.f32.mrf.mxu0
    %v8448 = vadd.f32 %v8335, %v8447
    %v8449 = vpop.f32.mrf.mxu0
    %v8450 = vadd.f32 %v8337, %v8449
    %8451 = vmatprep.mubr.bf16.mxu0 0
    %8452 = vmatmul.mubr.bf16.gmra.mxu0 %v5308
    %v8453 = vpop.f32.mrf.mxu0
    %v8454 = vadd.f32 %v8341, %v8453
    %v8455 = vpop.f32.mrf.mxu0
    %v8456 = vadd.f32 %v8343, %v8455
    %v8457 = vpop.f32.mrf.mxu0
    %v8458 = vadd.f32 %v8345, %v8457
    %v8459 = vpop.f32.mrf.mxu0
    %v8460 = vadd.f32 %v8347, %v8459
    %8461 = vmatprep.mubr.bf16.mxu0 0
    %8462 = vmatmul.mubr.bf16.gmra.mxu0 %v5311
    %v8463 = vpop.f32.mrf.mxu0
    %v8464 = vadd.f32 %v8351, %v8463
    %v8465 = vpop.f32.mrf.mxu0
    %v8466 = vadd.f32 %v8353, %v8465
    %v8467 = vpop.f32.mrf.mxu0
    %v8468 = vadd.f32 %v8355, %v8467
    %v8469 = vpop.f32.mrf.mxu0
    %v8470 = vadd.f32 %v8357, %v8469
    %8471 = vmatprep.mubr.bf16.mxu0 0
    %8472 = vmatmul.mubr.bf16.gmra.mxu0 %v5314
    %v8473 = vpop.f32.mrf.mxu0
    %v8474 = vadd.f32 %v8361, %v8473
    %v8475 = vpop.f32.mrf.mxu0
    %v8476 = vadd.f32 %v8363, %v8475
    %v8477 = vpop.f32.mrf.mxu0
    %v8478 = vadd.f32 %v8365, %v8477
    %v8479 = vpop.f32.mrf.mxu0
    %v8480 = vadd.f32 %v8367, %v8479
    %8481 = vmatprep.mubr.bf16.mxu0 0
    %8482 = vmatmul.mubr.bf16.gmra.mxu0 %v5317
    %v8483 = vpop.f32.mrf.mxu0
    %v8484 = vadd.f32 %v8371, %v8483
    %v8485 = vpop.f32.mrf.mxu0
    %v8486 = vadd.f32 %v8373, %v8485
    %v8487 = vpop.f32.mrf.mxu0
    %v8488 = vadd.f32 %v8375, %v8487
    %v8489 = vpop.f32.mrf.mxu0
    %v8490 = vadd.f32 %v8377, %v8489
    %8491 = vdwg.mxu0
    %v8524 = vrot.slane %v8188, 1
    %v8525 = vrot.slane %v8190, 1
    %v8526 = vrot.slane %v8414, 1
    %v8527 = vrot.slane %v8416, 1
    %v8528 = vrot.slane %v8192, 1
    %v8529 = vrot.slane %v8194, 1
    %v8530 = vrot.slane %v8418, 1
    %v8531 = vrot.slane %v8420, 1
    %v8532 = vrot.slane %v8198, 1
    %v8533 = vrot.slane %v8200, 1
    %v8534 = vrot.slane %v8424, 1
    %v8535 = vrot.slane %v8426, 1
    %v8536 = vrot.slane %v8202, 1
    %v8537 = vrot.slane %v8204, 1
    %v8538 = vrot.slane %v8428, 1
    %v8539 = vrot.slane %v8430, 1
    %v8540 = vrot.slane %v8208, 1
    %v8541 = vrot.slane %v8210, 1
    %v8542 = vrot.slane %v8434, 1
    %v8543 = vrot.slane %v8436, 1
    %v8544 = vrot.slane %v8212, 1
    %v8545 = vrot.slane %v8214, 1
    %v8546 = vrot.slane %v8438, 1
    %v8547 = vrot.slane %v8440, 1
    %v8548 = vrot.slane %v8218, 1
    %v8549 = vrot.slane %v8220, 1
    %v8550 = vrot.slane %v8444, 1
    %v8551 = vrot.slane %v8446, 1
    %v8552 = vrot.slane %v8222, 1
    %v8553 = vrot.slane %v8224, 1
    %v8554 = vrot.slane %v8448, 1
    %v8555 = vrot.slane %v8450, 1
    %v8588 = vadd.f32 %v7303, %v8524
    %v8589 = vadd.f32 %v7304, %v8525
    %v8590 = vadd.f32 %v7305, %v8526
    %v8591 = vadd.f32 %v7306, %v8527
    %v8592 = vadd.f32 %v7307, %v8528
    %v8593 = vadd.f32 %v7308, %v8529
    %v8594 = vadd.f32 %v7309, %v8530
    %v8595 = vadd.f32 %v7310, %v8531
    %v8596 = vadd.f32 %v7311, %v8532
    %v8597 = vadd.f32 %v7312, %v8533
    %v8598 = vadd.f32 %v7313, %v8534
    %v8599 = vadd.f32 %v7314, %v8535
    %v8600 = vadd.f32 %v7315, %v8536
    %v8601 = vadd.f32 %v7316, %v8537
    %v8602 = vadd.f32 %v7317, %v8538
    %v8603 = vadd.f32 %v7318, %v8539
    %v8604 = vadd.f32 %v7319, %v8540
    %v8605 = vadd.f32 %v7320, %v8541
    %v8606 = vadd.f32 %v7321, %v8542
    %v8607 = vadd.f32 %v7322, %v8543
    %v8608 = vadd.f32 %v7323, %v8544
    %v8609 = vadd.f32 %v7324, %v8545
    %v8610 = vadd.f32 %v7325, %v8546
    %v8611 = vadd.f32 %v7326, %v8547
    %v8612 = vadd.f32 %v7327, %v8548
    %v8613 = vadd.f32 %v7328, %v8549
    %v8614 = vadd.f32 %v7329, %v8550
    %v8615 = vadd.f32 %v7330, %v8551
    %v8616 = vadd.f32 %v7331, %v8552
    %v8617 = vadd.f32 %v7332, %v8553
    %v8618 = vadd.f32 %v7333, %v8554
    %v8619 = vadd.f32 %v7334, %v8555
    %v8652 = vrot.slane %v8228, 1
    %v8653 = vrot.slane %v8230, 1
    %v8654 = vrot.slane %v8454, 1
    %v8655 = vrot.slane %v8456, 1
    %v8656 = vrot.slane %v8232, 1
    %v8657 = vrot.slane %v8234, 1
    %v8658 = vrot.slane %v8458, 1
    %v8659 = vrot.slane %v8460, 1
    %v8660 = vrot.slane %v8238, 1
    %v8661 = vrot.slane %v8240, 1
    %v8662 = vrot.slane %v8464, 1
    %v8663 = vrot.slane %v8466, 1
    %v8664 = vrot.slane %v8242, 1
    %v8665 = vrot.slane %v8244, 1
    %v8666 = vrot.slane %v8468, 1
    %v8667 = vrot.slane %v8470, 1
    %v8668 = vrot.slane %v8248, 1
    %v8669 = vrot.slane %v8250, 1
    %v8670 = vrot.slane %v8474, 1
    %v8671 = vrot.slane %v8476, 1
    %v8672 = vrot.slane %v8252, 1
    %v8673 = vrot.slane %v8254, 1
    %v8674 = vrot.slane %v8478, 1
    %v8675 = vrot.slane %v8480, 1
    %v8676 = vrot.slane %v8258, 1
    %v8677 = vrot.slane %v8260, 1
    %v8678 = vrot.slane %v8484, 1
    %v8679 = vrot.slane %v8486, 1
    %v8680 = vrot.slane %v8262, 1
    %v8681 = vrot.slane %v8264, 1
    %v8682 = vrot.slane %v8488, 1
    %v8683 = vrot.slane %v8490, 1
    %v8716 = vadd.f32 %v7431, %v8652
    %v8717 = vadd.f32 %v7432, %v8653
    %v8718 = vadd.f32 %v7433, %v8654
    %v8719 = vadd.f32 %v7434, %v8655
    %v8720 = vadd.f32 %v7435, %v8656
    %v8721 = vadd.f32 %v7436, %v8657
    %v8722 = vadd.f32 %v7437, %v8658
    %v8723 = vadd.f32 %v7438, %v8659
    %v8724 = vadd.f32 %v7439, %v8660
    %v8725 = vadd.f32 %v7440, %v8661
    %v8726 = vadd.f32 %v7441, %v8662
    %v8727 = vadd.f32 %v7442, %v8663
    %v8728 = vadd.f32 %v7443, %v8664
    %v8729 = vadd.f32 %v7444, %v8665
    %v8730 = vadd.f32 %v7445, %v8666
    %v8731 = vadd.f32 %v7446, %v8667
    %v8732 = vadd.f32 %v7447, %v8668
    %v8733 = vadd.f32 %v7448, %v8669
    %v8734 = vadd.f32 %v7449, %v8670
    %v8735 = vadd.f32 %v7450, %v8671
    %v8736 = vadd.f32 %v7451, %v8672
    %v8737 = vadd.f32 %v7452, %v8673
    %v8738 = vadd.f32 %v7453, %v8674
    %v8739 = vadd.f32 %v7454, %v8675
    %v8740 = vadd.f32 %v7455, %v8676
    %v8741 = vadd.f32 %v7456, %v8677
    %v8742 = vadd.f32 %v7457, %v8678
    %v8743 = vadd.f32 %v7458, %v8679
    %v8744 = vadd.f32 %v7459, %v8680
    %v8745 = vadd.f32 %v7460, %v8681
    %v8746 = vadd.f32 %v7461, %v8682
    %v8747 = vadd.f32 %v7462, %v8683
    %s8748 = scalar_lea.vmem [#allocation6], 2304
    %v8749 = vld [vmem:[%s8748] sm:$0xff]
    %v8750 = vld [vmem:[%s8748 + $0x8] sm:$0xff]
    %v8751 = vld [vmem:[%s8748 + $0x10] sm:$0xff]
    %v8752 = vld [vmem:[%s8748 + $0x18] sm:$0xff]
    %v8753 = vld [vmem:[%s8748 + $0x20] sm:$0xff]
    %v8754 = vld [vmem:[%s8748 + $0x28] sm:$0xff]
    %v8755 = vld [vmem:[%s8748 + $0x30] sm:$0xff]
    %v8756 = vld [vmem:[%s8748 + $0x38] sm:$0xff]
    %v8757 = vld [vmem:[%s8748 + $0x40] sm:$0xff]
    %v8758 = vld [vmem:[%s8748 + $0x48] sm:$0xff]
    %v8759 = vld [vmem:[%s8748 + $0x50] sm:$0xff]
    %v8760 = vld [vmem:[%s8748 + $0x58] sm:$0xff]
    %v8761 = vld [vmem:[%s8748 + $0x60] sm:$0xff]
    %v8762 = vld [vmem:[%s8748 + $0x68] sm:$0xff]
    %v8763 = vld [vmem:[%s8748 + $0x70] sm:$0xff]
    %v8764 = vld [vmem:[%s8748 + $0x78] sm:$0xff]
    %v8765 = vld [vmem:[%s8748 + $0x80] sm:$0xff]
    %v8766 = vld [vmem:[%s8748 + $0x88] sm:$0xff]
    %v8767 = vld [vmem:[%s8748 + $0x90] sm:$0xff]
    %v8768 = vld [vmem:[%s8748 + $0x98] sm:$0xff]
    %v8769 = vld [vmem:[%s8748 + $0xa0] sm:$0xff]
    %v8770 = vld [vmem:[%s8748 + $0xa8] sm:$0xff]
    %v8771 = vld [vmem:[%s8748 + $0xb0] sm:$0xff]
    %v8772 = vld [vmem:[%s8748 + $0xb8] sm:$0xff]
    %v8773 = vld [vmem:[%s8748 + $0xc0] sm:$0xff]
    %v8774 = vld [vmem:[%s8748 + $0xc8] sm:$0xff]
    %v8775 = vld [vmem:[%s8748 + $0xd0] sm:$0xff]
    %v8776 = vld [vmem:[%s8748 + $0xd8] sm:$0xff]
    %v8777 = vld [vmem:[%s8748 + $0xe0] sm:$0xff]
    %v8778 = vld [vmem:[%s8748 + $0xe8] sm:$0xff]
    %v8779 = vld [vmem:[%s8748 + $0xf0] sm:$0xff]
    %v8780 = vld [vmem:[%s8748 + $0xf8] sm:$0xff]
    %v8781 = vld [vmem:[%s8748 + $0x100] sm:$0xff]
    %v8782 = vld [vmem:[%s8748 + $0x108] sm:$0xff]
    %v8783 = vld [vmem:[%s8748 + $0x110] sm:$0xff]
    %v8784 = vld [vmem:[%s8748 + $0x118] sm:$0xff]
    %v8785 = vld [vmem:[%s8748 + $0x120] sm:$0xff]
    %v8786 = vld [vmem:[%s8748 + $0x128] sm:$0xff]
    %v8787 = vld [vmem:[%s8748 + $0x130] sm:$0xff]
    %v8788 = vld [vmem:[%s8748 + $0x138] sm:$0xff]
    %v8789 = vld [vmem:[%s8748 + $0x140] sm:$0xff]
    %v8790 = vld [vmem:[%s8748 + $0x148] sm:$0xff]
    %v8791 = vld [vmem:[%s8748 + $0x150] sm:$0xff]
    %v8792 = vld [vmem:[%s8748 + $0x158] sm:$0xff]
    %v8793 = vld [vmem:[%s8748 + $0x160] sm:$0xff]
    %v8794 = vld [vmem:[%s8748 + $0x168] sm:$0xff]
    %v8795 = vld [vmem:[%s8748 + $0x170] sm:$0xff]
    %v8796 = vld [vmem:[%s8748 + $0x178] sm:$0xff]
    %v8797 = vld [vmem:[%s8748 + $0x180] sm:$0xff]
    %v8798 = vld [vmem:[%s8748 + $0x188] sm:$0xff]
    %v8799 = vld [vmem:[%s8748 + $0x190] sm:$0xff]
    %v8800 = vld [vmem:[%s8748 + $0x198] sm:$0xff]
    %v8801 = vld [vmem:[%s8748 + $0x1a0] sm:$0xff]
    %v8802 = vld [vmem:[%s8748 + $0x1a8] sm:$0xff]
    %v8803 = vld [vmem:[%s8748 + $0x1b0] sm:$0xff]
    %v8804 = vld [vmem:[%s8748 + $0x1b8] sm:$0xff]
    %v8805 = vld [vmem:[%s8748 + $0x1c0] sm:$0xff]
    %v8806 = vld [vmem:[%s8748 + $0x1c8] sm:$0xff]
    %v8807 = vld [vmem:[%s8748 + $0x1d0] sm:$0xff]
    %v8808 = vld [vmem:[%s8748 + $0x1d8] sm:$0xff]
    %v8809 = vld [vmem:[%s8748 + $0x1e0] sm:$0xff]
    %v8810 = vld [vmem:[%s8748 + $0x1e8] sm:$0xff]
    %v8811 = vld [vmem:[%s8748 + $0x1f0] sm:$0xff]
    %v8812 = vld [vmem:[%s8748 + $0x1f8] sm:$0xff]
    %v8813 = vld [vmem:[%s8748 + $0x200] sm:$0xff]
    %v8814 = vld [vmem:[%s8748 + $0x208] sm:$0xff]
    %v8815 = vld [vmem:[%s8748 + $0x210] sm:$0xff]
    %v8816 = vld [vmem:[%s8748 + $0x218] sm:$0xff]
    %v8817 = vld [vmem:[%s8748 + $0x220] sm:$0xff]
    %v8818 = vld [vmem:[%s8748 + $0x228] sm:$0xff]
    %v8819 = vld [vmem:[%s8748 + $0x230] sm:$0xff]
    %v8820 = vld [vmem:[%s8748 + $0x238] sm:$0xff]
    %v8821 = vld [vmem:[%s8748 + $0x240] sm:$0xff]
    %v8822 = vld [vmem:[%s8748 + $0x248] sm:$0xff]
    %v8823 = vld [vmem:[%s8748 + $0x250] sm:$0xff]
    %v8824 = vld [vmem:[%s8748 + $0x258] sm:$0xff]
    %v8825 = vld [vmem:[%s8748 + $0x260] sm:$0xff]
    %v8826 = vld [vmem:[%s8748 + $0x268] sm:$0xff]
    %v8827 = vld [vmem:[%s8748 + $0x270] sm:$0xff]
    %v8828 = vld [vmem:[%s8748 + $0x278] sm:$0xff]
    %v8829 = vld [vmem:[%s8748 + $0x280] sm:$0xff]
    %v8830 = vld [vmem:[%s8748 + $0x288] sm:$0xff]
    %v8831 = vld [vmem:[%s8748 + $0x290] sm:$0xff]
    %v8832 = vld [vmem:[%s8748 + $0x298] sm:$0xff]
    %v8833 = vld [vmem:[%s8748 + $0x2a0] sm:$0xff]
    %v8834 = vld [vmem:[%s8748 + $0x2a8] sm:$0xff]
    %v8835 = vld [vmem:[%s8748 + $0x2b0] sm:$0xff]
    %v8836 = vld [vmem:[%s8748 + $0x2b8] sm:$0xff]
    %v8837 = vld [vmem:[%s8748 + $0x2c0] sm:$0xff]
    %v8838 = vld [vmem:[%s8748 + $0x2c8] sm:$0xff]
    %v8839 = vld [vmem:[%s8748 + $0x2d0] sm:$0xff]
    %v8840 = vld [vmem:[%s8748 + $0x2d8] sm:$0xff]
    %v8841 = vld [vmem:[%s8748 + $0x2e0] sm:$0xff]
    %v8842 = vld [vmem:[%s8748 + $0x2e8] sm:$0xff]
    %v8843 = vld [vmem:[%s8748 + $0x2f0] sm:$0xff]
    %v8844 = vld [vmem:[%s8748 + $0x2f8] sm:$0xff]
    %v8941 = vunpack.c.l.b16 %v8749
    %v8942 = vunpack.c.h.b16 %v8749
    %v8943 = vunpack.c.l.b16 %v8750
    %v8944 = vunpack.c.h.b16 %v8750
    %v8945 = vunpack.c.l.b16 %v8751
    %v8946 = vunpack.c.h.b16 %v8751
    %v8947 = vunpack.c.l.b16 %v8752
    %v8948 = vunpack.c.h.b16 %v8752
    %v8949 = vunpack.c.l.b16 %v8753
    %v8950 = vunpack.c.h.b16 %v8753
    %v8951 = vunpack.c.l.b16 %v8754
    %v8952 = vunpack.c.h.b16 %v8754
    %v8953 = vunpack.c.l.b16 %v8755
    %v8954 = vunpack.c.h.b16 %v8755
    %v8955 = vunpack.c.l.b16 %v8756
    %v8956 = vunpack.c.h.b16 %v8756
    %v8957 = vunpack.c.l.b16 %v8757
    %v8958 = vunpack.c.h.b16 %v8757
    %v8959 = vunpack.c.l.b16 %v8758
    %v8960 = vunpack.c.h.b16 %v8758
    %v8961 = vunpack.c.l.b16 %v8759
    %v8962 = vunpack.c.h.b16 %v8759
    %v8963 = vunpack.c.l.b16 %v8760
    %v8964 = vunpack.c.h.b16 %v8760
    %v8965 = vunpack.c.l.b16 %v8761
    %v8966 = vunpack.c.h.b16 %v8761
    %v8967 = vunpack.c.l.b16 %v8762
    %v8968 = vunpack.c.h.b16 %v8762
    %v8969 = vunpack.c.l.b16 %v8763
    %v8970 = vunpack.c.h.b16 %v8763
    %v8971 = vunpack.c.l.b16 %v8764
    %v8972 = vunpack.c.h.b16 %v8764
    %v8973 = vunpack.c.l.b16 %v8765
    %v8974 = vunpack.c.h.b16 %v8765
    %v8975 = vunpack.c.l.b16 %v8766
    %v8976 = vunpack.c.h.b16 %v8766
    %v8977 = vunpack.c.l.b16 %v8767
    %v8978 = vunpack.c.h.b16 %v8767
    %v8979 = vunpack.c.l.b16 %v8768
    %v8980 = vunpack.c.h.b16 %v8768
    %v8981 = vunpack.c.l.b16 %v8769
    %v8982 = vunpack.c.h.b16 %v8769
    %v8983 = vunpack.c.l.b16 %v8770
    %v8984 = vunpack.c.h.b16 %v8770
    %v8985 = vunpack.c.l.b16 %v8771
    %v8986 = vunpack.c.h.b16 %v8771
    %v8987 = vunpack.c.l.b16 %v8772
    %v8988 = vunpack.c.h.b16 %v8772
    %v8989 = vunpack.c.l.b16 %v8773
    %v8990 = vunpack.c.h.b16 %v8773
    %v8991 = vunpack.c.l.b16 %v8774
    %v8992 = vunpack.c.h.b16 %v8774
    %v8993 = vunpack.c.l.b16 %v8775
    %v8994 = vunpack.c.h.b16 %v8775
    %v8995 = vunpack.c.l.b16 %v8776
    %v8996 = vunpack.c.h.b16 %v8776
    %v8997 = vunpack.c.l.b16 %v8777
    %v8998 = vunpack.c.h.b16 %v8777
    %v8999 = vunpack.c.l.b16 %v8778
    %v9000 = vunpack.c.h.b16 %v8778
    %v9001 = vunpack.c.l.b16 %v8779
    %v9002 = vunpack.c.h.b16 %v8779
    %v9003 = vunpack.c.l.b16 %v8780
    %v9004 = vunpack.c.h.b16 %v8780
    %v9005 = vunpack.c.l.b16 %v8781
    %v9006 = vunpack.c.h.b16 %v8781
    %v9007 = vunpack.c.l.b16 %v8782
    %v9008 = vunpack.c.h.b16 %v8782
    %v9009 = vunpack.c.l.b16 %v8783
    %v9010 = vunpack.c.h.b16 %v8783
    %v9011 = vunpack.c.l.b16 %v8784
    %v9012 = vunpack.c.h.b16 %v8784
    %v9013 = vunpack.c.l.b16 %v8785
    %v9014 = vunpack.c.h.b16 %v8785
    %v9015 = vunpack.c.l.b16 %v8786
    %v9016 = vunpack.c.h.b16 %v8786
    %v9017 = vunpack.c.l.b16 %v8787
    %v9018 = vunpack.c.h.b16 %v8787
    %v9019 = vunpack.c.l.b16 %v8788
    %v9020 = vunpack.c.h.b16 %v8788
    %v9021 = vunpack.c.l.b16 %v8789
    %v9022 = vunpack.c.h.b16 %v8789
    %v9023 = vunpack.c.l.b16 %v8790
    %v9024 = vunpack.c.h.b16 %v8790
    %v9025 = vunpack.c.l.b16 %v8791
    %v9026 = vunpack.c.h.b16 %v8791
    %v9027 = vunpack.c.l.b16 %v8792
    %v9028 = vunpack.c.h.b16 %v8792
    %v9029 = vunpack.c.l.b16 %v8793
    %v9030 = vunpack.c.h.b16 %v8793
    %v9031 = vunpack.c.l.b16 %v8794
    %v9032 = vunpack.c.h.b16 %v8794
    %v9033 = vunpack.c.l.b16 %v8795
    %v9034 = vunpack.c.h.b16 %v8795
    %v9035 = vunpack.c.l.b16 %v8796
    %v9036 = vunpack.c.h.b16 %v8796
    %v9037 = vunpack.c.l.b16 %v8797
    %v9038 = vunpack.c.h.b16 %v8797
    %v9039 = vunpack.c.l.b16 %v8798
    %v9040 = vunpack.c.h.b16 %v8798
    %v9041 = vunpack.c.l.b16 %v8799
    %v9042 = vunpack.c.h.b16 %v8799
    %v9043 = vunpack.c.l.b16 %v8800
    %v9044 = vunpack.c.h.b16 %v8800
    %v9045 = vunpack.c.l.b16 %v8801
    %v9046 = vunpack.c.h.b16 %v8801
    %v9047 = vunpack.c.l.b16 %v8802
    %v9048 = vunpack.c.h.b16 %v8802
    %v9049 = vunpack.c.l.b16 %v8803
    %v9050 = vunpack.c.h.b16 %v8803
    %v9051 = vunpack.c.l.b16 %v8804
    %v9052 = vunpack.c.h.b16 %v8804
    %v9053 = vunpack.c.l.b16 %v8805
    %v9054 = vunpack.c.h.b16 %v8805
    %v9055 = vunpack.c.l.b16 %v8806
    %v9056 = vunpack.c.h.b16 %v8806
    %v9057 = vunpack.c.l.b16 %v8807
    %v9058 = vunpack.c.h.b16 %v8807
    %v9059 = vunpack.c.l.b16 %v8808
    %v9060 = vunpack.c.h.b16 %v8808
    %v9061 = vunpack.c.l.b16 %v8809
    %v9062 = vunpack.c.h.b16 %v8809
    %v9063 = vunpack.c.l.b16 %v8810
    %v9064 = vunpack.c.h.b16 %v8810
    %v9065 = vunpack.c.l.b16 %v8811
    %v9066 = vunpack.c.h.b16 %v8811
    %v9067 = vunpack.c.l.b16 %v8812
    %v9068 = vunpack.c.h.b16 %v8812
    %v9069 = vunpack.c.l.b16 %v8813
    %v9070 = vunpack.c.h.b16 %v8813
    %v9071 = vunpack.c.l.b16 %v8814
    %v9072 = vunpack.c.h.b16 %v8814
    %v9073 = vunpack.c.l.b16 %v8815
    %v9074 = vunpack.c.h.b16 %v8815
    %v9075 = vunpack.c.l.b16 %v8816
    %v9076 = vunpack.c.h.b16 %v8816
    %v9077 = vunpack.c.l.b16 %v8817
    %v9078 = vunpack.c.h.b16 %v8817
    %v9079 = vunpack.c.l.b16 %v8818
    %v9080 = vunpack.c.h.b16 %v8818
    %v9081 = vunpack.c.l.b16 %v8819
    %v9082 = vunpack.c.h.b16 %v8819
    %v9083 = vunpack.c.l.b16 %v8820
    %v9084 = vunpack.c.h.b16 %v8820
    %v9085 = vunpack.c.l.b16 %v8821
    %v9086 = vunpack.c.h.b16 %v8821
    %v9087 = vunpack.c.l.b16 %v8822
    %v9088 = vunpack.c.h.b16 %v8822
    %v9089 = vunpack.c.l.b16 %v8823
    %v9090 = vunpack.c.h.b16 %v8823
    %v9091 = vunpack.c.l.b16 %v8824
    %v9092 = vunpack.c.h.b16 %v8824
    %v9093 = vunpack.c.l.b16 %v8825
    %v9094 = vunpack.c.h.b16 %v8825
    %v9095 = vunpack.c.l.b16 %v8826
    %v9096 = vunpack.c.h.b16 %v8826
    %v9097 = vunpack.c.l.b16 %v8827
    %v9098 = vunpack.c.h.b16 %v8827
    %v9099 = vunpack.c.l.b16 %v8828
    %v9100 = vunpack.c.h.b16 %v8828
    %v9101 = vunpack.c.l.b16 %v8829
    %v9102 = vunpack.c.h.b16 %v8829
    %v9103 = vunpack.c.l.b16 %v8830
    %v9104 = vunpack.c.h.b16 %v8830
    %v9105 = vunpack.c.l.b16 %v8831
    %v9106 = vunpack.c.h.b16 %v8831
    %v9107 = vunpack.c.l.b16 %v8832
    %v9108 = vunpack.c.h.b16 %v8832
    %v9109 = vunpack.c.l.b16 %v8833
    %v9110 = vunpack.c.h.b16 %v8833
    %v9111 = vunpack.c.l.b16 %v8834
    %v9112 = vunpack.c.h.b16 %v8834
    %v9113 = vunpack.c.l.b16 %v8835
    %v9114 = vunpack.c.h.b16 %v8835
    %v9115 = vunpack.c.l.b16 %v8836
    %v9116 = vunpack.c.h.b16 %v8836
    %v9117 = vunpack.c.l.b16 %v8837
    %v9118 = vunpack.c.h.b16 %v8837
    %v9119 = vunpack.c.l.b16 %v8838
    %v9120 = vunpack.c.h.b16 %v8838
    %v9121 = vunpack.c.l.b16 %v8839
    %v9122 = vunpack.c.h.b16 %v8839
    %v9123 = vunpack.c.l.b16 %v8840
    %v9124 = vunpack.c.h.b16 %v8840
    %v9125 = vunpack.c.l.b16 %v8841
    %v9126 = vunpack.c.h.b16 %v8841
    %v9127 = vunpack.c.l.b16 %v8842
    %v9128 = vunpack.c.h.b16 %v8842
    %v9129 = vunpack.c.l.b16 %v8843
    %v9130 = vunpack.c.h.b16 %v8843
    %v9131 = vunpack.c.l.b16 %v8844
    %v9132 = vunpack.c.h.b16 %v8844
    %v9133 = vpack.c.b16 %v8945, %v8941
    %v9134 = vpack.c.b16 %v8946, %v8942
    %v9135 = vpack.c.b16 %v8947, %v8943
    %v9136 = vpack.c.b16 %v8948, %v8944
    %v9137 = vpack.c.b16 %v8953, %v8949
    %v9138 = vpack.c.b16 %v8954, %v8950
    %v9139 = vpack.c.b16 %v8955, %v8951
    %v9140 = vpack.c.b16 %v8956, %v8952
    %v9141 = vpack.c.b16 %v8961, %v8957
    %v9142 = vpack.c.b16 %v8962, %v8958
    %v9143 = vpack.c.b16 %v8963, %v8959
    %v9144 = vpack.c.b16 %v8964, %v8960
    %v9145 = vpack.c.b16 %v8969, %v8965
    %v9146 = vpack.c.b16 %v8970, %v8966
    %v9147 = vpack.c.b16 %v8971, %v8967
    %v9148 = vpack.c.b16 %v8972, %v8968
    %v9149 = vpack.c.b16 %v8977, %v8973
    %v9150 = vpack.c.b16 %v8978, %v8974
    %v9151 = vpack.c.b16 %v8979, %v8975
    %v9152 = vpack.c.b16 %v8980, %v8976
    %v9153 = vpack.c.b16 %v8985, %v8981
    %v9154 = vpack.c.b16 %v8986, %v8982
    %v9155 = vpack.c.b16 %v8987, %v8983
    %v9156 = vpack.c.b16 %v8988, %v8984
    %v9157 = vpack.c.b16 %v8993, %v8989
    %v9158 = vpack.c.b16 %v8994, %v8990
    %v9159 = vpack.c.b16 %v8995, %v8991
    %v9160 = vpack.c.b16 %v8996, %v8992
    %v9161 = vpack.c.b16 %v9001, %v8997
    %v9162 = vpack.c.b16 %v9002, %v8998
    %v9163 = vpack.c.b16 %v9003, %v8999
    %v9164 = vpack.c.b16 %v9004, %v9000
    %v9165 = vpack.c.b16 %v9009, %v9005
    %v9166 = vpack.c.b16 %v9010, %v9006
    %v9167 = vpack.c.b16 %v9011, %v9007
    %v9168 = vpack.c.b16 %v9012, %v9008
    %v9169 = vpack.c.b16 %v9017, %v9013
    %v9170 = vpack.c.b16 %v9018, %v9014
    %v9171 = vpack.c.b16 %v9019, %v9015
    %v9172 = vpack.c.b16 %v9020, %v9016
    %v9173 = vpack.c.b16 %v9025, %v9021
    %v9174 = vpack.c.b16 %v9026, %v9022
    %v9175 = vpack.c.b16 %v9027, %v9023
    %v9176 = vpack.c.b16 %v9028, %v9024
    %v9177 = vpack.c.b16 %v9033, %v9029
    %v9178 = vpack.c.b16 %v9034, %v9030
    %v9179 = vpack.c.b16 %v9035, %v9031
    %v9180 = vpack.c.b16 %v9036, %v9032
    %v9181 = vpack.c.b16 %v9041, %v9037
    %v9182 = vpack.c.b16 %v9042, %v9038
    %v9183 = vpack.c.b16 %v9043, %v9039
    %v9184 = vpack.c.b16 %v9044, %v9040
    %v9185 = vpack.c.b16 %v9049, %v9045
    %v9186 = vpack.c.b16 %v9050, %v9046
    %v9187 = vpack.c.b16 %v9051, %v9047
    %v9188 = vpack.c.b16 %v9052, %v9048
    %v9189 = vpack.c.b16 %v9057, %v9053
    %v9190 = vpack.c.b16 %v9058, %v9054
    %v9191 = vpack.c.b16 %v9059, %v9055
    %v9192 = vpack.c.b16 %v9060, %v9056
    %v9193 = vpack.c.b16 %v9065, %v9061
    %v9194 = vpack.c.b16 %v9066, %v9062
    %v9195 = vpack.c.b16 %v9067, %v9063
    %v9196 = vpack.c.b16 %v9068, %v9064
    %v9197 = vpack.c.b16 %v9073, %v9069
    %v9198 = vpack.c.b16 %v9074, %v9070
    %v9199 = vpack.c.b16 %v9075, %v9071
    %v9200 = vpack.c.b16 %v9076, %v9072
    %v9201 = vpack.c.b16 %v9081, %v9077
    %v9202 = vpack.c.b16 %v9082, %v9078
    %v9203 = vpack.c.b16 %v9083, %v9079
    %v9204 = vpack.c.b16 %v9084, %v9080
    %v9205 = vpack.c.b16 %v9089, %v9085
    %v9206 = vpack.c.b16 %v9090, %v9086
    %v9207 = vpack.c.b16 %v9091, %v9087
    %v9208 = vpack.c.b16 %v9092, %v9088
    %v9209 = vpack.c.b16 %v9097, %v9093
    %v9210 = vpack.c.b16 %v9098, %v9094
    %v9211 = vpack.c.b16 %v9099, %v9095
    %v9212 = vpack.c.b16 %v9100, %v9096
    %v9213 = vpack.c.b16 %v9105, %v9101
    %v9214 = vpack.c.b16 %v9106, %v9102
    %v9215 = vpack.c.b16 %v9107, %v9103
    %v9216 = vpack.c.b16 %v9108, %v9104
    %v9217 = vpack.c.b16 %v9113, %v9109
    %v9218 = vpack.c.b16 %v9114, %v9110
    %v9219 = vpack.c.b16 %v9115, %v9111
    %v9220 = vpack.c.b16 %v9116, %v9112
    %v9221 = vpack.c.b16 %v9121, %v9117
    %v9222 = vpack.c.b16 %v9122, %v9118
    %v9223 = vpack.c.b16 %v9123, %v9119
    %v9224 = vpack.c.b16 %v9124, %v9120
    %v9225 = vpack.c.b16 %v9129, %v9125
    %v9226 = vpack.c.b16 %v9130, %v9126
    %v9227 = vpack.c.b16 %v9131, %v9127
    %v9228 = vpack.c.b16 %v9132, %v9128
    %9325 = vmatprep.subr.bf16.mxu0 %v9162
    %9326 = vmatpush1.bf16.msra.mxu0 %v9161
    %9327 = vmatprep.subr.bf16.mxu0 %v9158
    %9328 = vmatpush1.bf16.msra.mxu0 %v9157
    %9329 = vmatprep.subr.bf16.mxu0 %v9154
    %9330 = vmatpush1.bf16.msra.mxu0 %v9153
    %9331 = vmatprep.subr.bf16.mxu0 %v9150
    %9332 = vmatpush1.bf16.msra.mxu0 %v9149
    %9333 = vmatprep.subr.bf16.mxu0 %v9146
    %9334 = vmatpush1.bf16.msra.mxu0 %v9145
    %9335 = vmatprep.subr.bf16.mxu0 %v9142
    %9336 = vmatpush1.bf16.msra.mxu0 %v9141
    %9337 = vmatprep.subr.bf16.mxu0 %v9138
    %9338 = vmatpush1.bf16.msra.mxu0 %v9137
    %9339 = vmatprep.subr.bf16.mxu0 %v9134
    %9340 = vmatpush1.bf16.msra.mxu0 %v9133
    %9341 = vmatprep.subr.bf16.mxu0 %v9194
    %9342 = vmatpush2.bf16.msra.mxu0 %v9193
    %9343 = vmatprep.subr.bf16.mxu0 %v9190
    %9344 = vmatpush2.bf16.msra.mxu0 %v9189
    %9345 = vmatprep.subr.bf16.mxu0 %v9186
    %9346 = vmatpush2.bf16.msra.mxu0 %v9185
    %9347 = vmatprep.subr.bf16.mxu0 %v9182
    %9348 = vmatpush2.bf16.msra.mxu0 %v9181
    %9349 = vmatprep.subr.bf16.mxu0 %v9178
    %9350 = vmatpush2.bf16.msra.mxu0 %v9177
    %9351 = vmatprep.subr.bf16.mxu0 %v9174
    %9352 = vmatpush2.bf16.msra.mxu0 %v9173
    %9353 = vmatprep.subr.bf16.mxu0 %v9170
    %9354 = vmatpush2.bf16.msra.mxu0 %v9169
    %9355 = vmatprep.subr.bf16.mxu0 %v9166
    %9356 = vmatpush2.bf16.msra.mxu0 %v9165
    %9357 = vmatprep.mubr.bf16.mxu0 %v5307
    %9358 = vmatmul.mubr.bf16.gmra.mxu0 %v5306
    %v9359 = vpop.f32.mrf.mxu0
    %v9360 = vadd.f32 0.0, %v9359
    %v9361 = vpop.f32.mrf.mxu0
    %v9362 = vadd.f32 0.0, %v9361
    %v9363 = vpop.f32.mrf.mxu0
    %v9364 = vadd.f32 0.0, %v9363
    %v9365 = vpop.f32.mrf.mxu0
    %v9366 = vadd.f32 0.0, %v9365
    %9367 = vmatprep.mubr.bf16.mxu0 %v5310
    %9368 = vmatmul.mubr.bf16.gmra.mxu0 %v5309
    %v9369 = vpop.f32.mrf.mxu0
    %v9370 = vadd.f32 0.0, %v9369
    %v9371 = vpop.f32.mrf.mxu0
    %v9372 = vadd.f32 0.0, %v9371
    %v9373 = vpop.f32.mrf.mxu0
    %v9374 = vadd.f32 0.0, %v9373
    %v9375 = vpop.f32.mrf.mxu0
    %v9376 = vadd.f32 0.0, %v9375
    %9377 = vmatprep.mubr.bf16.mxu0 %v5313
    %9378 = vmatmul.mubr.bf16.gmra.mxu0 %v5312
    %v9379 = vpop.f32.mrf.mxu0
    %v9380 = vadd.f32 0.0, %v9379
    %v9381 = vpop.f32.mrf.mxu0
    %v9382 = vadd.f32 0.0, %v9381
    %v9383 = vpop.f32.mrf.mxu0
    %v9384 = vadd.f32 0.0, %v9383
    %v9385 = vpop.f32.mrf.mxu0
    %v9386 = vadd.f32 0.0, %v9385
    %9387 = vmatprep.mubr.bf16.mxu0 %v5316
    %9388 = vmatmul.mubr.bf16.gmra.mxu0 %v5315
    %v9389 = vpop.f32.mrf.mxu0
    %v9390 = vadd.f32 0.0, %v9389
    %v9391 = vpop.f32.mrf.mxu0
    %v9392 = vadd.f32 0.0, %v9391
    %v9393 = vpop.f32.mrf.mxu0
    %v9394 = vadd.f32 0.0, %v9393
    %v9395 = vpop.f32.mrf.mxu0
    %v9396 = vadd.f32 0.0, %v9395
    %9397 = vmatprep.mubr.bf16.mxu0 %v5295
    %9398 = vmatmul.mubr.bf16.gmra.mxu0 %v5294
    %v9399 = vpop.f32.mrf.mxu0
    %v9400 = vadd.f32 0.0, %v9399
    %v9401 = vpop.f32.mrf.mxu0
    %v9402 = vadd.f32 0.0, %v9401
    %v9403 = vpop.f32.mrf.mxu0
    %v9404 = vadd.f32 0.0, %v9403
    %v9405 = vpop.f32.mrf.mxu0
    %v9406 = vadd.f32 0.0, %v9405
    %9407 = vmatprep.mubr.bf16.mxu0 %v5298
    %9408 = vmatmul.mubr.bf16.gmra.mxu0 %v5297
    %v9409 = vpop.f32.mrf.mxu0
    %v9410 = vadd.f32 0.0, %v9409
    %v9411 = vpop.f32.mrf.mxu0
    %v9412 = vadd.f32 0.0, %v9411
    %v9413 = vpop.f32.mrf.mxu0
    %v9414 = vadd.f32 0.0, %v9413
    %v9415 = vpop.f32.mrf.mxu0
    %v9416 = vadd.f32 0.0, %v9415
    %9417 = vmatprep.mubr.bf16.mxu0 %v5301
    %9418 = vmatmul.mubr.bf16.gmra.mxu0 %v5300
    %v9419 = vpop.f32.mrf.mxu0
    %v9420 = vadd.f32 0.0, %v9419
    %v9421 = vpop.f32.mrf.mxu0
    %v9422 = vadd.f32 0.0, %v9421
    %v9423 = vpop.f32.mrf.mxu0
    %v9424 = vadd.f32 0.0, %v9423
    %v9425 = vpop.f32.mrf.mxu0
    %v9426 = vadd.f32 0.0, %v9425
    %9427 = vmatprep.mubr.bf16.mxu0 %v5304
    %9428 = vmatmul.mubr.bf16.gmra.mxu0 %v5303
    %v9429 = vpop.f32.mrf.mxu0
    %v9430 = vadd.f32 0.0, %v9429
    %v9431 = vpop.f32.mrf.mxu0
    %v9432 = vadd.f32 0.0, %v9431
    %v9433 = vpop.f32.mrf.mxu0
    %v9434 = vadd.f32 0.0, %v9433
    %v9435 = vpop.f32.mrf.mxu0
    %v9436 = vadd.f32 0.0, %v9435
    %9437 = vdwg.mxu0
    %9438 = vmatprep.subr.bf16.mxu0 %v9226
    %9439 = vmatpush1.bf16.msra.mxu0 %v9225
    %9440 = vmatprep.subr.bf16.mxu0 %v9222
    %9441 = vmatpush1.bf16.msra.mxu0 %v9221
    %9442 = vmatprep.subr.bf16.mxu0 %v9218
    %9443 = vmatpush1.bf16.msra.mxu0 %v9217
    %9444 = vmatprep.subr.bf16.mxu0 %v9214
    %9445 = vmatpush1.bf16.msra.mxu0 %v9213
    %9446 = vmatprep.subr.bf16.mxu0 %v9210
    %9447 = vmatpush1.bf16.msra.mxu0 %v9209
    %9448 = vmatprep.subr.bf16.mxu0 %v9206
    %9449 = vmatpush1.bf16.msra.mxu0 %v9205
    %9450 = vmatprep.subr.bf16.mxu0 %v9202
    %9451 = vmatpush1.bf16.msra.mxu0 %v9201
    %9452 = vmatprep.subr.bf16.mxu0 %v9198
    %9453 = vmatpush1.bf16.msra.mxu0 %v9197
    %9454 = vmatprep.subr.bf16.mxu0 0
    %9455 = vmatpush2.bf16.msra.mxu0 0
    %9456 = vmatprep.subr.bf16.mxu0 0
    %9457 = vmatpush2.bf16.msra.mxu0 0
    %9458 = vmatprep.subr.bf16.mxu0 0
    %9459 = vmatpush2.bf16.msra.mxu0 0
    %9460 = vmatprep.subr.bf16.mxu0 0
    %9461 = vmatpush2.bf16.msra.mxu0 0
    %9462 = vmatprep.subr.bf16.mxu0 0
    %9463 = vmatpush2.bf16.msra.mxu0 0
    %9464 = vmatprep.subr.bf16.mxu0 0
    %9465 = vmatpush2.bf16.msra.mxu0 0
    %9466 = vmatprep.subr.bf16.mxu0 0
    %9467 = vmatpush2.bf16.msra.mxu0 0
    %9468 = vmatprep.subr.bf16.mxu0 0
    %9469 = vmatpush2.bf16.msra.mxu0 0
    %9470 = vmatprep.mubr.bf16.mxu0 0
    %9471 = vmatmul.mubr.bf16.gmra.mxu0 %v5308
    %v9472 = vpop.f32.mrf.mxu0
    %v9473 = vadd.f32 %v9360, %v9472
    %v9474 = vpop.f32.mrf.mxu0
    %v9475 = vadd.f32 %v9362, %v9474
    %v9476 = vpop.f32.mrf.mxu0
    %v9477 = vadd.f32 %v9364, %v9476
    %v9478 = vpop.f32.mrf.mxu0
    %v9479 = vadd.f32 %v9366, %v9478
    %9480 = vmatprep.mubr.bf16.mxu0 0
    %9481 = vmatmul.mubr.bf16.gmra.mxu0 %v5311
    %v9482 = vpop.f32.mrf.mxu0
    %v9483 = vadd.f32 %v9370, %v9482
    %v9484 = vpop.f32.mrf.mxu0
    %v9485 = vadd.f32 %v9372, %v9484
    %v9486 = vpop.f32.mrf.mxu0
    %v9487 = vadd.f32 %v9374, %v9486
    %v9488 = vpop.f32.mrf.mxu0
    %v9489 = vadd.f32 %v9376, %v9488
    %9490 = vmatprep.mubr.bf16.mxu0 0
    %9491 = vmatmul.mubr.bf16.gmra.mxu0 %v5314
    %v9492 = vpop.f32.mrf.mxu0
    %v9493 = vadd.f32 %v9380, %v9492
    %v9494 = vpop.f32.mrf.mxu0
    %v9495 = vadd.f32 %v9382, %v9494
    %v9496 = vpop.f32.mrf.mxu0
    %v9497 = vadd.f32 %v9384, %v9496
    %v9498 = vpop.f32.mrf.mxu0
    %v9499 = vadd.f32 %v9386, %v9498
    %9500 = vmatprep.mubr.bf16.mxu0 0
    %9501 = vmatmul.mubr.bf16.gmra.mxu0 %v5317
    %v9502 = vpop.f32.mrf.mxu0
    %v9503 = vadd.f32 %v9390, %v9502
    %v9504 = vpop.f32.mrf.mxu0
    %v9505 = vadd.f32 %v9392, %v9504
    %v9506 = vpop.f32.mrf.mxu0
    %v9507 = vadd.f32 %v9394, %v9506
    %v9508 = vpop.f32.mrf.mxu0
    %v9509 = vadd.f32 %v9396, %v9508
    %9510 = vmatprep.mubr.bf16.mxu0 0
    %9511 = vmatmul.mubr.bf16.gmra.mxu0 %v5296
    %v9512 = vpop.f32.mrf.mxu0
    %v9513 = vadd.f32 %v9400, %v9512
    %v9514 = vpop.f32.mrf.mxu0
    %v9515 = vadd.f32 %v9402, %v9514
    %v9516 = vpop.f32.mrf.mxu0
    %v9517 = vadd.f32 %v9404, %v9516
    %v9518 = vpop.f32.mrf.mxu0
    %v9519 = vadd.f32 %v9406, %v9518
    %9520 = vmatprep.mubr.bf16.mxu0 0
    %9521 = vmatmul.mubr.bf16.gmra.mxu0 %v5299
    %v9522 = vpop.f32.mrf.mxu0
    %v9523 = vadd.f32 %v9410, %v9522
    %v9524 = vpop.f32.mrf.mxu0
    %v9525 = vadd.f32 %v9412, %v9524
    %v9526 = vpop.f32.mrf.mxu0
    %v9527 = vadd.f32 %v9414, %v9526
    %v9528 = vpop.f32.mrf.mxu0
    %v9529 = vadd.f32 %v9416, %v9528
    %9530 = vmatprep.mubr.bf16.mxu0 0
    %9531 = vmatmul.mubr.bf16.gmra.mxu0 %v5302
    %v9532 = vpop.f32.mrf.mxu0
    %v9533 = vadd.f32 %v9420, %v9532
    %v9534 = vpop.f32.mrf.mxu0
    %v9535 = vadd.f32 %v9422, %v9534
    %v9536 = vpop.f32.mrf.mxu0
    %v9537 = vadd.f32 %v9424, %v9536
    %v9538 = vpop.f32.mrf.mxu0
    %v9539 = vadd.f32 %v9426, %v9538
    %9540 = vmatprep.mubr.bf16.mxu0 0
    %9541 = vmatmul.mubr.bf16.gmra.mxu0 %v5305
    %v9542 = vpop.f32.mrf.mxu0
    %v9543 = vadd.f32 %v9430, %v9542
    %v9544 = vpop.f32.mrf.mxu0
    %v9545 = vadd.f32 %v9432, %v9544
    %v9546 = vpop.f32.mrf.mxu0
    %v9547 = vadd.f32 %v9434, %v9546
    %v9548 = vpop.f32.mrf.mxu0
    %v9549 = vadd.f32 %v9436, %v9548
    %9550 = vdwg.mxu0
    %9551 = vmatprep.subr.bf16.mxu0 %v9164
    %9552 = vmatpush1.bf16.msra.mxu0 %v9163
    %9553 = vmatprep.subr.bf16.mxu0 %v9160
    %9554 = vmatpush1.bf16.msra.mxu0 %v9159
    %9555 = vmatprep.subr.bf16.mxu0 %v9156
    %9556 = vmatpush1.bf16.msra.mxu0 %v9155
    %9557 = vmatprep.subr.bf16.mxu0 %v9152
    %9558 = vmatpush1.bf16.msra.mxu0 %v9151
    %9559 = vmatprep.subr.bf16.mxu0 %v9148
    %9560 = vmatpush1.bf16.msra.mxu0 %v9147
    %9561 = vmatprep.subr.bf16.mxu0 %v9144
    %9562 = vmatpush1.bf16.msra.mxu0 %v9143
    %9563 = vmatprep.subr.bf16.mxu0 %v9140
    %9564 = vmatpush1.bf16.msra.mxu0 %v9139
    %9565 = vmatprep.subr.bf16.mxu0 %v9136
    %9566 = vmatpush1.bf16.msra.mxu0 %v9135
    %9567 = vmatprep.subr.bf16.mxu0 %v9196
    %9568 = vmatpush2.bf16.msra.mxu0 %v9195
    %9569 = vmatprep.subr.bf16.mxu0 %v9192
    %9570 = vmatpush2.bf16.msra.mxu0 %v9191
    %9571 = vmatprep.subr.bf16.mxu0 %v9188
    %9572 = vmatpush2.bf16.msra.mxu0 %v9187
    %9573 = vmatprep.subr.bf16.mxu0 %v9184
    %9574 = vmatpush2.bf16.msra.mxu0 %v9183
    %9575 = vmatprep.subr.bf16.mxu0 %v9180
    %9576 = vmatpush2.bf16.msra.mxu0 %v9179
    %9577 = vmatprep.subr.bf16.mxu0 %v9176
    %9578 = vmatpush2.bf16.msra.mxu0 %v9175
    %9579 = vmatprep.subr.bf16.mxu0 %v9172
    %9580 = vmatpush2.bf16.msra.mxu0 %v9171
    %9581 = vmatprep.subr.bf16.mxu0 %v9168
    %9582 = vmatpush2.bf16.msra.mxu0 %v9167
    %9583 = vmatprep.mubr.bf16.mxu0 %v5307
    %9584 = vmatmul.mubr.bf16.gmra.mxu0 %v5306
    %v9585 = vpop.f32.mrf.mxu0
    %v9586 = vadd.f32 0.0, %v9585
    %v9587 = vpop.f32.mrf.mxu0
    %v9588 = vadd.f32 0.0, %v9587
    %v9589 = vpop.f32.mrf.mxu0
    %v9590 = vadd.f32 0.0, %v9589
    %v9591 = vpop.f32.mrf.mxu0
    %v9592 = vadd.f32 0.0, %v9591
    %9593 = vmatprep.mubr.bf16.mxu0 %v5310
    %9594 = vmatmul.mubr.bf16.gmra.mxu0 %v5309
    %v9595 = vpop.f32.mrf.mxu0
    %v9596 = vadd.f32 0.0, %v9595
    %v9597 = vpop.f32.mrf.mxu0
    %v9598 = vadd.f32 0.0, %v9597
    %v9599 = vpop.f32.mrf.mxu0
    %v9600 = vadd.f32 0.0, %v9599
    %v9601 = vpop.f32.mrf.mxu0
    %v9602 = vadd.f32 0.0, %v9601
    %9603 = vmatprep.mubr.bf16.mxu0 %v5313
    %9604 = vmatmul.mubr.bf16.gmra.mxu0 %v5312
    %v9605 = vpop.f32.mrf.mxu0
    %v9606 = vadd.f32 0.0, %v9605
    %v9607 = vpop.f32.mrf.mxu0
    %v9608 = vadd.f32 0.0, %v9607
    %v9609 = vpop.f32.mrf.mxu0
    %v9610 = vadd.f32 0.0, %v9609
    %v9611 = vpop.f32.mrf.mxu0
    %v9612 = vadd.f32 0.0, %v9611
    %9613 = vmatprep.mubr.bf16.mxu0 %v5316
    %9614 = vmatmul.mubr.bf16.gmra.mxu0 %v5315
    %v9615 = vpop.f32.mrf.mxu0
    %v9616 = vadd.f32 0.0, %v9615
    %v9617 = vpop.f32.mrf.mxu0
    %v9618 = vadd.f32 0.0, %v9617
    %v9619 = vpop.f32.mrf.mxu0
    %v9620 = vadd.f32 0.0, %v9619
    %v9621 = vpop.f32.mrf.mxu0
    %v9622 = vadd.f32 0.0, %v9621
    %9623 = vmatprep.mubr.bf16.mxu0 %v5295
    %9624 = vmatmul.mubr.bf16.gmra.mxu0 %v5294
    %v9625 = vpop.f32.mrf.mxu0
    %v9626 = vadd.f32 0.0, %v9625
    %v9627 = vpop.f32.mrf.mxu0
    %v9628 = vadd.f32 0.0, %v9627
    %v9629 = vpop.f32.mrf.mxu0
    %v9630 = vadd.f32 0.0, %v9629
    %v9631 = vpop.f32.mrf.mxu0
    %v9632 = vadd.f32 0.0, %v9631
    %9633 = vmatprep.mubr.bf16.mxu0 %v5298
    %9634 = vmatmul.mubr.bf16.gmra.mxu0 %v5297
    %v9635 = vpop.f32.mrf.mxu0
    %v9636 = vadd.f32 0.0, %v9635
    %v9637 = vpop.f32.mrf.mxu0
    %v9638 = vadd.f32 0.0, %v9637
    %v9639 = vpop.f32.mrf.mxu0
    %v9640 = vadd.f32 0.0, %v9639
    %v9641 = vpop.f32.mrf.mxu0
    %v9642 = vadd.f32 0.0, %v9641
    %9643 = vmatprep.mubr.bf16.mxu0 %v5301
    %9644 = vmatmul.mubr.bf16.gmra.mxu0 %v5300
    %v9645 = vpop.f32.mrf.mxu0
    %v9646 = vadd.f32 0.0, %v9645
    %v9647 = vpop.f32.mrf.mxu0
    %v9648 = vadd.f32 0.0, %v9647
    %v9649 = vpop.f32.mrf.mxu0
    %v9650 = vadd.f32 0.0, %v9649
    %v9651 = vpop.f32.mrf.mxu0
    %v9652 = vadd.f32 0.0, %v9651
    %9653 = vmatprep.mubr.bf16.mxu0 %v5304
    %9654 = vmatmul.mubr.bf16.gmra.mxu0 %v5303
    %v9655 = vpop.f32.mrf.mxu0
    %v9656 = vadd.f32 0.0, %v9655
    %v9657 = vpop.f32.mrf.mxu0
    %v9658 = vadd.f32 0.0, %v9657
    %v9659 = vpop.f32.mrf.mxu0
    %v9660 = vadd.f32 0.0, %v9659
    %v9661 = vpop.f32.mrf.mxu0
    %v9662 = vadd.f32 0.0, %v9661
    %9663 = vdwg.mxu0
    %9664 = vmatprep.subr.bf16.mxu0 %v9228
    %9665 = vmatpush1.bf16.msra.mxu0 %v9227
    %9666 = vmatprep.subr.bf16.mxu0 %v9224
    %9667 = vmatpush1.bf16.msra.mxu0 %v9223
    %9668 = vmatprep.subr.bf16.mxu0 %v9220
    %9669 = vmatpush1.bf16.msra.mxu0 %v9219
    %9670 = vmatprep.subr.bf16.mxu0 %v9216
    %9671 = vmatpush1.bf16.msra.mxu0 %v9215
    %9672 = vmatprep.subr.bf16.mxu0 %v9212
    %9673 = vmatpush1.bf16.msra.mxu0 %v9211
    %9674 = vmatprep.subr.bf16.mxu0 %v9208
    %9675 = vmatpush1.bf16.msra.mxu0 %v9207
    %9676 = vmatprep.subr.bf16.mxu0 %v9204
    %9677 = vmatpush1.bf16.msra.mxu0 %v9203
    %9678 = vmatprep.subr.bf16.mxu0 %v9200
    %9679 = vmatpush1.bf16.msra.mxu0 %v9199
    %9680 = vmatprep.subr.bf16.mxu0 0
    %9681 = vmatpush2.bf16.msra.mxu0 0
    %9682 = vmatprep.subr.bf16.mxu0 0
    %9683 = vmatpush2.bf16.msra.mxu0 0
    %9684 = vmatprep.subr.bf16.mxu0 0
    %9685 = vmatpush2.bf16.msra.mxu0 0
    %9686 = vmatprep.subr.bf16.mxu0 0
    %9687 = vmatpush2.bf16.msra.mxu0 0
    %9688 = vmatprep.subr.bf16.mxu0 0
    %9689 = vmatpush2.bf16.msra.mxu0 0
    %9690 = vmatprep.subr.bf16.mxu0 0
    %9691 = vmatpush2.bf16.msra.mxu0 0
    %9692 = vmatprep.subr.bf16.mxu0 0
    %9693 = vmatpush2.bf16.msra.mxu0 0
    %9694 = vmatprep.subr.bf16.mxu0 0
    %9695 = vmatpush2.bf16.msra.mxu0 0
    %9696 = vmatprep.mubr.bf16.mxu0 0
    %9697 = vmatmul.mubr.bf16.gmra.mxu0 %v5308
    %v9698 = vpop.f32.mrf.mxu0
    %v9699 = vadd.f32 %v9586, %v9698
    %v9700 = vpop.f32.mrf.mxu0
    %v9701 = vadd.f32 %v9588, %v9700
    %v9702 = vpop.f32.mrf.mxu0
    %v9703 = vadd.f32 %v9590, %v9702
    %v9704 = vpop.f32.mrf.mxu0
    %v9705 = vadd.f32 %v9592, %v9704
    %9706 = vmatprep.mubr.bf16.mxu0 0
    %9707 = vmatmul.mubr.bf16.gmra.mxu0 %v5311
    %v9708 = vpop.f32.mrf.mxu0
    %v9709 = vadd.f32 %v9596, %v9708
    %v9710 = vpop.f32.mrf.mxu0
    %v9711 = vadd.f32 %v9598, %v9710
    %v9712 = vpop.f32.mrf.mxu0
    %v9713 = vadd.f32 %v9600, %v9712
    %v9714 = vpop.f32.mrf.mxu0
    %v9715 = vadd.f32 %v9602, %v9714
    %9716 = vmatprep.mubr.bf16.mxu0 0
    %9717 = vmatmul.mubr.bf16.gmra.mxu0 %v5314
    %v9718 = vpop.f32.mrf.mxu0
    %v9719 = vadd.f32 %v9606, %v9718
    %v9720 = vpop.f32.mrf.mxu0
    %v9721 = vadd.f32 %v9608, %v9720
    %v9722 = vpop.f32.mrf.mxu0
    %v9723 = vadd.f32 %v9610, %v9722
    %v9724 = vpop.f32.mrf.mxu0
    %v9725 = vadd.f32 %v9612, %v9724
    %9726 = vmatprep.mubr.bf16.mxu0 0
    %9727 = vmatmul.mubr.bf16.gmra.mxu0 %v5317
    %v9728 = vpop.f32.mrf.mxu0
    %v9729 = vadd.f32 %v9616, %v9728
    %v9730 = vpop.f32.mrf.mxu0
    %v9731 = vadd.f32 %v9618, %v9730
    %v9732 = vpop.f32.mrf.mxu0
    %v9733 = vadd.f32 %v9620, %v9732
    %v9734 = vpop.f32.mrf.mxu0
    %v9735 = vadd.f32 %v9622, %v9734
    %9736 = vmatprep.mubr.bf16.mxu0 0
    %9737 = vmatmul.mubr.bf16.gmra.mxu0 %v5296
    %v9738 = vpop.f32.mrf.mxu0
    %v9739 = vadd.f32 %v9626, %v9738
    %v9740 = vpop.f32.mrf.mxu0
    %v9741 = vadd.f32 %v9628, %v9740
    %v9742 = vpop.f32.mrf.mxu0
    %v9743 = vadd.f32 %v9630, %v9742
    %v9744 = vpop.f32.mrf.mxu0
    %v9745 = vadd.f32 %v9632, %v9744
    %9746 = vmatprep.mubr.bf16.mxu0 0
    %9747 = vmatmul.mubr.bf16.gmra.mxu0 %v5299
    %v9748 = vpop.f32.mrf.mxu0
    %v9749 = vadd.f32 %v9636, %v9748
    %v9750 = vpop.f32.mrf.mxu0
    %v9751 = vadd.f32 %v9638, %v9750
    %v9752 = vpop.f32.mrf.mxu0
    %v9753 = vadd.f32 %v9640, %v9752
    %v9754 = vpop.f32.mrf.mxu0
    %v9755 = vadd.f32 %v9642, %v9754
    %9756 = vmatprep.mubr.bf16.mxu0 0
    %9757 = vmatmul.mubr.bf16.gmra.mxu0 %v5302
    %v9758 = vpop.f32.mrf.mxu0
    %v9759 = vadd.f32 %v9646, %v9758
    %v9760 = vpop.f32.mrf.mxu0
    %v9761 = vadd.f32 %v9648, %v9760
    %v9762 = vpop.f32.mrf.mxu0
    %v9763 = vadd.f32 %v9650, %v9762
    %v9764 = vpop.f32.mrf.mxu0
    %v9765 = vadd.f32 %v9652, %v9764
    %9766 = vmatprep.mubr.bf16.mxu0 0
    %9767 = vmatmul.mubr.bf16.gmra.mxu0 %v5305
    %v9768 = vpop.f32.mrf.mxu0
    %v9769 = vadd.f32 %v9656, %v9768
    %v9770 = vpop.f32.mrf.mxu0
    %v9771 = vadd.f32 %v9658, %v9770
    %v9772 = vpop.f32.mrf.mxu0
    %v9773 = vadd.f32 %v9660, %v9772
    %v9774 = vpop.f32.mrf.mxu0
    %v9775 = vadd.f32 %v9662, %v9774
    %9776 = vdwg.mxu0
    %v9809 = vrot.slane %v9473, 1
    %v9810 = vrot.slane %v9475, 1
    %v9811 = vrot.slane %v9699, 1
    %v9812 = vrot.slane %v9701, 1
    %v9813 = vrot.slane %v9477, 1
    %v9814 = vrot.slane %v9479, 1
    %v9815 = vrot.slane %v9703, 1
    %v9816 = vrot.slane %v9705, 1
    %v9817 = vrot.slane %v9483, 1
    %v9818 = vrot.slane %v9485, 1
    %v9819 = vrot.slane %v9709, 1
    %v9820 = vrot.slane %v9711, 1
    %v9821 = vrot.slane %v9487, 1
    %v9822 = vrot.slane %v9489, 1
    %v9823 = vrot.slane %v9713, 1
    %v9824 = vrot.slane %v9715, 1
    %v9825 = vrot.slane %v9493, 1
    %v9826 = vrot.slane %v9495, 1
    %v9827 = vrot.slane %v9719, 1
    %v9828 = vrot.slane %v9721, 1
    %v9829 = vrot.slane %v9497, 1
    %v9830 = vrot.slane %v9499, 1
    %v9831 = vrot.slane %v9723, 1
    %v9832 = vrot.slane %v9725, 1
    %v9833 = vrot.slane %v9503, 1
    %v9834 = vrot.slane %v9505, 1
    %v9835 = vrot.slane %v9729, 1
    %v9836 = vrot.slane %v9731, 1
    %v9837 = vrot.slane %v9507, 1
    %v9838 = vrot.slane %v9509, 1
    %v9839 = vrot.slane %v9733, 1
    %v9840 = vrot.slane %v9735, 1
    %v9873 = vadd.f32 %v8588, %v9809
    %v9874 = vadd.f32 %v8589, %v9810
    %v9875 = vadd.f32 %v8590, %v9811
    %v9876 = vadd.f32 %v8591, %v9812
    %v9877 = vadd.f32 %v8592, %v9813
    %v9878 = vadd.f32 %v8593, %v9814
    %v9879 = vadd.f32 %v8594, %v9815
    %v9880 = vadd.f32 %v8595, %v9816
    %v9881 = vadd.f32 %v8596, %v9817
    %v9882 = vadd.f32 %v8597, %v9818
    %v9883 = vadd.f32 %v8598, %v9819
    %v9884 = vadd.f32 %v8599, %v9820
    %v9885 = vadd.f32 %v8600, %v9821
    %v9886 = vadd.f32 %v8601, %v9822
    %v9887 = vadd.f32 %v8602, %v9823
    %v9888 = vadd.f32 %v8603, %v9824
    %v9889 = vadd.f32 %v8604, %v9825
    %v9890 = vadd.f32 %v8605, %v9826
    %v9891 = vadd.f32 %v8606, %v9827
    %v9892 = vadd.f32 %v8607, %v9828
    %v9893 = vadd.f32 %v8608, %v9829
    %v9894 = vadd.f32 %v8609, %v9830
    %v9895 = vadd.f32 %v8610, %v9831
    %v9896 = vadd.f32 %v8611, %v9832
    %v9897 = vadd.f32 %v8612, %v9833
    %v9898 = vadd.f32 %v8613, %v9834
    %v9899 = vadd.f32 %v8614, %v9835
    %v9900 = vadd.f32 %v8615, %v9836
    %v9901 = vadd.f32 %v8616, %v9837
    %v9902 = vadd.f32 %v8617, %v9838
    %v9903 = vadd.f32 %v8618, %v9839
    %v9904 = vadd.f32 %v8619, %v9840
    %v9937 = vrot.slane %v9513, 2
    %v9938 = vrot.slane %v9515, 2
    %v9939 = vrot.slane %v9739, 2
    %v9940 = vrot.slane %v9741, 2
    %v9941 = vrot.slane %v9517, 2
    %v9942 = vrot.slane %v9519, 2
    %v9943 = vrot.slane %v9743, 2
    %v9944 = vrot.slane %v9745, 2
    %v9945 = vrot.slane %v9523, 2
    %v9946 = vrot.slane %v9525, 2
    %v9947 = vrot.slane %v9749, 2
    %v9948 = vrot.slane %v9751, 2
    %v9949 = vrot.slane %v9527, 2
    %v9950 = vrot.slane %v9529, 2
    %v9951 = vrot.slane %v9753, 2
    %v9952 = vrot.slane %v9755, 2
    %v9953 = vrot.slane %v9533, 2
    %v9954 = vrot.slane %v9535, 2
    %v9955 = vrot.slane %v9759, 2
    %v9956 = vrot.slane %v9761, 2
    %v9957 = vrot.slane %v9537, 2
    %v9958 = vrot.slane %v9539, 2
    %v9959 = vrot.slane %v9763, 2
    %v9960 = vrot.slane %v9765, 2
    %v9961 = vrot.slane %v9543, 2
    %v9962 = vrot.slane %v9545, 2
    %v9963 = vrot.slane %v9769, 2
    %v9964 = vrot.slane %v9771, 2
    %v9965 = vrot.slane %v9547, 2
    %v9966 = vrot.slane %v9549, 2
    %v9967 = vrot.slane %v9773, 2
    %v9968 = vrot.slane %v9775, 2
    %v10001 = vadd.f32 %v8716, %v9937
    %v10002 = vadd.f32 %v8717, %v9938
    %v10003 = vadd.f32 %v8718, %v9939
    %v10004 = vadd.f32 %v8719, %v9940
    %v10005 = vadd.f32 %v8720, %v9941
    %v10006 = vadd.f32 %v8721, %v9942
    %v10007 = vadd.f32 %v8722, %v9943
    %v10008 = vadd.f32 %v8723, %v9944
    %v10009 = vadd.f32 %v8724, %v9945
    %v10010 = vadd.f32 %v8725, %v9946
    %v10011 = vadd.f32 %v8726, %v9947
    %v10012 = vadd.f32 %v8727, %v9948
    %v10013 = vadd.f32 %v8728, %v9949
    %v10014 = vadd.f32 %v8729, %v9950
    %v10015 = vadd.f32 %v8730, %v9951
    %v10016 = vadd.f32 %v8731, %v9952
    %v10017 = vadd.f32 %v8732, %v9953
    %v10018 = vadd.f32 %v8733, %v9954
    %v10019 = vadd.f32 %v8734, %v9955
    %v10020 = vadd.f32 %v8735, %v9956
    %v10021 = vadd.f32 %v8736, %v9957
    %v10022 = vadd.f32 %v8737, %v9958
    %v10023 = vadd.f32 %v8738, %v9959
    %v10024 = vadd.f32 %v8739, %v9960
    %v10025 = vadd.f32 %v8740, %v9961
    %v10026 = vadd.f32 %v8741, %v9962
    %v10027 = vadd.f32 %v8742, %v9963
    %v10028 = vadd.f32 %v8743, %v9964
    %v10029 = vadd.f32 %v8744, %v9965
    %v10030 = vadd.f32 %v8745, %v9966
    %v10031 = vadd.f32 %v8746, %v9967
    %v10032 = vadd.f32 %v8747, %v9968
    %s10033 = scalar_lea.vmem [#allocation6], 3072
    %v10034 = vld [vmem:[%s10033] sm:$0xff]
    %v10035 = vld [vmem:[%s10033 + $0x8] sm:$0xff]
    %v10036 = vld [vmem:[%s10033 + $0x10] sm:$0xff]
    %v10037 = vld [vmem:[%s10033 + $0x18] sm:$0xff]
    %v10038 = vld [vmem:[%s10033 + $0x20] sm:$0xff]
    %v10039 = vld [vmem:[%s10033 + $0x28] sm:$0xff]
    %v10040 = vld [vmem:[%s10033 + $0x30] sm:$0xff]
    %v10041 = vld [vmem:[%s10033 + $0x38] sm:$0xff]
    %v10042 = vld [vmem:[%s10033 + $0x40] sm:$0xff]
    %v10043 = vld [vmem:[%s10033 + $0x48] sm:$0xff]
    %v10044 = vld [vmem:[%s10033 + $0x50] sm:$0xff]
    %v10045 = vld [vmem:[%s10033 + $0x58] sm:$0xff]
    %v10046 = vld [vmem:[%s10033 + $0x60] sm:$0xff]
    %v10047 = vld [vmem:[%s10033 + $0x68] sm:$0xff]
    %v10048 = vld [vmem:[%s10033 + $0x70] sm:$0xff]
    %v10049 = vld [vmem:[%s10033 + $0x78] sm:$0xff]
    %v10050 = vld [vmem:[%s10033 + $0x80] sm:$0xff]
    %v10051 = vld [vmem:[%s10033 + $0x88] sm:$0xff]
    %v10052 = vld [vmem:[%s10033 + $0x90] sm:$0xff]
    %v10053 = vld [vmem:[%s10033 + $0x98] sm:$0xff]
    %v10054 = vld [vmem:[%s10033 + $0xa0] sm:$0xff]
    %v10055 = vld [vmem:[%s10033 + $0xa8] sm:$0xff]
    %v10056 = vld [vmem:[%s10033 + $0xb0] sm:$0xff]
    %v10057 = vld [vmem:[%s10033 + $0xb8] sm:$0xff]
    %v10058 = vld [vmem:[%s10033 + $0xc0] sm:$0xff]
    %v10059 = vld [vmem:[%s10033 + $0xc8] sm:$0xff]
    %v10060 = vld [vmem:[%s10033 + $0xd0] sm:$0xff]
    %v10061 = vld [vmem:[%s10033 + $0xd8] sm:$0xff]
    %v10062 = vld [vmem:[%s10033 + $0xe0] sm:$0xff]
    %v10063 = vld [vmem:[%s10033 + $0xe8] sm:$0xff]
    %v10064 = vld [vmem:[%s10033 + $0xf0] sm:$0xff]
    %v10065 = vld [vmem:[%s10033 + $0xf8] sm:$0xff]
    %v10066 = vld [vmem:[%s10033 + $0x100] sm:$0xff]
    %v10067 = vld [vmem:[%s10033 + $0x108] sm:$0xff]
    %v10068 = vld [vmem:[%s10033 + $0x110] sm:$0xff]
    %v10069 = vld [vmem:[%s10033 + $0x118] sm:$0xff]
    %v10070 = vld [vmem:[%s10033 + $0x120] sm:$0xff]
    %v10071 = vld [vmem:[%s10033 + $0x128] sm:$0xff]
    %v10072 = vld [vmem:[%s10033 + $0x130] sm:$0xff]
    %v10073 = vld [vmem:[%s10033 + $0x138] sm:$0xff]
    %v10074 = vld [vmem:[%s10033 + $0x140] sm:$0xff]
    %v10075 = vld [vmem:[%s10033 + $0x148] sm:$0xff]
    %v10076 = vld [vmem:[%s10033 + $0x150] sm:$0xff]
    %v10077 = vld [vmem:[%s10033 + $0x158] sm:$0xff]
    %v10078 = vld [vmem:[%s10033 + $0x160] sm:$0xff]
    %v10079 = vld [vmem:[%s10033 + $0x168] sm:$0xff]
    %v10080 = vld [vmem:[%s10033 + $0x170] sm:$0xff]
    %v10081 = vld [vmem:[%s10033 + $0x178] sm:$0xff]
    %v10082 = vld [vmem:[%s10033 + $0x180] sm:$0xff]
    %v10083 = vld [vmem:[%s10033 + $0x188] sm:$0xff]
    %v10084 = vld [vmem:[%s10033 + $0x190] sm:$0xff]
    %v10085 = vld [vmem:[%s10033 + $0x198] sm:$0xff]
    %v10086 = vld [vmem:[%s10033 + $0x1a0] sm:$0xff]
    %v10087 = vld [vmem:[%s10033 + $0x1a8] sm:$0xff]
    %v10088 = vld [vmem:[%s10033 + $0x1b0] sm:$0xff]
    %v10089 = vld [vmem:[%s10033 + $0x1b8] sm:$0xff]
    %v10090 = vld [vmem:[%s10033 + $0x1c0] sm:$0xff]
    %v10091 = vld [vmem:[%s10033 + $0x1c8] sm:$0xff]
    %v10092 = vld [vmem:[%s10033 + $0x1d0] sm:$0xff]
    %v10093 = vld [vmem:[%s10033 + $0x1d8] sm:$0xff]
    %v10094 = vld [vmem:[%s10033 + $0x1e0] sm:$0xff]
    %v10095 = vld [vmem:[%s10033 + $0x1e8] sm:$0xff]
    %v10096 = vld [vmem:[%s10033 + $0x1f0] sm:$0xff]
    %v10097 = vld [vmem:[%s10033 + $0x1f8] sm:$0xff]
    %v10098 = vld [vmem:[%s10033 + $0x200] sm:$0xff]
    %v10099 = vld [vmem:[%s10033 + $0x208] sm:$0xff]
    %v10100 = vld [vmem:[%s10033 + $0x210] sm:$0xff]
    %v10101 = vld [vmem:[%s10033 + $0x218] sm:$0xff]
    %v10102 = vld [vmem:[%s10033 + $0x220] sm:$0xff]
    %v10103 = vld [vmem:[%s10033 + $0x228] sm:$0xff]
    %v10104 = vld [vmem:[%s10033 + $0x230] sm:$0xff]
    %v10105 = vld [vmem:[%s10033 + $0x238] sm:$0xff]
    %v10106 = vld [vmem:[%s10033 + $0x240] sm:$0xff]
    %v10107 = vld [vmem:[%s10033 + $0x248] sm:$0xff]
    %v10108 = vld [vmem:[%s10033 + $0x250] sm:$0xff]
    %v10109 = vld [vmem:[%s10033 + $0x258] sm:$0xff]
    %v10110 = vld [vmem:[%s10033 + $0x260] sm:$0xff]
    %v10111 = vld [vmem:[%s10033 + $0x268] sm:$0xff]
    %v10112 = vld [vmem:[%s10033 + $0x270] sm:$0xff]
    %v10113 = vld [vmem:[%s10033 + $0x278] sm:$0xff]
    %v10114 = vld [vmem:[%s10033 + $0x280] sm:$0xff]
    %v10115 = vld [vmem:[%s10033 + $0x288] sm:$0xff]
    %v10116 = vld [vmem:[%s10033 + $0x290] sm:$0xff]
    %v10117 = vld [vmem:[%s10033 + $0x298] sm:$0xff]
    %v10118 = vld [vmem:[%s10033 + $0x2a0] sm:$0xff]
    %v10119 = vld [vmem:[%s10033 + $0x2a8] sm:$0xff]
    %v10120 = vld [vmem:[%s10033 + $0x2b0] sm:$0xff]
    %v10121 = vld [vmem:[%s10033 + $0x2b8] sm:$0xff]
    %v10122 = vld [vmem:[%s10033 + $0x2c0] sm:$0xff]
    %v10123 = vld [vmem:[%s10033 + $0x2c8] sm:$0xff]
    %v10124 = vld [vmem:[%s10033 + $0x2d0] sm:$0xff]
    %v10125 = vld [vmem:[%s10033 + $0x2d8] sm:$0xff]
    %v10126 = vld [vmem:[%s10033 + $0x2e0] sm:$0xff]
    %v10127 = vld [vmem:[%s10033 + $0x2e8] sm:$0xff]
    %v10128 = vld [vmem:[%s10033 + $0x2f0] sm:$0xff]
    %v10129 = vld [vmem:[%s10033 + $0x2f8] sm:$0xff]
    %v10226 = vunpack.c.l.b16 %v10034
    %v10227 = vunpack.c.h.b16 %v10034
    %v10228 = vunpack.c.l.b16 %v10035
    %v10229 = vunpack.c.h.b16 %v10035
    %v10230 = vunpack.c.l.b16 %v10036
    %v10231 = vunpack.c.h.b16 %v10036
    %v10232 = vunpack.c.l.b16 %v10037
    %v10233 = vunpack.c.h.b16 %v10037
    %v10234 = vunpack.c.l.b16 %v10038
    %v10235 = vunpack.c.h.b16 %v10038
    %v10236 = vunpack.c.l.b16 %v10039
    %v10237 = vunpack.c.h.b16 %v10039
    %v10238 = vunpack.c.l.b16 %v10040
    %v10239 = vunpack.c.h.b16 %v10040
    %v10240 = vunpack.c.l.b16 %v10041
    %v10241 = vunpack.c.h.b16 %v10041
    %v10242 = vunpack.c.l.b16 %v10042
    %v10243 = vunpack.c.h.b16 %v10042
    %v10244 = vunpack.c.l.b16 %v10043
    %v10245 = vunpack.c.h.b16 %v10043
    %v10246 = vunpack.c.l.b16 %v10044
    %v10247 = vunpack.c.h.b16 %v10044
    %v10248 = vunpack.c.l.b16 %v10045
    %v10249 = vunpack.c.h.b16 %v10045
    %v10250 = vunpack.c.l.b16 %v10046
    %v10251 = vunpack.c.h.b16 %v10046
    %v10252 = vunpack.c.l.b16 %v10047
    %v10253 = vunpack.c.h.b16 %v10047
    %v10254 = vunpack.c.l.b16 %v10048
    %v10255 = vunpack.c.h.b16 %v10048
    %v10256 = vunpack.c.l.b16 %v10049
    %v10257 = vunpack.c.h.b16 %v10049
    %v10258 = vunpack.c.l.b16 %v10050
    %v10259 = vunpack.c.h.b16 %v10050
    %v10260 = vunpack.c.l.b16 %v10051
    %v10261 = vunpack.c.h.b16 %v10051
    %v10262 = vunpack.c.l.b16 %v10052
    %v10263 = vunpack.c.h.b16 %v10052
    %v10264 = vunpack.c.l.b16 %v10053
    %v10265 = vunpack.c.h.b16 %v10053
    %v10266 = vunpack.c.l.b16 %v10054
    %v10267 = vunpack.c.h.b16 %v10054
    %v10268 = vunpack.c.l.b16 %v10055
    %v10269 = vunpack.c.h.b16 %v10055
    %v10270 = vunpack.c.l.b16 %v10056
    %v10271 = vunpack.c.h.b16 %v10056
    %v10272 = vunpack.c.l.b16 %v10057
    %v10273 = vunpack.c.h.b16 %v10057
    %v10274 = vunpack.c.l.b16 %v10058
    %v10275 = vunpack.c.h.b16 %v10058
    %v10276 = vunpack.c.l.b16 %v10059
    %v10277 = vunpack.c.h.b16 %v10059
    %v10278 = vunpack.c.l.b16 %v10060
    %v10279 = vunpack.c.h.b16 %v10060
    %v10280 = vunpack.c.l.b16 %v10061
    %v10281 = vunpack.c.h.b16 %v10061
    %v10282 = vunpack.c.l.b16 %v10062
    %v10283 = vunpack.c.h.b16 %v10062
    %v10284 = vunpack.c.l.b16 %v10063
    %v10285 = vunpack.c.h.b16 %v10063
    %v10286 = vunpack.c.l.b16 %v10064
    %v10287 = vunpack.c.h.b16 %v10064
    %v10288 = vunpack.c.l.b16 %v10065
    %v10289 = vunpack.c.h.b16 %v10065
    %v10290 = vunpack.c.l.b16 %v10066
    %v10291 = vunpack.c.h.b16 %v10066
    %v10292 = vunpack.c.l.b16 %v10067
    %v10293 = vunpack.c.h.b16 %v10067
    %v10294 = vunpack.c.l.b16 %v10068
    %v10295 = vunpack.c.h.b16 %v10068
    %v10296 = vunpack.c.l.b16 %v10069
    %v10297 = vunpack.c.h.b16 %v10069
    %v10298 = vunpack.c.l.b16 %v10070
    %v10299 = vunpack.c.h.b16 %v10070
    %v10300 = vunpack.c.l.b16 %v10071
    %v10301 = vunpack.c.h.b16 %v10071
    %v10302 = vunpack.c.l.b16 %v10072
    %v10303 = vunpack.c.h.b16 %v10072
    %v10304 = vunpack.c.l.b16 %v10073
    %v10305 = vunpack.c.h.b16 %v10073
    %v10306 = vunpack.c.l.b16 %v10074
    %v10307 = vunpack.c.h.b16 %v10074
    %v10308 = vunpack.c.l.b16 %v10075
    %v10309 = vunpack.c.h.b16 %v10075
    %v10310 = vunpack.c.l.b16 %v10076
    %v10311 = vunpack.c.h.b16 %v10076
    %v10312 = vunpack.c.l.b16 %v10077
    %v10313 = vunpack.c.h.b16 %v10077
    %v10314 = vunpack.c.l.b16 %v10078
    %v10315 = vunpack.c.h.b16 %v10078
    %v10316 = vunpack.c.l.b16 %v10079
    %v10317 = vunpack.c.h.b16 %v10079
    %v10318 = vunpack.c.l.b16 %v10080
    %v10319 = vunpack.c.h.b16 %v10080
    %v10320 = vunpack.c.l.b16 %v10081
    %v10321 = vunpack.c.h.b16 %v10081
    %v10322 = vunpack.c.l.b16 %v10082
    %v10323 = vunpack.c.h.b16 %v10082
    %v10324 = vunpack.c.l.b16 %v10083
    %v10325 = vunpack.c.h.b16 %v10083
    %v10326 = vunpack.c.l.b16 %v10084
    %v10327 = vunpack.c.h.b16 %v10084
    %v10328 = vunpack.c.l.b16 %v10085
    %v10329 = vunpack.c.h.b16 %v10085
    %v10330 = vunpack.c.l.b16 %v10086
    %v10331 = vunpack.c.h.b16 %v10086
    %v10332 = vunpack.c.l.b16 %v10087
    %v10333 = vunpack.c.h.b16 %v10087
    %v10334 = vunpack.c.l.b16 %v10088
    %v10335 = vunpack.c.h.b16 %v10088
    %v10336 = vunpack.c.l.b16 %v10089
    %v10337 = vunpack.c.h.b16 %v10089
    %v10338 = vunpack.c.l.b16 %v10090
    %v10339 = vunpack.c.h.b16 %v10090
    %v10340 = vunpack.c.l.b16 %v10091
    %v10341 = vunpack.c.h.b16 %v10091
    %v10342 = vunpack.c.l.b16 %v10092
    %v10343 = vunpack.c.h.b16 %v10092
    %v10344 = vunpack.c.l.b16 %v10093
    %v10345 = vunpack.c.h.b16 %v10093
    %v10346 = vunpack.c.l.b16 %v10094
    %v10347 = vunpack.c.h.b16 %v10094
    %v10348 = vunpack.c.l.b16 %v10095
    %v10349 = vunpack.c.h.b16 %v10095
    %v10350 = vunpack.c.l.b16 %v10096
    %v10351 = vunpack.c.h.b16 %v10096
    %v10352 = vunpack.c.l.b16 %v10097
    %v10353 = vunpack.c.h.b16 %v10097
    %v10354 = vunpack.c.l.b16 %v10098
    %v10355 = vunpack.c.h.b16 %v10098
    %v10356 = vunpack.c.l.b16 %v10099
    %v10357 = vunpack.c.h.b16 %v10099
    %v10358 = vunpack.c.l.b16 %v10100
    %v10359 = vunpack.c.h.b16 %v10100
    %v10360 = vunpack.c.l.b16 %v10101
    %v10361 = vunpack.c.h.b16 %v10101
    %v10362 = vunpack.c.l.b16 %v10102
    %v10363 = vunpack.c.h.b16 %v10102
    %v10364 = vunpack.c.l.b16 %v10103
    %v10365 = vunpack.c.h.b16 %v10103
    %v10366 = vunpack.c.l.b16 %v10104
    %v10367 = vunpack.c.h.b16 %v10104
    %v10368 = vunpack.c.l.b16 %v10105
    %v10369 = vunpack.c.h.b16 %v10105
    %v10370 = vunpack.c.l.b16 %v10106
    %v10371 = vunpack.c.h.b16 %v10106
    %v10372 = vunpack.c.l.b16 %v10107
    %v10373 = vunpack.c.h.b16 %v10107
    %v10374 = vunpack.c.l.b16 %v10108
    %v10375 = vunpack.c.h.b16 %v10108
    %v10376 = vunpack.c.l.b16 %v10109
    %v10377 = vunpack.c.h.b16 %v10109
    %v10378 = vunpack.c.l.b16 %v10110
    %v10379 = vunpack.c.h.b16 %v10110
    %v10380 = vunpack.c.l.b16 %v10111
    %v10381 = vunpack.c.h.b16 %v10111
    %v10382 = vunpack.c.l.b16 %v10112
    %v10383 = vunpack.c.h.b16 %v10112
    %v10384 = vunpack.c.l.b16 %v10113
    %v10385 = vunpack.c.h.b16 %v10113
    %v10386 = vunpack.c.l.b16 %v10114
    %v10387 = vunpack.c.h.b16 %v10114
    %v10388 = vunpack.c.l.b16 %v10115
    %v10389 = vunpack.c.h.b16 %v10115
    %v10390 = vunpack.c.l.b16 %v10116
    %v10391 = vunpack.c.h.b16 %v10116
    %v10392 = vunpack.c.l.b16 %v10117
    %v10393 = vunpack.c.h.b16 %v10117
    %v10394 = vunpack.c.l.b16 %v10118
    %v10395 = vunpack.c.h.b16 %v10118
    %v10396 = vunpack.c.l.b16 %v10119
    %v10397 = vunpack.c.h.b16 %v10119
    %v10398 = vunpack.c.l.b16 %v10120
    %v10399 = vunpack.c.h.b16 %v10120
    %v10400 = vunpack.c.l.b16 %v10121
    %v10401 = vunpack.c.h.b16 %v10121
    %v10402 = vunpack.c.l.b16 %v10122
    %v10403 = vunpack.c.h.b16 %v10122
    %v10404 = vunpack.c.l.b16 %v10123
    %v10405 = vunpack.c.h.b16 %v10123
    %v10406 = vunpack.c.l.b16 %v10124
    %v10407 = vunpack.c.h.b16 %v10124
    %v10408 = vunpack.c.l.b16 %v10125
    %v10409 = vunpack.c.h.b16 %v10125
    %v10410 = vunpack.c.l.b16 %v10126
    %v10411 = vunpack.c.h.b16 %v10126
    %v10412 = vunpack.c.l.b16 %v10127
    %v10413 = vunpack.c.h.b16 %v10127
    %v10414 = vunpack.c.l.b16 %v10128
    %v10415 = vunpack.c.h.b16 %v10128
    %v10416 = vunpack.c.l.b16 %v10129
    %v10417 = vunpack.c.h.b16 %v10129
    %v10418 = vpack.c.b16 %v10230, %v10226
    %v10419 = vpack.c.b16 %v10231, %v10227
    %v10420 = vpack.c.b16 %v10232, %v10228
    %v10421 = vpack.c.b16 %v10233, %v10229
    %v10422 = vpack.c.b16 %v10238, %v10234
    %v10423 = vpack.c.b16 %v10239, %v10235
    %v10424 = vpack.c.b16 %v10240, %v10236
    %v10425 = vpack.c.b16 %v10241, %v10237
    %v10426 = vpack.c.b16 %v10246, %v10242
    %v10427 = vpack.c.b16 %v10247, %v10243
    %v10428 = vpack.c.b16 %v10248, %v10244
    %v10429 = vpack.c.b16 %v10249, %v10245
    %v10430 = vpack.c.b16 %v10254, %v10250
    %v10431 = vpack.c.b16 %v10255, %v10251
    %v10432 = vpack.c.b16 %v10256, %v10252
    %v10433 = vpack.c.b16 %v10257, %v10253
    %v10434 = vpack.c.b16 %v10262, %v10258
    %v10435 = vpack.c.b16 %v10263, %v10259
    %v10436 = vpack.c.b16 %v10264, %v10260
    %v10437 = vpack.c.b16 %v10265, %v10261
    %v10438 = vpack.c.b16 %v10270, %v10266
    %v10439 = vpack.c.b16 %v10271, %v10267
    %v10440 = vpack.c.b16 %v10272, %v10268
    %v10441 = vpack.c.b16 %v10273, %v10269
    %v10442 = vpack.c.b16 %v10278, %v10274
    %v10443 = vpack.c.b16 %v10279, %v10275
    %v10444 = vpack.c.b16 %v10280, %v10276
    %v10445 = vpack.c.b16 %v10281, %v10277
    %v10446 = vpack.c.b16 %v10286, %v10282
    %v10447 = vpack.c.b16 %v10287, %v10283
    %v10448 = vpack.c.b16 %v10288, %v10284
    %v10449 = vpack.c.b16 %v10289, %v10285
    %v10450 = vpack.c.b16 %v10294, %v10290
    %v10451 = vpack.c.b16 %v10295, %v10291
    %v10452 = vpack.c.b16 %v10296, %v10292
    %v10453 = vpack.c.b16 %v10297, %v10293
    %v10454 = vpack.c.b16 %v10302, %v10298
    %v10455 = vpack.c.b16 %v10303, %v10299
    %v10456 = vpack.c.b16 %v10304, %v10300
    %v10457 = vpack.c.b16 %v10305, %v10301
    %v10458 = vpack.c.b16 %v10310, %v10306
    %v10459 = vpack.c.b16 %v10311, %v10307
    %v10460 = vpack.c.b16 %v10312, %v10308
    %v10461 = vpack.c.b16 %v10313, %v10309
    %v10462 = vpack.c.b16 %v10318, %v10314
    %v10463 = vpack.c.b16 %v10319, %v10315
    %v10464 = vpack.c.b16 %v10320, %v10316
    %v10465 = vpack.c.b16 %v10321, %v10317
    %v10466 = vpack.c.b16 %v10326, %v10322
    %v10467 = vpack.c.b16 %v10327, %v10323
    %v10468 = vpack.c.b16 %v10328, %v10324
    %v10469 = vpack.c.b16 %v10329, %v10325
    %v10470 = vpack.c.b16 %v10334, %v10330
    %v10471 = vpack.c.b16 %v10335, %v10331
    %v10472 = vpack.c.b16 %v10336, %v10332
    %v10473 = vpack.c.b16 %v10337, %v10333
    %v10474 = vpack.c.b16 %v10342, %v10338
    %v10475 = vpack.c.b16 %v10343, %v10339
    %v10476 = vpack.c.b16 %v10344, %v10340
    %v10477 = vpack.c.b16 %v10345, %v10341
    %v10478 = vpack.c.b16 %v10350, %v10346
    %v10479 = vpack.c.b16 %v10351, %v10347
    %v10480 = vpack.c.b16 %v10352, %v10348
    %v10481 = vpack.c.b16 %v10353, %v10349
    %v10482 = vpack.c.b16 %v10358, %v10354
    %v10483 = vpack.c.b16 %v10359, %v10355
    %v10484 = vpack.c.b16 %v10360, %v10356
    %v10485 = vpack.c.b16 %v10361, %v10357
    %v10486 = vpack.c.b16 %v10366, %v10362
    %v10487 = vpack.c.b16 %v10367, %v10363
    %v10488 = vpack.c.b16 %v10368, %v10364
    %v10489 = vpack.c.b16 %v10369, %v10365
    %v10490 = vpack.c.b16 %v10374, %v10370
    %v10491 = vpack.c.b16 %v10375, %v10371
    %v10492 = vpack.c.b16 %v10376, %v10372
    %v10493 = vpack.c.b16 %v10377, %v10373
    %v10494 = vpack.c.b16 %v10382, %v10378
    %v10495 = vpack.c.b16 %v10383, %v10379
    %v10496 = vpack.c.b16 %v10384, %v10380
    %v10497 = vpack.c.b16 %v10385, %v10381
    %v10498 = vpack.c.b16 %v10390, %v10386
    %v10499 = vpack.c.b16 %v10391, %v10387
    %v10500 = vpack.c.b16 %v10392, %v10388
    %v10501 = vpack.c.b16 %v10393, %v10389
    %v10502 = vpack.c.b16 %v10398, %v10394
    %v10503 = vpack.c.b16 %v10399, %v10395
    %v10504 = vpack.c.b16 %v10400, %v10396
    %v10505 = vpack.c.b16 %v10401, %v10397
    %v10506 = vpack.c.b16 %v10406, %v10402
    %v10507 = vpack.c.b16 %v10407, %v10403
    %v10508 = vpack.c.b16 %v10408, %v10404
    %v10509 = vpack.c.b16 %v10409, %v10405
    %v10510 = vpack.c.b16 %v10414, %v10410
    %v10511 = vpack.c.b16 %v10415, %v10411
    %v10512 = vpack.c.b16 %v10416, %v10412
    %v10513 = vpack.c.b16 %v10417, %v10413
    %10610 = vmatprep.subr.bf16.mxu0 %v10447
    %10611 = vmatpush1.bf16.msra.mxu0 %v10446
    %10612 = vmatprep.subr.bf16.mxu0 %v10443
    %10613 = vmatpush1.bf16.msra.mxu0 %v10442
    %10614 = vmatprep.subr.bf16.mxu0 %v10439
    %10615 = vmatpush1.bf16.msra.mxu0 %v10438
    %10616 = vmatprep.subr.bf16.mxu0 %v10435
    %10617 = vmatpush1.bf16.msra.mxu0 %v10434
    %10618 = vmatprep.subr.bf16.mxu0 %v10431
    %10619 = vmatpush1.bf16.msra.mxu0 %v10430
    %10620 = vmatprep.subr.bf16.mxu0 %v10427
    %10621 = vmatpush1.bf16.msra.mxu0 %v10426
    %10622 = vmatprep.subr.bf16.mxu0 %v10423
    %10623 = vmatpush1.bf16.msra.mxu0 %v10422
    %10624 = vmatprep.subr.bf16.mxu0 %v10419
    %10625 = vmatpush1.bf16.msra.mxu0 %v10418
    %10626 = vmatprep.subr.bf16.mxu0 %v10479
    %10627 = vmatpush2.bf16.msra.mxu0 %v10478
    %10628 = vmatprep.subr.bf16.mxu0 %v10475
    %10629 = vmatpush2.bf16.msra.mxu0 %v10474
    %10630 = vmatprep.subr.bf16.mxu0 %v10471
    %10631 = vmatpush2.bf16.msra.mxu0 %v10470
    %10632 = vmatprep.subr.bf16.mxu0 %v10467
    %10633 = vmatpush2.bf16.msra.mxu0 %v10466
    %10634 = vmatprep.subr.bf16.mxu0 %v10463
    %10635 = vmatpush2.bf16.msra.mxu0 %v10462
    %10636 = vmatprep.subr.bf16.mxu0 %v10459
    %10637 = vmatpush2.bf16.msra.mxu0 %v10458
    %10638 = vmatprep.subr.bf16.mxu0 %v10455
    %10639 = vmatpush2.bf16.msra.mxu0 %v10454
    %10640 = vmatprep.subr.bf16.mxu0 %v10451
    %10641 = vmatpush2.bf16.msra.mxu0 %v10450
    %10642 = vmatprep.mubr.bf16.mxu0 %v5295
    %10643 = vmatmul.mubr.bf16.gmra.mxu0 %v5294
    %v10644 = vpop.f32.mrf.mxu0
    %v10645 = vadd.f32 0.0, %v10644
    %v10646 = vpop.f32.mrf.mxu0
    %v10647 = vadd.f32 0.0, %v10646
    %v10648 = vpop.f32.mrf.mxu0
    %v10649 = vadd.f32 0.0, %v10648
    %v10650 = vpop.f32.mrf.mxu0
    %v10651 = vadd.f32 0.0, %v10650
    %10652 = vmatprep.mubr.bf16.mxu0 %v5298
    %10653 = vmatmul.mubr.bf16.gmra.mxu0 %v5297
    %v10654 = vpop.f32.mrf.mxu0
    %v10655 = vadd.f32 0.0, %v10654
    %v10656 = vpop.f32.mrf.mxu0
    %v10657 = vadd.f32 0.0, %v10656
    %v10658 = vpop.f32.mrf.mxu0
    %v10659 = vadd.f32 0.0, %v10658
    %v10660 = vpop.f32.mrf.mxu0
    %v10661 = vadd.f32 0.0, %v10660
    %10662 = vmatprep.mubr.bf16.mxu0 %v5301
    %10663 = vmatmul.mubr.bf16.gmra.mxu0 %v5300
    %v10664 = vpop.f32.mrf.mxu0
    %v10665 = vadd.f32 0.0, %v10664
    %v10666 = vpop.f32.mrf.mxu0
    %v10667 = vadd.f32 0.0, %v10666
    %v10668 = vpop.f32.mrf.mxu0
    %v10669 = vadd.f32 0.0, %v10668
    %v10670 = vpop.f32.mrf.mxu0
    %v10671 = vadd.f32 0.0, %v10670
    %10672 = vmatprep.mubr.bf16.mxu0 %v5304
    %10673 = vmatmul.mubr.bf16.gmra.mxu0 %v5303
    %v10674 = vpop.f32.mrf.mxu0
    %v10675 = vadd.f32 0.0, %v10674
    %v10676 = vpop.f32.mrf.mxu0
    %v10677 = vadd.f32 0.0, %v10676
    %v10678 = vpop.f32.mrf.mxu0
    %v10679 = vadd.f32 0.0, %v10678
    %v10680 = vpop.f32.mrf.mxu0
    %v10681 = vadd.f32 0.0, %v10680
    %10682 = vmatprep.mubr.bf16.mxu0 %v5307
    %10683 = vmatmul.mubr.bf16.gmra.mxu0 %v5306
    %v10684 = vpop.f32.mrf.mxu0
    %v10685 = vadd.f32 0.0, %v10684
    %v10686 = vpop.f32.mrf.mxu0
    %v10687 = vadd.f32 0.0, %v10686
    %v10688 = vpop.f32.mrf.mxu0
    %v10689 = vadd.f32 0.0, %v10688
    %v10690 = vpop.f32.mrf.mxu0
    %v10691 = vadd.f32 0.0, %v10690
    %10692 = vmatprep.mubr.bf16.mxu0 %v5310
    %10693 = vmatmul.mubr.bf16.gmra.mxu0 %v5309
    %v10694 = vpop.f32.mrf.mxu0
    %v10695 = vadd.f32 0.0, %v10694
    %v10696 = vpop.f32.mrf.mxu0
    %v10697 = vadd.f32 0.0, %v10696
    %v10698 = vpop.f32.mrf.mxu0
    %v10699 = vadd.f32 0.0, %v10698
    %v10700 = vpop.f32.mrf.mxu0
    %v10701 = vadd.f32 0.0, %v10700
    %10702 = vmatprep.mubr.bf16.mxu0 %v5313
    %10703 = vmatmul.mubr.bf16.gmra.mxu0 %v5312
    %v10704 = vpop.f32.mrf.mxu0
    %v10705 = vadd.f32 0.0, %v10704
    %v10706 = vpop.f32.mrf.mxu0
    %v10707 = vadd.f32 0.0, %v10706
    %v10708 = vpop.f32.mrf.mxu0
    %v10709 = vadd.f32 0.0, %v10708
    %v10710 = vpop.f32.mrf.mxu0
    %v10711 = vadd.f32 0.0, %v10710
    %10712 = vmatprep.mubr.bf16.mxu0 %v5316
    %10713 = vmatmul.mubr.bf16.gmra.mxu0 %v5315
    %v10714 = vpop.f32.mrf.mxu0
    %v10715 = vadd.f32 0.0, %v10714
    %v10716 = vpop.f32.mrf.mxu0
    %v10717 = vadd.f32 0.0, %v10716
    %v10718 = vpop.f32.mrf.mxu0
    %v10719 = vadd.f32 0.0, %v10718
    %v10720 = vpop.f32.mrf.mxu0
    %v10721 = vadd.f32 0.0, %v10720
    %10722 = vdwg.mxu0
    %10723 = vmatprep.subr.bf16.mxu0 %v10511
    %10724 = vmatpush1.bf16.msra.mxu0 %v10510
    %10725 = vmatprep.subr.bf16.mxu0 %v10507
    %10726 = vmatpush1.bf16.msra.mxu0 %v10506
    %10727 = vmatprep.subr.bf16.mxu0 %v10503
    %10728 = vmatpush1.bf16.msra.mxu0 %v10502
    %10729 = vmatprep.subr.bf16.mxu0 %v10499
    %10730 = vmatpush1.bf16.msra.mxu0 %v10498
    %10731 = vmatprep.subr.bf16.mxu0 %v10495
    %10732 = vmatpush1.bf16.msra.mxu0 %v10494
    %10733 = vmatprep.subr.bf16.mxu0 %v10491
    %10734 = vmatpush1.bf16.msra.mxu0 %v10490
    %10735 = vmatprep.subr.bf16.mxu0 %v10487
    %10736 = vmatpush1.bf16.msra.mxu0 %v10486
    %10737 = vmatprep.subr.bf16.mxu0 %v10483
    %10738 = vmatpush1.bf16.msra.mxu0 %v10482
    %10739 = vmatprep.subr.bf16.mxu0 0
    %10740 = vmatpush2.bf16.msra.mxu0 0
    %10741 = vmatprep.subr.bf16.mxu0 0
    %10742 = vmatpush2.bf16.msra.mxu0 0
    %10743 = vmatprep.subr.bf16.mxu0 0
    %10744 = vmatpush2.bf16.msra.mxu0 0
    %10745 = vmatprep.subr.bf16.mxu0 0
    %10746 = vmatpush2.bf16.msra.mxu0 0
    %10747 = vmatprep.subr.bf16.mxu0 0
    %10748 = vmatpush2.bf16.msra.mxu0 0
    %10749 = vmatprep.subr.bf16.mxu0 0
    %10750 = vmatpush2.bf16.msra.mxu0 0
    %10751 = vmatprep.subr.bf16.mxu0 0
    %10752 = vmatpush2.bf16.msra.mxu0 0
    %10753 = vmatprep.subr.bf16.mxu0 0
    %10754 = vmatpush2.bf16.msra.mxu0 0
    %10755 = vmatprep.mubr.bf16.mxu0 0
    %10756 = vmatmul.mubr.bf16.gmra.mxu0 %v5296
    %v10757 = vpop.f32.mrf.mxu0
    %v10758 = vadd.f32 %v10645, %v10757
    %v10759 = vpop.f32.mrf.mxu0
    %v10760 = vadd.f32 %v10647, %v10759
    %v10761 = vpop.f32.mrf.mxu0
    %v10762 = vadd.f32 %v10649, %v10761
    %v10763 = vpop.f32.mrf.mxu0
    %v10764 = vadd.f32 %v10651, %v10763
    %10765 = vmatprep.mubr.bf16.mxu0 0
    %10766 = vmatmul.mubr.bf16.gmra.mxu0 %v5299
    %v10767 = vpop.f32.mrf.mxu0
    %v10768 = vadd.f32 %v10655, %v10767
    %v10769 = vpop.f32.mrf.mxu0
    %v10770 = vadd.f32 %v10657, %v10769
    %v10771 = vpop.f32.mrf.mxu0
    %v10772 = vadd.f32 %v10659, %v10771
    %v10773 = vpop.f32.mrf.mxu0
    %v10774 = vadd.f32 %v10661, %v10773
    %10775 = vmatprep.mubr.bf16.mxu0 0
    %10776 = vmatmul.mubr.bf16.gmra.mxu0 %v5302
    %v10777 = vpop.f32.mrf.mxu0
    %v10778 = vadd.f32 %v10665, %v10777
    %v10779 = vpop.f32.mrf.mxu0
    %v10780 = vadd.f32 %v10667, %v10779
    %v10781 = vpop.f32.mrf.mxu0
    %v10782 = vadd.f32 %v10669, %v10781
    %v10783 = vpop.f32.mrf.mxu0
    %v10784 = vadd.f32 %v10671, %v10783
    %10785 = vmatprep.mubr.bf16.mxu0 0
    %10786 = vmatmul.mubr.bf16.gmra.mxu0 %v5305
    %v10787 = vpop.f32.mrf.mxu0
    %v10788 = vadd.f32 %v10675, %v10787
    %v10789 = vpop.f32.mrf.mxu0
    %v10790 = vadd.f32 %v10677, %v10789
    %v10791 = vpop.f32.mrf.mxu0
    %v10792 = vadd.f32 %v10679, %v10791
    %v10793 = vpop.f32.mrf.mxu0
    %v10794 = vadd.f32 %v10681, %v10793
    %10795 = vmatprep.mubr.bf16.mxu0 0
    %10796 = vmatmul.mubr.bf16.gmra.mxu0 %v5308
    %v10797 = vpop.f32.mrf.mxu0
    %v10798 = vadd.f32 %v10685, %v10797
    %v10799 = vpop.f32.mrf.mxu0
    %v10800 = vadd.f32 %v10687, %v10799
    %v10801 = vpop.f32.mrf.mxu0
    %v10802 = vadd.f32 %v10689, %v10801
    %v10803 = vpop.f32.mrf.mxu0
    %v10804 = vadd.f32 %v10691, %v10803
    %10805 = vmatprep.mubr.bf16.mxu0 0
    %10806 = vmatmul.mubr.bf16.gmra.mxu0 %v5311
    %v10807 = vpop.f32.mrf.mxu0
    %v10808 = vadd.f32 %v10695, %v10807
    %v10809 = vpop.f32.mrf.mxu0
    %v10810 = vadd.f32 %v10697, %v10809
    %v10811 = vpop.f32.mrf.mxu0
    %v10812 = vadd.f32 %v10699, %v10811
    %v10813 = vpop.f32.mrf.mxu0
    %v10814 = vadd.f32 %v10701, %v10813
    %10815 = vmatprep.mubr.bf16.mxu0 0
    %10816 = vmatmul.mubr.bf16.gmra.mxu0 %v5314
    %v10817 = vpop.f32.mrf.mxu0
    %v10818 = vadd.f32 %v10705, %v10817
    %v10819 = vpop.f32.mrf.mxu0
    %v10820 = vadd.f32 %v10707, %v10819
    %v10821 = vpop.f32.mrf.mxu0
    %v10822 = vadd.f32 %v10709, %v10821
    %v10823 = vpop.f32.mrf.mxu0
    %v10824 = vadd.f32 %v10711, %v10823
    %10825 = vmatprep.mubr.bf16.mxu0 0
    %10826 = vmatmul.mubr.bf16.gmra.mxu0 %v5317
    %v10827 = vpop.f32.mrf.mxu0
    %v10828 = vadd.f32 %v10715, %v10827
    %v10829 = vpop.f32.mrf.mxu0
    %v10830 = vadd.f32 %v10717, %v10829
    %v10831 = vpop.f32.mrf.mxu0
    %v10832 = vadd.f32 %v10719, %v10831
    %v10833 = vpop.f32.mrf.mxu0
    %v10834 = vadd.f32 %v10721, %v10833
    %10835 = vdwg.mxu0
    %10836 = vmatprep.subr.bf16.mxu0 %v10449
    %10837 = vmatpush1.bf16.msra.mxu0 %v10448
    %10838 = vmatprep.subr.bf16.mxu0 %v10445
    %10839 = vmatpush1.bf16.msra.mxu0 %v10444
    %10840 = vmatprep.subr.bf16.mxu0 %v10441
    %10841 = vmatpush1.bf16.msra.mxu0 %v10440
    %10842 = vmatprep.subr.bf16.mxu0 %v10437
    %10843 = vmatpush1.bf16.msra.mxu0 %v10436
    %10844 = vmatprep.subr.bf16.mxu0 %v10433
    %10845 = vmatpush1.bf16.msra.mxu0 %v10432
    %10846 = vmatprep.subr.bf16.mxu0 %v10429
    %10847 = vmatpush1.bf16.msra.mxu0 %v10428
    %10848 = vmatprep.subr.bf16.mxu0 %v10425
    %10849 = vmatpush1.bf16.msra.mxu0 %v10424
    %10850 = vmatprep.subr.bf16.mxu0 %v10421
    %10851 = vmatpush1.bf16.msra.mxu0 %v10420
    %10852 = vmatprep.subr.bf16.mxu0 %v10481
    %10853 = vmatpush2.bf16.msra.mxu0 %v10480
    %10854 = vmatprep.subr.bf16.mxu0 %v10477
    %10855 = vmatpush2.bf16.msra.mxu0 %v10476
    %10856 = vmatprep.subr.bf16.mxu0 %v10473
    %10857 = vmatpush2.bf16.msra.mxu0 %v10472
    %10858 = vmatprep.subr.bf16.mxu0 %v10469
    %10859 = vmatpush2.bf16.msra.mxu0 %v10468
    %10860 = vmatprep.subr.bf16.mxu0 %v10465
    %10861 = vmatpush2.bf16.msra.mxu0 %v10464
    %10862 = vmatprep.subr.bf16.mxu0 %v10461
    %10863 = vmatpush2.bf16.msra.mxu0 %v10460
    %10864 = vmatprep.subr.bf16.mxu0 %v10457
    %10865 = vmatpush2.bf16.msra.mxu0 %v10456
    %10866 = vmatprep.subr.bf16.mxu0 %v10453
    %10867 = vmatpush2.bf16.msra.mxu0 %v10452
    %10868 = vmatprep.mubr.bf16.mxu0 %v5295
    %10869 = vmatmul.mubr.bf16.gmra.mxu0 %v5294
    %v10870 = vpop.f32.mrf.mxu0
    %v10871 = vadd.f32 0.0, %v10870
    %v10872 = vpop.f32.mrf.mxu0
    %v10873 = vadd.f32 0.0, %v10872
    %v10874 = vpop.f32.mrf.mxu0
    %v10875 = vadd.f32 0.0, %v10874
    %v10876 = vpop.f32.mrf.mxu0
    %v10877 = vadd.f32 0.0, %v10876
    %10878 = vmatprep.mubr.bf16.mxu0 %v5298
    %10879 = vmatmul.mubr.bf16.gmra.mxu0 %v5297
    %v10880 = vpop.f32.mrf.mxu0
    %v10881 = vadd.f32 0.0, %v10880
    %v10882 = vpop.f32.mrf.mxu0
    %v10883 = vadd.f32 0.0, %v10882
    %v10884 = vpop.f32.mrf.mxu0
    %v10885 = vadd.f32 0.0, %v10884
    %v10886 = vpop.f32.mrf.mxu0
    %v10887 = vadd.f32 0.0, %v10886
    %10888 = vmatprep.mubr.bf16.mxu0 %v5301
    %10889 = vmatmul.mubr.bf16.gmra.mxu0 %v5300
    %v10890 = vpop.f32.mrf.mxu0
    %v10891 = vadd.f32 0.0, %v10890
    %v10892 = vpop.f32.mrf.mxu0
    %v10893 = vadd.f32 0.0, %v10892
    %v10894 = vpop.f32.mrf.mxu0
    %v10895 = vadd.f32 0.0, %v10894
    %v10896 = vpop.f32.mrf.mxu0
    %v10897 = vadd.f32 0.0, %v10896
    %10898 = vmatprep.mubr.bf16.mxu0 %v5304
    %10899 = vmatmul.mubr.bf16.gmra.mxu0 %v5303
    %v10900 = vpop.f32.mrf.mxu0
    %v10901 = vadd.f32 0.0, %v10900
    %v10902 = vpop.f32.mrf.mxu0
    %v10903 = vadd.f32 0.0, %v10902
    %v10904 = vpop.f32.mrf.mxu0
    %v10905 = vadd.f32 0.0, %v10904
    %v10906 = vpop.f32.mrf.mxu0
    %v10907 = vadd.f32 0.0, %v10906
    %10908 = vmatprep.mubr.bf16.mxu0 %v5307
    %10909 = vmatmul.mubr.bf16.gmra.mxu0 %v5306
    %v10910 = vpop.f32.mrf.mxu0
    %v10911 = vadd.f32 0.0, %v10910
    %v10912 = vpop.f32.mrf.mxu0
    %v10913 = vadd.f32 0.0, %v10912
    %v10914 = vpop.f32.mrf.mxu0
    %v10915 = vadd.f32 0.0, %v10914
    %v10916 = vpop.f32.mrf.mxu0
    %v10917 = vadd.f32 0.0, %v10916
    %10918 = vmatprep.mubr.bf16.mxu0 %v5310
    %10919 = vmatmul.mubr.bf16.gmra.mxu0 %v5309
    %v10920 = vpop.f32.mrf.mxu0
    %v10921 = vadd.f32 0.0, %v10920
    %v10922 = vpop.f32.mrf.mxu0
    %v10923 = vadd.f32 0.0, %v10922
    %v10924 = vpop.f32.mrf.mxu0
    %v10925 = vadd.f32 0.0, %v10924
    %v10926 = vpop.f32.mrf.mxu0
    %v10927 = vadd.f32 0.0, %v10926
    %10928 = vmatprep.mubr.bf16.mxu0 %v5313
    %10929 = vmatmul.mubr.bf16.gmra.mxu0 %v5312
    %v10930 = vpop.f32.mrf.mxu0
    %v10931 = vadd.f32 0.0, %v10930
    %v10932 = vpop.f32.mrf.mxu0
    %v10933 = vadd.f32 0.0, %v10932
    %v10934 = vpop.f32.mrf.mxu0
    %v10935 = vadd.f32 0.0, %v10934
    %v10936 = vpop.f32.mrf.mxu0
    %v10937 = vadd.f32 0.0, %v10936
    %10938 = vmatprep.mubr.bf16.mxu0 %v5316
    %10939 = vmatmul.mubr.bf16.gmra.mxu0 %v5315
    %v10940 = vpop.f32.mrf.mxu0
    %v10941 = vadd.f32 0.0, %v10940
    %v10942 = vpop.f32.mrf.mxu0
    %v10943 = vadd.f32 0.0, %v10942
    %v10944 = vpop.f32.mrf.mxu0
    %v10945 = vadd.f32 0.0, %v10944
    %v10946 = vpop.f32.mrf.mxu0
    %v10947 = vadd.f32 0.0, %v10946
    %10948 = vdwg.mxu0
    %10949 = vmatprep.subr.bf16.mxu0 %v10513
    %10950 = vmatpush1.bf16.msra.mxu0 %v10512
    %10951 = vmatprep.subr.bf16.mxu0 %v10509
    %10952 = vmatpush1.bf16.msra.mxu0 %v10508
    %10953 = vmatprep.subr.bf16.mxu0 %v10505
    %10954 = vmatpush1.bf16.msra.mxu0 %v10504
    %10955 = vmatprep.subr.bf16.mxu0 %v10501
    %10956 = vmatpush1.bf16.msra.mxu0 %v10500
    %10957 = vmatprep.subr.bf16.mxu0 %v10497
    %10958 = vmatpush1.bf16.msra.mxu0 %v10496
    %10959 = vmatprep.subr.bf16.mxu0 %v10493
    %10960 = vmatpush1.bf16.msra.mxu0 %v10492
    %10961 = vmatprep.subr.bf16.mxu0 %v10489
    %10962 = vmatpush1.bf16.msra.mxu0 %v10488
    %10963 = vmatprep.subr.bf16.mxu0 %v10485
    %10964 = vmatpush1.bf16.msra.mxu0 %v10484
    %10965 = vmatprep.subr.bf16.mxu0 0
    %10966 = vmatpush2.bf16.msra.mxu0 0
    %10967 = vmatprep.subr.bf16.mxu0 0
    %10968 = vmatpush2.bf16.msra.mxu0 0
    %10969 = vmatprep.subr.bf16.mxu0 0
    %10970 = vmatpush2.bf16.msra.mxu0 0
    %10971 = vmatprep.subr.bf16.mxu0 0
    %10972 = vmatpush2.bf16.msra.mxu0 0
    %10973 = vmatprep.subr.bf16.mxu0 0
    %10974 = vmatpush2.bf16.msra.mxu0 0
    %10975 = vmatprep.subr.bf16.mxu0 0
    %10976 = vmatpush2.bf16.msra.mxu0 0
    %10977 = vmatprep.subr.bf16.mxu0 0
    %10978 = vmatpush2.bf16.msra.mxu0 0
    %10979 = vmatprep.subr.bf16.mxu0 0
    %10980 = vmatpush2.bf16.msra.mxu0 0
    %10981 = vmatprep.mubr.bf16.mxu0 0
    %10982 = vmatmul.mubr.bf16.gmra.mxu0 %v5296
    %v10983 = vpop.f32.mrf.mxu0
    %v10984 = vadd.f32 %v10871, %v10983
    %v10985 = vpop.f32.mrf.mxu0
    %v10986 = vadd.f32 %v10873, %v10985
    %v10987 = vpop.f32.mrf.mxu0
    %v10988 = vadd.f32 %v10875, %v10987
    %v10989 = vpop.f32.mrf.mxu0
    %v10990 = vadd.f32 %v10877, %v10989
    %10991 = vmatprep.mubr.bf16.mxu0 0
    %10992 = vmatmul.mubr.bf16.gmra.mxu0 %v5299
    %v10993 = vpop.f32.mrf.mxu0
    %v10994 = vadd.f32 %v10881, %v10993
    %v10995 = vpop.f32.mrf.mxu0
    %v10996 = vadd.f32 %v10883, %v10995
    %v10997 = vpop.f32.mrf.mxu0
    %v10998 = vadd.f32 %v10885, %v10997
    %v10999 = vpop.f32.mrf.mxu0
    %v11000 = vadd.f32 %v10887, %v10999
    %11001 = vmatprep.mubr.bf16.mxu0 0
    %11002 = vmatmul.mubr.bf16.gmra.mxu0 %v5302
    %v11003 = vpop.f32.mrf.mxu0
    %v11004 = vadd.f32 %v10891, %v11003
    %v11005 = vpop.f32.mrf.mxu0
    %v11006 = vadd.f32 %v10893, %v11005
    %v11007 = vpop.f32.mrf.mxu0
    %v11008 = vadd.f32 %v10895, %v11007
    %v11009 = vpop.f32.mrf.mxu0
    %v11010 = vadd.f32 %v10897, %v11009
    %11011 = vmatprep.mubr.bf16.mxu0 0
    %11012 = vmatmul.mubr.bf16.gmra.mxu0 %v5305
    %v11013 = vpop.f32.mrf.mxu0
    %v11014 = vadd.f32 %v10901, %v11013
    %v11015 = vpop.f32.mrf.mxu0
    %v11016 = vadd.f32 %v10903, %v11015
    %v11017 = vpop.f32.mrf.mxu0
    %v11018 = vadd.f32 %v10905, %v11017
    %v11019 = vpop.f32.mrf.mxu0
    %v11020 = vadd.f32 %v10907, %v11019
    %11021 = vmatprep.mubr.bf16.mxu0 0
    %11022 = vmatmul.mubr.bf16.gmra.mxu0 %v5308
    %v11023 = vpop.f32.mrf.mxu0
    %v11024 = vadd.f32 %v10911, %v11023
    %v11025 = vpop.f32.mrf.mxu0
    %v11026 = vadd.f32 %v10913, %v11025
    %v11027 = vpop.f32.mrf.mxu0
    %v11028 = vadd.f32 %v10915, %v11027
    %v11029 = vpop.f32.mrf.mxu0
    %v11030 = vadd.f32 %v10917, %v11029
    %11031 = vmatprep.mubr.bf16.mxu0 0
    %11032 = vmatmul.mubr.bf16.gmra.mxu0 %v5311
    %v11033 = vpop.f32.mrf.mxu0
    %v11034 = vadd.f32 %v10921, %v11033
    %v11035 = vpop.f32.mrf.mxu0
    %v11036 = vadd.f32 %v10923, %v11035
    %v11037 = vpop.f32.mrf.mxu0
    %v11038 = vadd.f32 %v10925, %v11037
    %v11039 = vpop.f32.mrf.mxu0
    %v11040 = vadd.f32 %v10927, %v11039
    %11041 = vmatprep.mubr.bf16.mxu0 0
    %11042 = vmatmul.mubr.bf16.gmra.mxu0 %v5314
    %v11043 = vpop.f32.mrf.mxu0
    %v11044 = vadd.f32 %v10931, %v11043
    %v11045 = vpop.f32.mrf.mxu0
    %v11046 = vadd.f32 %v10933, %v11045
    %v11047 = vpop.f32.mrf.mxu0
    %v11048 = vadd.f32 %v10935, %v11047
    %v11049 = vpop.f32.mrf.mxu0
    %v11050 = vadd.f32 %v10937, %v11049
    %11051 = vmatprep.mubr.bf16.mxu0 0
    %11052 = vmatmul.mubr.bf16.gmra.mxu0 %v5317
    %v11053 = vpop.f32.mrf.mxu0
    %v11054 = vadd.f32 %v10941, %v11053
    %v11055 = vpop.f32.mrf.mxu0
    %v11056 = vadd.f32 %v10943, %v11055
    %v11057 = vpop.f32.mrf.mxu0
    %v11058 = vadd.f32 %v10945, %v11057
    %v11059 = vpop.f32.mrf.mxu0
    %v11060 = vadd.f32 %v10947, %v11059
    %11061 = vdwg.mxu0
    %v11094 = vrot.slane %v10758, 2
    %v11095 = vrot.slane %v10760, 2
    %v11096 = vrot.slane %v10984, 2
    %v11097 = vrot.slane %v10986, 2
    %v11098 = vrot.slane %v10762, 2
    %v11099 = vrot.slane %v10764, 2
    %v11100 = vrot.slane %v10988, 2
    %v11101 = vrot.slane %v10990, 2
    %v11102 = vrot.slane %v10768, 2
    %v11103 = vrot.slane %v10770, 2
    %v11104 = vrot.slane %v10994, 2
    %v11105 = vrot.slane %v10996, 2
    %v11106 = vrot.slane %v10772, 2
    %v11107 = vrot.slane %v10774, 2
    %v11108 = vrot.slane %v10998, 2
    %v11109 = vrot.slane %v11000, 2
    %v11110 = vrot.slane %v10778, 2
    %v11111 = vrot.slane %v10780, 2
    %v11112 = vrot.slane %v11004, 2
    %v11113 = vrot.slane %v11006, 2
    %v11114 = vrot.slane %v10782, 2
    %v11115 = vrot.slane %v10784, 2
    %v11116 = vrot.slane %v11008, 2
    %v11117 = vrot.slane %v11010, 2
    %v11118 = vrot.slane %v10788, 2
    %v11119 = vrot.slane %v10790, 2
    %v11120 = vrot.slane %v11014, 2
    %v11121 = vrot.slane %v11016, 2
    %v11122 = vrot.slane %v10792, 2
    %v11123 = vrot.slane %v10794, 2
    %v11124 = vrot.slane %v11018, 2
    %v11125 = vrot.slane %v11020, 2
    %v11158 = vadd.f32 %v9873, %v11094
    %v11159 = vadd.f32 %v9874, %v11095
    %v11160 = vadd.f32 %v9875, %v11096
    %v11161 = vadd.f32 %v9876, %v11097
    %v11162 = vadd.f32 %v9877, %v11098
    %v11163 = vadd.f32 %v9878, %v11099
    %v11164 = vadd.f32 %v9879, %v11100
    %v11165 = vadd.f32 %v9880, %v11101
    %v11166 = vadd.f32 %v9881, %v11102
    %v11167 = vadd.f32 %v9882, %v11103
    %v11168 = vadd.f32 %v9883, %v11104
    %v11169 = vadd.f32 %v9884, %v11105
    %v11170 = vadd.f32 %v9885, %v11106
    %v11171 = vadd.f32 %v9886, %v11107
    %v11172 = vadd.f32 %v9887, %v11108
    %v11173 = vadd.f32 %v9888, %v11109
    %v11174 = vadd.f32 %v9889, %v11110
    %v11175 = vadd.f32 %v9890, %v11111
    %v11176 = vadd.f32 %v9891, %v11112
    %v11177 = vadd.f32 %v9892, %v11113
    %v11178 = vadd.f32 %v9893, %v11114
    %v11179 = vadd.f32 %v9894, %v11115
    %v11180 = vadd.f32 %v9895, %v11116
    %v11181 = vadd.f32 %v9896, %v11117
    %v11182 = vadd.f32 %v9897, %v11118
    %v11183 = vadd.f32 %v9898, %v11119
    %v11184 = vadd.f32 %v9899, %v11120
    %v11185 = vadd.f32 %v9900, %v11121
    %v11186 = vadd.f32 %v9901, %v11122
    %v11187 = vadd.f32 %v9902, %v11123
    %v11188 = vadd.f32 %v9903, %v11124
    %v11189 = vadd.f32 %v9904, %v11125
    %v11222 = vrot.slane %v10798, 2
    %v11223 = vrot.slane %v10800, 2
    %v11224 = vrot.slane %v11024, 2
    %v11225 = vrot.slane %v11026, 2
    %v11226 = vrot.slane %v10802, 2
    %v11227 = vrot.slane %v10804, 2
    %v11228 = vrot.slane %v11028, 2
    %v11229 = vrot.slane %v11030, 2
    %v11230 = vrot.slane %v10808, 2
    %v11231 = vrot.slane %v10810, 2
    %v11232 = vrot.slane %v11034, 2
    %v11233 = vrot.slane %v11036, 2
    %v11234 = vrot.slane %v10812, 2
    %v11235 = vrot.slane %v10814, 2
    %v11236 = vrot.slane %v11038, 2
    %v11237 = vrot.slane %v11040, 2
    %v11238 = vrot.slane %v10818, 2
    %v11239 = vrot.slane %v10820, 2
    %v11240 = vrot.slane %v11044, 2
    %v11241 = vrot.slane %v11046, 2
    %v11242 = vrot.slane %v10822, 2
    %v11243 = vrot.slane %v10824, 2
    %v11244 = vrot.slane %v11048, 2
    %v11245 = vrot.slane %v11050, 2
    %v11246 = vrot.slane %v10828, 2
    %v11247 = vrot.slane %v10830, 2
    %v11248 = vrot.slane %v11054, 2
    %v11249 = vrot.slane %v11056, 2
    %v11250 = vrot.slane %v10832, 2
    %v11251 = vrot.slane %v10834, 2
    %v11252 = vrot.slane %v11058, 2
    %v11253 = vrot.slane %v11060, 2
    %v11286 = vadd.f32 %v10001, %v11222
    %v11287 = vadd.f32 %v10002, %v11223
    %v11288 = vadd.f32 %v10003, %v11224
    %v11289 = vadd.f32 %v10004, %v11225
    %v11290 = vadd.f32 %v10005, %v11226
    %v11291 = vadd.f32 %v10006, %v11227
    %v11292 = vadd.f32 %v10007, %v11228
    %v11293 = vadd.f32 %v10008, %v11229
    %v11294 = vadd.f32 %v10009, %v11230
    %v11295 = vadd.f32 %v10010, %v11231
    %v11296 = vadd.f32 %v10011, %v11232
    %v11297 = vadd.f32 %v10012, %v11233
    %v11298 = vadd.f32 %v10013, %v11234
    %v11299 = vadd.f32 %v10014, %v11235
    %v11300 = vadd.f32 %v10015, %v11236
    %v11301 = vadd.f32 %v10016, %v11237
    %v11302 = vadd.f32 %v10017, %v11238
    %v11303 = vadd.f32 %v10018, %v11239
    %v11304 = vadd.f32 %v10019, %v11240
    %v11305 = vadd.f32 %v10020, %v11241
    %v11306 = vadd.f32 %v10021, %v11242
    %v11307 = vadd.f32 %v10022, %v11243
    %v11308 = vadd.f32 %v10023, %v11244
    %v11309 = vadd.f32 %v10024, %v11245
    %v11310 = vadd.f32 %v10025, %v11246
    %v11311 = vadd.f32 %v10026, %v11247
    %v11312 = vadd.f32 %v10027, %v11248
    %v11313 = vadd.f32 %v10028, %v11249
    %v11314 = vadd.f32 %v10029, %v11250
    %v11315 = vadd.f32 %v10030, %v11251
    %v11316 = vadd.f32 %v10031, %v11252
    %v11317 = vadd.f32 %v10032, %v11253
    %v11318 = vmax.f32 %v11158, %v11286
    %v11319 = vmax.f32 %v11159, %v11287
    %v11320 = vmax.f32 %v11160, %v11288
    %v11321 = vmax.f32 %v11161, %v11289
    %v11322 = vmax.f32 %v11162, %v11290
    %v11323 = vmax.f32 %v11163, %v11291
    %v11324 = vmax.f32 %v11164, %v11292
    %v11325 = vmax.f32 %v11165, %v11293
    %v11326 = vmax.f32 %v11166, %v11294
    %v11327 = vmax.f32 %v11167, %v11295
    %v11328 = vmax.f32 %v11168, %v11296
    %v11329 = vmax.f32 %v11169, %v11297
    %v11330 = vmax.f32 %v11170, %v11298
    %v11331 = vmax.f32 %v11171, %v11299
    %v11332 = vmax.f32 %v11172, %v11300
    %v11333 = vmax.f32 %v11173, %v11301
    %v11334 = vmax.f32 %v11174, %v11302
    %v11335 = vmax.f32 %v11175, %v11303
    %v11336 = vmax.f32 %v11176, %v11304
    %v11337 = vmax.f32 %v11177, %v11305
    %v11338 = vmax.f32 %v11178, %v11306
    %v11339 = vmax.f32 %v11179, %v11307
    %v11340 = vmax.f32 %v11180, %v11308
    %v11341 = vmax.f32 %v11181, %v11309
    %v11342 = vmax.f32 %v11182, %v11310
    %v11343 = vmax.f32 %v11183, %v11311
    %v11344 = vmax.f32 %v11184, %v11312
    %v11345 = vmax.f32 %v11185, %v11313
    %v11346 = vmax.f32 %v11186, %v11314
    %v11347 = vmax.f32 %v11187, %v11315
    %v11348 = vmax.f32 %v11188, %v11316
    %v11349 = vmax.f32 %v11189, %v11317
    %v11350 = vmax.f32 %v11318, %v11320
    %v11351 = vmax.f32 %v11319, %v11321
    %v11352 = vmax.f32 %v11322, %v11324
    %v11353 = vmax.f32 %v11323, %v11325
    %v11354 = vmax.f32 %v11326, %v11328
    %v11355 = vmax.f32 %v11327, %v11329
    %v11356 = vmax.f32 %v11330, %v11332
    %v11357 = vmax.f32 %v11331, %v11333
    %v11358 = vmax.f32 %v11334, %v11336
    %v11359 = vmax.f32 %v11335, %v11337
    %v11360 = vmax.f32 %v11338, %v11340
    %v11361 = vmax.f32 %v11339, %v11341
    %v11362 = vmax.f32 %v11342, %v11344
    %v11363 = vmax.f32 %v11343, %v11345
    %v11364 = vmax.f32 %v11346, %v11348
    %v11365 = vmax.f32 %v11347, %v11349
    %v11366 = vld [vmem:[#allocation7] sm:$0x3]
    %v11368 = vlaneseq
    %v11369 = vshrl.u32 %v11368, 7
    %v11370 = vsub.s32 0, %v11369
    %v11371 = vrot.slane %v11366, %v11370
    %v11372 = vlaneseq
    %v11373 = vshrl.u32 %v11372, 7
    %v11374 = vsub.s32 1, %v11373
    %v11375 = vrot.slane %v11366, %v11374
    %v11378 = vadd.f32 %v11350, %v11371
    %v11379 = vadd.f32 %v11351, %v11375
    %v11380 = vadd.f32 %v11352, %v11371
    %v11381 = vadd.f32 %v11353, %v11375
    %v11382 = vadd.f32 %v11354, %v11371
    %v11383 = vadd.f32 %v11355, %v11375
    %v11384 = vadd.f32 %v11356, %v11371
    %v11385 = vadd.f32 %v11357, %v11375
    %v11386 = vadd.f32 %v11358, %v11371
    %v11387 = vadd.f32 %v11359, %v11375
    %v11388 = vadd.f32 %v11360, %v11371
    %v11389 = vadd.f32 %v11361, %v11375
    %v11390 = vadd.f32 %v11362, %v11371
    %v11391 = vadd.f32 %v11363, %v11375
    %v11392 = vadd.f32 %v11364, %v11371
    %v11393 = vadd.f32 %v11365, %v11375
    %v11394 = vmax.f32 %v11378, 0.0
    %v11395 = vmax.f32 %v11379, 0.0
    %v11396 = vmax.f32 %v11380, 0.0
    %v11397 = vmax.f32 %v11381, 0.0
    %v11398 = vmax.f32 %v11382, 0.0
    %v11399 = vmax.f32 %v11383, 0.0
    %v11400 = vmax.f32 %v11384, 0.0
    %v11401 = vmax.f32 %v11385, 0.0
    %v11402 = vmax.f32 %v11386, 0.0
    %v11403 = vmax.f32 %v11387, 0.0
    %v11404 = vmax.f32 %v11388, 0.0
    %v11405 = vmax.f32 %v11389, 0.0
    %v11406 = vmax.f32 %v11390, 0.0
    %v11407 = vmax.f32 %v11391, 0.0
    %v11408 = vmax.f32 %v11392, 0.0
    %v11409 = vmax.f32 %v11393, 0.0
    %v11410 = vpack.c.bf16 %v11394, %v11394
    %v11411 = vpack.c.bf16 %v11395, %v11395
    %v11412 = vpack.c.bf16 %v11396, %v11396
    %v11413 = vpack.c.bf16 %v11397, %v11397
    %v11414 = vpack.c.bf16 %v11398, %v11398
    %v11415 = vpack.c.bf16 %v11399, %v11399
    %v11416 = vpack.c.bf16 %v11400, %v11400
    %v11417 = vpack.c.bf16 %v11401, %v11401
    %v11418 = vpack.c.bf16 %v11402, %v11402
    %v11419 = vpack.c.bf16 %v11403, %v11403
    %v11420 = vpack.c.bf16 %v11404, %v11404
    %v11421 = vpack.c.bf16 %v11405, %v11405
    %v11422 = vpack.c.bf16 %v11406, %v11406
    %v11423 = vpack.c.bf16 %v11407, %v11407
    %v11424 = vpack.c.bf16 %v11408, %v11408
    %v11425 = vpack.c.bf16 %v11409, %v11409
    %v11442 = vunpack.c.l.b16 %v11410
    %v11443 = vunpack.c.l.b16 %v11411
    %v11444 = vunpack.c.l.b16 %v11412
    %v11445 = vunpack.c.l.b16 %v11413
    %v11446 = vunpack.c.l.b16 %v11414
    %v11447 = vunpack.c.l.b16 %v11415
    %v11448 = vunpack.c.l.b16 %v11416
    %v11449 = vunpack.c.l.b16 %v11417
    %v11450 = vunpack.c.l.b16 %v11418
    %v11451 = vunpack.c.l.b16 %v11419
    %v11452 = vunpack.c.l.b16 %v11420
    %v11453 = vunpack.c.l.b16 %v11421
    %v11454 = vunpack.c.l.b16 %v11422
    %v11455 = vunpack.c.l.b16 %v11423
    %v11456 = vunpack.c.l.b16 %v11424
    %v11457 = vunpack.c.l.b16 %v11425
    %v11458 = vrot.slane %v11444, 7
    %vm11459 = vcmask 1041409
    %v11460 = vsel %vm11459, %v11458, %v11442
    %v11461 = vrot.slane %v11446, 6
    %vm11462 = vcmask 1042434
    %v11463 = vsel %vm11462, %v11461, %v11460
    %v11464 = vrot.slane %v11448, 5
    %vm11465 = vcmask 1043459
    %v11466 = vsel %vm11465, %v11464, %v11463
    %v11467 = vrot.slane %v11450, 4
    %vm11468 = vcmask 1044484
    %v11469 = vsel %vm11468, %v11467, %v11466
    %v11470 = vrot.slane %v11452, 3
    %vm11471 = vcmask 1045509
    %v11472 = vsel %vm11471, %v11470, %v11469
    %v11473 = vrot.slane %v11454, 2
    %vm11474 = vcmask 1046534
    %v11475 = vsel %vm11474, %v11473, %v11472
    %v11476 = vrot.slane %v11456, 1
    %vm11477 = vcmask 1047559
    %v11478 = vsel %vm11477, %v11476, %v11475
    %v11479 = vrot.slane %v11445, 7
    %v11480 = vsel %vm11459, %v11479, %v11443
    %v11481 = vrot.slane %v11447, 6
    %v11482 = vsel %vm11462, %v11481, %v11480
    %v11483 = vrot.slane %v11449, 5
    %v11484 = vsel %vm11465, %v11483, %v11482
    %v11485 = vrot.slane %v11451, 4
    %v11486 = vsel %vm11468, %v11485, %v11484
    %v11487 = vrot.slane %v11453, 3
    %v11488 = vsel %vm11471, %v11487, %v11486
    %v11489 = vrot.slane %v11455, 2
    %v11490 = vsel %vm11474, %v11489, %v11488
    %v11491 = vrot.slane %v11457, 1
    %v11492 = vsel %vm11477, %v11491, %v11490
    %v11493 = vpack.c.b16 %v11478, %v11478
    %v11494 = vpack.c.b16 %v11492, %v11492
    %v11497 = vrot.slane %v11442, 1
    %v11498 = vsel %vm11459, %v11444, %v11497
    %v11499 = vrot.slane %v11446, 7
    %v11500 = vsel %vm11462, %v11499, %v11498
    %v11501 = vrot.slane %v11448, 6
    %v11502 = vsel %vm11465, %v11501, %v11500
    %v11503 = vrot.slane %v11450, 5
    %v11504 = vsel %vm11468, %v11503, %v11502
    %v11505 = vrot.slane %v11452, 4
    %v11506 = vsel %vm11471, %v11505, %v11504
    %v11507 = vrot.slane %v11454, 3
    %v11508 = vsel %vm11474, %v11507, %v11506
    %v11509 = vrot.slane %v11456, 2
    %v11510 = vsel %vm11477, %v11509, %v11508
    %v11511 = vrot.slane %v11443, 1
    %v11512 = vsel %vm11459, %v11445, %v11511
    %v11513 = vrot.slane %v11447, 7
    %v11514 = vsel %vm11462, %v11513, %v11512
    %v11515 = vrot.slane %v11449, 6
    %v11516 = vsel %vm11465, %v11515, %v11514
    %v11517 = vrot.slane %v11451, 5
    %v11518 = vsel %vm11468, %v11517, %v11516
    %v11519 = vrot.slane %v11453, 4
    %v11520 = vsel %vm11471, %v11519, %v11518
    %v11521 = vrot.slane %v11455, 3
    %v11522 = vsel %vm11474, %v11521, %v11520
    %v11523 = vrot.slane %v11457, 2
    %v11524 = vsel %vm11477, %v11523, %v11522
    %v11525 = vpack.c.b16 %v11510, %v11510
    %v11526 = vpack.c.b16 %v11524, %v11524
    %v11529 = vrot.slane %v11442, 2
    %v11530 = vrot.slane %v11444, 1
    %v11531 = vsel %vm11459, %v11530, %v11529
    %v11532 = vsel %vm11462, %v11446, %v11531
    %v11533 = vrot.slane %v11448, 7
    %v11534 = vsel %vm11465, %v11533, %v11532
    %v11535 = vrot.slane %v11450, 6
    %v11536 = vsel %vm11468, %v11535, %v11534
    %v11537 = vrot.slane %v11452, 5
    %v11538 = vsel %vm11471, %v11537, %v11536
    %v11539 = vrot.slane %v11454, 4
    %v11540 = vsel %vm11474, %v11539, %v11538
    %v11541 = vrot.slane %v11456, 3
    %v11542 = vsel %vm11477, %v11541, %v11540
    %v11543 = vrot.slane %v11443, 2
    %v11544 = vrot.slane %v11445, 1
    %v11545 = vsel %vm11459, %v11544, %v11543
    %v11546 = vsel %vm11462, %v11447, %v11545
    %v11547 = vrot.slane %v11449, 7
    %v11548 = vsel %vm11465, %v11547, %v11546
    %v11549 = vrot.slane %v11451, 6
    %v11550 = vsel %vm11468, %v11549, %v11548
    %v11551 = vrot.slane %v11453, 5
    %v11552 = vsel %vm11471, %v11551, %v11550
    %v11553 = vrot.slane %v11455, 4
    %v11554 = vsel %vm11474, %v11553, %v11552
    %v11555 = vrot.slane %v11457, 3
    %v11556 = vsel %vm11477, %v11555, %v11554
    %v11557 = vpack.c.b16 %v11542, %v11542
    %v11558 = vpack.c.b16 %v11556, %v11556
    %v11561 = vrot.slane %v11442, 3
    %v11562 = vrot.slane %v11444, 2
    %v11563 = vsel %vm11459, %v11562, %v11561
    %v11564 = vrot.slane %v11446, 1
    %v11565 = vsel %vm11462, %v11564, %v11563
    %v11566 = vsel %vm11465, %v11448, %v11565
    %v11567 = vrot.slane %v11450, 7
    %v11568 = vsel %vm11468, %v11567, %v11566
    %v11569 = vrot.slane %v11452, 6
    %v11570 = vsel %vm11471, %v11569, %v11568
    %v11571 = vrot.slane %v11454, 5
    %v11572 = vsel %vm11474, %v11571, %v11570
    %v11573 = vrot.slane %v11456, 4
    %v11574 = vsel %vm11477, %v11573, %v11572
    %v11575 = vrot.slane %v11443, 3
    %v11576 = vrot.slane %v11445, 2
    %v11577 = vsel %vm11459, %v11576, %v11575
    %v11578 = vrot.slane %v11447, 1
    %v11579 = vsel %vm11462, %v11578, %v11577
    %v11580 = vsel %vm11465, %v11449, %v11579
    %v11581 = vrot.slane %v11451, 7
    %v11582 = vsel %vm11468, %v11581, %v11580
    %v11583 = vrot.slane %v11453, 6
    %v11584 = vsel %vm11471, %v11583, %v11582
    %v11585 = vrot.slane %v11455, 5
    %v11586 = vsel %vm11474, %v11585, %v11584
    %v11587 = vrot.slane %v11457, 4
    %v11588 = vsel %vm11477, %v11587, %v11586
    %v11589 = vpack.c.b16 %v11574, %v11574
    %v11590 = vpack.c.b16 %v11588, %v11588
    %v11593 = vld [vmem:[#allocation9] sm:$0xff]
    %v11594 = vld [vmem:[#allocation9 + $0x8] sm:$0xff]
    %v11595 = vld [vmem:[#allocation9 + $0x10] sm:$0xff]
    %v11596 = vld [vmem:[#allocation9 + $0x18] sm:$0xff]
    %v11597 = vld [vmem:[#allocation9 + $0x20] sm:$0xff]
    %v11598 = vld [vmem:[#allocation9 + $0x28] sm:$0xff]
    %v11599 = vld [vmem:[#allocation9 + $0x30] sm:$0xff]
    %v11600 = vld [vmem:[#allocation9 + $0x38] sm:$0xff]
    %v11601 = vld [vmem:[#allocation9 + $0x40] sm:$0xff]
    %v11602 = vld [vmem:[#allocation9 + $0x48] sm:$0xff]
    %v11603 = vld [vmem:[#allocation9 + $0x50] sm:$0xff]
    %v11604 = vld [vmem:[#allocation9 + $0x58] sm:$0xff]
    %v11605 = vld [vmem:[#allocation9 + $0x60] sm:$0xff]
    %v11606 = vld [vmem:[#allocation9 + $0x68] sm:$0xff]
    %v11607 = vld [vmem:[#allocation9 + $0x70] sm:$0xff]
    %v11608 = vld [vmem:[#allocation9 + $0x78] sm:$0xff]
    %v11609 = vld [vmem:[#allocation9 + $0x80] sm:$0xff]
    %v11610 = vld [vmem:[#allocation9 + $0x88] sm:$0xff]
    %v11611 = vld [vmem:[#allocation9 + $0x90] sm:$0xff]
    %v11612 = vld [vmem:[#allocation9 + $0x98] sm:$0xff]
    %v11613 = vld [vmem:[#allocation9 + $0xa0] sm:$0xff]
    %v11614 = vld [vmem:[#allocation9 + $0xa8] sm:$0xff]
    %v11615 = vld [vmem:[#allocation9 + $0xb0] sm:$0xff]
    %v11616 = vld [vmem:[#allocation9 + $0xb8] sm:$0xff]
    %v11617 = vld [vmem:[#allocation9 + $0xc0] sm:$0xff]
    %v11618 = vld [vmem:[#allocation9 + $0xc8] sm:$0xff]
    %v11619 = vld [vmem:[#allocation9 + $0xd0] sm:$0xff]
    %v11620 = vld [vmem:[#allocation9 + $0xd8] sm:$0xff]
    %v11621 = vld [vmem:[#allocation9 + $0xe0] sm:$0xff]
    %v11622 = vld [vmem:[#allocation9 + $0xe8] sm:$0xff]
    %v11623 = vld [vmem:[#allocation9 + $0xf0] sm:$0xff]
    %v11624 = vld [vmem:[#allocation9 + $0xf8] sm:$0xff]
    %v11625 = vld [vmem:[#allocation9 + $0x100] sm:$0xff]
    %v11626 = vld [vmem:[#allocation9 + $0x108] sm:$0xff]
    %v11627 = vld [vmem:[#allocation9 + $0x110] sm:$0xff]
    %v11628 = vld [vmem:[#allocation9 + $0x118] sm:$0xff]
    %v11629 = vld [vmem:[#allocation9 + $0x120] sm:$0xff]
    %v11630 = vld [vmem:[#allocation9 + $0x128] sm:$0xff]
    %v11631 = vld [vmem:[#allocation9 + $0x130] sm:$0xff]
    %v11632 = vld [vmem:[#allocation9 + $0x138] sm:$0xff]
    %v11633 = vld [vmem:[#allocation9 + $0x140] sm:$0xff]
    %v11634 = vld [vmem:[#allocation9 + $0x148] sm:$0xff]
    %v11635 = vld [vmem:[#allocation9 + $0x150] sm:$0xff]
    %v11636 = vld [vmem:[#allocation9 + $0x158] sm:$0xff]
    %v11637 = vld [vmem:[#allocation9 + $0x160] sm:$0xff]
    %v11638 = vld [vmem:[#allocation9 + $0x168] sm:$0xff]
    %v11639 = vld [vmem:[#allocation9 + $0x170] sm:$0xff]
    %v11640 = vld [vmem:[#allocation9 + $0x178] sm:$0xff]
    %v11641 = vld [vmem:[#allocation9 + $0x180] sm:$0xff]
    %v11642 = vld [vmem:[#allocation9 + $0x188] sm:$0xff]
    %v11643 = vld [vmem:[#allocation9 + $0x190] sm:$0xff]
    %v11644 = vld [vmem:[#allocation9 + $0x198] sm:$0xff]
    %v11645 = vld [vmem:[#allocation9 + $0x1a0] sm:$0xff]
    %v11646 = vld [vmem:[#allocation9 + $0x1a8] sm:$0xff]
    %v11647 = vld [vmem:[#allocation9 + $0x1b0] sm:$0xff]
    %v11648 = vld [vmem:[#allocation9 + $0x1b8] sm:$0xff]
    %v11649 = vld [vmem:[#allocation9 + $0x1c0] sm:$0xff]
    %v11650 = vld [vmem:[#allocation9 + $0x1c8] sm:$0xff]
    %v11651 = vld [vmem:[#allocation9 + $0x1d0] sm:$0xff]
    %v11652 = vld [vmem:[#allocation9 + $0x1d8] sm:$0xff]
    %v11653 = vld [vmem:[#allocation9 + $0x1e0] sm:$0xff]
    %v11654 = vld [vmem:[#allocation9 + $0x1e8] sm:$0xff]
    %v11655 = vld [vmem:[#allocation9 + $0x1f0] sm:$0xff]
    %v11656 = vld [vmem:[#allocation9 + $0x1f8] sm:$0xff]
    %v11657 = vld [vmem:[#allocation9 + $0x200] sm:$0xff]
    %v11658 = vld [vmem:[#allocation9 + $0x208] sm:$0xff]
    %v11659 = vld [vmem:[#allocation9 + $0x210] sm:$0xff]
    %v11660 = vld [vmem:[#allocation9 + $0x218] sm:$0xff]
    %v11661 = vld [vmem:[#allocation9 + $0x220] sm:$0xff]
    %v11662 = vld [vmem:[#allocation9 + $0x228] sm:$0xff]
    %v11663 = vld [vmem:[#allocation9 + $0x230] sm:$0xff]
    %v11664 = vld [vmem:[#allocation9 + $0x238] sm:$0xff]
    %v11665 = vld [vmem:[#allocation9 + $0x240] sm:$0xff]
    %v11666 = vld [vmem:[#allocation9 + $0x248] sm:$0xff]
    %v11667 = vld [vmem:[#allocation9 + $0x250] sm:$0xff]
    %v11668 = vld [vmem:[#allocation9 + $0x258] sm:$0xff]
    %v11669 = vld [vmem:[#allocation9 + $0x260] sm:$0xff]
    %v11670 = vld [vmem:[#allocation9 + $0x268] sm:$0xff]
    %v11671 = vld [vmem:[#allocation9 + $0x270] sm:$0xff]
    %v11672 = vld [vmem:[#allocation9 + $0x278] sm:$0xff]
    %v11673 = vld [vmem:[#allocation9 + $0x280] sm:$0xff]
    %v11674 = vld [vmem:[#allocation9 + $0x288] sm:$0xff]
    %v11675 = vld [vmem:[#allocation9 + $0x290] sm:$0xff]
    %v11676 = vld [vmem:[#allocation9 + $0x298] sm:$0xff]
    %v11677 = vld [vmem:[#allocation9 + $0x2a0] sm:$0xff]
    %v11678 = vld [vmem:[#allocation9 + $0x2a8] sm:$0xff]
    %v11679 = vld [vmem:[#allocation9 + $0x2b0] sm:$0xff]
    %v11680 = vld [vmem:[#allocation9 + $0x2b8] sm:$0xff]
    %v11681 = vld [vmem:[#allocation9 + $0x2c0] sm:$0xff]
    %v11682 = vld [vmem:[#allocation9 + $0x2c8] sm:$0xff]
    %v11683 = vld [vmem:[#allocation9 + $0x2d0] sm:$0xff]
    %v11684 = vld [vmem:[#allocation9 + $0x2d8] sm:$0xff]
    %v11685 = vld [vmem:[#allocation9 + $0x2e0] sm:$0xff]
    %v11686 = vld [vmem:[#allocation9 + $0x2e8] sm:$0xff]
    %v11687 = vld [vmem:[#allocation9 + $0x2f0] sm:$0xff]
    %v11688 = vld [vmem:[#allocation9 + $0x2f8] sm:$0xff]
    %v11689 = vld [vmem:[#allocation9 + $0x300] sm:$0xff]
    %v11690 = vld [vmem:[#allocation9 + $0x308] sm:$0xff]
    %v11691 = vld [vmem:[#allocation9 + $0x310] sm:$0xff]
    %v11692 = vld [vmem:[#allocation9 + $0x318] sm:$0xff]
    %v11693 = vld [vmem:[#allocation9 + $0x320] sm:$0xff]
    %v11694 = vld [vmem:[#allocation9 + $0x328] sm:$0xff]
    %v11695 = vld [vmem:[#allocation9 + $0x330] sm:$0xff]
    %v11696 = vld [vmem:[#allocation9 + $0x338] sm:$0xff]
    %v11697 = vld [vmem:[#allocation9 + $0x340] sm:$0xff]
    %v11698 = vld [vmem:[#allocation9 + $0x348] sm:$0xff]
    %v11699 = vld [vmem:[#allocation9 + $0x350] sm:$0xff]
    %v11700 = vld [vmem:[#allocation9 + $0x358] sm:$0xff]
    %v11701 = vld [vmem:[#allocation9 + $0x360] sm:$0xff]
    %v11702 = vld [vmem:[#allocation9 + $0x368] sm:$0xff]
    %v11703 = vld [vmem:[#allocation9 + $0x370] sm:$0xff]
    %v11704 = vld [vmem:[#allocation9 + $0x378] sm:$0xff]
    %v11705 = vld [vmem:[#allocation9 + $0x380] sm:$0xff]
    %v11706 = vld [vmem:[#allocation9 + $0x388] sm:$0xff]
    %v11707 = vld [vmem:[#allocation9 + $0x390] sm:$0xff]
    %v11708 = vld [vmem:[#allocation9 + $0x398] sm:$0xff]
    %v11709 = vld [vmem:[#allocation9 + $0x3a0] sm:$0xff]
    %v11710 = vld [vmem:[#allocation9 + $0x3a8] sm:$0xff]
    %v11711 = vld [vmem:[#allocation9 + $0x3b0] sm:$0xff]
    %v11712 = vld [vmem:[#allocation9 + $0x3b8] sm:$0xff]
    %v11713 = vld [vmem:[#allocation9 + $0x3c0] sm:$0xff]
    %v11714 = vld [vmem:[#allocation9 + $0x3c8] sm:$0xff]
    %v11715 = vld [vmem:[#allocation9 + $0x3d0] sm:$0xff]
    %v11716 = vld [vmem:[#allocation9 + $0x3d8] sm:$0xff]
    %v11717 = vld [vmem:[#allocation9 + $0x3e0] sm:$0xff]
    %v11718 = vld [vmem:[#allocation9 + $0x3e8] sm:$0xff]
    %v11719 = vld [vmem:[#allocation9 + $0x3f0] sm:$0xff]
    %v11720 = vld [vmem:[#allocation9 + $0x3f8] sm:$0xff]
    %v11721 = vld [vmem:[#allocation9 + $0x400] sm:$0xff]
    %v11722 = vld [vmem:[#allocation9 + $0x408] sm:$0xff]
    %v11723 = vld [vmem:[#allocation9 + $0x410] sm:$0xff]
    %v11724 = vld [vmem:[#allocation9 + $0x418] sm:$0xff]
    %v11725 = vld [vmem:[#allocation9 + $0x420] sm:$0xff]
    %v11726 = vld [vmem:[#allocation9 + $0x428] sm:$0xff]
    %v11727 = vld [vmem:[#allocation9 + $0x430] sm:$0xff]
    %v11728 = vld [vmem:[#allocation9 + $0x438] sm:$0xff]
    %v11729 = vld [vmem:[#allocation9 + $0x440] sm:$0xff]
    %v11730 = vld [vmem:[#allocation9 + $0x448] sm:$0xff]
    %v11731 = vld [vmem:[#allocation9 + $0x450] sm:$0xff]
    %v11732 = vld [vmem:[#allocation9 + $0x458] sm:$0xff]
    %v11733 = vld [vmem:[#allocation9 + $0x460] sm:$0xff]
    %v11734 = vld [vmem:[#allocation9 + $0x468] sm:$0xff]
    %v11735 = vld [vmem:[#allocation9 + $0x470] sm:$0xff]
    %v11736 = vld [vmem:[#allocation9 + $0x478] sm:$0xff]
    %v11737 = vld [vmem:[#allocation9 + $0x480] sm:$0xff]
    %v11738 = vld [vmem:[#allocation9 + $0x488] sm:$0xff]
    %v11739 = vld [vmem:[#allocation9 + $0x490] sm:$0xff]
    %v11740 = vld [vmem:[#allocation9 + $0x498] sm:$0xff]
    %v11741 = vld [vmem:[#allocation9 + $0x4a0] sm:$0xff]
    %v11742 = vld [vmem:[#allocation9 + $0x4a8] sm:$0xff]
    %v11743 = vld [vmem:[#allocation9 + $0x4b0] sm:$0xff]
    %v11744 = vld [vmem:[#allocation9 + $0x4b8] sm:$0xff]
    %v11745 = vld [vmem:[#allocation9 + $0x4c0] sm:$0xff]
    %v11746 = vld [vmem:[#allocation9 + $0x4c8] sm:$0xff]
    %v11747 = vld [vmem:[#allocation9 + $0x4d0] sm:$0xff]
    %v11748 = vld [vmem:[#allocation9 + $0x4d8] sm:$0xff]
    %v11749 = vld [vmem:[#allocation9 + $0x4e0] sm:$0xff]
    %v11750 = vld [vmem:[#allocation9 + $0x4e8] sm:$0xff]
    %v11751 = vld [vmem:[#allocation9 + $0x4f0] sm:$0xff]
    %v11752 = vld [vmem:[#allocation9 + $0x4f8] sm:$0xff]
    %v11753 = vld [vmem:[#allocation9 + $0x500] sm:$0xff]
    %v11754 = vld [vmem:[#allocation9 + $0x508] sm:$0xff]
    %v11755 = vld [vmem:[#allocation9 + $0x510] sm:$0xff]
    %v11756 = vld [vmem:[#allocation9 + $0x518] sm:$0xff]
    %v11757 = vld [vmem:[#allocation9 + $0x520] sm:$0xff]
    %v11758 = vld [vmem:[#allocation9 + $0x528] sm:$0xff]
    %v11759 = vld [vmem:[#allocation9 + $0x530] sm:$0xff]
    %v11760 = vld [vmem:[#allocation9 + $0x538] sm:$0xff]
    %v11761 = vld [vmem:[#allocation9 + $0x540] sm:$0xff]
    %v11762 = vld [vmem:[#allocation9 + $0x548] sm:$0xff]
    %v11763 = vld [vmem:[#allocation9 + $0x550] sm:$0xff]
    %v11764 = vld [vmem:[#allocation9 + $0x558] sm:$0xff]
    %v11765 = vld [vmem:[#allocation9 + $0x560] sm:$0xff]
    %v11766 = vld [vmem:[#allocation9 + $0x568] sm:$0xff]
    %v11767 = vld [vmem:[#allocation9 + $0x570] sm:$0xff]
    %v11768 = vld [vmem:[#allocation9 + $0x578] sm:$0xff]
    %v11769 = vld [vmem:[#allocation9 + $0x580] sm:$0xff]
    %v11770 = vld [vmem:[#allocation9 + $0x588] sm:$0xff]
    %v11771 = vld [vmem:[#allocation9 + $0x590] sm:$0xff]
    %v11772 = vld [vmem:[#allocation9 + $0x598] sm:$0xff]
    %v11773 = vld [vmem:[#allocation9 + $0x5a0] sm:$0xff]
    %v11774 = vld [vmem:[#allocation9 + $0x5a8] sm:$0xff]
    %v11775 = vld [vmem:[#allocation9 + $0x5b0] sm:$0xff]
    %v11776 = vld [vmem:[#allocation9 + $0x5b8] sm:$0xff]
    %v11777 = vld [vmem:[#allocation9 + $0x5c0] sm:$0xff]
    %v11778 = vld [vmem:[#allocation9 + $0x5c8] sm:$0xff]
    %v11779 = vld [vmem:[#allocation9 + $0x5d0] sm:$0xff]
    %v11780 = vld [vmem:[#allocation9 + $0x5d8] sm:$0xff]
    %v11781 = vld [vmem:[#allocation9 + $0x5e0] sm:$0xff]
    %v11782 = vld [vmem:[#allocation9 + $0x5e8] sm:$0xff]
    %v11783 = vld [vmem:[#allocation9 + $0x5f0] sm:$0xff]
    %v11784 = vld [vmem:[#allocation9 + $0x5f8] sm:$0xff]
    %v11785 = vld [vmem:[#allocation9 + $0x600] sm:$0xff]
    %v11786 = vld [vmem:[#allocation9 + $0x608] sm:$0xff]
    %v11787 = vld [vmem:[#allocation9 + $0x610] sm:$0xff]
    %v11788 = vld [vmem:[#allocation9 + $0x618] sm:$0xff]
    %v11789 = vld [vmem:[#allocation9 + $0x620] sm:$0xff]
    %v11790 = vld [vmem:[#allocation9 + $0x628] sm:$0xff]
    %v11791 = vld [vmem:[#allocation9 + $0x630] sm:$0xff]
    %v11792 = vld [vmem:[#allocation9 + $0x638] sm:$0xff]
    %v11793 = vld [vmem:[#allocation9 + $0x640] sm:$0xff]
    %v11794 = vld [vmem:[#allocation9 + $0x648] sm:$0xff]
    %v11795 = vld [vmem:[#allocation9 + $0x650] sm:$0xff]
    %v11796 = vld [vmem:[#allocation9 + $0x658] sm:$0xff]
    %v11797 = vld [vmem:[#allocation9 + $0x660] sm:$0xff]
    %v11798 = vld [vmem:[#allocation9 + $0x668] sm:$0xff]
    %v11799 = vld [vmem:[#allocation9 + $0x670] sm:$0xff]
    %v11800 = vld [vmem:[#allocation9 + $0x678] sm:$0xff]
    %v11801 = vld [vmem:[#allocation9 + $0x680] sm:$0xff]
    %v11802 = vld [vmem:[#allocation9 + $0x688] sm:$0xff]
    %v11803 = vld [vmem:[#allocation9 + $0x690] sm:$0xff]
    %v11804 = vld [vmem:[#allocation9 + $0x698] sm:$0xff]
    %v11805 = vld [vmem:[#allocation9 + $0x6a0] sm:$0xff]
    %v11806 = vld [vmem:[#allocation9 + $0x6a8] sm:$0xff]
    %v11807 = vld [vmem:[#allocation9 + $0x6b0] sm:$0xff]
    %v11808 = vld [vmem:[#allocation9 + $0x6b8] sm:$0xff]
    %v11809 = vld [vmem:[#allocation9 + $0x6c0] sm:$0xff]
    %v11810 = vld [vmem:[#allocation9 + $0x6c8] sm:$0xff]
    %v11811 = vld [vmem:[#allocation9 + $0x6d0] sm:$0xff]
    %v11812 = vld [vmem:[#allocation9 + $0x6d8] sm:$0xff]
    %v11813 = vld [vmem:[#allocation9 + $0x6e0] sm:$0xff]
    %v11814 = vld [vmem:[#allocation9 + $0x6e8] sm:$0xff]
    %v11815 = vld [vmem:[#allocation9 + $0x6f0] sm:$0xff]
    %v11816 = vld [vmem:[#allocation9 + $0x6f8] sm:$0xff]
    %v11817 = vld [vmem:[#allocation9 + $0x700] sm:$0xff]
    %v11818 = vld [vmem:[#allocation9 + $0x708] sm:$0xff]
    %v11819 = vld [vmem:[#allocation9 + $0x710] sm:$0xff]
    %v11820 = vld [vmem:[#allocation9 + $0x718] sm:$0xff]
    %v11821 = vld [vmem:[#allocation9 + $0x720] sm:$0xff]
    %v11822 = vld [vmem:[#allocation9 + $0x728] sm:$0xff]
    %v11823 = vld [vmem:[#allocation9 + $0x730] sm:$0xff]
    %v11824 = vld [vmem:[#allocation9 + $0x738] sm:$0xff]
    %v11825 = vld [vmem:[#allocation9 + $0x740] sm:$0xff]
    %v11826 = vld [vmem:[#allocation9 + $0x748] sm:$0xff]
    %v11827 = vld [vmem:[#allocation9 + $0x750] sm:$0xff]
    %v11828 = vld [vmem:[#allocation9 + $0x758] sm:$0xff]
    %v11829 = vld [vmem:[#allocation9 + $0x760] sm:$0xff]
    %v11830 = vld [vmem:[#allocation9 + $0x768] sm:$0xff]
    %v11831 = vld [vmem:[#allocation9 + $0x770] sm:$0xff]
    %v11832 = vld [vmem:[#allocation9 + $0x778] sm:$0xff]
    %v11833 = vld [vmem:[#allocation9 + $0x780] sm:$0xff]
    %v11834 = vld [vmem:[#allocation9 + $0x788] sm:$0xff]
    %v11835 = vld [vmem:[#allocation9 + $0x790] sm:$0xff]
    %v11836 = vld [vmem:[#allocation9 + $0x798] sm:$0xff]
    %v11837 = vld [vmem:[#allocation9 + $0x7a0] sm:$0xff]
    %v11838 = vld [vmem:[#allocation9 + $0x7a8] sm:$0xff]
    %v11839 = vld [vmem:[#allocation9 + $0x7b0] sm:$0xff]
    %v11840 = vld [vmem:[#allocation9 + $0x7b8] sm:$0xff]
    %v11841 = vld [vmem:[#allocation9 + $0x7c0] sm:$0xff]
    %v11842 = vld [vmem:[#allocation9 + $0x7c8] sm:$0xff]
    %v11843 = vld [vmem:[#allocation9 + $0x7d0] sm:$0xff]
    %v11844 = vld [vmem:[#allocation9 + $0x7d8] sm:$0xff]
    %v11845 = vld [vmem:[#allocation9 + $0x7e0] sm:$0xff]
    %v11846 = vld [vmem:[#allocation9 + $0x7e8] sm:$0xff]
    %v11847 = vld [vmem:[#allocation9 + $0x7f0] sm:$0xff]
    %v11848 = vld [vmem:[#allocation9 + $0x7f8] sm:$0xff]
    %v11849 = vld [vmem:[#allocation10] sm:$0xf]
    %v11851 = vlaneseq
    %v11852 = vshrl.u32 %v11851, 7
    %v11853 = vsub.s32 0, %v11852
    %v11854 = vrot.slane %v11849, %v11853
    %v11855 = vlaneseq
    %v11856 = vshrl.u32 %v11855, 7
    %v11857 = vsub.s32 1, %v11856
    %v11858 = vrot.slane %v11849, %v11857
    %v11859 = vlaneseq
    %v11860 = vshrl.u32 %v11859, 7
    %v11861 = vsub.s32 2, %v11860
    %v11862 = vrot.slane %v11849, %v11861
    %v11863 = vlaneseq
    %v11864 = vshrl.u32 %v11863, 7
    %v11865 = vsub.s32 3, %v11864
    %v11866 = vrot.slane %v11849, %v11865
    %v12127 = vunpack.c.l.b16 %v11593
    %v12128 = vunpack.c.h.b16 %v11593
    %v12129 = vunpack.c.l.b16 %v11594
    %v12130 = vunpack.c.h.b16 %v11594
    %v12131 = vunpack.c.l.b16 %v11595
    %v12132 = vunpack.c.h.b16 %v11595
    %v12133 = vunpack.c.l.b16 %v11596
    %v12134 = vunpack.c.h.b16 %v11596
    %v12135 = vunpack.c.l.b16 %v11597
    %v12136 = vunpack.c.h.b16 %v11597
    %v12137 = vunpack.c.l.b16 %v11598
    %v12138 = vunpack.c.h.b16 %v11598
    %v12139 = vunpack.c.l.b16 %v11599
    %v12140 = vunpack.c.h.b16 %v11599
    %v12141 = vunpack.c.l.b16 %v11600
    %v12142 = vunpack.c.h.b16 %v11600
    %v12143 = vunpack.c.l.b16 %v11601
    %v12144 = vunpack.c.h.b16 %v11601
    %v12145 = vunpack.c.l.b16 %v11602
    %v12146 = vunpack.c.h.b16 %v11602
    %v12147 = vunpack.c.l.b16 %v11603
    %v12148 = vunpack.c.h.b16 %v11603
    %v12149 = vunpack.c.l.b16 %v11604
    %v12150 = vunpack.c.h.b16 %v11604
    %v12151 = vunpack.c.l.b16 %v11605
    %v12152 = vunpack.c.h.b16 %v11605
    %v12153 = vunpack.c.l.b16 %v11606
    %v12154 = vunpack.c.h.b16 %v11606
    %v12155 = vunpack.c.l.b16 %v11607
    %v12156 = vunpack.c.h.b16 %v11607
    %v12157 = vunpack.c.l.b16 %v11608
    %v12158 = vunpack.c.h.b16 %v11608
    %v12159 = vunpack.c.l.b16 %v11609
    %v12160 = vunpack.c.h.b16 %v11609
    %v12161 = vunpack.c.l.b16 %v11610
    %v12162 = vunpack.c.h.b16 %v11610
    %v12163 = vunpack.c.l.b16 %v11611
    %v12164 = vunpack.c.h.b16 %v11611
    %v12165 = vunpack.c.l.b16 %v11612
    %v12166 = vunpack.c.h.b16 %v11612
    %v12167 = vunpack.c.l.b16 %v11613
    %v12168 = vunpack.c.h.b16 %v11613
    %v12169 = vunpack.c.l.b16 %v11614
    %v12170 = vunpack.c.h.b16 %v11614
    %v12171 = vunpack.c.l.b16 %v11615
    %v12172 = vunpack.c.h.b16 %v11615
    %v12173 = vunpack.c.l.b16 %v11616
    %v12174 = vunpack.c.h.b16 %v11616
    %v12175 = vunpack.c.l.b16 %v11617
    %v12176 = vunpack.c.h.b16 %v11617
    %v12177 = vunpack.c.l.b16 %v11618
    %v12178 = vunpack.c.h.b16 %v11618
    %v12179 = vunpack.c.l.b16 %v11619
    %v12180 = vunpack.c.h.b16 %v11619
    %v12181 = vunpack.c.l.b16 %v11620
    %v12182 = vunpack.c.h.b16 %v11620
    %v12183 = vunpack.c.l.b16 %v11621
    %v12184 = vunpack.c.h.b16 %v11621
    %v12185 = vunpack.c.l.b16 %v11622
    %v12186 = vunpack.c.h.b16 %v11622
    %v12187 = vunpack.c.l.b16 %v11623
    %v12188 = vunpack.c.h.b16 %v11623
    %v12189 = vunpack.c.l.b16 %v11624
    %v12190 = vunpack.c.h.b16 %v11624
    %v12191 = vunpack.c.l.b16 %v11625
    %v12192 = vunpack.c.h.b16 %v11625
    %v12193 = vunpack.c.l.b16 %v11626
    %v12194 = vunpack.c.h.b16 %v11626
    %v12195 = vunpack.c.l.b16 %v11627
    %v12196 = vunpack.c.h.b16 %v11627
    %v12197 = vunpack.c.l.b16 %v11628
    %v12198 = vunpack.c.h.b16 %v11628
    %v12199 = vunpack.c.l.b16 %v11629
    %v12200 = vunpack.c.h.b16 %v11629
    %v12201 = vunpack.c.l.b16 %v11630
    %v12202 = vunpack.c.h.b16 %v11630
    %v12203 = vunpack.c.l.b16 %v11631
    %v12204 = vunpack.c.h.b16 %v11631
    %v12205 = vunpack.c.l.b16 %v11632
    %v12206 = vunpack.c.h.b16 %v11632
    %v12207 = vunpack.c.l.b16 %v11633
    %v12208 = vunpack.c.h.b16 %v11633
    %v12209 = vunpack.c.l.b16 %v11634
    %v12210 = vunpack.c.h.b16 %v11634
    %v12211 = vunpack.c.l.b16 %v11635
    %v12212 = vunpack.c.h.b16 %v11635
    %v12213 = vunpack.c.l.b16 %v11636
    %v12214 = vunpack.c.h.b16 %v11636
    %v12215 = vunpack.c.l.b16 %v11637
    %v12216 = vunpack.c.h.b16 %v11637
    %v12217 = vunpack.c.l.b16 %v11638
    %v12218 = vunpack.c.h.b16 %v11638
    %v12219 = vunpack.c.l.b16 %v11639
    %v12220 = vunpack.c.h.b16 %v11639
    %v12221 = vunpack.c.l.b16 %v11640
    %v12222 = vunpack.c.h.b16 %v11640
    %v12223 = vunpack.c.l.b16 %v11641
    %v12224 = vunpack.c.h.b16 %v11641
    %v12225 = vunpack.c.l.b16 %v11642
    %v12226 = vunpack.c.h.b16 %v11642
    %v12227 = vunpack.c.l.b16 %v11643
    %v12228 = vunpack.c.h.b16 %v11643
    %v12229 = vunpack.c.l.b16 %v11644
    %v12230 = vunpack.c.h.b16 %v11644
    %v12231 = vunpack.c.l.b16 %v11645
    %v12232 = vunpack.c.h.b16 %v11645
    %v12233 = vunpack.c.l.b16 %v11646
    %v12234 = vunpack.c.h.b16 %v11646
    %v12235 = vunpack.c.l.b16 %v11647
    %v12236 = vunpack.c.h.b16 %v11647
    %v12237 = vunpack.c.l.b16 %v11648
    %v12238 = vunpack.c.h.b16 %v11648
    %v12239 = vunpack.c.l.b16 %v11649
    %v12240 = vunpack.c.h.b16 %v11649
    %v12241 = vunpack.c.l.b16 %v11650
    %v12242 = vunpack.c.h.b16 %v11650
    %v12243 = vunpack.c.l.b16 %v11651
    %v12244 = vunpack.c.h.b16 %v11651
    %v12245 = vunpack.c.l.b16 %v11652
    %v12246 = vunpack.c.h.b16 %v11652
    %v12247 = vunpack.c.l.b16 %v11653
    %v12248 = vunpack.c.h.b16 %v11653
    %v12249 = vunpack.c.l.b16 %v11654
    %v12250 = vunpack.c.h.b16 %v11654
    %v12251 = vunpack.c.l.b16 %v11655
    %v12252 = vunpack.c.h.b16 %v11655
    %v12253 = vunpack.c.l.b16 %v11656
    %v12254 = vunpack.c.h.b16 %v11656
    %v12255 = vunpack.c.l.b16 %v11657
    %v12256 = vunpack.c.h.b16 %v11657
    %v12257 = vunpack.c.l.b16 %v11658
    %v12258 = vunpack.c.h.b16 %v11658
    %v12259 = vunpack.c.l.b16 %v11659
    %v12260 = vunpack.c.h.b16 %v11659
    %v12261 = vunpack.c.l.b16 %v11660
    %v12262 = vunpack.c.h.b16 %v11660
    %v12263 = vunpack.c.l.b16 %v11661
    %v12264 = vunpack.c.h.b16 %v11661
    %v12265 = vunpack.c.l.b16 %v11662
    %v12266 = vunpack.c.h.b16 %v11662
    %v12267 = vunpack.c.l.b16 %v11663
    %v12268 = vunpack.c.h.b16 %v11663
    %v12269 = vunpack.c.l.b16 %v11664
    %v12270 = vunpack.c.h.b16 %v11664
    %v12271 = vunpack.c.l.b16 %v11665
    %v12272 = vunpack.c.h.b16 %v11665
    %v12273 = vunpack.c.l.b16 %v11666
    %v12274 = vunpack.c.h.b16 %v11666
    %v12275 = vunpack.c.l.b16 %v11667
    %v12276 = vunpack.c.h.b16 %v11667
    %v12277 = vunpack.c.l.b16 %v11668
    %v12278 = vunpack.c.h.b16 %v11668
    %v12279 = vunpack.c.l.b16 %v11669
    %v12280 = vunpack.c.h.b16 %v11669
    %v12281 = vunpack.c.l.b16 %v11670
    %v12282 = vunpack.c.h.b16 %v11670
    %v12283 = vunpack.c.l.b16 %v11671
    %v12284 = vunpack.c.h.b16 %v11671
    %v12285 = vunpack.c.l.b16 %v11672
    %v12286 = vunpack.c.h.b16 %v11672
    %v12287 = vunpack.c.l.b16 %v11673
    %v12288 = vunpack.c.h.b16 %v11673
    %v12289 = vunpack.c.l.b16 %v11674
    %v12290 = vunpack.c.h.b16 %v11674
    %v12291 = vunpack.c.l.b16 %v11675
    %v12292 = vunpack.c.h.b16 %v11675
    %v12293 = vunpack.c.l.b16 %v11676
    %v12294 = vunpack.c.h.b16 %v11676
    %v12295 = vunpack.c.l.b16 %v11677
    %v12296 = vunpack.c.h.b16 %v11677
    %v12297 = vunpack.c.l.b16 %v11678
    %v12298 = vunpack.c.h.b16 %v11678
    %v12299 = vunpack.c.l.b16 %v11679
    %v12300 = vunpack.c.h.b16 %v11679
    %v12301 = vunpack.c.l.b16 %v11680
    %v12302 = vunpack.c.h.b16 %v11680
    %v12303 = vunpack.c.l.b16 %v11681
    %v12304 = vunpack.c.h.b16 %v11681
    %v12305 = vunpack.c.l.b16 %v11682
    %v12306 = vunpack.c.h.b16 %v11682
    %v12307 = vunpack.c.l.b16 %v11683
    %v12308 = vunpack.c.h.b16 %v11683
    %v12309 = vunpack.c.l.b16 %v11684
    %v12310 = vunpack.c.h.b16 %v11684
    %v12311 = vunpack.c.l.b16 %v11685
    %v12312 = vunpack.c.h.b16 %v11685
    %v12313 = vunpack.c.l.b16 %v11686
    %v12314 = vunpack.c.h.b16 %v11686
    %v12315 = vunpack.c.l.b16 %v11687
    %v12316 = vunpack.c.h.b16 %v11687
    %v12317 = vunpack.c.l.b16 %v11688
    %v12318 = vunpack.c.h.b16 %v11688
    %v12319 = vunpack.c.l.b16 %v11689
    %v12320 = vunpack.c.h.b16 %v11689
    %v12321 = vunpack.c.l.b16 %v11690
    %v12322 = vunpack.c.h.b16 %v11690
    %v12323 = vunpack.c.l.b16 %v11691
    %v12324 = vunpack.c.h.b16 %v11691
    %v12325 = vunpack.c.l.b16 %v11692
    %v12326 = vunpack.c.h.b16 %v11692
    %v12327 = vunpack.c.l.b16 %v11693
    %v12328 = vunpack.c.h.b16 %v11693
    %v12329 = vunpack.c.l.b16 %v11694
    %v12330 = vunpack.c.h.b16 %v11694
    %v12331 = vunpack.c.l.b16 %v11695
    %v12332 = vunpack.c.h.b16 %v11695
    %v12333 = vunpack.c.l.b16 %v11696
    %v12334 = vunpack.c.h.b16 %v11696
    %v12335 = vunpack.c.l.b16 %v11697
    %v12336 = vunpack.c.h.b16 %v11697
    %v12337 = vunpack.c.l.b16 %v11698
    %v12338 = vunpack.c.h.b16 %v11698
    %v12339 = vunpack.c.l.b16 %v11699
    %v12340 = vunpack.c.h.b16 %v11699
    %v12341 = vunpack.c.l.b16 %v11700
    %v12342 = vunpack.c.h.b16 %v11700
    %v12343 = vunpack.c.l.b16 %v11701
    %v12344 = vunpack.c.h.b16 %v11701
    %v12345 = vunpack.c.l.b16 %v11702
    %v12346 = vunpack.c.h.b16 %v11702
    %v12347 = vunpack.c.l.b16 %v11703
    %v12348 = vunpack.c.h.b16 %v11703
    %v12349 = vunpack.c.l.b16 %v11704
    %v12350 = vunpack.c.h.b16 %v11704
    %v12351 = vunpack.c.l.b16 %v11705
    %v12352 = vunpack.c.h.b16 %v11705
    %v12353 = vunpack.c.l.b16 %v11706
    %v12354 = vunpack.c.h.b16 %v11706
    %v12355 = vunpack.c.l.b16 %v11707
    %v12356 = vunpack.c.h.b16 %v11707
    %v12357 = vunpack.c.l.b16 %v11708
    %v12358 = vunpack.c.h.b16 %v11708
    %v12359 = vunpack.c.l.b16 %v11709
    %v12360 = vunpack.c.h.b16 %v11709
    %v12361 = vunpack.c.l.b16 %v11710
    %v12362 = vunpack.c.h.b16 %v11710
    %v12363 = vunpack.c.l.b16 %v11711
    %v12364 = vunpack.c.h.b16 %v11711
    %v12365 = vunpack.c.l.b16 %v11712
    %v12366 = vunpack.c.h.b16 %v11712
    %v12367 = vunpack.c.l.b16 %v11713
    %v12368 = vunpack.c.h.b16 %v11713
    %v12369 = vunpack.c.l.b16 %v11714
    %v12370 = vunpack.c.h.b16 %v11714
    %v12371 = vunpack.c.l.b16 %v11715
    %v12372 = vunpack.c.h.b16 %v11715
    %v12373 = vunpack.c.l.b16 %v11716
    %v12374 = vunpack.c.h.b16 %v11716
    %v12375 = vunpack.c.l.b16 %v11717
    %v12376 = vunpack.c.h.b16 %v11717
    %v12377 = vunpack.c.l.b16 %v11718
    %v12378 = vunpack.c.h.b16 %v11718
    %v12379 = vunpack.c.l.b16 %v11719
    %v12380 = vunpack.c.h.b16 %v11719
    %v12381 = vunpack.c.l.b16 %v11720
    %v12382 = vunpack.c.h.b16 %v11720
    %v12383 = vunpack.c.l.b16 %v11721
    %v12384 = vunpack.c.h.b16 %v11721
    %v12385 = vunpack.c.l.b16 %v11722
    %v12386 = vunpack.c.h.b16 %v11722
    %v12387 = vunpack.c.l.b16 %v11723
    %v12388 = vunpack.c.h.b16 %v11723
    %v12389 = vunpack.c.l.b16 %v11724
    %v12390 = vunpack.c.h.b16 %v11724
    %v12391 = vunpack.c.l.b16 %v11725
    %v12392 = vunpack.c.h.b16 %v11725
    %v12393 = vunpack.c.l.b16 %v11726
    %v12394 = vunpack.c.h.b16 %v11726
    %v12395 = vunpack.c.l.b16 %v11727
    %v12396 = vunpack.c.h.b16 %v11727
    %v12397 = vunpack.c.l.b16 %v11728
    %v12398 = vunpack.c.h.b16 %v11728
    %v12399 = vunpack.c.l.b16 %v11729
    %v12400 = vunpack.c.h.b16 %v11729
    %v12401 = vunpack.c.l.b16 %v11730
    %v12402 = vunpack.c.h.b16 %v11730
    %v12403 = vunpack.c.l.b16 %v11731
    %v12404 = vunpack.c.h.b16 %v11731
    %v12405 = vunpack.c.l.b16 %v11732
    %v12406 = vunpack.c.h.b16 %v11732
    %v12407 = vunpack.c.l.b16 %v11733
    %v12408 = vunpack.c.h.b16 %v11733
    %v12409 = vunpack.c.l.b16 %v11734
    %v12410 = vunpack.c.h.b16 %v11734
    %v12411 = vunpack.c.l.b16 %v11735
    %v12412 = vunpack.c.h.b16 %v11735
    %v12413 = vunpack.c.l.b16 %v11736
    %v12414 = vunpack.c.h.b16 %v11736
    %v12415 = vunpack.c.l.b16 %v11737
    %v12416 = vunpack.c.h.b16 %v11737
    %v12417 = vunpack.c.l.b16 %v11738
    %v12418 = vunpack.c.h.b16 %v11738
    %v12419 = vunpack.c.l.b16 %v11739
    %v12420 = vunpack.c.h.b16 %v11739
    %v12421 = vunpack.c.l.b16 %v11740
    %v12422 = vunpack.c.h.b16 %v11740
    %v12423 = vunpack.c.l.b16 %v11741
    %v12424 = vunpack.c.h.b16 %v11741
    %v12425 = vunpack.c.l.b16 %v11742
    %v12426 = vunpack.c.h.b16 %v11742
    %v12427 = vunpack.c.l.b16 %v11743
    %v12428 = vunpack.c.h.b16 %v11743
    %v12429 = vunpack.c.l.b16 %v11744
    %v12430 = vunpack.c.h.b16 %v11744
    %v12431 = vunpack.c.l.b16 %v11745
    %v12432 = vunpack.c.h.b16 %v11745
    %v12433 = vunpack.c.l.b16 %v11746
    %v12434 = vunpack.c.h.b16 %v11746
    %v12435 = vunpack.c.l.b16 %v11747
    %v12436 = vunpack.c.h.b16 %v11747
    %v12437 = vunpack.c.l.b16 %v11748
    %v12438 = vunpack.c.h.b16 %v11748
    %v12439 = vunpack.c.l.b16 %v11749
    %v12440 = vunpack.c.h.b16 %v11749
    %v12441 = vunpack.c.l.b16 %v11750
    %v12442 = vunpack.c.h.b16 %v11750
    %v12443 = vunpack.c.l.b16 %v11751
    %v12444 = vunpack.c.h.b16 %v11751
    %v12445 = vunpack.c.l.b16 %v11752
    %v12446 = vunpack.c.h.b16 %v11752
    %v12447 = vunpack.c.l.b16 %v11753
    %v12448 = vunpack.c.h.b16 %v11753
    %v12449 = vunpack.c.l.b16 %v11754
    %v12450 = vunpack.c.h.b16 %v11754
    %v12451 = vunpack.c.l.b16 %v11755
    %v12452 = vunpack.c.h.b16 %v11755
    %v12453 = vunpack.c.l.b16 %v11756
    %v12454 = vunpack.c.h.b16 %v11756
    %v12455 = vunpack.c.l.b16 %v11757
    %v12456 = vunpack.c.h.b16 %v11757
    %v12457 = vunpack.c.l.b16 %v11758
    %v12458 = vunpack.c.h.b16 %v11758
    %v12459 = vunpack.c.l.b16 %v11759
    %v12460 = vunpack.c.h.b16 %v11759
    %v12461 = vunpack.c.l.b16 %v11760
    %v12462 = vunpack.c.h.b16 %v11760
    %v12463 = vunpack.c.l.b16 %v11761
    %v12464 = vunpack.c.h.b16 %v11761
    %v12465 = vunpack.c.l.b16 %v11762
    %v12466 = vunpack.c.h.b16 %v11762
    %v12467 = vunpack.c.l.b16 %v11763
    %v12468 = vunpack.c.h.b16 %v11763
    %v12469 = vunpack.c.l.b16 %v11764
    %v12470 = vunpack.c.h.b16 %v11764
    %v12471 = vunpack.c.l.b16 %v11765
    %v12472 = vunpack.c.h.b16 %v11765
    %v12473 = vunpack.c.l.b16 %v11766
    %v12474 = vunpack.c.h.b16 %v11766
    %v12475 = vunpack.c.l.b16 %v11767
    %v12476 = vunpack.c.h.b16 %v11767
    %v12477 = vunpack.c.l.b16 %v11768
    %v12478 = vunpack.c.h.b16 %v11768
    %v12479 = vunpack.c.l.b16 %v11769
    %v12480 = vunpack.c.h.b16 %v11769
    %v12481 = vunpack.c.l.b16 %v11770
    %v12482 = vunpack.c.h.b16 %v11770
    %v12483 = vunpack.c.l.b16 %v11771
    %v12484 = vunpack.c.h.b16 %v11771
    %v12485 = vunpack.c.l.b16 %v11772
    %v12486 = vunpack.c.h.b16 %v11772
    %v12487 = vunpack.c.l.b16 %v11773
    %v12488 = vunpack.c.h.b16 %v11773
    %v12489 = vunpack.c.l.b16 %v11774
    %v12490 = vunpack.c.h.b16 %v11774
    %v12491 = vunpack.c.l.b16 %v11775
    %v12492 = vunpack.c.h.b16 %v11775
    %v12493 = vunpack.c.l.b16 %v11776
    %v12494 = vunpack.c.h.b16 %v11776
    %v12495 = vunpack.c.l.b16 %v11777
    %v12496 = vunpack.c.h.b16 %v11777
    %v12497 = vunpack.c.l.b16 %v11778
    %v12498 = vunpack.c.h.b16 %v11778
    %v12499 = vunpack.c.l.b16 %v11779
    %v12500 = vunpack.c.h.b16 %v11779
    %v12501 = vunpack.c.l.b16 %v11780
    %v12502 = vunpack.c.h.b16 %v11780
    %v12503 = vunpack.c.l.b16 %v11781
    %v12504 = vunpack.c.h.b16 %v11781
    %v12505 = vunpack.c.l.b16 %v11782
    %v12506 = vunpack.c.h.b16 %v11782
    %v12507 = vunpack.c.l.b16 %v11783
    %v12508 = vunpack.c.h.b16 %v11783
    %v12509 = vunpack.c.l.b16 %v11784
    %v12510 = vunpack.c.h.b16 %v11784
    %v12511 = vunpack.c.l.b16 %v11785
    %v12512 = vunpack.c.h.b16 %v11785
    %v12513 = vunpack.c.l.b16 %v11786
    %v12514 = vunpack.c.h.b16 %v11786
    %v12515 = vunpack.c.l.b16 %v11787
    %v12516 = vunpack.c.h.b16 %v11787
    %v12517 = vunpack.c.l.b16 %v11788
    %v12518 = vunpack.c.h.b16 %v11788
    %v12519 = vunpack.c.l.b16 %v11789
    %v12520 = vunpack.c.h.b16 %v11789
    %v12521 = vunpack.c.l.b16 %v11790
    %v12522 = vunpack.c.h.b16 %v11790
    %v12523 = vunpack.c.l.b16 %v11791
    %v12524 = vunpack.c.h.b16 %v11791
    %v12525 = vunpack.c.l.b16 %v11792
    %v12526 = vunpack.c.h.b16 %v11792
    %v12527 = vunpack.c.l.b16 %v11793
    %v12528 = vunpack.c.h.b16 %v11793
    %v12529 = vunpack.c.l.b16 %v11794
    %v12530 = vunpack.c.h.b16 %v11794
    %v12531 = vunpack.c.l.b16 %v11795
    %v12532 = vunpack.c.h.b16 %v11795
    %v12533 = vunpack.c.l.b16 %v11796
    %v12534 = vunpack.c.h.b16 %v11796
    %v12535 = vunpack.c.l.b16 %v11797
    %v12536 = vunpack.c.h.b16 %v11797
    %v12537 = vunpack.c.l.b16 %v11798
    %v12538 = vunpack.c.h.b16 %v11798
    %v12539 = vunpack.c.l.b16 %v11799
    %v12540 = vunpack.c.h.b16 %v11799
    %v12541 = vunpack.c.l.b16 %v11800
    %v12542 = vunpack.c.h.b16 %v11800
    %v12543 = vunpack.c.l.b16 %v11801
    %v12544 = vunpack.c.h.b16 %v11801
    %v12545 = vunpack.c.l.b16 %v11802
    %v12546 = vunpack.c.h.b16 %v11802
    %v12547 = vunpack.c.l.b16 %v11803
    %v12548 = vunpack.c.h.b16 %v11803
    %v12549 = vunpack.c.l.b16 %v11804
    %v12550 = vunpack.c.h.b16 %v11804
    %v12551 = vunpack.c.l.b16 %v11805
    %v12552 = vunpack.c.h.b16 %v11805
    %v12553 = vunpack.c.l.b16 %v11806
    %v12554 = vunpack.c.h.b16 %v11806
    %v12555 = vunpack.c.l.b16 %v11807
    %v12556 = vunpack.c.h.b16 %v11807
    %v12557 = vunpack.c.l.b16 %v11808
    %v12558 = vunpack.c.h.b16 %v11808
    %v12559 = vunpack.c.l.b16 %v11809
    %v12560 = vunpack.c.h.b16 %v11809
    %v12561 = vunpack.c.l.b16 %v11810
    %v12562 = vunpack.c.h.b16 %v11810
    %v12563 = vunpack.c.l.b16 %v11811
    %v12564 = vunpack.c.h.b16 %v11811
    %v12565 = vunpack.c.l.b16 %v11812
    %v12566 = vunpack.c.h.b16 %v11812
    %v12567 = vunpack.c.l.b16 %v11813
    %v12568 = vunpack.c.h.b16 %v11813
    %v12569 = vunpack.c.l.b16 %v11814
    %v12570 = vunpack.c.h.b16 %v11814
    %v12571 = vunpack.c.l.b16 %v11815
    %v12572 = vunpack.c.h.b16 %v11815
    %v12573 = vunpack.c.l.b16 %v11816
    %v12574 = vunpack.c.h.b16 %v11816
    %v12575 = vunpack.c.l.b16 %v11817
    %v12576 = vunpack.c.h.b16 %v11817
    %v12577 = vunpack.c.l.b16 %v11818
    %v12578 = vunpack.c.h.b16 %v11818
    %v12579 = vunpack.c.l.b16 %v11819
    %v12580 = vunpack.c.h.b16 %v11819
    %v12581 = vunpack.c.l.b16 %v11820
    %v12582 = vunpack.c.h.b16 %v11820
    %v12583 = vunpack.c.l.b16 %v11821
    %v12584 = vunpack.c.h.b16 %v11821
    %v12585 = vunpack.c.l.b16 %v11822
    %v12586 = vunpack.c.h.b16 %v11822
    %v12587 = vunpack.c.l.b16 %v11823
    %v12588 = vunpack.c.h.b16 %v11823
    %v12589 = vunpack.c.l.b16 %v11824
    %v12590 = vunpack.c.h.b16 %v11824
    %v12591 = vunpack.c.l.b16 %v11825
    %v12592 = vunpack.c.h.b16 %v11825
    %v12593 = vunpack.c.l.b16 %v11826
    %v12594 = vunpack.c.h.b16 %v11826
    %v12595 = vunpack.c.l.b16 %v11827
    %v12596 = vunpack.c.h.b16 %v11827
    %v12597 = vunpack.c.l.b16 %v11828
    %v12598 = vunpack.c.h.b16 %v11828
    %v12599 = vunpack.c.l.b16 %v11829
    %v12600 = vunpack.c.h.b16 %v11829
    %v12601 = vunpack.c.l.b16 %v11830
    %v12602 = vunpack.c.h.b16 %v11830
    %v12603 = vunpack.c.l.b16 %v11831
    %v12604 = vunpack.c.h.b16 %v11831
    %v12605 = vunpack.c.l.b16 %v11832
    %v12606 = vunpack.c.h.b16 %v11832
    %v12607 = vunpack.c.l.b16 %v11833
    %v12608 = vunpack.c.h.b16 %v11833
    %v12609 = vunpack.c.l.b16 %v11834
    %v12610 = vunpack.c.h.b16 %v11834
    %v12611 = vunpack.c.l.b16 %v11835
    %v12612 = vunpack.c.h.b16 %v11835
    %v12613 = vunpack.c.l.b16 %v11836
    %v12614 = vunpack.c.h.b16 %v11836
    %v12615 = vunpack.c.l.b16 %v11837
    %v12616 = vunpack.c.h.b16 %v11837
    %v12617 = vunpack.c.l.b16 %v11838
    %v12618 = vunpack.c.h.b16 %v11838
    %v12619 = vunpack.c.l.b16 %v11839
    %v12620 = vunpack.c.h.b16 %v11839
    %v12621 = vunpack.c.l.b16 %v11840
    %v12622 = vunpack.c.h.b16 %v11840
    %v12623 = vunpack.c.l.b16 %v11841
    %v12624 = vunpack.c.h.b16 %v11841
    %v12625 = vunpack.c.l.b16 %v11842
    %v12626 = vunpack.c.h.b16 %v11842
    %v12627 = vunpack.c.l.b16 %v11843
    %v12628 = vunpack.c.h.b16 %v11843
    %v12629 = vunpack.c.l.b16 %v11844
    %v12630 = vunpack.c.h.b16 %v11844
    %v12631 = vunpack.c.l.b16 %v11845
    %v12632 = vunpack.c.h.b16 %v11845
    %v12633 = vunpack.c.l.b16 %v11846
    %v12634 = vunpack.c.h.b16 %v11846
    %v12635 = vunpack.c.l.b16 %v11847
    %v12636 = vunpack.c.h.b16 %v11847
    %v12637 = vunpack.c.l.b16 %v11848
    %v12638 = vunpack.c.h.b16 %v11848
    %v12639 = vpack.c.b16 %v12131, %v12127
    %v12640 = vpack.c.b16 %v12132, %v12128
    %v12641 = vpack.c.b16 %v12133, %v12129
    %v12642 = vpack.c.b16 %v12134, %v12130
    %v12643 = vpack.c.b16 %v12139, %v12135
    %v12644 = vpack.c.b16 %v12140, %v12136
    %v12645 = vpack.c.b16 %v12141, %v12137
    %v12646 = vpack.c.b16 %v12142, %v12138
    %v12647 = vpack.c.b16 %v12147, %v12143
    %v12648 = vpack.c.b16 %v12148, %v12144
    %v12649 = vpack.c.b16 %v12149, %v12145
    %v12650 = vpack.c.b16 %v12150, %v12146
    %v12651 = vpack.c.b16 %v12155, %v12151
    %v12652 = vpack.c.b16 %v12156, %v12152
    %v12653 = vpack.c.b16 %v12157, %v12153
    %v12654 = vpack.c.b16 %v12158, %v12154
    %v12655 = vpack.c.b16 %v12163, %v12159
    %v12656 = vpack.c.b16 %v12164, %v12160
    %v12657 = vpack.c.b16 %v12165, %v12161
    %v12658 = vpack.c.b16 %v12166, %v12162
    %v12659 = vpack.c.b16 %v12171, %v12167
    %v12660 = vpack.c.b16 %v12172, %v12168
    %v12661 = vpack.c.b16 %v12173, %v12169
    %v12662 = vpack.c.b16 %v12174, %v12170
    %v12663 = vpack.c.b16 %v12179, %v12175
    %v12664 = vpack.c.b16 %v12180, %v12176
    %v12665 = vpack.c.b16 %v12181, %v12177
    %v12666 = vpack.c.b16 %v12182, %v12178
    %v12667 = vpack.c.b16 %v12187, %v12183
    %v12668 = vpack.c.b16 %v12188, %v12184
    %v12669 = vpack.c.b16 %v12189, %v12185
    %v12670 = vpack.c.b16 %v12190, %v12186
    %v12671 = vpack.c.b16 %v12195, %v12191
    %v12672 = vpack.c.b16 %v12196, %v12192
    %v12673 = vpack.c.b16 %v12197, %v12193
    %v12674 = vpack.c.b16 %v12198, %v12194
    %v12675 = vpack.c.b16 %v12203, %v12199
    %v12676 = vpack.c.b16 %v12204, %v12200
    %v12677 = vpack.c.b16 %v12205, %v12201
    %v12678 = vpack.c.b16 %v12206, %v12202
    %v12679 = vpack.c.b16 %v12211, %v12207
    %v12680 = vpack.c.b16 %v12212, %v12208
    %v12681 = vpack.c.b16 %v12213, %v12209
    %v12682 = vpack.c.b16 %v12214, %v12210
    %v12683 = vpack.c.b16 %v12219, %v12215
    %v12684 = vpack.c.b16 %v12220, %v12216
    %v12685 = vpack.c.b16 %v12221, %v12217
    %v12686 = vpack.c.b16 %v12222, %v12218
    %v12687 = vpack.c.b16 %v12227, %v12223
    %v12688 = vpack.c.b16 %v12228, %v12224
    %v12689 = vpack.c.b16 %v12229, %v12225
    %v12690 = vpack.c.b16 %v12230, %v12226
    %v12691 = vpack.c.b16 %v12235, %v12231
    %v12692 = vpack.c.b16 %v12236, %v12232
    %v12693 = vpack.c.b16 %v12237, %v12233
    %v12694 = vpack.c.b16 %v12238, %v12234
    %v12695 = vpack.c.b16 %v12243, %v12239
    %v12696 = vpack.c.b16 %v12244, %v12240
    %v12697 = vpack.c.b16 %v12245, %v12241
    %v12698 = vpack.c.b16 %v12246, %v12242
    %v12699 = vpack.c.b16 %v12251, %v12247
    %v12700 = vpack.c.b16 %v12252, %v12248
    %v12701 = vpack.c.b16 %v12253, %v12249
    %v12702 = vpack.c.b16 %v12254, %v12250
    %v12703 = vpack.c.b16 %v12259, %v12255
    %v12704 = vpack.c.b16 %v12260, %v12256
    %v12705 = vpack.c.b16 %v12261, %v12257
    %v12706 = vpack.c.b16 %v12262, %v12258
    %v12707 = vpack.c.b16 %v12267, %v12263
    %v12708 = vpack.c.b16 %v12268, %v12264
    %v12709 = vpack.c.b16 %v12269, %v12265
    %v12710 = vpack.c.b16 %v12270, %v12266
    %v12711 = vpack.c.b16 %v12275, %v12271
    %v12712 = vpack.c.b16 %v12276, %v12272
    %v12713 = vpack.c.b16 %v12277, %v12273
    %v12714 = vpack.c.b16 %v12278, %v12274
    %v12715 = vpack.c.b16 %v12283, %v12279
    %v12716 = vpack.c.b16 %v12284, %v12280
    %v12717 = vpack.c.b16 %v12285, %v12281
    %v12718 = vpack.c.b16 %v12286, %v12282
    %v12719 = vpack.c.b16 %v12291, %v12287
    %v12720 = vpack.c.b16 %v12292, %v12288
    %v12721 = vpack.c.b16 %v12293, %v12289
    %v12722 = vpack.c.b16 %v12294, %v12290
    %v12723 = vpack.c.b16 %v12299, %v12295
    %v12724 = vpack.c.b16 %v12300, %v12296
    %v12725 = vpack.c.b16 %v12301, %v12297
    %v12726 = vpack.c.b16 %v12302, %v12298
    %v12727 = vpack.c.b16 %v12307, %v12303
    %v12728 = vpack.c.b16 %v12308, %v12304
    %v12729 = vpack.c.b16 %v12309, %v12305
    %v12730 = vpack.c.b16 %v12310, %v12306
    %v12731 = vpack.c.b16 %v12315, %v12311
    %v12732 = vpack.c.b16 %v12316, %v12312
    %v12733 = vpack.c.b16 %v12317, %v12313
    %v12734 = vpack.c.b16 %v12318, %v12314
    %v12735 = vpack.c.b16 %v12323, %v12319
    %v12736 = vpack.c.b16 %v12324, %v12320
    %v12737 = vpack.c.b16 %v12325, %v12321
    %v12738 = vpack.c.b16 %v12326, %v12322
    %v12739 = vpack.c.b16 %v12331, %v12327
    %v12740 = vpack.c.b16 %v12332, %v12328
    %v12741 = vpack.c.b16 %v12333, %v12329
    %v12742 = vpack.c.b16 %v12334, %v12330
    %v12743 = vpack.c.b16 %v12339, %v12335
    %v12744 = vpack.c.b16 %v12340, %v12336
    %v12745 = vpack.c.b16 %v12341, %v12337
    %v12746 = vpack.c.b16 %v12342, %v12338
    %v12747 = vpack.c.b16 %v12347, %v12343
    %v12748 = vpack.c.b16 %v12348, %v12344
    %v12749 = vpack.c.b16 %v12349, %v12345
    %v12750 = vpack.c.b16 %v12350, %v12346
    %v12751 = vpack.c.b16 %v12355, %v12351
    %v12752 = vpack.c.b16 %v12356, %v12352
    %v12753 = vpack.c.b16 %v12357, %v12353
    %v12754 = vpack.c.b16 %v12358, %v12354
    %v12755 = vpack.c.b16 %v12363, %v12359
    %v12756 = vpack.c.b16 %v12364, %v12360
    %v12757 = vpack.c.b16 %v12365, %v12361
    %v12758 = vpack.c.b16 %v12366, %v12362
    %v12759 = vpack.c.b16 %v12371, %v12367
    %v12760 = vpack.c.b16 %v12372, %v12368
    %v12761 = vpack.c.b16 %v12373, %v12369
    %v12762 = vpack.c.b16 %v12374, %v12370
    %v12763 = vpack.c.b16 %v12379, %v12375
    %v12764 = vpack.c.b16 %v12380, %v12376
    %v12765 = vpack.c.b16 %v12381, %v12377
    %v12766 = vpack.c.b16 %v12382, %v12378
    %v12767 = vpack.c.b16 %v12387, %v12383
    %v12768 = vpack.c.b16 %v12388, %v12384
    %v12769 = vpack.c.b16 %v12389, %v12385
    %v12770 = vpack.c.b16 %v12390, %v12386
    %v12771 = vpack.c.b16 %v12395, %v12391
    %v12772 = vpack.c.b16 %v12396, %v12392
    %v12773 = vpack.c.b16 %v12397, %v12393
    %v12774 = vpack.c.b16 %v12398, %v12394
    %v12775 = vpack.c.b16 %v12403, %v12399
    %v12776 = vpack.c.b16 %v12404, %v12400
    %v12777 = vpack.c.b16 %v12405, %v12401
    %v12778 = vpack.c.b16 %v12406, %v12402
    %v12779 = vpack.c.b16 %v12411, %v12407
    %v12780 = vpack.c.b16 %v12412, %v12408
    %v12781 = vpack.c.b16 %v12413, %v12409
    %v12782 = vpack.c.b16 %v12414, %v12410
    %v12783 = vpack.c.b16 %v12419, %v12415
    %v12784 = vpack.c.b16 %v12420, %v12416
    %v12785 = vpack.c.b16 %v12421, %v12417
    %v12786 = vpack.c.b16 %v12422, %v12418
    %v12787 = vpack.c.b16 %v12427, %v12423
    %v12788 = vpack.c.b16 %v12428, %v12424
    %v12789 = vpack.c.b16 %v12429, %v12425
    %v12790 = vpack.c.b16 %v12430, %v12426
    %v12791 = vpack.c.b16 %v12435, %v12431
    %v12792 = vpack.c.b16 %v12436, %v12432
    %v12793 = vpack.c.b16 %v12437, %v12433
    %v12794 = vpack.c.b16 %v12438, %v12434
    %v12795 = vpack.c.b16 %v12443, %v12439
    %v12796 = vpack.c.b16 %v12444, %v12440
    %v12797 = vpack.c.b16 %v12445, %v12441
    %v12798 = vpack.c.b16 %v12446, %v12442
    %v12799 = vpack.c.b16 %v12451, %v12447
    %v12800 = vpack.c.b16 %v12452, %v12448
    %v12801 = vpack.c.b16 %v12453, %v12449
    %v12802 = vpack.c.b16 %v12454, %v12450
    %v12803 = vpack.c.b16 %v12459, %v12455
    %v12804 = vpack.c.b16 %v12460, %v12456
    %v12805 = vpack.c.b16 %v12461, %v12457
    %v12806 = vpack.c.b16 %v12462, %v12458
    %v12807 = vpack.c.b16 %v12467, %v12463
    %v12808 = vpack.c.b16 %v12468, %v12464
    %v12809 = vpack.c.b16 %v12469, %v12465
    %v12810 = vpack.c.b16 %v12470, %v12466
    %v12811 = vpack.c.b16 %v12475, %v12471
    %v12812 = vpack.c.b16 %v12476, %v12472
    %v12813 = vpack.c.b16 %v12477, %v12473
    %v12814 = vpack.c.b16 %v12478, %v12474
    %v12815 = vpack.c.b16 %v12483, %v12479
    %v12816 = vpack.c.b16 %v12484, %v12480
    %v12817 = vpack.c.b16 %v12485, %v12481
    %v12818 = vpack.c.b16 %v12486, %v12482
    %v12819 = vpack.c.b16 %v12491, %v12487
    %v12820 = vpack.c.b16 %v12492, %v12488
    %v12821 = vpack.c.b16 %v12493, %v12489
    %v12822 = vpack.c.b16 %v12494, %v12490
    %v12823 = vpack.c.b16 %v12499, %v12495
    %v12824 = vpack.c.b16 %v12500, %v12496
    %v12825 = vpack.c.b16 %v12501, %v12497
    %v12826 = vpack.c.b16 %v12502, %v12498
    %v12827 = vpack.c.b16 %v12507, %v12503
    %v12828 = vpack.c.b16 %v12508, %v12504
    %v12829 = vpack.c.b16 %v12509, %v12505
    %v12830 = vpack.c.b16 %v12510, %v12506
    %v12831 = vpack.c.b16 %v12515, %v12511
    %v12832 = vpack.c.b16 %v12516, %v12512
    %v12833 = vpack.c.b16 %v12517, %v12513
    %v12834 = vpack.c.b16 %v12518, %v12514
    %v12835 = vpack.c.b16 %v12523, %v12519
    %v12836 = vpack.c.b16 %v12524, %v12520
    %v12837 = vpack.c.b16 %v12525, %v12521
    %v12838 = vpack.c.b16 %v12526, %v12522
    %v12839 = vpack.c.b16 %v12531, %v12527
    %v12840 = vpack.c.b16 %v12532, %v12528
    %v12841 = vpack.c.b16 %v12533, %v12529
    %v12842 = vpack.c.b16 %v12534, %v12530
    %v12843 = vpack.c.b16 %v12539, %v12535
    %v12844 = vpack.c.b16 %v12540, %v12536
    %v12845 = vpack.c.b16 %v12541, %v12537
    %v12846 = vpack.c.b16 %v12542, %v12538
    %v12847 = vpack.c.b16 %v12547, %v12543
    %v12848 = vpack.c.b16 %v12548, %v12544
    %v12849 = vpack.c.b16 %v12549, %v12545
    %v12850 = vpack.c.b16 %v12550, %v12546
    %v12851 = vpack.c.b16 %v12555, %v12551
    %v12852 = vpack.c.b16 %v12556, %v12552
    %v12853 = vpack.c.b16 %v12557, %v12553
    %v12854 = vpack.c.b16 %v12558, %v12554
    %v12855 = vpack.c.b16 %v12563, %v12559
    %v12856 = vpack.c.b16 %v12564, %v12560
    %v12857 = vpack.c.b16 %v12565, %v12561
    %v12858 = vpack.c.b16 %v12566, %v12562
    %v12859 = vpack.c.b16 %v12571, %v12567
    %v12860 = vpack.c.b16 %v12572, %v12568
    %v12861 = vpack.c.b16 %v12573, %v12569
    %v12862 = vpack.c.b16 %v12574, %v12570
    %v12863 = vpack.c.b16 %v12579, %v12575
    %v12864 = vpack.c.b16 %v12580, %v12576
    %v12865 = vpack.c.b16 %v12581, %v12577
    %v12866 = vpack.c.b16 %v12582, %v12578
    %v12867 = vpack.c.b16 %v12587, %v12583
    %v12868 = vpack.c.b16 %v12588, %v12584
    %v12869 = vpack.c.b16 %v12589, %v12585
    %v12870 = vpack.c.b16 %v12590, %v12586
    %v12871 = vpack.c.b16 %v12595, %v12591
    %v12872 = vpack.c.b16 %v12596, %v12592
    %v12873 = vpack.c.b16 %v12597, %v12593
    %v12874 = vpack.c.b16 %v12598, %v12594
    %v12875 = vpack.c.b16 %v12603, %v12599
    %v12876 = vpack.c.b16 %v12604, %v12600
    %v12877 = vpack.c.b16 %v12605, %v12601
    %v12878 = vpack.c.b16 %v12606, %v12602
    %v12879 = vpack.c.b16 %v12611, %v12607
    %v12880 = vpack.c.b16 %v12612, %v12608
    %v12881 = vpack.c.b16 %v12613, %v12609
    %v12882 = vpack.c.b16 %v12614, %v12610
    %v12883 = vpack.c.b16 %v12619, %v12615
    %v12884 = vpack.c.b16 %v12620, %v12616
    %v12885 = vpack.c.b16 %v12621, %v12617
    %v12886 = vpack.c.b16 %v12622, %v12618
    %v12887 = vpack.c.b16 %v12627, %v12623
    %v12888 = vpack.c.b16 %v12628, %v12624
    %v12889 = vpack.c.b16 %v12629, %v12625
    %v12890 = vpack.c.b16 %v12630, %v12626
    %v12891 = vpack.c.b16 %v12635, %v12631
    %v12892 = vpack.c.b16 %v12636, %v12632
    %v12893 = vpack.c.b16 %v12637, %v12633
    %v12894 = vpack.c.b16 %v12638, %v12634
    %13151 = vmatprep.subr.bf16.mxu0 %v12668
    %13152 = vmatpush1.bf16.msra.mxu0 %v12667
    %13153 = vmatprep.subr.bf16.mxu0 %v12664
    %13154 = vmatpush1.bf16.msra.mxu0 %v12663
    %13155 = vmatprep.subr.bf16.mxu0 %v12660
    %13156 = vmatpush1.bf16.msra.mxu0 %v12659
    %13157 = vmatprep.subr.bf16.mxu0 %v12656
    %13158 = vmatpush1.bf16.msra.mxu0 %v12655
    %13159 = vmatprep.subr.bf16.mxu0 %v12652
    %13160 = vmatpush1.bf16.msra.mxu0 %v12651
    %13161 = vmatprep.subr.bf16.mxu0 %v12648
    %13162 = vmatpush1.bf16.msra.mxu0 %v12647
    %13163 = vmatprep.subr.bf16.mxu0 %v12644
    %13164 = vmatpush1.bf16.msra.mxu0 %v12643
    %13165 = vmatprep.subr.bf16.mxu0 %v12640
    %13166 = vmatpush1.bf16.msra.mxu0 %v12639
    %13167 = vmatprep.subr.bf16.mxu0 %v12700
    %13168 = vmatpush2.bf16.msra.mxu0 %v12699
    %13169 = vmatprep.subr.bf16.mxu0 %v12696
    %13170 = vmatpush2.bf16.msra.mxu0 %v12695
    %13171 = vmatprep.subr.bf16.mxu0 %v12692
    %13172 = vmatpush2.bf16.msra.mxu0 %v12691
    %13173 = vmatprep.subr.bf16.mxu0 %v12688
    %13174 = vmatpush2.bf16.msra.mxu0 %v12687
    %13175 = vmatprep.subr.bf16.mxu0 %v12684
    %13176 = vmatpush2.bf16.msra.mxu0 %v12683
    %13177 = vmatprep.subr.bf16.mxu0 %v12680
    %13178 = vmatpush2.bf16.msra.mxu0 %v12679
    %13179 = vmatprep.subr.bf16.mxu0 %v12676
    %13180 = vmatpush2.bf16.msra.mxu0 %v12675
    %13181 = vmatprep.subr.bf16.mxu0 %v12672
    %13182 = vmatpush2.bf16.msra.mxu0 %v12671
    %13183 = vmatprep.mubr.bf16.mxu0 %v11494
    %13184 = vmatmul.mubr.bf16.gmra.mxu0 %v11493
    %v13185 = vpop.f32.mrf.mxu0
    %v13186 = vadd.f32 %v11854, %v13185
    %v13187 = vpop.f32.mrf.mxu0
    %v13188 = vadd.f32 %v11858, %v13187
    %v13189 = vpop.f32.mrf.mxu0
    %v13190 = vpop.f32.mrf.mxu0
    %13191 = vdwg.mxu0
    %13192 = vmatprep.subr.bf16.mxu0 %v12732
    %13193 = vmatpush1.bf16.msra.mxu0 %v12731
    %13194 = vmatprep.subr.bf16.mxu0 %v12728
    %13195 = vmatpush1.bf16.msra.mxu0 %v12727
    %13196 = vmatprep.subr.bf16.mxu0 %v12724
    %13197 = vmatpush1.bf16.msra.mxu0 %v12723
    %13198 = vmatprep.subr.bf16.mxu0 %v12720
    %13199 = vmatpush1.bf16.msra.mxu0 %v12719
    %13200 = vmatprep.subr.bf16.mxu0 %v12716
    %13201 = vmatpush1.bf16.msra.mxu0 %v12715
    %13202 = vmatprep.subr.bf16.mxu0 %v12712
    %13203 = vmatpush1.bf16.msra.mxu0 %v12711
    %13204 = vmatprep.subr.bf16.mxu0 %v12708
    %13205 = vmatpush1.bf16.msra.mxu0 %v12707
    %13206 = vmatprep.subr.bf16.mxu0 %v12704
    %13207 = vmatpush1.bf16.msra.mxu0 %v12703
    %13208 = vmatprep.subr.bf16.mxu0 %v12764
    %13209 = vmatpush2.bf16.msra.mxu0 %v12763
    %13210 = vmatprep.subr.bf16.mxu0 %v12760
    %13211 = vmatpush2.bf16.msra.mxu0 %v12759
    %13212 = vmatprep.subr.bf16.mxu0 %v12756
    %13213 = vmatpush2.bf16.msra.mxu0 %v12755
    %13214 = vmatprep.subr.bf16.mxu0 %v12752
    %13215 = vmatpush2.bf16.msra.mxu0 %v12751
    %13216 = vmatprep.subr.bf16.mxu0 %v12748
    %13217 = vmatpush2.bf16.msra.mxu0 %v12747
    %13218 = vmatprep.subr.bf16.mxu0 %v12744
    %13219 = vmatpush2.bf16.msra.mxu0 %v12743
    %13220 = vmatprep.subr.bf16.mxu0 %v12740
    %13221 = vmatpush2.bf16.msra.mxu0 %v12739
    %13222 = vmatprep.subr.bf16.mxu0 %v12736
    %13223 = vmatpush2.bf16.msra.mxu0 %v12735
    %13224 = vmatprep.mubr.bf16.mxu0 %v11526
    %13225 = vmatmul.mubr.bf16.gmra.mxu0 %v11525
    %v13226 = vpop.f32.mrf.mxu0
    %v13227 = vadd.f32 %v13186, %v13226
    %v13228 = vpop.f32.mrf.mxu0
    %v13229 = vadd.f32 %v13188, %v13228
    %v13230 = vpop.f32.mrf.mxu0
    %v13231 = vpop.f32.mrf.mxu0
    %13232 = vdwg.mxu0
    %13233 = vmatprep.subr.bf16.mxu0 %v12796
    %13234 = vmatpush1.bf16.msra.mxu0 %v12795
    %13235 = vmatprep.subr.bf16.mxu0 %v12792
    %13236 = vmatpush1.bf16.msra.mxu0 %v12791
    %13237 = vmatprep.subr.bf16.mxu0 %v12788
    %13238 = vmatpush1.bf16.msra.mxu0 %v12787
    %13239 = vmatprep.subr.bf16.mxu0 %v12784
    %13240 = vmatpush1.bf16.msra.mxu0 %v12783
    %13241 = vmatprep.subr.bf16.mxu0 %v12780
    %13242 = vmatpush1.bf16.msra.mxu0 %v12779
    %13243 = vmatprep.subr.bf16.mxu0 %v12776
    %13244 = vmatpush1.bf16.msra.mxu0 %v12775
    %13245 = vmatprep.subr.bf16.mxu0 %v12772
    %13246 = vmatpush1.bf16.msra.mxu0 %v12771
    %13247 = vmatprep.subr.bf16.mxu0 %v12768
    %13248 = vmatpush1.bf16.msra.mxu0 %v12767
    %13249 = vmatprep.subr.bf16.mxu0 %v12828
    %13250 = vmatpush2.bf16.msra.mxu0 %v12827
    %13251 = vmatprep.subr.bf16.mxu0 %v12824
    %13252 = vmatpush2.bf16.msra.mxu0 %v12823
    %13253 = vmatprep.subr.bf16.mxu0 %v12820
    %13254 = vmatpush2.bf16.msra.mxu0 %v12819
    %13255 = vmatprep.subr.bf16.mxu0 %v12816
    %13256 = vmatpush2.bf16.msra.mxu0 %v12815
    %13257 = vmatprep.subr.bf16.mxu0 %v12812
    %13258 = vmatpush2.bf16.msra.mxu0 %v12811
    %13259 = vmatprep.subr.bf16.mxu0 %v12808
    %13260 = vmatpush2.bf16.msra.mxu0 %v12807
    %13261 = vmatprep.subr.bf16.mxu0 %v12804
    %13262 = vmatpush2.bf16.msra.mxu0 %v12803
    %13263 = vmatprep.subr.bf16.mxu0 %v12800
    %13264 = vmatpush2.bf16.msra.mxu0 %v12799
    %13265 = vmatprep.mubr.bf16.mxu0 %v11558
    %13266 = vmatmul.mubr.bf16.gmra.mxu0 %v11557
    %v13267 = vpop.f32.mrf.mxu0
    %v13268 = vadd.f32 %v13227, %v13267
    %v13269 = vpop.f32.mrf.mxu0
    %v13270 = vadd.f32 %v13229, %v13269
    %v13271 = vpop.f32.mrf.mxu0
    %v13272 = vpop.f32.mrf.mxu0
    %13273 = vdwg.mxu0
    %13274 = vmatprep.subr.bf16.mxu0 %v12860
    %13275 = vmatpush1.bf16.msra.mxu0 %v12859
    %13276 = vmatprep.subr.bf16.mxu0 %v12856
    %13277 = vmatpush1.bf16.msra.mxu0 %v12855
    %13278 = vmatprep.subr.bf16.mxu0 %v12852
    %13279 = vmatpush1.bf16.msra.mxu0 %v12851
    %13280 = vmatprep.subr.bf16.mxu0 %v12848
    %13281 = vmatpush1.bf16.msra.mxu0 %v12847
    %13282 = vmatprep.subr.bf16.mxu0 %v12844
    %13283 = vmatpush1.bf16.msra.mxu0 %v12843
    %13284 = vmatprep.subr.bf16.mxu0 %v12840
    %13285 = vmatpush1.bf16.msra.mxu0 %v12839
    %13286 = vmatprep.subr.bf16.mxu0 %v12836
    %13287 = vmatpush1.bf16.msra.mxu0 %v12835
    %13288 = vmatprep.subr.bf16.mxu0 %v12832
    %13289 = vmatpush1.bf16.msra.mxu0 %v12831
    %13290 = vmatprep.subr.bf16.mxu0 %v12892
    %13291 = vmatpush2.bf16.msra.mxu0 %v12891
    %13292 = vmatprep.subr.bf16.mxu0 %v12888
    %13293 = vmatpush2.bf16.msra.mxu0 %v12887
    %13294 = vmatprep.subr.bf16.mxu0 %v12884
    %13295 = vmatpush2.bf16.msra.mxu0 %v12883
    %13296 = vmatprep.subr.bf16.mxu0 %v12880
    %13297 = vmatpush2.bf16.msra.mxu0 %v12879
    %13298 = vmatprep.subr.bf16.mxu0 %v12876
    %13299 = vmatpush2.bf16.msra.mxu0 %v12875
    %13300 = vmatprep.subr.bf16.mxu0 %v12872
    %13301 = vmatpush2.bf16.msra.mxu0 %v12871
    %13302 = vmatprep.subr.bf16.mxu0 %v12868
    %13303 = vmatpush2.bf16.msra.mxu0 %v12867
    %13304 = vmatprep.subr.bf16.mxu0 %v12864
    %13305 = vmatpush2.bf16.msra.mxu0 %v12863
    %13306 = vmatprep.mubr.bf16.mxu0 %v11590
    %13307 = vmatmul.mubr.bf16.gmra.mxu0 %v11589
    %v13308 = vpop.f32.mrf.mxu0
    %v13309 = vadd.f32 %v13268, %v13308
    %v13310 = vpop.f32.mrf.mxu0
    %v13311 = vadd.f32 %v13270, %v13310
    %v13312 = vpop.f32.mrf.mxu0
    %v13313 = vpop.f32.mrf.mxu0
    %13314 = vdwg.mxu0
    %13315 = vmatprep.subr.bf16.mxu0 %v12670
    %13316 = vmatpush1.bf16.msra.mxu0 %v12669
    %13317 = vmatprep.subr.bf16.mxu0 %v12666
    %13318 = vmatpush1.bf16.msra.mxu0 %v12665
    %13319 = vmatprep.subr.bf16.mxu0 %v12662
    %13320 = vmatpush1.bf16.msra.mxu0 %v12661
    %13321 = vmatprep.subr.bf16.mxu0 %v12658
    %13322 = vmatpush1.bf16.msra.mxu0 %v12657
    %13323 = vmatprep.subr.bf16.mxu0 %v12654
    %13324 = vmatpush1.bf16.msra.mxu0 %v12653
    %13325 = vmatprep.subr.bf16.mxu0 %v12650
    %13326 = vmatpush1.bf16.msra.mxu0 %v12649
    %13327 = vmatprep.subr.bf16.mxu0 %v12646
    %13328 = vmatpush1.bf16.msra.mxu0 %v12645
    %13329 = vmatprep.subr.bf16.mxu0 %v12642
    %13330 = vmatpush1.bf16.msra.mxu0 %v12641
    %13331 = vmatprep.subr.bf16.mxu0 %v12702
    %13332 = vmatpush2.bf16.msra.mxu0 %v12701
    %13333 = vmatprep.subr.bf16.mxu0 %v12698
    %13334 = vmatpush2.bf16.msra.mxu0 %v12697
    %13335 = vmatprep.subr.bf16.mxu0 %v12694
    %13336 = vmatpush2.bf16.msra.mxu0 %v12693
    %13337 = vmatprep.subr.bf16.mxu0 %v12690
    %13338 = vmatpush2.bf16.msra.mxu0 %v12689
    %13339 = vmatprep.subr.bf16.mxu0 %v12686
    %13340 = vmatpush2.bf16.msra.mxu0 %v12685
    %13341 = vmatprep.subr.bf16.mxu0 %v12682
    %13342 = vmatpush2.bf16.msra.mxu0 %v12681
    %13343 = vmatprep.subr.bf16.mxu0 %v12678
    %13344 = vmatpush2.bf16.msra.mxu0 %v12677
    %13345 = vmatprep.subr.bf16.mxu0 %v12674
    %13346 = vmatpush2.bf16.msra.mxu0 %v12673
    %13347 = vmatprep.mubr.bf16.mxu0 %v11494
    %13348 = vmatmul.mubr.bf16.gmra.mxu0 %v11493
    %v13349 = vpop.f32.mrf.mxu0
    %v13350 = vadd.f32 %v11862, %v13349
    %v13351 = vpop.f32.mrf.mxu0
    %v13352 = vadd.f32 %v11866, %v13351
    %v13353 = vpop.f32.mrf.mxu0
    %v13354 = vpop.f32.mrf.mxu0
    %13355 = vdwg.mxu0
    %13356 = vmatprep.subr.bf16.mxu0 %v12734
    %13357 = vmatpush1.bf16.msra.mxu0 %v12733
    %13358 = vmatprep.subr.bf16.mxu0 %v12730
    %13359 = vmatpush1.bf16.msra.mxu0 %v12729
    %13360 = vmatprep.subr.bf16.mxu0 %v12726
    %13361 = vmatpush1.bf16.msra.mxu0 %v12725
    %13362 = vmatprep.subr.bf16.mxu0 %v12722
    %13363 = vmatpush1.bf16.msra.mxu0 %v12721
    %13364 = vmatprep.subr.bf16.mxu0 %v12718
    %13365 = vmatpush1.bf16.msra.mxu0 %v12717
    %13366 = vmatprep.subr.bf16.mxu0 %v12714
    %13367 = vmatpush1.bf16.msra.mxu0 %v12713
    %13368 = vmatprep.subr.bf16.mxu0 %v12710
    %13369 = vmatpush1.bf16.msra.mxu0 %v12709
    %13370 = vmatprep.subr.bf16.mxu0 %v12706
    %13371 = vmatpush1.bf16.msra.mxu0 %v12705
    %13372 = vmatprep.subr.bf16.mxu0 %v12766
    %13373 = vmatpush2.bf16.msra.mxu0 %v12765
    %13374 = vmatprep.subr.bf16.mxu0 %v12762
    %13375 = vmatpush2.bf16.msra.mxu0 %v12761
    %13376 = vmatprep.subr.bf16.mxu0 %v12758
    %13377 = vmatpush2.bf16.msra.mxu0 %v12757
    %13378 = vmatprep.subr.bf16.mxu0 %v12754
    %13379 = vmatpush2.bf16.msra.mxu0 %v12753
    %13380 = vmatprep.subr.bf16.mxu0 %v12750
    %13381 = vmatpush2.bf16.msra.mxu0 %v12749
    %13382 = vmatprep.subr.bf16.mxu0 %v12746
    %13383 = vmatpush2.bf16.msra.mxu0 %v12745
    %13384 = vmatprep.subr.bf16.mxu0 %v12742
    %13385 = vmatpush2.bf16.msra.mxu0 %v12741
    %13386 = vmatprep.subr.bf16.mxu0 %v12738
    %13387 = vmatpush2.bf16.msra.mxu0 %v12737
    %13388 = vmatprep.mubr.bf16.mxu0 %v11526
    %13389 = vmatmul.mubr.bf16.gmra.mxu0 %v11525
    %v13390 = vpop.f32.mrf.mxu0
    %v13391 = vadd.f32 %v13350, %v13390
    %v13392 = vpop.f32.mrf.mxu0
    %v13393 = vadd.f32 %v13352, %v13392
    %v13394 = vpop.f32.mrf.mxu0
    %v13395 = vpop.f32.mrf.mxu0
    %13396 = vdwg.mxu0
    %13397 = vmatprep.subr.bf16.mxu0 %v12798
    %13398 = vmatpush1.bf16.msra.mxu0 %v12797
    %13399 = vmatprep.subr.bf16.mxu0 %v12794
    %13400 = vmatpush1.bf16.msra.mxu0 %v12793
    %13401 = vmatprep.subr.bf16.mxu0 %v12790
    %13402 = vmatpush1.bf16.msra.mxu0 %v12789
    %13403 = vmatprep.subr.bf16.mxu0 %v12786
    %13404 = vmatpush1.bf16.msra.mxu0 %v12785
    %13405 = vmatprep.subr.bf16.mxu0 %v12782
    %13406 = vmatpush1.bf16.msra.mxu0 %v12781
    %13407 = vmatprep.subr.bf16.mxu0 %v12778
    %13408 = vmatpush1.bf16.msra.mxu0 %v12777
    %13409 = vmatprep.subr.bf16.mxu0 %v12774
    %13410 = vmatpush1.bf16.msra.mxu0 %v12773
    %13411 = vmatprep.subr.bf16.mxu0 %v12770
    %13412 = vmatpush1.bf16.msra.mxu0 %v12769
    %13413 = vmatprep.subr.bf16.mxu0 %v12830
    %13414 = vmatpush2.bf16.msra.mxu0 %v12829
    %13415 = vmatprep.subr.bf16.mxu0 %v12826
    %13416 = vmatpush2.bf16.msra.mxu0 %v12825
    %13417 = vmatprep.subr.bf16.mxu0 %v12822
    %13418 = vmatpush2.bf16.msra.mxu0 %v12821
    %13419 = vmatprep.subr.bf16.mxu0 %v12818
    %13420 = vmatpush2.bf16.msra.mxu0 %v12817
    %13421 = vmatprep.subr.bf16.mxu0 %v12814
    %13422 = vmatpush2.bf16.msra.mxu0 %v12813
    %13423 = vmatprep.subr.bf16.mxu0 %v12810
    %13424 = vmatpush2.bf16.msra.mxu0 %v12809
    %13425 = vmatprep.subr.bf16.mxu0 %v12806
    %13426 = vmatpush2.bf16.msra.mxu0 %v12805
    %13427 = vmatprep.subr.bf16.mxu0 %v12802
    %13428 = vmatpush2.bf16.msra.mxu0 %v12801
    %13429 = vmatprep.mubr.bf16.mxu0 %v11558
    %13430 = vmatmul.mubr.bf16.gmra.mxu0 %v11557
    %v13431 = vpop.f32.mrf.mxu0
    %v13432 = vadd.f32 %v13391, %v13431
    %v13433 = vpop.f32.mrf.mxu0
    %v13434 = vadd.f32 %v13393, %v13433
    %v13435 = vpop.f32.mrf.mxu0
    %v13436 = vpop.f32.mrf.mxu0
    %13437 = vdwg.mxu0
    %13438 = vmatprep.subr.bf16.mxu0 %v12862
    %13439 = vmatpush1.bf16.msra.mxu0 %v12861
    %13440 = vmatprep.subr.bf16.mxu0 %v12858
    %13441 = vmatpush1.bf16.msra.mxu0 %v12857
    %13442 = vmatprep.subr.bf16.mxu0 %v12854
    %13443 = vmatpush1.bf16.msra.mxu0 %v12853
    %13444 = vmatprep.subr.bf16.mxu0 %v12850
    %13445 = vmatpush1.bf16.msra.mxu0 %v12849
    %13446 = vmatprep.subr.bf16.mxu0 %v12846
    %13447 = vmatpush1.bf16.msra.mxu0 %v12845
    %13448 = vmatprep.subr.bf16.mxu0 %v12842
    %13449 = vmatpush1.bf16.msra.mxu0 %v12841
    %13450 = vmatprep.subr.bf16.mxu0 %v12838
    %13451 = vmatpush1.bf16.msra.mxu0 %v12837
    %13452 = vmatprep.subr.bf16.mxu0 %v12834
    %13453 = vmatpush1.bf16.msra.mxu0 %v12833
    %13454 = vmatprep.subr.bf16.mxu0 %v12894
    %13455 = vmatpush2.bf16.msra.mxu0 %v12893
    %13456 = vmatprep.subr.bf16.mxu0 %v12890
    %13457 = vmatpush2.bf16.msra.mxu0 %v12889
    %13458 = vmatprep.subr.bf16.mxu0 %v12886
    %13459 = vmatpush2.bf16.msra.mxu0 %v12885
    %13460 = vmatprep.subr.bf16.mxu0 %v12882
    %13461 = vmatpush2.bf16.msra.mxu0 %v12881
    %13462 = vmatprep.subr.bf16.mxu0 %v12878
    %13463 = vmatpush2.bf16.msra.mxu0 %v12877
    %13464 = vmatprep.subr.bf16.mxu0 %v12874
    %13465 = vmatpush2.bf16.msra.mxu0 %v12873
    %13466 = vmatprep.subr.bf16.mxu0 %v12870
    %13467 = vmatpush2.bf16.msra.mxu0 %v12869
    %13468 = vmatprep.subr.bf16.mxu0 %v12866
    %13469 = vmatpush2.bf16.msra.mxu0 %v12865
    %13470 = vmatprep.mubr.bf16.mxu0 %v11590
    %13471 = vmatmul.mubr.bf16.gmra.mxu0 %v11589
    %v13472 = vpop.f32.mrf.mxu0
    %v13473 = vadd.f32 %v13432, %v13472
    %v13474 = vpop.f32.mrf.mxu0
    %v13475 = vadd.f32 %v13434, %v13474
    %v13476 = vpop.f32.mrf.mxu0
    %v13477 = vpop.f32.mrf.mxu0
    %13478 = vdwg.mxu0
    %v13479 = vmax.f32 %v13309, 0.0
    %v13480 = vmax.f32 %v13311, 0.0
    %v13481 = vmax.f32 %v13473, 0.0
    %v13482 = vmax.f32 %v13475, 0.0
    %v13483 = vpack.c.bf16 %v13479, %v13479
    %v13484 = vpack.c.bf16 %v13480, %v13480
    %v13485 = vpack.c.bf16 %v13481, %v13481
    %v13486 = vpack.c.bf16 %v13482, %v13482
    %v13487 = vld [vmem:[#allocation12] sm:$0xf]
    %v13488 = vld [vmem:[#allocation12 + $0x4] sm:$0xf]
    %v13489 = vld [vmem:[#allocation12 + $0x8] sm:$0xf]
    %v13490 = vld [vmem:[#allocation12 + $0xc] sm:$0xf]
    %v13491 = vld [vmem:[#allocation12 + $0x10] sm:$0xf]
    %v13492 = vld [vmem:[#allocation12 + $0x14] sm:$0xf]
    %v13493 = vld [vmem:[#allocation12 + $0x18] sm:$0xf]
    %v13494 = vld [vmem:[#allocation12 + $0x1c] sm:$0xf]
    %v13495 = vld [vmem:[#allocation12 + $0x20] sm:$0xf]
    %v13496 = vld [vmem:[#allocation12 + $0x24] sm:$0xf]
    %v13497 = vld [vmem:[#allocation12 + $0x28] sm:$0xf]
    %v13498 = vld [vmem:[#allocation12 + $0x2c] sm:$0xf]
    %v13499 = vld [vmem:[#allocation12 + $0x30] sm:$0xf]
    %v13500 = vld [vmem:[#allocation12 + $0x34] sm:$0xf]
    %v13501 = vld [vmem:[#allocation12 + $0x38] sm:$0xf]
    %v13502 = vld [vmem:[#allocation12 + $0x3c] sm:$0xf]
    %v13503 = vld [vmem:[#allocation12 + $0x40] sm:$0xf]
    %v13504 = vld [vmem:[#allocation12 + $0x44] sm:$0xf]
    %v13505 = vld [vmem:[#allocation12 + $0x48] sm:$0xf]
    %v13506 = vld [vmem:[#allocation12 + $0x4c] sm:$0xf]
    %v13507 = vld [vmem:[#allocation12 + $0x50] sm:$0xf]
    %v13508 = vld [vmem:[#allocation12 + $0x54] sm:$0xf]
    %v13509 = vld [vmem:[#allocation12 + $0x58] sm:$0xf]
    %v13510 = vld [vmem:[#allocation12 + $0x5c] sm:$0xf]
    %v13511 = vld [vmem:[#allocation12 + $0x60] sm:$0xf]
    %v13512 = vld [vmem:[#allocation12 + $0x64] sm:$0xf]
    %v13513 = vld [vmem:[#allocation12 + $0x68] sm:$0xf]
    %v13514 = vld [vmem:[#allocation12 + $0x6c] sm:$0xf]
    %v13515 = vld [vmem:[#allocation12 + $0x70] sm:$0xf]
    %v13516 = vld [vmem:[#allocation12 + $0x74] sm:$0xf]
    %v13517 = vld [vmem:[#allocation12 + $0x78] sm:$0xf]
    %v13518 = vld [vmem:[#allocation12 + $0x7c] sm:$0xf]
    %v13519 = vld [vmem:[#allocation12 + $0x80] sm:$0xf]
    %v13520 = vld [vmem:[#allocation12 + $0x84] sm:$0xf]
    %v13521 = vld [vmem:[#allocation12 + $0x88] sm:$0xf]
    %v13522 = vld [vmem:[#allocation12 + $0x8c] sm:$0xf]
    %v13523 = vld [vmem:[#allocation12 + $0x90] sm:$0xf]
    %v13524 = vld [vmem:[#allocation12 + $0x94] sm:$0xf]
    %v13525 = vld [vmem:[#allocation12 + $0x98] sm:$0xf]
    %v13526 = vld [vmem:[#allocation12 + $0x9c] sm:$0xf]
    %v13527 = vld [vmem:[#allocation12 + $0xa0] sm:$0xf]
    %v13528 = vld [vmem:[#allocation12 + $0xa4] sm:$0xf]
    %v13529 = vld [vmem:[#allocation12 + $0xa8] sm:$0xf]
    %v13530 = vld [vmem:[#allocation12 + $0xac] sm:$0xf]
    %v13531 = vld [vmem:[#allocation12 + $0xb0] sm:$0xf]
    %v13532 = vld [vmem:[#allocation12 + $0xb4] sm:$0xf]
    %v13533 = vld [vmem:[#allocation12 + $0xb8] sm:$0xf]
    %v13534 = vld [vmem:[#allocation12 + $0xbc] sm:$0xf]
    %v13535 = vld [vmem:[#allocation12 + $0xc0] sm:$0xf]
    %v13536 = vld [vmem:[#allocation12 + $0xc4] sm:$0xf]
    %v13537 = vld [vmem:[#allocation12 + $0xc8] sm:$0xf]
    %v13538 = vld [vmem:[#allocation12 + $0xcc] sm:$0xf]
    %v13539 = vld [vmem:[#allocation12 + $0xd0] sm:$0xf]
    %v13540 = vld [vmem:[#allocation12 + $0xd4] sm:$0xf]
    %v13541 = vld [vmem:[#allocation12 + $0xd8] sm:$0xf]
    %v13542 = vld [vmem:[#allocation12 + $0xdc] sm:$0xf]
    %v13543 = vld [vmem:[#allocation12 + $0xe0] sm:$0xf]
    %v13544 = vld [vmem:[#allocation12 + $0xe4] sm:$0xf]
    %v13545 = vld [vmem:[#allocation12 + $0xe8] sm:$0xf]
    %v13546 = vld [vmem:[#allocation12 + $0xec] sm:$0xf]
    %v13547 = vld [vmem:[#allocation12 + $0xf0] sm:$0xf]
    %v13548 = vld [vmem:[#allocation12 + $0xf4] sm:$0xf]
    %v13549 = vld [vmem:[#allocation12 + $0xf8] sm:$0xf]
    %v13550 = vld [vmem:[#allocation12 + $0xfc] sm:$0xf]
    %v13551 = vld [vmem:[#allocation13] sm:$0x1]
    %v13553 = vlaneseq
    %v13554 = vshrl.u32 %v13553, 7
    %v13555 = vsub.s32 0, %v13554
    %v13556 = vrot.slane %v13551, %v13555
    %v13622 = vunpack.c.l.b16 %v13487
    %v13623 = vunpack.c.l.b16 %v13488
    %v13624 = vunpack.c.l.b16 %v13489
    %v13625 = vunpack.c.l.b16 %v13490
    %v13626 = vunpack.c.l.b16 %v13491
    %v13627 = vunpack.c.l.b16 %v13492
    %v13628 = vunpack.c.l.b16 %v13493
    %v13629 = vunpack.c.l.b16 %v13494
    %v13630 = vunpack.c.l.b16 %v13495
    %v13631 = vunpack.c.l.b16 %v13496
    %v13632 = vunpack.c.l.b16 %v13497
    %v13633 = vunpack.c.l.b16 %v13498
    %v13634 = vunpack.c.l.b16 %v13499
    %v13635 = vunpack.c.l.b16 %v13500
    %v13636 = vunpack.c.l.b16 %v13501
    %v13637 = vunpack.c.l.b16 %v13502
    %v13638 = vunpack.c.l.b16 %v13503
    %v13639 = vunpack.c.l.b16 %v13504
    %v13640 = vunpack.c.l.b16 %v13505
    %v13641 = vunpack.c.l.b16 %v13506
    %v13642 = vunpack.c.l.b16 %v13507
    %v13643 = vunpack.c.l.b16 %v13508
    %v13644 = vunpack.c.l.b16 %v13509
    %v13645 = vunpack.c.l.b16 %v13510
    %v13646 = vunpack.c.l.b16 %v13511
    %v13647 = vunpack.c.l.b16 %v13512
    %v13648 = vunpack.c.l.b16 %v13513
    %v13649 = vunpack.c.l.b16 %v13514
    %v13650 = vunpack.c.l.b16 %v13515
    %v13651 = vunpack.c.l.b16 %v13516
    %v13652 = vunpack.c.l.b16 %v13517
    %v13653 = vunpack.c.l.b16 %v13518
    %v13654 = vunpack.c.l.b16 %v13519
    %v13655 = vunpack.c.l.b16 %v13520
    %v13656 = vunpack.c.l.b16 %v13521
    %v13657 = vunpack.c.l.b16 %v13522
    %v13658 = vunpack.c.l.b16 %v13523
    %v13659 = vunpack.c.l.b16 %v13524
    %v13660 = vunpack.c.l.b16 %v13525
    %v13661 = vunpack.c.l.b16 %v13526
    %v13662 = vunpack.c.l.b16 %v13527
    %v13663 = vunpack.c.l.b16 %v13528
    %v13664 = vunpack.c.l.b16 %v13529
    %v13665 = vunpack.c.l.b16 %v13530
    %v13666 = vunpack.c.l.b16 %v13531
    %v13667 = vunpack.c.l.b16 %v13532
    %v13668 = vunpack.c.l.b16 %v13533
    %v13669 = vunpack.c.l.b16 %v13534
    %v13670 = vunpack.c.l.b16 %v13535
    %v13671 = vunpack.c.l.b16 %v13536
    %v13672 = vunpack.c.l.b16 %v13537
    %v13673 = vunpack.c.l.b16 %v13538
    %v13674 = vunpack.c.l.b16 %v13539
    %v13675 = vunpack.c.l.b16 %v13540
    %v13676 = vunpack.c.l.b16 %v13541
    %v13677 = vunpack.c.l.b16 %v13542
    %v13678 = vunpack.c.l.b16 %v13543
    %v13679 = vunpack.c.l.b16 %v13544
    %v13680 = vunpack.c.l.b16 %v13545
    %v13681 = vunpack.c.l.b16 %v13546
    %v13682 = vunpack.c.l.b16 %v13547
    %v13683 = vunpack.c.l.b16 %v13548
    %v13684 = vunpack.c.l.b16 %v13549
    %v13685 = vunpack.c.l.b16 %v13550
    %v13686 = vpack.c.b16 %v13623, %v13622
    %v13687 = vpack.c.b16 %v13625, %v13624
    %v13688 = vpack.c.b16 %v13627, %v13626
    %v13689 = vpack.c.b16 %v13629, %v13628
    %v13690 = vpack.c.b16 %v13631, %v13630
    %v13691 = vpack.c.b16 %v13633, %v13632
    %v13692 = vpack.c.b16 %v13635, %v13634
    %v13693 = vpack.c.b16 %v13637, %v13636
    %v13694 = vpack.c.b16 %v13639, %v13638
    %v13695 = vpack.c.b16 %v13641, %v13640
    %v13696 = vpack.c.b16 %v13643, %v13642
    %v13697 = vpack.c.b16 %v13645, %v13644
    %v13698 = vpack.c.b16 %v13647, %v13646
    %v13699 = vpack.c.b16 %v13649, %v13648
    %v13700 = vpack.c.b16 %v13651, %v13650
    %v13701 = vpack.c.b16 %v13653, %v13652
    %v13702 = vpack.c.b16 %v13655, %v13654
    %v13703 = vpack.c.b16 %v13657, %v13656
    %v13704 = vpack.c.b16 %v13659, %v13658
    %v13705 = vpack.c.b16 %v13661, %v13660
    %v13706 = vpack.c.b16 %v13663, %v13662
    %v13707 = vpack.c.b16 %v13665, %v13664
    %v13708 = vpack.c.b16 %v13667, %v13666
    %v13709 = vpack.c.b16 %v13669, %v13668
    %v13710 = vpack.c.b16 %v13671, %v13670
    %v13711 = vpack.c.b16 %v13673, %v13672
    %v13712 = vpack.c.b16 %v13675, %v13674
    %v13713 = vpack.c.b16 %v13677, %v13676
    %v13714 = vpack.c.b16 %v13679, %v13678
    %v13715 = vpack.c.b16 %v13681, %v13680
    %v13716 = vpack.c.b16 %v13683, %v13682
    %v13717 = vpack.c.b16 %v13685, %v13684
    %13750 = vmatprep.subr.bf16.mxu0 0
    %13751 = vmatpush1.bf16.msra.mxu0 %v13693
    %13752 = vmatprep.subr.bf16.mxu0 0
    %13753 = vmatpush1.bf16.msra.mxu0 %v13692
    %13754 = vmatprep.subr.bf16.mxu0 0
    %13755 = vmatpush1.bf16.msra.mxu0 %v13691
    %13756 = vmatprep.subr.bf16.mxu0 0
    %13757 = vmatpush1.bf16.msra.mxu0 %v13690
    %13758 = vmatprep.subr.bf16.mxu0 0
    %13759 = vmatpush1.bf16.msra.mxu0 %v13689
    %13760 = vmatprep.subr.bf16.mxu0 0
    %13761 = vmatpush1.bf16.msra.mxu0 %v13688
    %13762 = vmatprep.subr.bf16.mxu0 0
    %13763 = vmatpush1.bf16.msra.mxu0 %v13687
    %13764 = vmatprep.subr.bf16.mxu0 0
    %13765 = vmatpush1.bf16.msra.mxu0 %v13686
    %13766 = vmatprep.subr.bf16.mxu0 0
    %13767 = vmatpush2.bf16.msra.mxu0 %v13701
    %13768 = vmatprep.subr.bf16.mxu0 0
    %13769 = vmatpush2.bf16.msra.mxu0 %v13700
    %13770 = vmatprep.subr.bf16.mxu0 0
    %13771 = vmatpush2.bf16.msra.mxu0 %v13699
    %13772 = vmatprep.subr.bf16.mxu0 0
    %13773 = vmatpush2.bf16.msra.mxu0 %v13698
    %13774 = vmatprep.subr.bf16.mxu0 0
    %13775 = vmatpush2.bf16.msra.mxu0 %v13697
    %13776 = vmatprep.subr.bf16.mxu0 0
    %13777 = vmatpush2.bf16.msra.mxu0 %v13696
    %13778 = vmatprep.subr.bf16.mxu0 0
    %13779 = vmatpush2.bf16.msra.mxu0 %v13695
    %13780 = vmatprep.subr.bf16.mxu0 0
    %13781 = vmatpush2.bf16.msra.mxu0 %v13694
    %13782 = vmatprep.mubr.bf16.mxu0 %v13484
    %13783 = vmatmul.mubr.bf16.gmra.mxu0 %v13483
    %v13784 = vpop.f32.mrf.mxu0
    %v13785 = vadd.f32 %v13556, %v13784
    %v13786 = vpop.f32.mrf.mxu0
    %v13787 = vpop.f32.mrf.mxu0
    %v13788 = vpop.f32.mrf.mxu0
    %13789 = vdwg.mxu0
    %13790 = vmatprep.subr.bf16.mxu0 0
    %13791 = vmatpush1.bf16.msra.mxu0 %v13709
    %13792 = vmatprep.subr.bf16.mxu0 0
    %13793 = vmatpush1.bf16.msra.mxu0 %v13708
    %13794 = vmatprep.subr.bf16.mxu0 0
    %13795 = vmatpush1.bf16.msra.mxu0 %v13707
    %13796 = vmatprep.subr.bf16.mxu0 0
    %13797 = vmatpush1.bf16.msra.mxu0 %v13706
    %13798 = vmatprep.subr.bf16.mxu0 0
    %13799 = vmatpush1.bf16.msra.mxu0 %v13705
    %13800 = vmatprep.subr.bf16.mxu0 0
    %13801 = vmatpush1.bf16.msra.mxu0 %v13704
    %13802 = vmatprep.subr.bf16.mxu0 0
    %13803 = vmatpush1.bf16.msra.mxu0 %v13703
    %13804 = vmatprep.subr.bf16.mxu0 0
    %13805 = vmatpush1.bf16.msra.mxu0 %v13702
    %13806 = vmatprep.subr.bf16.mxu0 0
    %13807 = vmatpush2.bf16.msra.mxu0 %v13717
    %13808 = vmatprep.subr.bf16.mxu0 0
    %13809 = vmatpush2.bf16.msra.mxu0 %v13716
    %13810 = vmatprep.subr.bf16.mxu0 0
    %13811 = vmatpush2.bf16.msra.mxu0 %v13715
    %13812 = vmatprep.subr.bf16.mxu0 0
    %13813 = vmatpush2.bf16.msra.mxu0 %v13714
    %13814 = vmatprep.subr.bf16.mxu0 0
    %13815 = vmatpush2.bf16.msra.mxu0 %v13713
    %13816 = vmatprep.subr.bf16.mxu0 0
    %13817 = vmatpush2.bf16.msra.mxu0 %v13712
    %13818 = vmatprep.subr.bf16.mxu0 0
    %13819 = vmatpush2.bf16.msra.mxu0 %v13711
    %13820 = vmatprep.subr.bf16.mxu0 0
    %13821 = vmatpush2.bf16.msra.mxu0 %v13710
    %13822 = vmatprep.mubr.bf16.mxu0 %v13486
    %13823 = vmatmul.mubr.bf16.gmra.mxu0 %v13485
    %v13824 = vpop.f32.mrf.mxu0
    %v13825 = vadd.f32 %v13785, %v13824
    %v13826 = vpop.f32.mrf.mxu0
    %v13827 = vpop.f32.mrf.mxu0
    %v13828 = vpop.f32.mrf.mxu0
    %13829 = vdwg.mxu0
    %13830 = vst [vmem:[%s9] sm:$0xff] %v13825
    // Predicated region
    $region70: #{lenet_forward_fn.1} parent=1 // pred_check
      _
    $region71: #{lenet_forward_fn.1} parent=1 // pred_check_branch
      %13832 = sbr.rel (0) target = $region73
    $region72: #{lenet_forward_fn.1} parent=1 // pred_region
      _
    $region73: #{lenet_forward_fn.1} parent=1 // pred_fallthru
      _
    // Predicated region
    $region74: #{lenet_forward_fn.1} parent=1 // pred_check
      _
    $region75: #{lenet_forward_fn.1} parent=1 // pred_check_branch
      %13834 = sbr.rel (0) target = $region77
    $region76: #{lenet_forward_fn.1} parent=1 // pred_region
      _
    $region77: #{lenet_forward_fn.1} parent=1 // pred_fallthru
      _
    %13835 = vsyncpa [#allocation3], 1
    %13836 = vsyncpa [#allocation5], 1
    %13837 = vsyncpa [#allocation8], 1
    %13838 = vsyncpa [#allocation11], 1
    %13839 = vsyncpa [#allocation14], 1

</llo_original>
